<compile_context>
chip_gen: v7x
topology: tpu7x:2x2x1
jax: 0.10.0
libtpu: 0.0.40
codegen_flags: <defaults>
</compile_context>

<pallas_src>
import functools
import jax
import jax.numpy as jnp
from jax.experimental import pallas as pl
from jax.experimental.pallas import tpu as pltpu

# ---------------- problem sizes (module defaults, small batch) ----------------
B = 2              # batch
NF = 4             # num_fields
S = NF + 1         # real sequence length (CLS + fields)
S_PAD = 8          # padded sequence length (sublane aligned)
H = 384            # hidden_dim
NH = 6             # num_attention_heads
HD = H // NH       # head dim = 64
L = 2              # num_hidden_layers
INTER = 4 * H      # intermediate_size
LN_EPS = 1e-12     # BERT layer_norm_eps


# ---------------- in-kernel helpers ----------------
def _layer_norm(x, g, b):
    mu = jnp.mean(x, axis=-1, keepdims=True)
    xc = x - mu
    var = jnp.mean(xc * xc, axis=-1, keepdims=True)
    return xc * jax.lax.rsqrt(var + LN_EPS) * g + b


def _erf(x):
    # Abramowitz & Stegun 7.1.26 rational approximation, |err| < 1.5e-7.
    a1, a2, a3, a4, a5 = 0.254829592, -0.284496736, 1.421413741, -1.453152027, 1.061405429
    p = 0.3275911
    ax = jnp.abs(x)
    t = 1.0 / (1.0 + p * ax)
    poly = ((((a5 * t + a4) * t + a3) * t + a2) * t + a1) * t
    y = 1.0 - poly * jnp.exp(-ax * ax)
    return jnp.where(x >= 0.0, y, -y)


def _gelu_exact(x):
    # BERT uses exact (erf-based) GELU.
    return 0.5 * x * (1.0 + _erf(x * 0.7071067811865476))


def _bf16_dot(lhs_f32, w_bf16_ref_block, bias_f32):
    """bf16 x bf16 matmul with f32 accumulation (native MXU path)."""
    return jnp.dot(lhs_f32.astype(jnp.bfloat16), w_bf16_ref_block,
                   preferred_element_type=jnp.float32) + bias_f32


# ---------------- the Pallas kernel (one grid step == one transformer layer) ----------------
def bert_regressor_kernel(tokens_ref, emb_g_ref, emb_b_ref,
                          qkv_w_ref, qkv_b_ref, ao_w_ref, ao_b_ref,
                          ln1_g_ref, ln1_b_ref,
                          f1_w_ref, f1_b_ref, f2_w_ref, f2_b_ref,
                          ln2_g_ref, ln2_b_ref,
                          reg_w_ref, reg_b_ref,
                          out_ref,
                          x_ref):
    l = pl.program_id(0)

    # ---- layer 0 only: embedding LayerNorm (dropout is eval-mode no-op) ----
    @pl.when(l == 0)
    def _init():
        t = tokens_ref[...].reshape(B * S_PAD, H)
        x_ref[...] = _layer_norm(t, emb_g_ref[...], emb_b_ref[...])

    x = x_ref[...]                                           # [B*S_PAD, H] f32

    # ---- self-attention ----
    # QKV projection: bf16 LHS x bf16 weights, f32 accumulation.
    qkv = _bf16_dot(x, qkv_w_ref[0], qkv_b_ref[0])           # [B*S_PAD, 3H] f32

    scale = 1.0 / (HD ** 0.5)
    key_idx = jax.lax.broadcasted_iota(jnp.int32, (1, 1, S_PAD), 2)
    key_mask = jnp.where(key_idx < S, 0.0, -1e9)             # mask padded key positions

    # Head-pair loop (2*HD = 128 lanes per slab): all qkv column slices start at
    # multiples of 128, so loads are full-lane-width; per-pair contexts are
    # concatenated into one [B*S_PAD, H] value (no VMEM round trip, no masked stores).
    ctx_slabs = []
    for hp in range(NH // 2):
        c0 = hp * 2 * HD                                      # 0, 128, 256
        q_slab = qkv[:, 0 * H + c0: 0 * H + c0 + 2 * HD].reshape(B, S_PAD, 2 * HD)
        k_slab = qkv[:, 1 * H + c0: 1 * H + c0 + 2 * HD].reshape(B, S_PAD, 2 * HD)
        v_slab = qkv[:, 2 * H + c0: 2 * H + c0 + 2 * HD].reshape(B, S_PAD, 2 * HD)
        pair_ctx = []
        for h in range(2):
            d0 = h * HD
            qh = q_slab[:, :, d0:d0 + HD]
            kh = k_slab[:, :, d0:d0 + HD]
            vh = v_slab[:, :, d0:d0 + HD]
            s = jnp.einsum("bqd,bkd->bqk", qh, kh,
                           preferred_element_type=jnp.float32) * scale + key_mask
            s = s - jnp.max(s, axis=-1, keepdims=True)
            e = jnp.exp(s)
            p = e / jnp.sum(e, axis=-1, keepdims=True)
            pair_ctx.append(jnp.einsum("bqk,bkd->bqd", p, vh,
                                       preferred_element_type=jnp.float32))
        ctx_slabs.append(jnp.concatenate(pair_ctx, axis=-1).reshape(B * S_PAD, 2 * HD))
    ctx = jnp.concatenate(ctx_slabs, axis=-1)                 # [B*S_PAD, H]

    attn = _bf16_dot(ctx, ao_w_ref[0], ao_b_ref[0])
    x = _layer_norm(x + attn, ln1_g_ref[0], ln1_b_ref[0])

    # ---- feed-forward ----
    h1 = _gelu_exact(_bf16_dot(x, f1_w_ref[0], f1_b_ref[0]))
    h2 = _bf16_dot(h1, f2_w_ref[0], f2_b_ref[0])
    x = _layer_norm(x + h2, ln2_g_ref[0], ln2_b_ref[0])

    x_ref[...] = x

    # ---- last layer only: CLS readout + Linear(H -> 1) regressor ----
    @pl.when(l == L - 1)
    def _finalize():
        fused = x.reshape(B, S_PAD, H)[:, 0, :]               # CLS row per batch element
        out_ref[...] = (jnp.sum(fused * reg_w_ref[...], axis=-1, keepdims=True)
                        + reg_b_ref[...])


# ---------------- BlockSpec helpers ----------------
def _const_spec(shape):
    nd = len(shape)
    return pl.BlockSpec(shape, lambda l, _n=nd: (0,) * _n)


def _layer_spec(shape):
    nd = len(shape)
    block = (1,) + tuple(shape[1:])
    return pl.BlockSpec(block, lambda l, _n=nd: (l,) + (0,) * (_n - 1))


# ---------------- parameters (deterministic synthetic init) ----------------
def init_params(key):
    ks = iter(jax.random.split(key, 32))
    nrm = lambda shape, std=0.02: std * jax.random.normal(next(ks), shape, dtype=jnp.float32)
    bf16 = lambda a: a.astype(jnp.bfloat16)   # big weights stored / DMA'd / MXU-fed in bf16
    p = {}
    p["cls_token"] = jax.random.normal(next(ks), (1, 1, H), dtype=jnp.float32)
    p["field_type_embed"] = nrm((NF, H))
    p["pos_embed"] = nrm((S, H))              # max_position_embeddings = NF + 1
    p["tok_type_embed0"] = nrm((H,))          # token_type_ids all zeros -> row 0
    p["emb_ln_g"] = jnp.ones((1, H), jnp.float32)
    p["emb_ln_b"] = jnp.zeros((1, H), jnp.float32)
    p["qkv_w"] = bf16(nrm((L, H, 3 * H)))
    p["qkv_b"] = nrm((L, 1, 3 * H))
    p["ao_w"] = bf16(nrm((L, H, H)))
    p["ao_b"] = nrm((L, 1, H))
    p["ln1_g"] = jnp.ones((L, 1, H), jnp.float32)
    p["ln1_b"] = jnp.zeros((L, 1, H), jnp.float32)
    p["f1_w"] = bf16(nrm((L, H, INTER)))
    p["f1_b"] = nrm((L, 1, INTER))
    p["f2_w"] = bf16(nrm((L, INTER, H)))
    p["f2_b"] = nrm((L, 1, H))
    p["ln2_g"] = jnp.ones((L, 1, H), jnp.float32)
    p["ln2_b"] = jnp.zeros((L, 1, H), jnp.float32)
    p["reg_w"] = nrm((1, H))
    p["reg_b"] = nrm((1, 1))
    return p


def build_tokens(field_embeddings, p):
    """JAX glue: MetadataFusion token assembly + BertEmbeddings additive terms."""
    enriched = field_embeddings + p["field_type_embed"][None]            # [B, NF, H]
    cls = jnp.broadcast_to(p["cls_token"], (B, 1, H))
    tokens = jnp.concatenate([cls, enriched], axis=1)                    # [B, S, H]
    tokens = tokens + p["pos_embed"][None] + p["tok_type_embed0"][None, None]
    return tokens


# ---------------- wrapper ----------------
@functools.partial(jax.jit)
def metadata_regressor_forward(field_embeddings, params):
    tokens = build_tokens(field_embeddings, params)                      # [B, S, H]
    tokens = jnp.pad(tokens, ((0, 0), (0, S_PAD - S), (0, 0)))           # [B, S_PAD, H]

    args = (
        tokens,
        params["emb_ln_g"], params["emb_ln_b"],
        params["qkv_w"], params["qkv_b"], params["ao_w"], params["ao_b"],
        params["ln1_g"], params["ln1_b"],
        params["f1_w"], params["f1_b"], params["f2_w"], params["f2_b"],
        params["ln2_g"], params["ln2_b"],
        params["reg_w"], params["reg_b"],
    )

    const_names = {0, 1, 2, 15, 16}   # tokens, emb LN, regressor params
    in_specs = [
        _const_spec(a.shape) if i in const_names else _layer_spec(a.shape)
        for i, a in enumerate(args)
    ]

    grid_spec = pltpu.PrefetchScalarGridSpec(
        num_scalar_prefetch=0,
        grid=(L,),
        in_specs=in_specs,
        out_specs=pl.BlockSpec((B, 1), lambda l: (0, 0)),
        scratch_shapes=[
            pltpu.VMEM((B * S_PAD, H), jnp.float32),   # carried activation x
        ],
    )

    out = pl.pallas_call(
        bert_regressor_kernel,
        out_shape=jax.ShapeDtypeStruct((B, 1), jnp.float32),
        grid_spec=grid_spec,
        compiler_params=pltpu.CompilerParams(
            dimension_semantics=("arbitrary",),
            vmem_limit_bytes=16 * 1024 * 1024,   # ~7 MB double-buffered bf16 weights + activations
        ),
    )(*args)
    return out


# ---------------- pure-JAX reference (for correctness check) ----------------
def reference_forward(field_embeddings, p):
    def ln(x, g, b):
        mu = jnp.mean(x, axis=-1, keepdims=True)
        var = jnp.mean((x - mu) ** 2, axis=-1, keepdims=True)
        return (x - mu) * jax.lax.rsqrt(var + LN_EPS) * g + b

    x = build_tokens(field_embeddings, p)                                # [B, S, H]
    x = ln(x, p["emb_ln_g"], p["emb_ln_b"])
    for l in range(L):
        qkv = x @ p["qkv_w"][l].astype(jnp.float32) + p["qkv_b"][l]
        q, k, v = jnp.split(qkv, 3, axis=-1)
        q = q.reshape(B, S, NH, HD).transpose(0, 2, 1, 3)
        k = k.reshape(B, S, NH, HD).transpose(0, 2, 1, 3)
        v = v.reshape(B, S, NH, HD).transpose(0, 2, 1, 3)
        s = jnp.einsum("bhqd,bhkd->bhqk", q, k) / (HD ** 0.5)
        pr = jax.nn.softmax(s, axis=-1)
        ctx = jnp.einsum("bhqk,bhkd->bhqd", pr, v).transpose(0, 2, 1, 3).reshape(B, S, H)
        attn = ctx @ p["ao_w"][l].astype(jnp.float32) + p["ao_b"][l]
        x = ln(x + attn, p["ln1_g"][l], p["ln1_b"][l])
        h1 = jax.nn.gelu(x @ p["f1_w"][l].astype(jnp.float32) + p["f1_b"][l],
                         approximate=False)
        x = ln(x + h1 @ p["f2_w"][l].astype(jnp.float32) + p["f2_b"][l],
               p["ln2_g"][l], p["ln2_b"][l])
    fused = x[:, 0]
    return fused @ p["reg_w"].T + p["reg_b"]


if __name__ == "__main__":
    key = jax.random.PRNGKey(0)
    pkey, xkey = jax.random.split(key)
    params = init_params(pkey)
    field_embeddings = jax.random.normal(xkey, (B, NF, H), dtype=jnp.float32)

    out = metadata_regressor_forward(field_embeddings, params)
    out = jax.block_until_ready(out)

    ref = reference_forward(field_embeddings, params)
    assert out.shape == (B, 1), out.shape
    assert bool(jnp.all(jnp.isfinite(out)))
    # Kernel runs bf16 x bf16 matmuls with f32 accumulation; reference upcasts weights to
    # f32, so allow bf16-level rounding of the activations end-to-end.
    assert bool(jnp.allclose(out, ref, rtol=2e-2, atol=2e-2)), (out, ref)
    print("KERNEL_OK")
</pallas_src>

<mosaic_0001>
module attributes {stable_mosaic.version = 11 : i64} {
  func.func @bert_regressor_kernel(%arg0: i32, %arg1: memref<2x8x384xf32, #tpu.memory_space<vmem>>, %arg2: memref<1x384xf32, #tpu.memory_space<vmem>>, %arg3: memref<1x384xf32, #tpu.memory_space<vmem>>, %arg4: memref<1x384x1152xbf16, #tpu.memory_space<vmem>>, %arg5: memref<1x1x1152xf32, #tpu.memory_space<vmem>>, %arg6: memref<1x384x384xbf16, #tpu.memory_space<vmem>>, %arg7: memref<1x1x384xf32, #tpu.memory_space<vmem>>, %arg8: memref<1x1x384xf32, #tpu.memory_space<vmem>>, %arg9: memref<1x1x384xf32, #tpu.memory_space<vmem>>, %arg10: memref<1x384x1536xbf16, #tpu.memory_space<vmem>>, %arg11: memref<1x1x1536xf32, #tpu.memory_space<vmem>>, %arg12: memref<1x1536x384xbf16, #tpu.memory_space<vmem>>, %arg13: memref<1x1x384xf32, #tpu.memory_space<vmem>>, %arg14: memref<1x1x384xf32, #tpu.memory_space<vmem>>, %arg15: memref<1x1x384xf32, #tpu.memory_space<vmem>>, %arg16: memref<1x384xf32, #tpu.memory_space<vmem>>, %arg17: memref<1x1xf32, #tpu.memory_space<vmem>>, %arg18: memref<2x1xf32, #tpu.memory_space<vmem>>, %arg19: memref<16x384xf32, #tpu.memory_space<vmem>>) attributes {dimension_semantics = [#tpu.dimension_semantics<arbitrary>], iteration_bounds = array<i64: 2>, scalar_prefetch = 0 : i64, scratch_operands = 1 : i64, tpu.core_type = #tpu.core_type<tc>, window_params = [{pipeline_mode = #tpu.pipeline_mode<synchronous>, transform_indices = @transform_0, window_bounds = array<i64: 2, 8, 384>}, {pipeline_mode = #tpu.pipeline_mode<synchronous>, transform_indices = @transform_1, window_bounds = array<i64: 1, 384>}, {pipeline_mode = #tpu.pipeline_mode<synchronous>, transform_indices = @transform_2, window_bounds = array<i64: 1, 384>}, {transform_indices = @transform_3, window_bounds = array<i64: 1, 384, 1152>}, {transform_indices = @transform_4, window_bounds = array<i64: 1, 1, 1152>}, {transform_indices = @transform_5, window_bounds = array<i64: 1, 384, 384>}, {transform_indices = @transform_6, window_bounds = array<i64: 1, 1, 384>}, {transform_indices = @transform_7, window_bounds = array<i64: 1, 1, 384>}, {transform_indices = @transform_8, window_bounds = array<i64: 1, 1, 384>}, {transform_indices = @transform_9, window_bounds = array<i64: 1, 384, 1536>}, {transform_indices = @transform_10, window_bounds = array<i64: 1, 1, 1536>}, {transform_indices = @transform_11, window_bounds = array<i64: 1, 1536, 384>}, {transform_indices = @transform_12, window_bounds = array<i64: 1, 1, 384>}, {transform_indices = @transform_13, window_bounds = array<i64: 1, 1, 384>}, {transform_indices = @transform_14, window_bounds = array<i64: 1, 1, 384>}, {pipeline_mode = #tpu.pipeline_mode<synchronous>, transform_indices = @transform_15, window_bounds = array<i64: 1, 384>}, {pipeline_mode = #tpu.pipeline_mode<synchronous>, transform_indices = @transform_16, window_bounds = array<i64: 1, 1>}, {pipeline_mode = #tpu.pipeline_mode<synchronous>, transform_indices = @transform_17, window_bounds = array<i64: 2, 1>}]} {
    %c0_i32 = arith.constant 0 : i32
    %0 = arith.cmpi eq, %arg0, %c0_i32 : i32
    %1 = arith.extui %0 : i1 to i32
    %c0_i32_0 = arith.constant 0 : i32
    %2 = arith.cmpi ne, %1, %c0_i32_0 : i32
    scf.if %2 {
      %c0_101 = arith.constant 0 : index
      %c0_102 = arith.constant 0 : index
      %c0_103 = arith.constant 0 : index
      %269 = vector.load %arg1[%c0_101, %c0_102, %c0_103] : memref<2x8x384xf32, #tpu.memory_space<vmem>>, vector<2x8x384xf32>
      %270 = vector.shape_cast %269 : vector<2x8x384xf32> to vector<16x384xf32>
      %c0_104 = arith.constant 0 : index
      %c0_105 = arith.constant 0 : index
      %271 = vector.load %arg2[%c0_104, %c0_105] : memref<1x384xf32, #tpu.memory_space<vmem>>, vector<1x384xf32>
      %c0_106 = arith.constant 0 : index
      %c0_107 = arith.constant 0 : index
      %272 = vector.load %arg3[%c0_106, %c0_107] : memref<1x384xf32, #tpu.memory_space<vmem>>, vector<1x384xf32>
      %cst_108 = arith.constant dense<0.000000e+00> : vector<16xf32>
      %273 = vector.multi_reduction <add>, %270, %cst_108 [1] : vector<16x384xf32> to vector<16xf32>
      %274 = vector.shape_cast %273 : vector<16xf32> to vector<16x1xf32>
      %cst_109 = arith.constant 3.840000e+02 : f32
      %275 = vector.broadcast %cst_109 : f32 to vector<16x1xf32>
      %276 = arith.divf %274, %275 : vector<16x1xf32>
      %277 = vector.broadcast %276 : vector<16x1xf32> to vector<16x384xf32>
      %278 = arith.subf %270, %277 : vector<16x384xf32>
      %279 = arith.mulf %278, %278 : vector<16x384xf32>
      %cst_110 = arith.constant dense<0.000000e+00> : vector<16xf32>
      %280 = vector.multi_reduction <add>, %279, %cst_110 [1] : vector<16x384xf32> to vector<16xf32>
      %281 = vector.shape_cast %280 : vector<16xf32> to vector<16x1xf32>
      %cst_111 = arith.constant 3.840000e+02 : f32
      %282 = vector.broadcast %cst_111 : f32 to vector<16x1xf32>
      %283 = arith.divf %281, %282 : vector<16x1xf32>
      %cst_112 = arith.constant 9.99999996E-13 : f32
      %284 = vector.broadcast %cst_112 : f32 to vector<16x1xf32>
      %285 = arith.addf %283, %284 : vector<16x1xf32>
      %286 = math.rsqrt %285 : vector<16x1xf32>
      %287 = vector.broadcast %286 : vector<16x1xf32> to vector<16x384xf32>
      %288 = arith.mulf %278, %287 : vector<16x384xf32>
      %289 = vector.broadcast %271 : vector<1x384xf32> to vector<16x384xf32>
      %290 = arith.mulf %288, %289 : vector<16x384xf32>
      %291 = vector.broadcast %272 : vector<1x384xf32> to vector<16x384xf32>
      %292 = arith.addf %290, %291 : vector<16x384xf32>
      %c0_113 = arith.constant 0 : index
      %c0_114 = arith.constant 0 : index
      %293 = vector.load %arg19[%c0_113, %c0_114] : memref<16x384xf32, #tpu.memory_space<vmem>>, vector<16x384xf32>
      tpu.vector_store %arg19[%c0_113, %c0_114], %292 {strides = array<i32>} : memref<16x384xf32, #tpu.memory_space<vmem>>, vector<16x384xf32>,
    } else {
    }
    %c0 = arith.constant 0 : index
    %c0_1 = arith.constant 0 : index
    %3 = vector.load %arg19[%c0, %c0_1] : memref<16x384xf32, #tpu.memory_space<vmem>>, vector<16x384xf32>
    %c0_2 = arith.constant 0 : index
    %c0_3 = arith.constant 0 : index
    %c0_4 = arith.constant 0 : index
    %4 = vector.load %arg4[%c0_2, %c0_3, %c0_4] : memref<1x384x1152xbf16, #tpu.memory_space<vmem>>, vector<1x384x1152xbf16>
    %5 = vector.shape_cast %4 : vector<1x384x1152xbf16> to vector<384x1152xbf16>
    %c0_5 = arith.constant 0 : index
    %c0_6 = arith.constant 0 : index
    %c0_7 = arith.constant 0 : index
    %6 = vector.load %arg5[%c0_5, %c0_6, %c0_7] : memref<1x1x1152xf32, #tpu.memory_space<vmem>>, vector<1x1x1152xf32>
    %7 = vector.shape_cast %6 : vector<1x1x1152xf32> to vector<1x1152xf32>
    %8 = arith.truncf %3 : vector<16x384xf32> to vector<16x384xbf16>
    %cst = arith.constant dense<0.000000e+00> : vector<16x1152xf32>
    %9 = tpu.matmul %8, %5, %cst {dimension_numbers = #tpu.dot_dimension_numbers<[1], [0], [0], [1], [0, 0, 1, 1], [], []>} : vector<16x384xbf16>, vector<384x1152xbf16>, vector<16x1152xf32> -> vector<16x1152xf32>
    %10 = vector.broadcast %7 : vector<1x1152xf32> to vector<16x1152xf32>
    %11 = arith.addf %9, %10 : vector<16x1152xf32>
    %12 = tpu.iota {dimensions = array<i32: 2>} : vector<1x1x8xi32>
    %c5_i32 = arith.constant 5 : i32
    %13 = vector.broadcast %c5_i32 : i32 to vector<1x1x8xi32>
    %14 = arith.cmpi slt, %12, %13 : vector<1x1x8xi32>
    %cst_8 = arith.constant 0.000000e+00 : f32
    %cst_9 = arith.constant -1.000000e+09 : f32
    %15 = vector.broadcast %cst_8 : f32 to vector<1x1x8xf32>
    %16 = vector.broadcast %cst_9 : f32 to vector<1x1x8xf32>
    %17 = arith.select %14, %15, %16 : vector<1x1x8xi1>, vector<1x1x8xf32>
    %18 = vector.extract_strided_slice %11 {offsets = [0, 0], sizes = [16, 128], strides = [1, 1]} : vector<16x1152xf32> to vector<16x128xf32>
    %19 = vector.shape_cast %18 : vector<16x128xf32> to vector<2x8x128xf32>
    %20 = vector.extract_strided_slice %11 {offsets = [0, 384], sizes = [16, 128], strides = [1, 1]} : vector<16x1152xf32> to vector<16x128xf32>
    %21 = vector.shape_cast %20 : vector<16x128xf32> to vector<2x8x128xf32>
    %22 = vector.extract_strided_slice %11 {offsets = [0, 768], sizes = [16, 128], strides = [1, 1]} : vector<16x1152xf32> to vector<16x128xf32>
    %23 = vector.shape_cast %22 : vector<16x128xf32> to vector<2x8x128xf32>
    %24 = vector.extract_strided_slice %19 {offsets = [0, 0, 0], sizes = [2, 8, 64], strides = [1, 1, 1]} : vector<2x8x128xf32> to vector<2x8x64xf32>
    %25 = vector.extract_strided_slice %21 {offsets = [0, 0, 0], sizes = [2, 8, 64], strides = [1, 1, 1]} : vector<2x8x128xf32> to vector<2x8x64xf32>
    %26 = vector.extract_strided_slice %23 {offsets = [0, 0, 0], sizes = [2, 8, 64], strides = [1, 1, 1]} : vector<2x8x128xf32> to vector<2x8x64xf32>
    "tpu.trace_start"() <{level = 10 : i32, message = "bqd,bkd->bqk"}> : () -> ()
    %cst_10 = arith.constant dense<0.000000e+00> : vector<2x8x8xf32>
    %27 = tpu.matmul %24, %25, %cst_10 {dimension_numbers = #tpu.dot_dimension_numbers<[2], [2], [1], [1], [0, 0, 0, 1, 1, 1], [0], [0]>} : vector<2x8x64xf32>, vector<2x8x64xf32>, vector<2x8x8xf32> -> vector<2x8x8xf32>
    "tpu.trace_stop"() : () -> ()
    %cst_11 = arith.constant 1.250000e-01 : f32
    %28 = vector.broadcast %cst_11 : f32 to vector<2x8x8xf32>
    %29 = arith.mulf %27, %28 : vector<2x8x8xf32>
    %30 = vector.broadcast %17 : vector<1x1x8xf32> to vector<2x8x8xf32>
    %31 = arith.addf %29, %30 : vector<2x8x8xf32>
    %cst_12 = arith.constant dense<0xFF800000> : vector<2x8xf32>
    %32 = vector.multi_reduction <maximumf>, %31, %cst_12 [2] : vector<2x8x8xf32> to vector<2x8xf32>
    %33 = vector.shape_cast %32 : vector<2x8xf32> to vector<2x8x1xf32>
    %34 = vector.broadcast %33 : vector<2x8x1xf32> to vector<2x8x8xf32>
    %35 = arith.subf %31, %34 : vector<2x8x8xf32>
    %36 = math.exp %35 : vector<2x8x8xf32>
    %cst_13 = arith.constant dense<0.000000e+00> : vector<2x8xf32>
    %37 = vector.multi_reduction <add>, %36, %cst_13 [2] : vector<2x8x8xf32> to vector<2x8xf32>
    %38 = vector.shape_cast %37 : vector<2x8xf32> to vector<2x8x1xf32>
    %39 = vector.broadcast %38 : vector<2x8x1xf32> to vector<2x8x8xf32>
    %40 = arith.divf %36, %39 : vector<2x8x8xf32>
    "tpu.trace_start"() <{level = 10 : i32, message = "bqk,bkd->bqd"}> : () -> ()
    %cst_14 = arith.constant dense<0.000000e+00> : vector<2x8x64xf32>
    %41 = tpu.matmul %40, %26, %cst_14 {dimension_numbers = #tpu.dot_dimension_numbers<[2], [1], [1], [2], [0, 0, 0, 1, 1, 2], [0], [0]>} : vector<2x8x8xf32>, vector<2x8x64xf32>, vector<2x8x64xf32> -> vector<2x8x64xf32>
    "tpu.trace_stop"() : () -> ()
    %42 = vector.extract_strided_slice %19 {offsets = [0, 0, 64], sizes = [2, 8, 64], strides = [1, 1, 1]} : vector<2x8x128xf32> to vector<2x8x64xf32>
    %43 = vector.extract_strided_slice %21 {offsets = [0, 0, 64], sizes = [2, 8, 64], strides = [1, 1, 1]} : vector<2x8x128xf32> to vector<2x8x64xf32>
    %44 = vector.extract_strided_slice %23 {offsets = [0, 0, 64], sizes = [2, 8, 64], strides = [1, 1, 1]} : vector<2x8x128xf32> to vector<2x8x64xf32>
    "tpu.trace_start"() <{level = 10 : i32, message = "bqd,bkd->bqk"}> : () -> ()
    %cst_15 = arith.constant dense<0.000000e+00> : vector<2x8x8xf32>
    %45 = tpu.matmul %42, %43, %cst_15 {dimension_numbers = #tpu.dot_dimension_numbers<[2], [2], [1], [1], [0, 0, 0, 1, 1, 1], [0], [0]>} : vector<2x8x64xf32>, vector<2x8x64xf32>, vector<2x8x8xf32> -> vector<2x8x8xf32>
    "tpu.trace_stop"() : () -> ()
    %cst_16 = arith.constant 1.250000e-01 : f32
    %46 = vector.broadcast %cst_16 : f32 to vector<2x8x8xf32>
    %47 = arith.mulf %45, %46 : vector<2x8x8xf32>
    %48 = vector.broadcast %17 : vector<1x1x8xf32> to vector<2x8x8xf32>
    %49 = arith.addf %47, %48 : vector<2x8x8xf32>
    %cst_17 = arith.constant dense<0xFF800000> : vector<2x8xf32>
    %50 = vector.multi_reduction <maximumf>, %49, %cst_17 [2] : vector<2x8x8xf32> to vector<2x8xf32>
    %51 = vector.shape_cast %50 : vector<2x8xf32> to vector<2x8x1xf32>
    %52 = vector.broadcast %51 : vector<2x8x1xf32> to vector<2x8x8xf32>
    %53 = arith.subf %49, %52 : vector<2x8x8xf32>
    %54 = math.exp %53 : vector<2x8x8xf32>
    %cst_18 = arith.constant dense<0.000000e+00> : vector<2x8xf32>
    %55 = vector.multi_reduction <add>, %54, %cst_18 [2] : vector<2x8x8xf32> to vector<2x8xf32>
    %56 = vector.shape_cast %55 : vector<2x8xf32> to vector<2x8x1xf32>
    %57 = vector.broadcast %56 : vector<2x8x1xf32> to vector<2x8x8xf32>
    %58 = arith.divf %54, %57 : vector<2x8x8xf32>
    "tpu.trace_start"() <{level = 10 : i32, message = "bqk,bkd->bqd"}> : () -> ()
    %cst_19 = arith.constant dense<0.000000e+00> : vector<2x8x64xf32>
    %59 = tpu.matmul %58, %44, %cst_19 {dimension_numbers = #tpu.dot_dimension_numbers<[2], [1], [1], [2], [0, 0, 0, 1, 1, 2], [0], [0]>} : vector<2x8x8xf32>, vector<2x8x64xf32>, vector<2x8x64xf32> -> vector<2x8x64xf32>
    "tpu.trace_stop"() : () -> ()
    %60 = tpu.concatenate %41, %59 in 2 : vector<2x8x64xf32>, vector<2x8x64xf32> -> vector<2x8x128xf32>
    %61 = vector.shape_cast %60 : vector<2x8x128xf32> to vector<16x128xf32>
    %62 = vector.extract_strided_slice %11 {offsets = [0, 128], sizes = [16, 128], strides = [1, 1]} : vector<16x1152xf32> to vector<16x128xf32>
    %63 = vector.shape_cast %62 : vector<16x128xf32> to vector<2x8x128xf32>
    %64 = vector.extract_strided_slice %11 {offsets = [0, 512], sizes = [16, 128], strides = [1, 1]} : vector<16x1152xf32> to vector<16x128xf32>
    %65 = vector.shape_cast %64 : vector<16x128xf32> to vector<2x8x128xf32>
    %66 = vector.extract_strided_slice %11 {offsets = [0, 896], sizes = [16, 128], strides = [1, 1]} : vector<16x1152xf32> to vector<16x128xf32>
    %67 = vector.shape_cast %66 : vector<16x128xf32> to vector<2x8x128xf32>
    %68 = vector.extract_strided_slice %63 {offsets = [0, 0, 0], sizes = [2, 8, 64], strides = [1, 1, 1]} : vector<2x8x128xf32> to vector<2x8x64xf32>
    %69 = vector.extract_strided_slice %65 {offsets = [0, 0, 0], sizes = [2, 8, 64], strides = [1, 1, 1]} : vector<2x8x128xf32> to vector<2x8x64xf32>
    %70 = vector.extract_strided_slice %67 {offsets = [0, 0, 0], sizes = [2, 8, 64], strides = [1, 1, 1]} : vector<2x8x128xf32> to vector<2x8x64xf32>
    "tpu.trace_start"() <{level = 10 : i32, message = "bqd,bkd->bqk"}> : () -> ()
    %cst_20 = arith.constant dense<0.000000e+00> : vector<2x8x8xf32>
    %71 = tpu.matmul %68, %69, %cst_20 {dimension_numbers = #tpu.dot_dimension_numbers<[2], [2], [1], [1], [0, 0, 0, 1, 1, 1], [0], [0]>} : vector<2x8x64xf32>, vector<2x8x64xf32>, vector<2x8x8xf32> -> vector<2x8x8xf32>
    "tpu.trace_stop"() : () -> ()
    %cst_21 = arith.constant 1.250000e-01 : f32
    %72 = vector.broadcast %cst_21 : f32 to vector<2x8x8xf32>
    %73 = arith.mulf %71, %72 : vector<2x8x8xf32>
    %74 = vector.broadcast %17 : vector<1x1x8xf32> to vector<2x8x8xf32>
    %75 = arith.addf %73, %74 : vector<2x8x8xf32>
    %cst_22 = arith.constant dense<0xFF800000> : vector<2x8xf32>
    %76 = vector.multi_reduction <maximumf>, %75, %cst_22 [2] : vector<2x8x8xf32> to vector<2x8xf32>
    %77 = vector.shape_cast %76 : vector<2x8xf32> to vector<2x8x1xf32>
    %78 = vector.broadcast %77 : vector<2x8x1xf32> to vector<2x8x8xf32>
    %79 = arith.subf %75, %78 : vector<2x8x8xf32>
    %80 = math.exp %79 : vector<2x8x8xf32>
    %cst_23 = arith.constant dense<0.000000e+00> : vector<2x8xf32>
    %81 = vector.multi_reduction <add>, %80, %cst_23 [2] : vector<2x8x8xf32> to vector<2x8xf32>
    %82 = vector.shape_cast %81 : vector<2x8xf32> to vector<2x8x1xf32>
    %83 = vector.broadcast %82 : vector<2x8x1xf32> to vector<2x8x8xf32>
    %84 = arith.divf %80, %83 : vector<2x8x8xf32>
    "tpu.trace_start"() <{level = 10 : i32, message = "bqk,bkd->bqd"}> : () -> ()
    %cst_24 = arith.constant dense<0.000000e+00> : vector<2x8x64xf32>
    %85 = tpu.matmul %84, %70, %cst_24 {dimension_numbers = #tpu.dot_dimension_numbers<[2], [1], [1], [2], [0, 0, 0, 1, 1, 2], [0], [0]>} : vector<2x8x8xf32>, vector<2x8x64xf32>, vector<2x8x64xf32> -> vector<2x8x64xf32>
    "tpu.trace_stop"() : () -> ()
    %86 = vector.extract_strided_slice %63 {offsets = [0, 0, 64], sizes = [2, 8, 64], strides = [1, 1, 1]} : vector<2x8x128xf32> to vector<2x8x64xf32>
    %87 = vector.extract_strided_slice %65 {offsets = [0, 0, 64], sizes = [2, 8, 64], strides = [1, 1, 1]} : vector<2x8x128xf32> to vector<2x8x64xf32>
    %88 = vector.extract_strided_slice %67 {offsets = [0, 0, 64], sizes = [2, 8, 64], strides = [1, 1, 1]} : vector<2x8x128xf32> to vector<2x8x64xf32>
    "tpu.trace_start"() <{level = 10 : i32, message = "bqd,bkd->bqk"}> : () -> ()
    %cst_25 = arith.constant dense<0.000000e+00> : vector<2x8x8xf32>
    %89 = tpu.matmul %86, %87, %cst_25 {dimension_numbers = #tpu.dot_dimension_numbers<[2], [2], [1], [1], [0, 0, 0, 1, 1, 1], [0], [0]>} : vector<2x8x64xf32>, vector<2x8x64xf32>, vector<2x8x8xf32> -> vector<2x8x8xf32>
    "tpu.trace_stop"() : () -> ()
    %cst_26 = arith.constant 1.250000e-01 : f32
    %90 = vector.broadcast %cst_26 : f32 to vector<2x8x8xf32>
    %91 = arith.mulf %89, %90 : vector<2x8x8xf32>
    %92 = vector.broadcast %17 : vector<1x1x8xf32> to vector<2x8x8xf32>
    %93 = arith.addf %91, %92 : vector<2x8x8xf32>
    %cst_27 = arith.constant dense<0xFF800000> : vector<2x8xf32>
    %94 = vector.multi_reduction <maximumf>, %93, %cst_27 [2] : vector<2x8x8xf32> to vector<2x8xf32>
    %95 = vector.shape_cast %94 : vector<2x8xf32> to vector<2x8x1xf32>
    %96 = vector.broadcast %95 : vector<2x8x1xf32> to vector<2x8x8xf32>
    %97 = arith.subf %93, %96 : vector<2x8x8xf32>
    %98 = math.exp %97 : vector<2x8x8xf32>
    %cst_28 = arith.constant dense<0.000000e+00> : vector<2x8xf32>
    %99 = vector.multi_reduction <add>, %98, %cst_28 [2] : vector<2x8x8xf32> to vector<2x8xf32>
    %100 = vector.shape_cast %99 : vector<2x8xf32> to vector<2x8x1xf32>
    %101 = vector.broadcast %100 : vector<2x8x1xf32> to vector<2x8x8xf32>
    %102 = arith.divf %98, %101 : vector<2x8x8xf32>
    "tpu.trace_start"() <{level = 10 : i32, message = "bqk,bkd->bqd"}> : () -> ()
    %cst_29 = arith.constant dense<0.000000e+00> : vector<2x8x64xf32>
    %103 = tpu.matmul %102, %88, %cst_29 {dimension_numbers = #tpu.dot_dimension_numbers<[2], [1], [1], [2], [0, 0, 0, 1, 1, 2], [0], [0]>} : vector<2x8x8xf32>, vector<2x8x64xf32>, vector<2x8x64xf32> -> vector<2x8x64xf32>
    "tpu.trace_stop"() : () -> ()
    %104 = tpu.concatenate %85, %103 in 2 : vector<2x8x64xf32>, vector<2x8x64xf32> -> vector<2x8x128xf32>
    %105 = vector.shape_cast %104 : vector<2x8x128xf32> to vector<16x128xf32>
    %106 = vector.extract_strided_slice %11 {offsets = [0, 256], sizes = [16, 128], strides = [1, 1]} : vector<16x1152xf32> to vector<16x128xf32>
    %107 = vector.shape_cast %106 : vector<16x128xf32> to vector<2x8x128xf32>
    %108 = vector.extract_strided_slice %11 {offsets = [0, 640], sizes = [16, 128], strides = [1, 1]} : vector<16x1152xf32> to vector<16x128xf32>
    %109 = vector.shape_cast %108 : vector<16x128xf32> to vector<2x8x128xf32>
    %110 = vector.extract_strided_slice %11 {offsets = [0, 1024], sizes = [16, 128], strides = [1, 1]} : vector<16x1152xf32> to vector<16x128xf32>
    %111 = vector.shape_cast %110 : vector<16x128xf32> to vector<2x8x128xf32>
    %112 = vector.extract_strided_slice %107 {offsets = [0, 0, 0], sizes = [2, 8, 64], strides = [1, 1, 1]} : vector<2x8x128xf32> to vector<2x8x64xf32>
    %113 = vector.extract_strided_slice %109 {offsets = [0, 0, 0], sizes = [2, 8, 64], strides = [1, 1, 1]} : vector<2x8x128xf32> to vector<2x8x64xf32>
    %114 = vector.extract_strided_slice %111 {offsets = [0, 0, 0], sizes = [2, 8, 64], strides = [1, 1, 1]} : vector<2x8x128xf32> to vector<2x8x64xf32>
    "tpu.trace_start"() <{level = 10 : i32, message = "bqd,bkd->bqk"}> : () -> ()
    %cst_30 = arith.constant dense<0.000000e+00> : vector<2x8x8xf32>
    %115 = tpu.matmul %112, %113, %cst_30 {dimension_numbers = #tpu.dot_dimension_numbers<[2], [2], [1], [1], [0, 0, 0, 1, 1, 1], [0], [0]>} : vector<2x8x64xf32>, vector<2x8x64xf32>, vector<2x8x8xf32> -> vector<2x8x8xf32>
    "tpu.trace_stop"() : () -> ()
    %cst_31 = arith.constant 1.250000e-01 : f32
    %116 = vector.broadcast %cst_31 : f32 to vector<2x8x8xf32>
    %117 = arith.mulf %115, %116 : vector<2x8x8xf32>
    %118 = vector.broadcast %17 : vector<1x1x8xf32> to vector<2x8x8xf32>
    %119 = arith.addf %117, %118 : vector<2x8x8xf32>
    %cst_32 = arith.constant dense<0xFF800000> : vector<2x8xf32>
    %120 = vector.multi_reduction <maximumf>, %119, %cst_32 [2] : vector<2x8x8xf32> to vector<2x8xf32>
    %121 = vector.shape_cast %120 : vector<2x8xf32> to vector<2x8x1xf32>
    %122 = vector.broadcast %121 : vector<2x8x1xf32> to vector<2x8x8xf32>
    %123 = arith.subf %119, %122 : vector<2x8x8xf32>
    %124 = math.exp %123 : vector<2x8x8xf32>
    %cst_33 = arith.constant dense<0.000000e+00> : vector<2x8xf32>
    %125 = vector.multi_reduction <add>, %124, %cst_33 [2] : vector<2x8x8xf32> to vector<2x8xf32>
    %126 = vector.shape_cast %125 : vector<2x8xf32> to vector<2x8x1xf32>
    %127 = vector.broadcast %126 : vector<2x8x1xf32> to vector<2x8x8xf32>
    %128 = arith.divf %124, %127 : vector<2x8x8xf32>
    "tpu.trace_start"() <{level = 10 : i32, message = "bqk,bkd->bqd"}> : () -> ()
    %cst_34 = arith.constant dense<0.000000e+00> : vector<2x8x64xf32>
    %129 = tpu.matmul %128, %114, %cst_34 {dimension_numbers = #tpu.dot_dimension_numbers<[2], [1], [1], [2], [0, 0, 0, 1, 1, 2], [0], [0]>} : vector<2x8x8xf32>, vector<2x8x64xf32>, vector<2x8x64xf32> -> vector<2x8x64xf32>
    "tpu.trace_stop"() : () -> ()
    %130 = vector.extract_strided_slice %107 {offsets = [0, 0, 64], sizes = [2, 8, 64], strides = [1, 1, 1]} : vector<2x8x128xf32> to vector<2x8x64xf32>
    %131 = vector.extract_strided_slice %109 {offsets = [0, 0, 64], sizes = [2, 8, 64], strides = [1, 1, 1]} : vector<2x8x128xf32> to vector<2x8x64xf32>
    %132 = vector.extract_strided_slice %111 {offsets = [0, 0, 64], sizes = [2, 8, 64], strides = [1, 1, 1]} : vector<2x8x128xf32> to vector<2x8x64xf32>
    "tpu.trace_start"() <{level = 10 : i32, message = "bqd,bkd->bqk"}> : () -> ()
    %cst_35 = arith.constant dense<0.000000e+00> : vector<2x8x8xf32>
    %133 = tpu.matmul %130, %131, %cst_35 {dimension_numbers = #tpu.dot_dimension_numbers<[2], [2], [1], [1], [0, 0, 0, 1, 1, 1], [0], [0]>} : vector<2x8x64xf32>, vector<2x8x64xf32>, vector<2x8x8xf32> -> vector<2x8x8xf32>
    "tpu.trace_stop"() : () -> ()
    %cst_36 = arith.constant 1.250000e-01 : f32
    %134 = vector.broadcast %cst_36 : f32 to vector<2x8x8xf32>
    %135 = arith.mulf %133, %134 : vector<2x8x8xf32>
    %136 = vector.broadcast %17 : vector<1x1x8xf32> to vector<2x8x8xf32>
    %137 = arith.addf %135, %136 : vector<2x8x8xf32>
    %cst_37 = arith.constant dense<0xFF800000> : vector<2x8xf32>
    %138 = vector.multi_reduction <maximumf>, %137, %cst_37 [2] : vector<2x8x8xf32> to vector<2x8xf32>
    %139 = vector.shape_cast %138 : vector<2x8xf32> to vector<2x8x1xf32>
    %140 = vector.broadcast %139 : vector<2x8x1xf32> to vector<2x8x8xf32>
    %141 = arith.subf %137, %140 : vector<2x8x8xf32>
    %142 = math.exp %141 : vector<2x8x8xf32>
    %cst_38 = arith.constant dense<0.000000e+00> : vector<2x8xf32>
    %143 = vector.multi_reduction <add>, %142, %cst_38 [2] : vector<2x8x8xf32> to vector<2x8xf32>
    %144 = vector.shape_cast %143 : vector<2x8xf32> to vector<2x8x1xf32>
    %145 = vector.broadcast %144 : vector<2x8x1xf32> to vector<2x8x8xf32>
    %146 = arith.divf %142, %145 : vector<2x8x8xf32>
    "tpu.trace_start"() <{level = 10 : i32, message = "bqk,bkd->bqd"}> : () -> ()
    %cst_39 = arith.constant dense<0.000000e+00> : vector<2x8x64xf32>
    %147 = tpu.matmul %146, %132, %cst_39 {dimension_numbers = #tpu.dot_dimension_numbers<[2], [1], [1], [2], [0, 0, 0, 1, 1, 2], [0], [0]>} : vector<2x8x8xf32>, vector<2x8x64xf32>, vector<2x8x64xf32> -> vector<2x8x64xf32>
    "tpu.trace_stop"() : () -> ()
    %148 = tpu.concatenate %129, %147 in 2 : vector<2x8x64xf32>, vector<2x8x64xf32> -> vector<2x8x128xf32>
    %149 = vector.shape_cast %148 : vector<2x8x128xf32> to vector<16x128xf32>
    %150 = tpu.concatenate %61, %105, %149 in 1 : vector<16x128xf32>, vector<16x128xf32>, vector<16x128xf32> -> vector<16x384xf32>
    %c0_40 = arith.constant 0 : index
    %c0_41 = arith.constant 0 : index
    %c0_42 = arith.constant 0 : index
    %151 = vector.load %arg6[%c0_40, %c0_41, %c0_42] : memref<1x384x384xbf16, #tpu.memory_space<vmem>>, vector<1x384x384xbf16>
    %152 = vector.shape_cast %151 : vector<1x384x384xbf16> to vector<384x384xbf16>
    %c0_43 = arith.constant 0 : index
    %c0_44 = arith.constant 0 : index
    %c0_45 = arith.constant 0 : index
    %153 = vector.load %arg7[%c0_43, %c0_44, %c0_45] : memref<1x1x384xf32, #tpu.memory_space<vmem>>, vector<1x1x384xf32>
    %154 = vector.shape_cast %153 : vector<1x1x384xf32> to vector<1x384xf32>
    %155 = arith.truncf %150 : vector<16x384xf32> to vector<16x384xbf16>
    %cst_46 = arith.constant dense<0.000000e+00> : vector<16x384xf32>
    %156 = tpu.matmul %155, %152, %cst_46 {dimension_numbers = #tpu.dot_dimension_numbers<[1], [0], [0], [1], [0, 0, 1, 1], [], []>} : vector<16x384xbf16>, vector<384x384xbf16>, vector<16x384xf32> -> vector<16x384xf32>
    %157 = vector.broadcast %154 : vector<1x384xf32> to vector<16x384xf32>
    %158 = arith.addf %156, %157 : vector<16x384xf32>
    %159 = arith.addf %3, %158 : vector<16x384xf32>
    %c0_47 = arith.constant 0 : index
    %c0_48 = arith.constant 0 : index
    %c0_49 = arith.constant 0 : index
    %160 = vector.load %arg8[%c0_47, %c0_48, %c0_49] : memref<1x1x384xf32, #tpu.memory_space<vmem>>, vector<1x1x384xf32>
    %161 = vector.shape_cast %160 : vector<1x1x384xf32> to vector<1x384xf32>
    %c0_50 = arith.constant 0 : index
    %c0_51 = arith.constant 0 : index
    %c0_52 = arith.constant 0 : index
    %162 = vector.load %arg9[%c0_50, %c0_51, %c0_52] : memref<1x1x384xf32, #tpu.memory_space<vmem>>, vector<1x1x384xf32>
    %163 = vector.shape_cast %162 : vector<1x1x384xf32> to vector<1x384xf32>
    %cst_53 = arith.constant dense<0.000000e+00> : vector<16xf32>
    %164 = vector.multi_reduction <add>, %159, %cst_53 [1] : vector<16x384xf32> to vector<16xf32>
    %165 = vector.shape_cast %164 : vector<16xf32> to vector<16x1xf32>
    %cst_54 = arith.constant 3.840000e+02 : f32
    %166 = vector.broadcast %cst_54 : f32 to vector<16x1xf32>
    %167 = arith.divf %165, %166 : vector<16x1xf32>
    %168 = vector.broadcast %167 : vector<16x1xf32> to vector<16x384xf32>
    %169 = arith.subf %159, %168 : vector<16x384xf32>
    %170 = arith.mulf %169, %169 : vector<16x384xf32>
    %cst_55 = arith.constant dense<0.000000e+00> : vector<16xf32>
    %171 = vector.multi_reduction <add>, %170, %cst_55 [1] : vector<16x384xf32> to vector<16xf32>
    %172 = vector.shape_cast %171 : vector<16xf32> to vector<16x1xf32>
    %cst_56 = arith.constant 3.840000e+02 : f32
    %173 = vector.broadcast %cst_56 : f32 to vector<16x1xf32>
    %174 = arith.divf %172, %173 : vector<16x1xf32>
    %cst_57 = arith.constant 9.99999996E-13 : f32
    %175 = vector.broadcast %cst_57 : f32 to vector<16x1xf32>
    %176 = arith.addf %174, %175 : vector<16x1xf32>
    %177 = math.rsqrt %176 : vector<16x1xf32>
    %178 = vector.broadcast %177 : vector<16x1xf32> to vector<16x384xf32>
    %179 = arith.mulf %169, %178 : vector<16x384xf32>
    %180 = vector.broadcast %161 : vector<1x384xf32> to vector<16x384xf32>
    %181 = arith.mulf %179, %180 : vector<16x384xf32>
    %182 = vector.broadcast %163 : vector<1x384xf32> to vector<16x384xf32>
    %183 = arith.addf %181, %182 : vector<16x384xf32>
    %c0_58 = arith.constant 0 : index
    %c0_59 = arith.constant 0 : index
    %c0_60 = arith.constant 0 : index
    %184 = vector.load %arg10[%c0_58, %c0_59, %c0_60] : memref<1x384x1536xbf16, #tpu.memory_space<vmem>>, vector<1x384x1536xbf16>
    %185 = vector.shape_cast %184 : vector<1x384x1536xbf16> to vector<384x1536xbf16>
    %c0_61 = arith.constant 0 : index
    %c0_62 = arith.constant 0 : index
    %c0_63 = arith.constant 0 : index
    %186 = vector.load %arg11[%c0_61, %c0_62, %c0_63] : memref<1x1x1536xf32, #tpu.memory_space<vmem>>, vector<1x1x1536xf32>
    %187 = vector.shape_cast %186 : vector<1x1x1536xf32> to vector<1x1536xf32>
    %188 = arith.truncf %183 : vector<16x384xf32> to vector<16x384xbf16>
    %cst_64 = arith.constant dense<0.000000e+00> : vector<16x1536xf32>
    %189 = tpu.matmul %188, %185, %cst_64 {dimension_numbers = #tpu.dot_dimension_numbers<[1], [0], [0], [1], [0, 0, 1, 1], [], []>} : vector<16x384xbf16>, vector<384x1536xbf16>, vector<16x1536xf32> -> vector<16x1536xf32>
    %190 = vector.broadcast %187 : vector<1x1536xf32> to vector<16x1536xf32>
    %191 = arith.addf %189, %190 : vector<16x1536xf32>
    %cst_65 = arith.constant 5.000000e-01 : f32
    %192 = vector.broadcast %cst_65 : f32 to vector<16x1536xf32>
    %193 = arith.mulf %192, %191 : vector<16x1536xf32>
    %cst_66 = arith.constant 0.707106769 : f32
    %194 = vector.broadcast %cst_66 : f32 to vector<16x1536xf32>
    %195 = arith.mulf %191, %194 : vector<16x1536xf32>
    %196 = math.absf %195 : vector<16x1536xf32>
    %cst_67 = arith.constant 0.327591091 : f32
    %197 = vector.broadcast %cst_67 : f32 to vector<16x1536xf32>
    %198 = arith.mulf %197, %196 : vector<16x1536xf32>
    %cst_68 = arith.constant 1.000000e+00 : f32
    %199 = vector.broadcast %cst_68 : f32 to vector<16x1536xf32>
    %200 = arith.addf %199, %198 : vector<16x1536xf32>
    %cst_69 = arith.constant 1.000000e+00 : f32
    %201 = vector.broadcast %cst_69 : f32 to vector<16x1536xf32>
    %202 = arith.divf %201, %200 : vector<16x1536xf32>
    %cst_70 = arith.constant 1.06140542 : f32
    %203 = vector.broadcast %cst_70 : f32 to vector<16x1536xf32>
    %204 = arith.mulf %203, %202 : vector<16x1536xf32>
    %cst_71 = arith.constant -1.45315206 : f32
    %205 = vector.broadcast %cst_71 : f32 to vector<16x1536xf32>
    %206 = arith.addf %204, %205 : vector<16x1536xf32>
    %207 = arith.mulf %206, %202 : vector<16x1536xf32>
    %cst_72 = arith.constant 1.42141378 : f32
    %208 = vector.broadcast %cst_72 : f32 to vector<16x1536xf32>
    %209 = arith.addf %207, %208 : vector<16x1536xf32>
    %210 = arith.mulf %209, %202 : vector<16x1536xf32>
    %cst_73 = arith.constant -0.284496725 : f32
    %211 = vector.broadcast %cst_73 : f32 to vector<16x1536xf32>
    %212 = arith.addf %210, %211 : vector<16x1536xf32>
    %213 = arith.mulf %212, %202 : vector<16x1536xf32>
    %cst_74 = arith.constant 0.254829586 : f32
    %214 = vector.broadcast %cst_74 : f32 to vector<16x1536xf32>
    %215 = arith.addf %213, %214 : vector<16x1536xf32>
    %216 = arith.mulf %215, %202 : vector<16x1536xf32>
    %cst_75 = arith.constant 0.000000e+00 : f32
    %217 = vector.broadcast %cst_75 : f32 to vector<16x1536xf32>
    %218 = arith.subf %217, %196 : vector<16x1536xf32>
    %219 = arith.mulf %218, %196 : vector<16x1536xf32>
    %220 = math.exp %219 : vector<16x1536xf32>
    %221 = arith.mulf %216, %220 : vector<16x1536xf32>
    %cst_76 = arith.constant 1.000000e+00 : f32
    %222 = vector.broadcast %cst_76 : f32 to vector<16x1536xf32>
    %223 = arith.subf %222, %221 : vector<16x1536xf32>
    %cst_77 = arith.constant 0.000000e+00 : f32
    %224 = vector.broadcast %cst_77 : f32 to vector<16x1536xf32>
    %225 = arith.cmpf oge, %195, %224 : vector<16x1536xf32>
    %cst_78 = arith.constant 0.000000e+00 : f32
    %226 = vector.broadcast %cst_78 : f32 to vector<16x1536xf32>
    %227 = arith.subf %226, %223 : vector<16x1536xf32>
    %228 = arith.select %225, %223, %227 : vector<16x1536xi1>, vector<16x1536xf32>
    %cst_79 = arith.constant 1.000000e+00 : f32
    %229 = vector.broadcast %cst_79 : f32 to vector<16x1536xf32>
    %230 = arith.addf %229, %228 : vector<16x1536xf32>
    %231 = arith.mulf %193, %230 : vector<16x1536xf32>
    %c0_80 = arith.constant 0 : index
    %c0_81 = arith.constant 0 : index
    %c0_82 = arith.constant 0 : index
    %232 = vector.load %arg12[%c0_80, %c0_81, %c0_82] : memref<1x1536x384xbf16, #tpu.memory_space<vmem>>, vector<1x1536x384xbf16>
    %233 = vector.shape_cast %232 : vector<1x1536x384xbf16> to vector<1536x384xbf16>
    %c0_83 = arith.constant 0 : index
    %c0_84 = arith.constant 0 : index
    %c0_85 = arith.constant 0 : index
    %234 = vector.load %arg13[%c0_83, %c0_84, %c0_85] : memref<1x1x384xf32, #tpu.memory_space<vmem>>, vector<1x1x384xf32>
    %235 = vector.shape_cast %234 : vector<1x1x384xf32> to vector<1x384xf32>
    %236 = arith.truncf %231 : vector<16x1536xf32> to vector<16x1536xbf16>
    %cst_86 = arith.constant dense<0.000000e+00> : vector<16x384xf32>
    %237 = tpu.matmul %236, %233, %cst_86 {dimension_numbers = #tpu.dot_dimension_numbers<[1], [0], [0], [1], [0, 0, 1, 1], [], []>} : vector<16x1536xbf16>, vector<1536x384xbf16>, vector<16x384xf32> -> vector<16x384xf32>
    %238 = vector.broadcast %235 : vector<1x384xf32> to vector<16x384xf32>
    %239 = arith.addf %237, %238 : vector<16x384xf32>
    %240 = arith.addf %183, %239 : vector<16x384xf32>
    %c0_87 = arith.constant 0 : index
    %c0_88 = arith.constant 0 : index
    %c0_89 = arith.constant 0 : index
    %241 = vector.load %arg14[%c0_87, %c0_88, %c0_89] : memref<1x1x384xf32, #tpu.memory_space<vmem>>, vector<1x1x384xf32>
    %242 = vector.shape_cast %241 : vector<1x1x384xf32> to vector<1x384xf32>
    %c0_90 = arith.constant 0 : index
    %c0_91 = arith.constant 0 : index
    %c0_92 = arith.constant 0 : index
    %243 = vector.load %arg15[%c0_90, %c0_91, %c0_92] : memref<1x1x384xf32, #tpu.memory_space<vmem>>, vector<1x1x384xf32>
    %244 = vector.shape_cast %243 : vector<1x1x384xf32> to vector<1x384xf32>
    %cst_93 = arith.constant dense<0.000000e+00> : vector<16xf32>
    %245 = vector.multi_reduction <add>, %240, %cst_93 [1] : vector<16x384xf32> to vector<16xf32>
    %246 = vector.shape_cast %245 : vector<16xf32> to vector<16x1xf32>
    %cst_94 = arith.constant 3.840000e+02 : f32
    %247 = vector.broadcast %cst_94 : f32 to vector<16x1xf32>
    %248 = arith.divf %246, %247 : vector<16x1xf32>
    %249 = vector.broadcast %248 : vector<16x1xf32> to vector<16x384xf32>
    %250 = arith.subf %240, %249 : vector<16x384xf32>
    %251 = arith.mulf %250, %250 : vector<16x384xf32>
    %cst_95 = arith.constant dense<0.000000e+00> : vector<16xf32>
    %252 = vector.multi_reduction <add>, %251, %cst_95 [1] : vector<16x384xf32> to vector<16xf32>
    %253 = vector.shape_cast %252 : vector<16xf32> to vector<16x1xf32>
    %cst_96 = arith.constant 3.840000e+02 : f32
    %254 = vector.broadcast %cst_96 : f32 to vector<16x1xf32>
    %255 = arith.divf %253, %254 : vector<16x1xf32>
    %cst_97 = arith.constant 9.99999996E-13 : f32
    %256 = vector.broadcast %cst_97 : f32 to vector<16x1xf32>
    %257 = arith.addf %255, %256 : vector<16x1xf32>
    %258 = math.rsqrt %257 : vector<16x1xf32>
    %259 = vector.broadcast %258 : vector<16x1xf32> to vector<16x384xf32>
    %260 = arith.mulf %250, %259 : vector<16x384xf32>
    %261 = vector.broadcast %242 : vector<1x384xf32> to vector<16x384xf32>
    %262 = arith.mulf %260, %261 : vector<16x384xf32>
    %263 = vector.broadcast %244 : vector<1x384xf32> to vector<16x384xf32>
    %264 = arith.addf %262, %263 : vector<16x384xf32>
    %c0_98 = arith.constant 0 : index
    %c0_99 = arith.constant 0 : index
    %265 = vector.load %arg19[%c0_98, %c0_99] : memref<16x384xf32, #tpu.memory_space<vmem>>, vector<16x384xf32>
    tpu.vector_store %arg19[%c0_98, %c0_99], %264 {strides = array<i32>} : memref<16x384xf32, #tpu.memory_space<vmem>>, vector<16x384xf32>,
    %c1_i32 = arith.constant 1 : i32
    %266 = arith.cmpi eq, %arg0, %c1_i32 : i32
    %267 = arith.extui %266 : i1 to i32
    %c0_i32_100 = arith.constant 0 : i32
    %268 = arith.cmpi ne, %267, %c0_i32_100 : i32
    scf.if %268 {
      %269 = vector.shape_cast %264 : vector<16x384xf32> to vector<2x8x384xf32>
      %270 = vector.extract_strided_slice %269 {offsets = [0, 0, 0], sizes = [2, 1, 384], strides = [1, 1, 1]} : vector<2x8x384xf32> to vector<2x1x384xf32>
      %271 = vector.shape_cast %270 : vector<2x1x384xf32> to vector<2x384xf32>
      %c0_101 = arith.constant 0 : index
      %c0_102 = arith.constant 0 : index
      %272 = vector.load %arg16[%c0_101, %c0_102] : memref<1x384xf32, #tpu.memory_space<vmem>>, vector<1x384xf32>
      %273 = vector.broadcast %272 : vector<1x384xf32> to vector<2x384xf32>
      %274 = arith.mulf %271, %273 : vector<2x384xf32>
      %cst_103 = arith.constant dense<0.000000e+00> : vector<2xf32>
      %275 = vector.multi_reduction <add>, %274, %cst_103 [1] : vector<2x384xf32> to vector<2xf32>
      %276 = vector.shape_cast %275 : vector<2xf32> to vector<2x1xf32>
      %c0_104 = arith.constant 0 : index
      %c0_105 = arith.constant 0 : index
      %277 = vector.load %arg17[%c0_104, %c0_105] : memref<1x1xf32, #tpu.memory_space<vmem>>, vector<1x1xf32>
      %278 = vector.broadcast %277 : vector<1x1xf32> to vector<2x1xf32>
      %279 = arith.addf %276, %278 : vector<2x1xf32>
      %c0_106 = arith.constant 0 : index
      %c0_107 = arith.constant 0 : index
      %280 = vector.load %arg18[%c0_106, %c0_107] : memref<2x1xf32, #tpu.memory_space<vmem>>, vector<2x1xf32>
      tpu.vector_store %arg18[%c0_106, %c0_107], %279 {strides = array<i32>} : memref<2x1xf32, #tpu.memory_space<vmem>>, vector<2x1xf32>,
    } else {
    }
    return
  }
  func.func @transform_0(%arg0: i32) -> (i32, i32, i32) {
    %c0_i32 = arith.constant 0 : i32
    %c0_i32_0 = arith.constant 0 : i32
    %c0_i32_1 = arith.constant 0 : i32
    %c0_i32_2 = arith.constant 0 : i32
    return %c0_i32, %c0_i32_0, %c0_i32_1 : i32, i32, i32
  }
  func.func @transform_1(%arg0: i32) -> (i32, i32) {
    %c0_i32 = arith.constant 0 : i32
    %c0_i32_0 = arith.constant 0 : i32
    %c0_i32_1 = arith.constant 0 : i32
    return %c0_i32, %c0_i32_0 : i32, i32
  }
  func.func @transform_2(%arg0: i32) -> (i32, i32) {
    %c0_i32 = arith.constant 0 : i32
    %c0_i32_0 = arith.constant 0 : i32
    %c0_i32_1 = arith.constant 0 : i32
    return %c0_i32, %c0_i32_0 : i32, i32
  }
  func.func @transform_3(%arg0: i32) -> (i32, i32, i32) {
    %c0_i32 = arith.constant 0 : i32
    %c0_i32_0 = arith.constant 0 : i32
    %c0_i32_1 = arith.constant 0 : i32
    return %arg0, %c0_i32, %c0_i32_0 : i32, i32, i32
  }
  func.func @transform_4(%arg0: i32) -> (i32, i32, i32) {
    %c0_i32 = arith.constant 0 : i32
    %c0_i32_0 = arith.constant 0 : i32
    %c0_i32_1 = arith.constant 0 : i32
    return %arg0, %c0_i32, %c0_i32_0 : i32, i32, i32
  }
  func.func @transform_5(%arg0: i32) -> (i32, i32, i32) {
    %c0_i32 = arith.constant 0 : i32
    %c0_i32_0 = arith.constant 0 : i32
    %c0_i32_1 = arith.constant 0 : i32
    return %arg0, %c0_i32, %c0_i32_0 : i32, i32, i32
  }
  func.func @transform_6(%arg0: i32) -> (i32, i32, i32) {
    %c0_i32 = arith.constant 0 : i32
    %c0_i32_0 = arith.constant 0 : i32
    %c0_i32_1 = arith.constant 0 : i32
    return %arg0, %c0_i32, %c0_i32_0 : i32, i32, i32
  }
  func.func @transform_7(%arg0: i32) -> (i32, i32, i32) {
    %c0_i32 = arith.constant 0 : i32
    %c0_i32_0 = arith.constant 0 : i32
    %c0_i32_1 = arith.constant 0 : i32
    return %arg0, %c0_i32, %c0_i32_0 : i32, i32, i32
  }
  func.func @transform_8(%arg0: i32) -> (i32, i32, i32) {
    %c0_i32 = arith.constant 0 : i32
    %c0_i32_0 = arith.constant 0 : i32
    %c0_i32_1 = arith.constant 0 : i32
    return %arg0, %c0_i32, %c0_i32_0 : i32, i32, i32
  }
  func.func @transform_9(%arg0: i32) -> (i32, i32, i32) {
    %c0_i32 = arith.constant 0 : i32
    %c0_i32_0 = arith.constant 0 : i32
    %c0_i32_1 = arith.constant 0 : i32
    return %arg0, %c0_i32, %c0_i32_0 : i32, i32, i32
  }
  func.func @transform_10(%arg0: i32) -> (i32, i32, i32) {
    %c0_i32 = arith.constant 0 : i32
    %c0_i32_0 = arith.constant 0 : i32
    %c0_i32_1 = arith.constant 0 : i32
    return %arg0, %c0_i32, %c0_i32_0 : i32, i32, i32
  }
  func.func @transform_11(%arg0: i32) -> (i32, i32, i32) {
    %c0_i32 = arith.constant 0 : i32
    %c0_i32_0 = arith.constant 0 : i32
    %c0_i32_1 = arith.constant 0 : i32
    return %arg0, %c0_i32, %c0_i32_0 : i32, i32, i32
  }
  func.func @transform_12(%arg0: i32) -> (i32, i32, i32) {
    %c0_i32 = arith.constant 0 : i32
    %c0_i32_0 = arith.constant 0 : i32
    %c0_i32_1 = arith.constant 0 : i32
    return %arg0, %c0_i32, %c0_i32_0 : i32, i32, i32
  }
  func.func @transform_13(%arg0: i32) -> (i32, i32, i32) {
    %c0_i32 = arith.constant 0 : i32
    %c0_i32_0 = arith.constant 0 : i32
    %c0_i32_1 = arith.constant 0 : i32
    return %arg0, %c0_i32, %c0_i32_0 : i32, i32, i32
  }
  func.func @transform_14(%arg0: i32) -> (i32, i32, i32) {
    %c0_i32 = arith.constant 0 : i32
    %c0_i32_0 = arith.constant 0 : i32
    %c0_i32_1 = arith.constant 0 : i32
    return %arg0, %c0_i32, %c0_i32_0 : i32, i32, i32
  }
  func.func @transform_15(%arg0: i32) -> (i32, i32) {
    %c0_i32 = arith.constant 0 : i32
    %c0_i32_0 = arith.constant 0 : i32
    %c0_i32_1 = arith.constant 0 : i32
    return %c0_i32, %c0_i32_0 : i32, i32
  }
  func.func @transform_16(%arg0: i32) -> (i32, i32) {
    %c0_i32 = arith.constant 0 : i32
    %c0_i32_0 = arith.constant 0 : i32
    %c0_i32_1 = arith.constant 0 : i32
    return %c0_i32, %c0_i32_0 : i32, i32
  }
  func.func @transform_17(%arg0: i32) -> (i32, i32) {
    %c0_i32 = arith.constant 0 : i32
    %c0_i32_0 = arith.constant 0 : i32
    %c0_i32_1 = arith.constant 0 : i32
    return %c0_i32, %c0_i32_0 : i32, i32
  }
}

</mosaic_0001>

<llo_original>
// kernel: metadata_regressor_forward.1
$region0: #{metadata_regressor_forward.1}
  #allocation0 [shape = 'u32[]', space=smem, size = 0x4, offset = 0x4, fixed_abs, tag = 'smem constant byte address 0x4 - core index']
  #allocation1 [shape = 'u32[144,128]{1,0:T(1,128)}', space=vmem, size = 0x12000, scoped, tag = 'internal scratch']
  #allocation2 [shape = 'f32[16,384]{1,0:T(8,128)}', space=vmem, size = 0x6000, scoped, tag = 'scratch operand']
  #allocation3 [shape = 'f32[1,1]{1,0:T(1,128)S(1)}', space=vmem, size = 0x200, scoped, tag = 'scoped memory for metadata_regressor_forward.1']
  %s0 = inlined_call_operand.vmem [shape: f32[2,8,384], index: 0, kind: input, shape index: {}]
  %s1 = inlined_call_operand.hbm [shape: f32[1,384], index: 1, kind: input, shape index: {}]
  %s2 = inlined_call_operand.hbm [shape: f32[1,384], index: 2, kind: input, shape index: {}]
  %s3 = inlined_call_operand.hbm [shape: bf16[2,384,1152], index: 3, kind: input, shape index: {}]
  %s4 = inlined_call_operand.hbm [shape: f32[2,1,1152], index: 4, kind: input, shape index: {}]
  %s5 = inlined_call_operand.hbm [shape: bf16[2,384,384], index: 5, kind: input, shape index: {}]
  %s6 = inlined_call_operand.hbm [shape: f32[2,1,384], index: 6, kind: input, shape index: {}]
  %s7 = inlined_call_operand.hbm [shape: f32[2,1,384], index: 7, kind: input, shape index: {}]
  %s8 = inlined_call_operand.hbm [shape: f32[2,1,384], index: 8, kind: input, shape index: {}]
  %s9 = inlined_call_operand.hbm [shape: bf16[2,384,1536], index: 9, kind: input, shape index: {}]
  %s10 = inlined_call_operand.hbm [shape: f32[2,1,1536], index: 10, kind: input, shape index: {}]
  %s11 = inlined_call_operand.hbm [shape: bf16[2,1536,384], index: 11, kind: input, shape index: {}]
  %s12 = inlined_call_operand.hbm [shape: f32[2,1,384], index: 12, kind: input, shape index: {}]
  %s13 = inlined_call_operand.hbm [shape: f32[2,1,384], index: 13, kind: input, shape index: {}]
  %s14 = inlined_call_operand.hbm [shape: f32[2,1,384], index: 14, kind: input, shape index: {}]
  %s15 = inlined_call_operand.hbm [shape: f32[1,384], index: 15, kind: input, shape index: {}]
  %s16 = inlined_call_operand.<no memory space> [shape: f32[1,1], index: 16, kind: input, shape index: {}]
  %s17 = inlined_call_operand.vmem [shape: f32[2,1], index: 17, kind: output, shape index: {}]
  %s18 = sld [smem:[#allocation0]]
  $region169: #{metadata_regressor_forward.1} parent=0
    _
  %s20 = ssub.s32 1, %s18
  %s21 = scalar_select 0, %s20, %s18
  %v22 = vstv %s16
  %23 = vst [vmem:[#allocation3] sm:$0x1] %v22
  $region1: #{metadata_regressor_forward.1} parent=0
    #allocation4 [shape = 'u8[1536]{0}', space=vmem, size = 0x800, scoped, tag = 'input window, operand 1, single buffered']
    #allocation5 [shape = 's32[2]{0}', space=sflag, size = 0x8, scoped, tag = 'scoped memory for metadata_regressor_forward.1']
    #allocation6 [shape = 'u8[1536]{0}', space=vmem, size = 0x800, scoped, tag = 'input window, operand 2, single buffered']
    #allocation7 [shape = 's32[1]{0}', space=sflag, size = 0x4, scoped, tag = 'scoped memory for metadata_regressor_forward.1']
    #allocation8 [shape = 'u8[1769472]{0}', space=vmem, size = 0x1b0000, scoped, tag = 'input window, operand 3']
    #allocation9 [shape = 'u8[9216]{0}', space=vmem, size = 0x2400, scoped, tag = 'input window, operand 4']
    #allocation10 [shape = 'u8[589824]{0}', space=vmem, size = 0x90000, scoped, tag = 'input window, operand 5']
    #allocation11 [shape = 'u8[3072]{0}', space=vmem, size = 0xc00, scoped, tag = 'input window, operand 6']
    #allocation12 [shape = 'u8[3072]{0}', space=vmem, size = 0xc00, scoped, tag = 'input window, operand 7']
    #allocation13 [shape = 'u8[3072]{0}', space=vmem, size = 0xc00, scoped, tag = 'input window, operand 8']
    #allocation14 [shape = 'u8[2359296]{0}', space=vmem, size = 0x240000, scoped, tag = 'input window, operand 9']
    #allocation15 [shape = 'u8[12288]{0}', space=vmem, size = 0x3000, scoped, tag = 'input window, operand 10']
    #allocation16 [shape = 'u8[2359296]{0}', space=vmem, size = 0x240000, scoped, tag = 'input window, operand 11']
    #allocation17 [shape = 'u8[3072]{0}', space=vmem, size = 0xc00, scoped, tag = 'input window, operand 12']
    #allocation18 [shape = 'u8[3072]{0}', space=vmem, size = 0xc00, scoped, tag = 'input window, operand 13']
    #allocation19 [shape = 'u8[3072]{0}', space=vmem, size = 0xc00, scoped, tag = 'input window, operand 14']
    #allocation20 [shape = 'u8[1536]{0}', space=vmem, size = 0x800, scoped, tag = 'input window, operand 15, single buffered']
    %24 = vsyncpa [#allocation5], 0
    %25 = vsyncpa [#allocation7], 0
    loop: start=0, step=1, limit=4
    $region2: #{metadata_regressor_forward.1} parent=1 // loop_pre_header
      _
    $region3: #{metadata_regressor_forward.1} parent=1 // loop_header
      %s27 = sphi 0, %s31
      %p28 = scmp.ge.s32.totalorder %s27, 4
      %s35 = sphi 0, %s35
      %s37 = sphi 0, %s35
      %s38 = sphi 0, %s37
      %s52 = sphi 0, %s38
      %s56 = sphi 0, %s56
      %s58 = sphi 0, %s56
      %s59 = sphi 0, %s58
      %s73 = sphi 0, %s59
      %s77 = sphi 0, %s77
      %s79 = sphi 0, %s77
      %s80 = sphi 0, %s79
      %s94 = sphi 0, %s80
      %s100 = sphi 0, %s102
      %s103 = sphi 0, %s100
      %s104 = sphi 0, %s103
      %s120 = sphi 0, %s104
      %s126 = sphi 0, %s128
      %s129 = sphi 0, %s126
      %s130 = sphi 0, %s129
      %s146 = sphi 0, %s130
      %s152 = sphi 0, %s154
      %s155 = sphi 0, %s152
      %s156 = sphi 0, %s155
      %s172 = sphi 0, %s156
      %s178 = sphi 0, %s180
      %s181 = sphi 0, %s178
      %s182 = sphi 0, %s181
      %s198 = sphi 0, %s182
      %s204 = sphi 0, %s206
      %s207 = sphi 0, %s204
      %s208 = sphi 0, %s207
      %s224 = sphi 0, %s208
      %s230 = sphi 0, %s232
      %s233 = sphi 0, %s230
      %s234 = sphi 0, %s233
      %s250 = sphi 0, %s234
      %s256 = sphi 0, %s258
      %s259 = sphi 0, %s256
      %s260 = sphi 0, %s259
      %s276 = sphi 0, %s260
      %s282 = sphi 0, %s284
      %s285 = sphi 0, %s282
      %s286 = sphi 0, %s285
      %s302 = sphi 0, %s286
      %s308 = sphi 0, %s310
      %s311 = sphi 0, %s308
      %s312 = sphi 0, %s311
      %s328 = sphi 0, %s312
      %s334 = sphi 0, %s336
      %s337 = sphi 0, %s334
      %s338 = sphi 0, %s337
      %s354 = sphi 0, %s338
      %s360 = sphi 0, %s362
      %s363 = sphi 0, %s360
      %s364 = sphi 0, %s363
      %s380 = sphi 0, %s364
      %s386 = sphi 0, %s388
      %s389 = sphi 0, %s386
      %s390 = sphi 0, %s389
      %s406 = sphi 0, %s390
      %s410 = sphi 0, %s410
      %s412 = sphi 0, %s410
      %s413 = sphi 0, %s412
      %s427 = sphi 0, %s413
      %s431 = sphi 0, %s431
      %s433 = sphi 0, %s431
      %s434 = sphi 0, %s433
      %s448 = sphi 0, %s434
      %s452 = sphi 0, %s452
      %s454 = sphi 0, %s452
      %s455 = sphi 0, %s454
      %s469 = sphi 0, %s455
    $region4: #{metadata_regressor_forward.1} parent=1 // loop_header_branch
      %30 = sbr.rel (%p28) target = $region8
    $region5: #{metadata_regressor_forward.1} parent=1 // loop_body
      %s32 = ssub.s32 %s27, 1
      %s33 = ssub.s32 %s27, 2
      %s34 = sadd.s32 %s27, 1
      %s36 = sadd.s32 %s35, 1
      %p39 = scmp.eq.s32.totalorder %s27, 1
      %p40 = scmp.ne.s32.totalorder %s35, %s37
      %p41 = scmp.eq.s32.totalorder %s27, 0
      %p42 = por %p40, %p41
      %p43 = scmp.ne.s32.totalorder %s35, %s37
      %p44 = scmp.eq.s32.totalorder %s32, 1
      %p45 = por %p43, %p44
      %p46 = scmp.ne.s32.totalorder %s37, %s38
      %p47 = scmp.eq.s32.totalorder %s32, 0
      %p48 = por %p46, %p47
      %p49 = scmp.ne.s32.totalorder %s37, %s38
      %p50 = scmp.eq.s32.totalorder %s33, 1
      %p51 = por %p49, %p50
      %p53 = scmp.ne.s32.totalorder %s38, %s52
      %p54 = scmp.eq.s32.totalorder %s33, 0
      %p55 = por %p53, %p54
      %s57 = sadd.s32 %s56, 1
      %p60 = scmp.eq.s32.totalorder %s27, 1
      %p61 = scmp.ne.s32.totalorder %s56, %s58
      %p62 = scmp.eq.s32.totalorder %s27, 0
      %p63 = por %p61, %p62
      %p64 = scmp.ne.s32.totalorder %s56, %s58
      %p65 = scmp.eq.s32.totalorder %s32, 1
      %p66 = por %p64, %p65
      %p67 = scmp.ne.s32.totalorder %s58, %s59
      %p68 = scmp.eq.s32.totalorder %s32, 0
      %p69 = por %p67, %p68
      %p70 = scmp.ne.s32.totalorder %s58, %s59
      %p71 = scmp.eq.s32.totalorder %s33, 1
      %p72 = por %p70, %p71
      %p74 = scmp.ne.s32.totalorder %s59, %s73
      %p75 = scmp.eq.s32.totalorder %s33, 0
      %p76 = por %p74, %p75
      %s78 = sadd.s32 %s77, 1
      %p81 = scmp.eq.s32.totalorder %s27, 1
      %p82 = scmp.ne.s32.totalorder %s77, %s79
      %p83 = scmp.eq.s32.totalorder %s27, 0
      %p84 = por %p82, %p83
      %p85 = scmp.ne.s32.totalorder %s77, %s79
      %p86 = scmp.eq.s32.totalorder %s32, 1
      %p87 = por %p85, %p86
      %p88 = scmp.ne.s32.totalorder %s79, %s80
      %p89 = scmp.eq.s32.totalorder %s32, 0
      %p90 = por %p88, %p89
      %p91 = scmp.ne.s32.totalorder %s79, %s80
      %p92 = scmp.eq.s32.totalorder %s33, 1
      %p93 = por %p91, %p92
      %p95 = scmp.ne.s32.totalorder %s80, %s94
      %p96 = scmp.eq.s32.totalorder %s33, 0
      %p97 = por %p95, %p96
      %s98 = ssub.s32 %s27, %s34
      %p99 = scmp.eq.s32.totalorder %s98, 0
      %s101 = sadd.s32 %s100, 1
      %s102 = scalar_select %p99, %s100, %s101
      %p105 = pneg %p99
      %p106 = scmp.eq.s32.totalorder %s27, 1
      %p107 = por %p105, %p106
      %p108 = scmp.ne.s32.totalorder %s100, %s103
      %p109 = scmp.eq.s32.totalorder %s27, 0
      %p110 = por %p108, %p109
      %p111 = scmp.ne.s32.totalorder %s100, %s103
      %p112 = scmp.eq.s32.totalorder %s32, 1
      %p113 = por %p111, %p112
      %p114 = scmp.ne.s32.totalorder %s103, %s104
      %p115 = scmp.eq.s32.totalorder %s32, 0
      %p116 = por %p114, %p115
      %p117 = scmp.ne.s32.totalorder %s103, %s104
      %p118 = scmp.eq.s32.totalorder %s33, 1
      %p119 = por %p117, %p118
      %p121 = scmp.ne.s32.totalorder %s104, %s120
      %p122 = scmp.eq.s32.totalorder %s33, 0
      %p123 = por %p121, %p122
      %s124 = ssub.s32 %s27, %s34
      %p125 = scmp.eq.s32.totalorder %s124, 0
      %s127 = sadd.s32 %s126, 1
      %s128 = scalar_select %p125, %s126, %s127
      %p131 = pneg %p125
      %p132 = scmp.eq.s32.totalorder %s27, 1
      %p133 = por %p131, %p132
      %p134 = scmp.ne.s32.totalorder %s126, %s129
      %p135 = scmp.eq.s32.totalorder %s27, 0
      %p136 = por %p134, %p135
      %p137 = scmp.ne.s32.totalorder %s126, %s129
      %p138 = scmp.eq.s32.totalorder %s32, 1
      %p139 = por %p137, %p138
      %p140 = scmp.ne.s32.totalorder %s129, %s130
      %p141 = scmp.eq.s32.totalorder %s32, 0
      %p142 = por %p140, %p141
      %p143 = scmp.ne.s32.totalorder %s129, %s130
      %p144 = scmp.eq.s32.totalorder %s33, 1
      %p145 = por %p143, %p144
      %p147 = scmp.ne.s32.totalorder %s130, %s146
      %p148 = scmp.eq.s32.totalorder %s33, 0
      %p149 = por %p147, %p148
      %s150 = ssub.s32 %s27, %s34
      %p151 = scmp.eq.s32.totalorder %s150, 0
      %s153 = sadd.s32 %s152, 1
      %s154 = scalar_select %p151, %s152, %s153
      %p157 = pneg %p151
      %p158 = scmp.eq.s32.totalorder %s27, 1
      %p159 = por %p157, %p158
      %p160 = scmp.ne.s32.totalorder %s152, %s155
      %p161 = scmp.eq.s32.totalorder %s27, 0
      %p162 = por %p160, %p161
      %p163 = scmp.ne.s32.totalorder %s152, %s155
      %p164 = scmp.eq.s32.totalorder %s32, 1
      %p165 = por %p163, %p164
      %p166 = scmp.ne.s32.totalorder %s155, %s156
      %p167 = scmp.eq.s32.totalorder %s32, 0
      %p168 = por %p166, %p167
      %p169 = scmp.ne.s32.totalorder %s155, %s156
      %p170 = scmp.eq.s32.totalorder %s33, 1
      %p171 = por %p169, %p170
      %p173 = scmp.ne.s32.totalorder %s156, %s172
      %p174 = scmp.eq.s32.totalorder %s33, 0
      %p175 = por %p173, %p174
      %s176 = ssub.s32 %s27, %s34
      %p177 = scmp.eq.s32.totalorder %s176, 0
      %s179 = sadd.s32 %s178, 1
      %s180 = scalar_select %p177, %s178, %s179
      %p183 = pneg %p177
      %p184 = scmp.eq.s32.totalorder %s27, 1
      %p185 = por %p183, %p184
      %p186 = scmp.ne.s32.totalorder %s178, %s181
      %p187 = scmp.eq.s32.totalorder %s27, 0
      %p188 = por %p186, %p187
      %p189 = scmp.ne.s32.totalorder %s178, %s181
      %p190 = scmp.eq.s32.totalorder %s32, 1
      %p191 = por %p189, %p190
      %p192 = scmp.ne.s32.totalorder %s181, %s182
      %p193 = scmp.eq.s32.totalorder %s32, 0
      %p194 = por %p192, %p193
      %p195 = scmp.ne.s32.totalorder %s181, %s182
      %p196 = scmp.eq.s32.totalorder %s33, 1
      %p197 = por %p195, %p196
      %p199 = scmp.ne.s32.totalorder %s182, %s198
      %p200 = scmp.eq.s32.totalorder %s33, 0
      %p201 = por %p199, %p200
      %s202 = ssub.s32 %s27, %s34
      %p203 = scmp.eq.s32.totalorder %s202, 0
      %s205 = sadd.s32 %s204, 1
      %s206 = scalar_select %p203, %s204, %s205
      %p209 = pneg %p203
      %p210 = scmp.eq.s32.totalorder %s27, 1
      %p211 = por %p209, %p210
      %p212 = scmp.ne.s32.totalorder %s204, %s207
      %p213 = scmp.eq.s32.totalorder %s27, 0
      %p214 = por %p212, %p213
      %p215 = scmp.ne.s32.totalorder %s204, %s207
      %p216 = scmp.eq.s32.totalorder %s32, 1
      %p217 = por %p215, %p216
      %p218 = scmp.ne.s32.totalorder %s207, %s208
      %p219 = scmp.eq.s32.totalorder %s32, 0
      %p220 = por %p218, %p219
      %p221 = scmp.ne.s32.totalorder %s207, %s208
      %p222 = scmp.eq.s32.totalorder %s33, 1
      %p223 = por %p221, %p222
      %p225 = scmp.ne.s32.totalorder %s208, %s224
      %p226 = scmp.eq.s32.totalorder %s33, 0
      %p227 = por %p225, %p226
      %s228 = ssub.s32 %s27, %s34
      %p229 = scmp.eq.s32.totalorder %s228, 0
      %s231 = sadd.s32 %s230, 1
      %s232 = scalar_select %p229, %s230, %s231
      %p235 = pneg %p229
      %p236 = scmp.eq.s32.totalorder %s27, 1
      %p237 = por %p235, %p236
      %p238 = scmp.ne.s32.totalorder %s230, %s233
      %p239 = scmp.eq.s32.totalorder %s27, 0
      %p240 = por %p238, %p239
      %p241 = scmp.ne.s32.totalorder %s230, %s233
      %p242 = scmp.eq.s32.totalorder %s32, 1
      %p243 = por %p241, %p242
      %p244 = scmp.ne.s32.totalorder %s233, %s234
      %p245 = scmp.eq.s32.totalorder %s32, 0
      %p246 = por %p244, %p245
      %p247 = scmp.ne.s32.totalorder %s233, %s234
      %p248 = scmp.eq.s32.totalorder %s33, 1
      %p249 = por %p247, %p248
      %p251 = scmp.ne.s32.totalorder %s234, %s250
      %p252 = scmp.eq.s32.totalorder %s33, 0
      %p253 = por %p251, %p252
      %s254 = ssub.s32 %s27, %s34
      %p255 = scmp.eq.s32.totalorder %s254, 0
      %s257 = sadd.s32 %s256, 1
      %s258 = scalar_select %p255, %s256, %s257
      %p261 = pneg %p255
      %p262 = scmp.eq.s32.totalorder %s27, 1
      %p263 = por %p261, %p262
      %p264 = scmp.ne.s32.totalorder %s256, %s259
      %p265 = scmp.eq.s32.totalorder %s27, 0
      %p266 = por %p264, %p265
      %p267 = scmp.ne.s32.totalorder %s256, %s259
      %p268 = scmp.eq.s32.totalorder %s32, 1
      %p269 = por %p267, %p268
      %p270 = scmp.ne.s32.totalorder %s259, %s260
      %p271 = scmp.eq.s32.totalorder %s32, 0
      %p272 = por %p270, %p271
      %p273 = scmp.ne.s32.totalorder %s259, %s260
      %p274 = scmp.eq.s32.totalorder %s33, 1
      %p275 = por %p273, %p274
      %p277 = scmp.ne.s32.totalorder %s260, %s276
      %p278 = scmp.eq.s32.totalorder %s33, 0
      %p279 = por %p277, %p278
      %s280 = ssub.s32 %s27, %s34
      %p281 = scmp.eq.s32.totalorder %s280, 0
      %s283 = sadd.s32 %s282, 1
      %s284 = scalar_select %p281, %s282, %s283
      %p287 = pneg %p281
      %p288 = scmp.eq.s32.totalorder %s27, 1
      %p289 = por %p287, %p288
      %p290 = scmp.ne.s32.totalorder %s282, %s285
      %p291 = scmp.eq.s32.totalorder %s27, 0
      %p292 = por %p290, %p291
      %p293 = scmp.ne.s32.totalorder %s282, %s285
      %p294 = scmp.eq.s32.totalorder %s32, 1
      %p295 = por %p293, %p294
      %p296 = scmp.ne.s32.totalorder %s285, %s286
      %p297 = scmp.eq.s32.totalorder %s32, 0
      %p298 = por %p296, %p297
      %p299 = scmp.ne.s32.totalorder %s285, %s286
      %p300 = scmp.eq.s32.totalorder %s33, 1
      %p301 = por %p299, %p300
      %p303 = scmp.ne.s32.totalorder %s286, %s302
      %p304 = scmp.eq.s32.totalorder %s33, 0
      %p305 = por %p303, %p304
      %s306 = ssub.s32 %s27, %s34
      %p307 = scmp.eq.s32.totalorder %s306, 0
      %s309 = sadd.s32 %s308, 1
      %s310 = scalar_select %p307, %s308, %s309
      %p313 = pneg %p307
      %p314 = scmp.eq.s32.totalorder %s27, 1
      %p315 = por %p313, %p314
      %p316 = scmp.ne.s32.totalorder %s308, %s311
      %p317 = scmp.eq.s32.totalorder %s27, 0
      %p318 = por %p316, %p317
      %p319 = scmp.ne.s32.totalorder %s308, %s311
      %p320 = scmp.eq.s32.totalorder %s32, 1
      %p321 = por %p319, %p320
      %p322 = scmp.ne.s32.totalorder %s311, %s312
      %p323 = scmp.eq.s32.totalorder %s32, 0
      %p324 = por %p322, %p323
      %p325 = scmp.ne.s32.totalorder %s311, %s312
      %p326 = scmp.eq.s32.totalorder %s33, 1
      %p327 = por %p325, %p326
      %p329 = scmp.ne.s32.totalorder %s312, %s328
      %p330 = scmp.eq.s32.totalorder %s33, 0
      %p331 = por %p329, %p330
      %s332 = ssub.s32 %s27, %s34
      %p333 = scmp.eq.s32.totalorder %s332, 0
      %s335 = sadd.s32 %s334, 1
      %s336 = scalar_select %p333, %s334, %s335
      %p339 = pneg %p333
      %p340 = scmp.eq.s32.totalorder %s27, 1
      %p341 = por %p339, %p340
      %p342 = scmp.ne.s32.totalorder %s334, %s337
      %p343 = scmp.eq.s32.totalorder %s27, 0
      %p344 = por %p342, %p343
      %p345 = scmp.ne.s32.totalorder %s334, %s337
      %p346 = scmp.eq.s32.totalorder %s32, 1
      %p347 = por %p345, %p346
      %p348 = scmp.ne.s32.totalorder %s337, %s338
      %p349 = scmp.eq.s32.totalorder %s32, 0
      %p350 = por %p348, %p349
      %p351 = scmp.ne.s32.totalorder %s337, %s338
      %p352 = scmp.eq.s32.totalorder %s33, 1
      %p353 = por %p351, %p352
      %p355 = scmp.ne.s32.totalorder %s338, %s354
      %p356 = scmp.eq.s32.totalorder %s33, 0
      %p357 = por %p355, %p356
      %s358 = ssub.s32 %s27, %s34
      %p359 = scmp.eq.s32.totalorder %s358, 0
      %s361 = sadd.s32 %s360, 1
      %s362 = scalar_select %p359, %s360, %s361
      %p365 = pneg %p359
      %p366 = scmp.eq.s32.totalorder %s27, 1
      %p367 = por %p365, %p366
      %p368 = scmp.ne.s32.totalorder %s360, %s363
      %p369 = scmp.eq.s32.totalorder %s27, 0
      %p370 = por %p368, %p369
      %p371 = scmp.ne.s32.totalorder %s360, %s363
      %p372 = scmp.eq.s32.totalorder %s32, 1
      %p373 = por %p371, %p372
      %p374 = scmp.ne.s32.totalorder %s363, %s364
      %p375 = scmp.eq.s32.totalorder %s32, 0
      %p376 = por %p374, %p375
      %p377 = scmp.ne.s32.totalorder %s363, %s364
      %p378 = scmp.eq.s32.totalorder %s33, 1
      %p379 = por %p377, %p378
      %p381 = scmp.ne.s32.totalorder %s364, %s380
      %p382 = scmp.eq.s32.totalorder %s33, 0
      %p383 = por %p381, %p382
      %s384 = ssub.s32 %s27, %s34
      %p385 = scmp.eq.s32.totalorder %s384, 0
      %s387 = sadd.s32 %s386, 1
      %s388 = scalar_select %p385, %s386, %s387
      %p391 = pneg %p385
      %p392 = scmp.eq.s32.totalorder %s27, 1
      %p393 = por %p391, %p392
      %p394 = scmp.ne.s32.totalorder %s386, %s389
      %p395 = scmp.eq.s32.totalorder %s27, 0
      %p396 = por %p394, %p395
      %p397 = scmp.ne.s32.totalorder %s386, %s389
      %p398 = scmp.eq.s32.totalorder %s32, 1
      %p399 = por %p397, %p398
      %p400 = scmp.ne.s32.totalorder %s389, %s390
      %p401 = scmp.eq.s32.totalorder %s32, 0
      %p402 = por %p400, %p401
      %p403 = scmp.ne.s32.totalorder %s389, %s390
      %p404 = scmp.eq.s32.totalorder %s33, 1
      %p405 = por %p403, %p404
      %p407 = scmp.ne.s32.totalorder %s390, %s406
      %p408 = scmp.eq.s32.totalorder %s33, 0
      %p409 = por %p407, %p408
      %s411 = sadd.s32 %s410, 1
      %p414 = scmp.eq.s32.totalorder %s27, 1
      %p415 = scmp.ne.s32.totalorder %s410, %s412
      %p416 = scmp.eq.s32.totalorder %s27, 0
      %p417 = por %p415, %p416
      %p418 = scmp.ne.s32.totalorder %s410, %s412
      %p419 = scmp.eq.s32.totalorder %s32, 1
      %p420 = por %p418, %p419
      %p421 = scmp.ne.s32.totalorder %s412, %s413
      %p422 = scmp.eq.s32.totalorder %s32, 0
      %p423 = por %p421, %p422
      %p424 = scmp.ne.s32.totalorder %s412, %s413
      %p425 = scmp.eq.s32.totalorder %s33, 1
      %p426 = por %p424, %p425
      %p428 = scmp.ne.s32.totalorder %s413, %s427
      %p429 = scmp.eq.s32.totalorder %s33, 0
      %p430 = por %p428, %p429
      %s432 = sadd.s32 %s431, 1
      %p435 = scmp.eq.s32.totalorder %s27, 1
      %p436 = scmp.ne.s32.totalorder %s431, %s433
      %p437 = scmp.eq.s32.totalorder %s27, 0
      %p438 = por %p436, %p437
      %p439 = scmp.ne.s32.totalorder %s431, %s433
      %p440 = scmp.eq.s32.totalorder %s32, 1
      %p441 = por %p439, %p440
      %p442 = scmp.ne.s32.totalorder %s433, %s434
      %p443 = scmp.eq.s32.totalorder %s32, 0
      %p444 = por %p442, %p443
      %p445 = scmp.ne.s32.totalorder %s433, %s434
      %p446 = scmp.eq.s32.totalorder %s33, 1
      %p447 = por %p445, %p446
      %p449 = scmp.ne.s32.totalorder %s434, %s448
      %p450 = scmp.eq.s32.totalorder %s33, 0
      %p451 = por %p449, %p450
      %s453 = sadd.s32 %s452, 1
      %p456 = scmp.eq.s32.totalorder %s27, 1
      %p457 = scmp.ne.s32.totalorder %s452, %s454
      %p458 = scmp.eq.s32.totalorder %s27, 0
      %p459 = por %p457, %p458
      %p460 = scmp.ne.s32.totalorder %s452, %s454
      %p461 = scmp.eq.s32.totalorder %s32, 1
      %p462 = por %p460, %p461
      %p463 = scmp.ne.s32.totalorder %s454, %s455
      %p464 = scmp.eq.s32.totalorder %s32, 0
      %p465 = por %p463, %p464
      %p466 = scmp.ne.s32.totalorder %s454, %s455
      %p467 = scmp.eq.s32.totalorder %s33, 1
      %p468 = por %p466, %p467
      %p470 = scmp.ne.s32.totalorder %s455, %s469
      %p471 = scmp.eq.s32.totalorder %s33, 0
      %p472 = por %p470, %p471
      %p473 = scmp.le.s32.totalorder 1, %s27
      %p474 = scmp.lt.s32.totalorder %s27, 3
      %p475 = pnand %p473, %p474
      %p476 = pneg %p475
      // Predicated region
      $region9: #{metadata_regressor_forward.1} parent=5 // pred_check
        _
      $region10: #{metadata_regressor_forward.1} parent=5 // pred_check_branch
        %478 = sbr.rel (%p475) target = $region12
      $region11: #{metadata_regressor_forward.1} parent=5 // pred_region
        %s479 = ssub.s32 %s27, 1
        // Predicated region
        $region13: #{metadata_regressor_forward.1} parent=11 // pred_check
          %p480 = pneg %p48
        $region14: #{metadata_regressor_forward.1} parent=11 // pred_check_branch
          %482 = sbr.rel (%p480) target = $region16
        $region15: #{metadata_regressor_forward.1} parent=11 // pred_region
          _
        $region16: #{metadata_regressor_forward.1} parent=11 // pred_fallthru
          _
        // Predicated region
        $region17: #{metadata_regressor_forward.1} parent=11 // pred_check
          %p483 = pneg %p69
        $region18: #{metadata_regressor_forward.1} parent=11 // pred_check_branch
          %485 = sbr.rel (%p483) target = $region20
        $region19: #{metadata_regressor_forward.1} parent=11 // pred_region
          %s487 = ssub.s32 48, 48
          %488 = vsyncadd [#allocation5], %s487
          %s490 = sshll.u32 [#allocation4], 4
          %s491 = int_to_ptr.vmem [resolvable:$true] %s490
          %493 = dma.hbm_to_vmem [thread:$0]  %s1, 48, %s491, [#allocation5]
        $region20: #{metadata_regressor_forward.1} parent=11 // pred_fallthru
          _
        // Predicated region
        $region21: #{metadata_regressor_forward.1} parent=11 // pred_check
          %p494 = pneg %p90
        $region22: #{metadata_regressor_forward.1} parent=11 // pred_check_branch
          %496 = sbr.rel (%p494) target = $region24
        $region23: #{metadata_regressor_forward.1} parent=11 // pred_region
          %s498 = ssub.s32 48, 48
          %499 = vsyncadd [#allocation7], %s498
          %s501 = sshll.u32 [#allocation6], 4
          %s502 = int_to_ptr.vmem [resolvable:$true] %s501
          %504 = dma.hbm_to_vmem [thread:$0]  %s2, 48, %s502, [#allocation7]
        $region24: #{metadata_regressor_forward.1} parent=11 // pred_fallthru
          _
        // Predicated region
        $region25: #{metadata_regressor_forward.1} parent=11 // pred_check
          %p505 = pneg %p423
        $region26: #{metadata_regressor_forward.1} parent=11 // pred_check_branch
          %507 = sbr.rel (%p505) target = $region28
        $region27: #{metadata_regressor_forward.1} parent=11 // pred_region
          %s509 = ssub.s32 48, 48
          %510 = vsyncadd [#allocation7], %s509
          %s512 = sshll.u32 [#allocation20], 4
          %s513 = int_to_ptr.vmem [resolvable:$true] %s512
          %515 = dma.hbm_to_vmem [thread:$0]  %s15, 48, %s513, [#allocation7]
        $region28: #{metadata_regressor_forward.1} parent=11 // pred_fallthru
          _
        // Predicated region
        $region29: #{metadata_regressor_forward.1} parent=11 // pred_check
          %p516 = pneg %p444
        $region30: #{metadata_regressor_forward.1} parent=11 // pred_check_branch
          %518 = sbr.rel (%p516) target = $region32
        $region31: #{metadata_regressor_forward.1} parent=11 // pred_region
          _
        $region32: #{metadata_regressor_forward.1} parent=11 // pred_fallthru
          _
      $region12: #{metadata_regressor_forward.1} parent=5 // pred_fallthru
        _
      %p519 = scmp.lt.s32.totalorder %s27, 2
      // Predicated region
      $region33: #{metadata_regressor_forward.1} parent=5 // pred_check
        %p520 = pneg %p519
      $region34: #{metadata_regressor_forward.1} parent=5 // pred_check_branch
        %522 = sbr.rel (%p520) target = $region36
      $region35: #{metadata_regressor_forward.1} parent=5 // pred_region
        // Predicated region
        $region37: #{metadata_regressor_forward.1} parent=35 // pred_check
          %p523 = pneg %p110
        $region38: #{metadata_regressor_forward.1} parent=35 // pred_check_branch
          %525 = sbr.rel (%p523) target = $region40
        $region39: #{metadata_regressor_forward.1} parent=35 // pred_region
          %s526 = sand.u32 %s27, 1
          %s527 = scalar_lea.sflag [#allocation5], %s526
          %s528 = sand.u32 %s100, 1
          %s529 = smul.addr %s528, 1728
          %s530 = scalar_lea.vmem [#allocation8], %s529
          %s532 = ssub.s32 27648, 27648
          %533 = vsyncadd %s527, %s532
          %s534 = smul.addr %s27, 432
          %s535 = smul.addr %s534, 64
          %s536 = scalar_lea.hbm %s3, %s535
          %s537 = sshll.u32 %s530, 4
          %s538 = int_to_ptr.vmem [resolvable:$true] %s537
          %543 = dma.hbm_to_vmem [thread:$0]  %s536, 27648, %s538, %s527, 576, 576, 36
        $region40: #{metadata_regressor_forward.1} parent=35 // pred_fallthru
          _
        // Predicated region
        $region41: #{metadata_regressor_forward.1} parent=35 // pred_check
          %p544 = pneg %p136
        $region42: #{metadata_regressor_forward.1} parent=35 // pred_check_branch
          %546 = sbr.rel (%p544) target = $region44
        $region43: #{metadata_regressor_forward.1} parent=35 // pred_region
          %s547 = sand.u32 %s27, 1
          %s548 = scalar_lea.sflag [#allocation5], %s547
          %s549 = sand.u32 %s126, 1
          %s550 = smul.addr %s549, 9
          %s551 = scalar_lea.vmem [#allocation9], %s550
          %s553 = ssub.s32 144, 144
          %554 = vsyncadd %s548, %s553
          %s555 = smul.addr %s27, 9
          %s556 = smul.addr %s555, 16
          %s557 = scalar_lea.hbm %s4, %s556
          %s559 = sshll.u32 %s551, 4
          %s560 = int_to_ptr.vmem [resolvable:$true] %s559
          %562 = dma.hbm_to_vmem [thread:$0]  %s557, 144, %s560, %s548
        $region44: #{metadata_regressor_forward.1} parent=35 // pred_fallthru
          _
        // Predicated region
        $region45: #{metadata_regressor_forward.1} parent=35 // pred_check
          %p563 = pneg %p162
        $region46: #{metadata_regressor_forward.1} parent=35 // pred_check_branch
          %565 = sbr.rel (%p563) target = $region48
        $region47: #{metadata_regressor_forward.1} parent=35 // pred_region
          %s566 = sand.u32 %s27, 1
          %s567 = scalar_lea.sflag [#allocation5], %s566
          %s568 = sand.u32 %s152, 1
          %s569 = smul.addr %s568, 576
          %s570 = scalar_lea.vmem [#allocation10], %s569
          %s572 = ssub.s32 9216, 9216
          %573 = vsyncadd %s567, %s572
          %s574 = smul.addr %s27, 144
          %s575 = smul.addr %s574, 64
          %s576 = scalar_lea.hbm %s5, %s575
          %s577 = sshll.u32 %s570, 4
          %s578 = int_to_ptr.vmem [resolvable:$true] %s577
          %583 = dma.hbm_to_vmem [thread:$0]  %s576, 9216, %s578, %s567, 192, 192, 12
        $region48: #{metadata_regressor_forward.1} parent=35 // pred_fallthru
          _
        // Predicated region
        $region49: #{metadata_regressor_forward.1} parent=35 // pred_check
          %p584 = pneg %p188
        $region50: #{metadata_regressor_forward.1} parent=35 // pred_check_branch
          %586 = sbr.rel (%p584) target = $region52
        $region51: #{metadata_regressor_forward.1} parent=35 // pred_region
          %s587 = sand.u32 %s27, 1
          %s588 = scalar_lea.sflag [#allocation5], %s587
          %s589 = sand.u32 %s178, 1
          %s590 = smul.addr %s589, 3
          %s591 = scalar_lea.vmem [#allocation11], %s590
          %s593 = ssub.s32 48, 48
          %594 = vsyncadd %s588, %s593
          %s595 = smul.addr %s27, 3
          %s596 = smul.addr %s595, 16
          %s597 = scalar_lea.hbm %s6, %s596
          %s599 = sshll.u32 %s591, 4
          %s600 = int_to_ptr.vmem [resolvable:$true] %s599
          %602 = dma.hbm_to_vmem [thread:$0]  %s597, 48, %s600, %s588
        $region52: #{metadata_regressor_forward.1} parent=35 // pred_fallthru
          _
        // Predicated region
        $region53: #{metadata_regressor_forward.1} parent=35 // pred_check
          %p603 = pneg %p214
        $region54: #{metadata_regressor_forward.1} parent=35 // pred_check_branch
          %605 = sbr.rel (%p603) target = $region56
        $region55: #{metadata_regressor_forward.1} parent=35 // pred_region
          %s606 = sand.u32 %s27, 1
          %s607 = scalar_lea.sflag [#allocation5], %s606
          %s608 = sand.u32 %s204, 1
          %s609 = smul.addr %s608, 3
          %s610 = scalar_lea.vmem [#allocation12], %s609
          %s612 = ssub.s32 48, 48
          %613 = vsyncadd %s607, %s612
          %s614 = smul.addr %s27, 3
          %s615 = smul.addr %s614, 16
          %s616 = scalar_lea.hbm %s7, %s615
          %s618 = sshll.u32 %s610, 4
          %s619 = int_to_ptr.vmem [resolvable:$true] %s618
          %621 = dma.hbm_to_vmem [thread:$0]  %s616, 48, %s619, %s607
        $region56: #{metadata_regressor_forward.1} parent=35 // pred_fallthru
          _
        // Predicated region
        $region57: #{metadata_regressor_forward.1} parent=35 // pred_check
          %p622 = pneg %p240
        $region58: #{metadata_regressor_forward.1} parent=35 // pred_check_branch
          %624 = sbr.rel (%p622) target = $region60
        $region59: #{metadata_regressor_forward.1} parent=35 // pred_region
          %s625 = sand.u32 %s27, 1
          %s626 = scalar_lea.sflag [#allocation5], %s625
          %s627 = sand.u32 %s230, 1
          %s628 = smul.addr %s627, 3
          %s629 = scalar_lea.vmem [#allocation13], %s628
          %s631 = ssub.s32 48, 48
          %632 = vsyncadd %s626, %s631
          %s633 = smul.addr %s27, 3
          %s634 = smul.addr %s633, 16
          %s635 = scalar_lea.hbm %s8, %s634
          %s637 = sshll.u32 %s629, 4
          %s638 = int_to_ptr.vmem [resolvable:$true] %s637
          %640 = dma.hbm_to_vmem [thread:$0]  %s635, 48, %s638, %s626
        $region60: #{metadata_regressor_forward.1} parent=35 // pred_fallthru
          _
        // Predicated region
        $region61: #{metadata_regressor_forward.1} parent=35 // pred_check
          %p641 = pneg %p266
        $region62: #{metadata_regressor_forward.1} parent=35 // pred_check_branch
          %643 = sbr.rel (%p641) target = $region64
        $region63: #{metadata_regressor_forward.1} parent=35 // pred_region
          %s644 = sand.u32 %s27, 1
          %s645 = scalar_lea.sflag [#allocation5], %s644
          %s646 = sand.u32 %s256, 1
          %s647 = smul.addr %s646, 2304
          %s648 = scalar_lea.vmem [#allocation14], %s647
          %s650 = ssub.s32 36864, 36864
          %651 = vsyncadd %s645, %s650
          %s652 = smul.addr %s27, 576
          %s653 = smul.addr %s652, 64
          %s654 = scalar_lea.hbm %s9, %s653
          %s655 = sshll.u32 %s648, 4
          %s656 = int_to_ptr.vmem [resolvable:$true] %s655
          %661 = dma.hbm_to_vmem [thread:$0]  %s654, 36864, %s656, %s645, 768, 768, 48
        $region64: #{metadata_regressor_forward.1} parent=35 // pred_fallthru
          _
        // Predicated region
        $region65: #{metadata_regressor_forward.1} parent=35 // pred_check
          %p662 = pneg %p292
        $region66: #{metadata_regressor_forward.1} parent=35 // pred_check_branch
          %664 = sbr.rel (%p662) target = $region68
        $region67: #{metadata_regressor_forward.1} parent=35 // pred_region
          %s665 = sand.u32 %s27, 1
          %s666 = scalar_lea.sflag [#allocation5], %s665
          %s667 = sand.u32 %s282, 1
          %s668 = smul.addr %s667, 12
          %s669 = scalar_lea.vmem [#allocation15], %s668
          %s671 = ssub.s32 192, 192
          %672 = vsyncadd %s666, %s671
          %s673 = smul.addr %s27, 12
          %s674 = smul.addr %s673, 16
          %s675 = scalar_lea.hbm %s10, %s674
          %s677 = sshll.u32 %s669, 4
          %s678 = int_to_ptr.vmem [resolvable:$true] %s677
          %680 = dma.hbm_to_vmem [thread:$0]  %s675, 192, %s678, %s666
        $region68: #{metadata_regressor_forward.1} parent=35 // pred_fallthru
          _
        // Predicated region
        $region69: #{metadata_regressor_forward.1} parent=35 // pred_check
          %p681 = pneg %p318
        $region70: #{metadata_regressor_forward.1} parent=35 // pred_check_branch
          %683 = sbr.rel (%p681) target = $region72
        $region71: #{metadata_regressor_forward.1} parent=35 // pred_region
          %s684 = sand.u32 %s27, 1
          %s685 = scalar_lea.sflag [#allocation5], %s684
          %s686 = sand.u32 %s308, 1
          %s687 = smul.addr %s686, 2304
          %s688 = scalar_lea.vmem [#allocation16], %s687
          %s690 = ssub.s32 36864, 36864
          %691 = vsyncadd %s685, %s690
          %s692 = smul.addr %s27, 576
          %s693 = smul.addr %s692, 64
          %s694 = scalar_lea.hbm %s11, %s693
          %s695 = sshll.u32 %s688, 4
          %s696 = int_to_ptr.vmem [resolvable:$true] %s695
          %701 = dma.hbm_to_vmem [thread:$0]  %s694, 36864, %s696, %s685, 192, 192, 12
        $region72: #{metadata_regressor_forward.1} parent=35 // pred_fallthru
          _
        // Predicated region
        $region73: #{metadata_regressor_forward.1} parent=35 // pred_check
          %p702 = pneg %p344
        $region74: #{metadata_regressor_forward.1} parent=35 // pred_check_branch
          %704 = sbr.rel (%p702) target = $region76
        $region75: #{metadata_regressor_forward.1} parent=35 // pred_region
          %s705 = sand.u32 %s27, 1
          %s706 = scalar_lea.sflag [#allocation5], %s705
          %s707 = sand.u32 %s334, 1
          %s708 = smul.addr %s707, 3
          %s709 = scalar_lea.vmem [#allocation17], %s708
          %s711 = ssub.s32 48, 48
          %712 = vsyncadd %s706, %s711
          %s713 = smul.addr %s27, 3
          %s714 = smul.addr %s713, 16
          %s715 = scalar_lea.hbm %s12, %s714
          %s717 = sshll.u32 %s709, 4
          %s718 = int_to_ptr.vmem [resolvable:$true] %s717
          %720 = dma.hbm_to_vmem [thread:$0]  %s715, 48, %s718, %s706
        $region76: #{metadata_regressor_forward.1} parent=35 // pred_fallthru
          _
        // Predicated region
        $region77: #{metadata_regressor_forward.1} parent=35 // pred_check
          %p721 = pneg %p370
        $region78: #{metadata_regressor_forward.1} parent=35 // pred_check_branch
          %723 = sbr.rel (%p721) target = $region80
        $region79: #{metadata_regressor_forward.1} parent=35 // pred_region
          %s724 = sand.u32 %s27, 1
          %s725 = scalar_lea.sflag [#allocation5], %s724
          %s726 = sand.u32 %s360, 1
          %s727 = smul.addr %s726, 3
          %s728 = scalar_lea.vmem [#allocation18], %s727
          %s730 = ssub.s32 48, 48
          %731 = vsyncadd %s725, %s730
          %s732 = smul.addr %s27, 3
          %s733 = smul.addr %s732, 16
          %s734 = scalar_lea.hbm %s13, %s733
          %s736 = sshll.u32 %s728, 4
          %s737 = int_to_ptr.vmem [resolvable:$true] %s736
          %739 = dma.hbm_to_vmem [thread:$0]  %s734, 48, %s737, %s725
        $region80: #{metadata_regressor_forward.1} parent=35 // pred_fallthru
          _
        // Predicated region
        $region81: #{metadata_regressor_forward.1} parent=35 // pred_check
          %p740 = pneg %p396
        $region82: #{metadata_regressor_forward.1} parent=35 // pred_check_branch
          %742 = sbr.rel (%p740) target = $region84
        $region83: #{metadata_regressor_forward.1} parent=35 // pred_region
          %s743 = sand.u32 %s27, 1
          %s744 = scalar_lea.sflag [#allocation5], %s743
          %s745 = sand.u32 %s386, 1
          %s746 = smul.addr %s745, 3
          %s747 = scalar_lea.vmem [#allocation19], %s746
          %s749 = ssub.s32 48, 48
          %750 = vsyncadd %s744, %s749
          %s751 = smul.addr %s27, 3
          %s752 = smul.addr %s751, 16
          %s753 = scalar_lea.hbm %s14, %s752
          %s755 = sshll.u32 %s747, 4
          %s756 = int_to_ptr.vmem [resolvable:$true] %s755
          %758 = dma.hbm_to_vmem [thread:$0]  %s753, 48, %s756, %s744
        $region84: #{metadata_regressor_forward.1} parent=35 // pred_fallthru
          _
      $region36: #{metadata_regressor_forward.1} parent=5 // pred_fallthru
        _
      %p759 = scmp.le.s32.totalorder 1, %s27
      %p760 = scmp.lt.s32.totalorder %s27, 3
      %p761 = pnand %p759, %p760
      %p762 = pneg %p761
      // Predicated region
      $region85: #{metadata_regressor_forward.1} parent=5 // pred_check
        _
      $region86: #{metadata_regressor_forward.1} parent=5 // pred_check_branch
        %764 = sbr.rel (%p761) target = $region88
      $region87: #{metadata_regressor_forward.1} parent=5 // pred_region
        %s765 = ssub.s32 %s27, 1
        // Predicated region
        $region89: #{metadata_regressor_forward.1} parent=87 // pred_check
          %p766 = pneg %p69
        $region90: #{metadata_regressor_forward.1} parent=87 // pred_check_branch
          %768 = sbr.rel (%p766) target = $region92
        $region91: #{metadata_regressor_forward.1} parent=87 // pred_region
          %769 = dma.done [#allocation5], 48
        $region92: #{metadata_regressor_forward.1} parent=87 // pred_fallthru
          _
        // Predicated region
        $region93: #{metadata_regressor_forward.1} parent=87 // pred_check
          %p770 = pneg %p90
        $region94: #{metadata_regressor_forward.1} parent=87 // pred_check_branch
          %772 = sbr.rel (%p770) target = $region96
        $region95: #{metadata_regressor_forward.1} parent=87 // pred_region
          %773 = dma.done [#allocation7], 48
        $region96: #{metadata_regressor_forward.1} parent=87 // pred_fallthru
          _
        %s774 = sand.u32 %s32, 1
        %s775 = scalar_lea.sflag [#allocation5], %s774
        %s776 = sand.u32 %s103, 1
        %s777 = smul.addr %s776, 1728
        %s778 = scalar_lea.vmem [#allocation8], %s777
        // Predicated region
        $region97: #{metadata_regressor_forward.1} parent=87 // pred_check
          %p779 = pneg %p116
        $region98: #{metadata_regressor_forward.1} parent=87 // pred_check_branch
          %781 = sbr.rel (%p779) target = $region100
        $region99: #{metadata_regressor_forward.1} parent=87 // pred_region
          %782 = dma.done %s775, 27648
        $region100: #{metadata_regressor_forward.1} parent=87 // pred_fallthru
          _
        %s783 = sand.u32 %s32, 1
        %s784 = scalar_lea.sflag [#allocation5], %s783
        %s785 = sand.u32 %s129, 1
        %s786 = smul.addr %s785, 9
        %s787 = scalar_lea.vmem [#allocation9], %s786
        // Predicated region
        $region101: #{metadata_regressor_forward.1} parent=87 // pred_check
          %p788 = pneg %p142
        $region102: #{metadata_regressor_forward.1} parent=87 // pred_check_branch
          %790 = sbr.rel (%p788) target = $region104
        $region103: #{metadata_regressor_forward.1} parent=87 // pred_region
          %791 = dma.done %s784, 144
        $region104: #{metadata_regressor_forward.1} parent=87 // pred_fallthru
          _
        %s792 = sand.u32 %s32, 1
        %s793 = scalar_lea.sflag [#allocation5], %s792
        %s794 = sand.u32 %s155, 1
        %s795 = smul.addr %s794, 576
        %s796 = scalar_lea.vmem [#allocation10], %s795
        // Predicated region
        $region105: #{metadata_regressor_forward.1} parent=87 // pred_check
          %p797 = pneg %p168
        $region106: #{metadata_regressor_forward.1} parent=87 // pred_check_branch
          %799 = sbr.rel (%p797) target = $region108
        $region107: #{metadata_regressor_forward.1} parent=87 // pred_region
          %800 = dma.done %s793, 9216
        $region108: #{metadata_regressor_forward.1} parent=87 // pred_fallthru
          _
        %s801 = sand.u32 %s32, 1
        %s802 = scalar_lea.sflag [#allocation5], %s801
        %s803 = sand.u32 %s181, 1
        %s804 = smul.addr %s803, 3
        %s805 = scalar_lea.vmem [#allocation11], %s804
        // Predicated region
        $region109: #{metadata_regressor_forward.1} parent=87 // pred_check
          %p806 = pneg %p194
        $region110: #{metadata_regressor_forward.1} parent=87 // pred_check_branch
          %808 = sbr.rel (%p806) target = $region112
        $region111: #{metadata_regressor_forward.1} parent=87 // pred_region
          %809 = dma.done %s802, 48
        $region112: #{metadata_regressor_forward.1} parent=87 // pred_fallthru
          _
        %s810 = sand.u32 %s32, 1
        %s811 = scalar_lea.sflag [#allocation5], %s810
        %s812 = sand.u32 %s207, 1
        %s813 = smul.addr %s812, 3
        %s814 = scalar_lea.vmem [#allocation12], %s813
        // Predicated region
        $region113: #{metadata_regressor_forward.1} parent=87 // pred_check
          %p815 = pneg %p220
        $region114: #{metadata_regressor_forward.1} parent=87 // pred_check_branch
          %817 = sbr.rel (%p815) target = $region116
        $region115: #{metadata_regressor_forward.1} parent=87 // pred_region
          %818 = dma.done %s811, 48
        $region116: #{metadata_regressor_forward.1} parent=87 // pred_fallthru
          _
        %s819 = sand.u32 %s32, 1
        %s820 = scalar_lea.sflag [#allocation5], %s819
        %s821 = sand.u32 %s233, 1
        %s822 = smul.addr %s821, 3
        %s823 = scalar_lea.vmem [#allocation13], %s822
        // Predicated region
        $region117: #{metadata_regressor_forward.1} parent=87 // pred_check
          %p824 = pneg %p246
        $region118: #{metadata_regressor_forward.1} parent=87 // pred_check_branch
          %826 = sbr.rel (%p824) target = $region120
        $region119: #{metadata_regressor_forward.1} parent=87 // pred_region
          %827 = dma.done %s820, 48
        $region120: #{metadata_regressor_forward.1} parent=87 // pred_fallthru
          _
        %s828 = sand.u32 %s32, 1
        %s829 = scalar_lea.sflag [#allocation5], %s828
        %s830 = sand.u32 %s259, 1
        %s831 = smul.addr %s830, 2304
        %s832 = scalar_lea.vmem [#allocation14], %s831
        // Predicated region
        $region121: #{metadata_regressor_forward.1} parent=87 // pred_check
          %p833 = pneg %p272
        $region122: #{metadata_regressor_forward.1} parent=87 // pred_check_branch
          %835 = sbr.rel (%p833) target = $region124
        $region123: #{metadata_regressor_forward.1} parent=87 // pred_region
          %836 = dma.done %s829, 36864
        $region124: #{metadata_regressor_forward.1} parent=87 // pred_fallthru
          _
        %s837 = sand.u32 %s32, 1
        %s838 = scalar_lea.sflag [#allocation5], %s837
        %s839 = sand.u32 %s285, 1
        %s840 = smul.addr %s839, 12
        %s841 = scalar_lea.vmem [#allocation15], %s840
        // Predicated region
        $region125: #{metadata_regressor_forward.1} parent=87 // pred_check
          %p842 = pneg %p298
        $region126: #{metadata_regressor_forward.1} parent=87 // pred_check_branch
          %844 = sbr.rel (%p842) target = $region128
        $region127: #{metadata_regressor_forward.1} parent=87 // pred_region
          %845 = dma.done %s838, 192
        $region128: #{metadata_regressor_forward.1} parent=87 // pred_fallthru
          _
        %s846 = sand.u32 %s32, 1
        %s847 = scalar_lea.sflag [#allocation5], %s846
        %s848 = sand.u32 %s311, 1
        %s849 = smul.addr %s848, 2304
        %s850 = scalar_lea.vmem [#allocation16], %s849
        // Predicated region
        $region129: #{metadata_regressor_forward.1} parent=87 // pred_check
          %p851 = pneg %p324
        $region130: #{metadata_regressor_forward.1} parent=87 // pred_check_branch
          %853 = sbr.rel (%p851) target = $region132
        $region131: #{metadata_regressor_forward.1} parent=87 // pred_region
          %854 = dma.done %s847, 36864
        $region132: #{metadata_regressor_forward.1} parent=87 // pred_fallthru
          _
        %s855 = sand.u32 %s32, 1
        %s856 = scalar_lea.sflag [#allocation5], %s855
        %s857 = sand.u32 %s337, 1
        %s858 = smul.addr %s857, 3
        %s859 = scalar_lea.vmem [#allocation17], %s858
        // Predicated region
        $region133: #{metadata_regressor_forward.1} parent=87 // pred_check
          %p860 = pneg %p350
        $region134: #{metadata_regressor_forward.1} parent=87 // pred_check_branch
          %862 = sbr.rel (%p860) target = $region136
        $region135: #{metadata_regressor_forward.1} parent=87 // pred_region
          %863 = dma.done %s856, 48
        $region136: #{metadata_regressor_forward.1} parent=87 // pred_fallthru
          _
        %s864 = sand.u32 %s32, 1
        %s865 = scalar_lea.sflag [#allocation5], %s864
        %s866 = sand.u32 %s363, 1
        %s867 = smul.addr %s866, 3
        %s868 = scalar_lea.vmem [#allocation18], %s867
        // Predicated region
        $region137: #{metadata_regressor_forward.1} parent=87 // pred_check
          %p869 = pneg %p376
        $region138: #{metadata_regressor_forward.1} parent=87 // pred_check_branch
          %871 = sbr.rel (%p869) target = $region140
        $region139: #{metadata_regressor_forward.1} parent=87 // pred_region
          %872 = dma.done %s865, 48
        $region140: #{metadata_regressor_forward.1} parent=87 // pred_fallthru
          _
        %s873 = sand.u32 %s32, 1
        %s874 = scalar_lea.sflag [#allocation5], %s873
        %s875 = sand.u32 %s389, 1
        %s876 = smul.addr %s875, 3
        %s877 = scalar_lea.vmem [#allocation19], %s876
        // Predicated region
        $region141: #{metadata_regressor_forward.1} parent=87 // pred_check
          %p878 = pneg %p402
        $region142: #{metadata_regressor_forward.1} parent=87 // pred_check_branch
          %880 = sbr.rel (%p878) target = $region144
        $region143: #{metadata_regressor_forward.1} parent=87 // pred_region
          %881 = dma.done %s874, 48
        $region144: #{metadata_regressor_forward.1} parent=87 // pred_fallthru
          _
        // Predicated region
        $region145: #{metadata_regressor_forward.1} parent=87 // pred_check
          %p882 = pneg %p423
        $region146: #{metadata_regressor_forward.1} parent=87 // pred_check_branch
          %884 = sbr.rel (%p882) target = $region148
        $region147: #{metadata_regressor_forward.1} parent=87 // pred_region
          %885 = dma.done [#allocation7], 48
        $region148: #{metadata_regressor_forward.1} parent=87 // pred_fallthru
          _
        %p886 = pneg %p48
        %p887 = pneg %p45
        %p888 = pneg %p69
        %p889 = pneg %p66
        %p890 = pneg %p90
        %p891 = pneg %p87
        %s892 = sand.u32 %s32, 1
        %s893 = scalar_lea.sflag [#allocation5], %s892
        %s894 = sand.u32 %s103, 1
        %s895 = smul.addr %s894, 1728
        %s896 = scalar_lea.vmem [#allocation8], %s895
        %p897 = pneg %p116
        %p898 = pneg %p113
        %s899 = sand.u32 %s32, 1
        %s900 = scalar_lea.sflag [#allocation5], %s899
        %s901 = sand.u32 %s129, 1
        %s902 = smul.addr %s901, 9
        %s903 = scalar_lea.vmem [#allocation9], %s902
        %p904 = pneg %p142
        %p905 = pneg %p139
        %s906 = sand.u32 %s32, 1
        %s907 = scalar_lea.sflag [#allocation5], %s906
        %s908 = sand.u32 %s155, 1
        %s909 = smul.addr %s908, 576
        %s910 = scalar_lea.vmem [#allocation10], %s909
        %p911 = pneg %p168
        %p912 = pneg %p165
        %s913 = sand.u32 %s32, 1
        %s914 = scalar_lea.sflag [#allocation5], %s913
        %s915 = sand.u32 %s181, 1
        %s916 = smul.addr %s915, 3
        %s917 = scalar_lea.vmem [#allocation11], %s916
        %p918 = pneg %p194
        %p919 = pneg %p191
        %s920 = sand.u32 %s32, 1
        %s921 = scalar_lea.sflag [#allocation5], %s920
        %s922 = sand.u32 %s207, 1
        %s923 = smul.addr %s922, 3
        %s924 = scalar_lea.vmem [#allocation12], %s923
        %p925 = pneg %p220
        %p926 = pneg %p217
        %s927 = sand.u32 %s32, 1
        %s928 = scalar_lea.sflag [#allocation5], %s927
        %s929 = sand.u32 %s233, 1
        %s930 = smul.addr %s929, 3
        %s931 = scalar_lea.vmem [#allocation13], %s930
        %p932 = pneg %p246
        %p933 = pneg %p243
        %s934 = sand.u32 %s32, 1
        %s935 = scalar_lea.sflag [#allocation5], %s934
        %s936 = sand.u32 %s259, 1
        %s937 = smul.addr %s936, 2304
        %s938 = scalar_lea.vmem [#allocation14], %s937
        %p939 = pneg %p272
        %p940 = pneg %p269
        %s941 = sand.u32 %s32, 1
        %s942 = scalar_lea.sflag [#allocation5], %s941
        %s943 = sand.u32 %s285, 1
        %s944 = smul.addr %s943, 12
        %s945 = scalar_lea.vmem [#allocation15], %s944
        %p946 = pneg %p298
        %p947 = pneg %p295
        %s948 = sand.u32 %s32, 1
        %s949 = scalar_lea.sflag [#allocation5], %s948
        %s950 = sand.u32 %s311, 1
        %s951 = smul.addr %s950, 2304
        %s952 = scalar_lea.vmem [#allocation16], %s951
        %p953 = pneg %p324
        %p954 = pneg %p321
        %s955 = sand.u32 %s32, 1
        %s956 = scalar_lea.sflag [#allocation5], %s955
        %s957 = sand.u32 %s337, 1
        %s958 = smul.addr %s957, 3
        %s959 = scalar_lea.vmem [#allocation17], %s958
        %p960 = pneg %p350
        %p961 = pneg %p347
        %s962 = sand.u32 %s32, 1
        %s963 = scalar_lea.sflag [#allocation5], %s962
        %s964 = sand.u32 %s363, 1
        %s965 = smul.addr %s964, 3
        %s966 = scalar_lea.vmem [#allocation18], %s965
        %p967 = pneg %p376
        %p968 = pneg %p373
        %s969 = sand.u32 %s32, 1
        %s970 = scalar_lea.sflag [#allocation5], %s969
        %s971 = sand.u32 %s389, 1
        %s972 = smul.addr %s971, 3
        %s973 = scalar_lea.vmem [#allocation19], %s972
        %p974 = pneg %p402
        %p975 = pneg %p399
        %p976 = pneg %p423
        %p977 = pneg %p420
        %p978 = pneg %p444
        %p979 = pneg %p441
        %p980 = pneg %p465
        %p981 = pneg %p462
        %p983 = scmp.eq.s32.totalorder %s32, 0
        // Predicated region
        $region149: #{metadata_regressor_forward.1} parent=87 // pred_check
          %p984 = pneg %p983
        $region150: #{metadata_regressor_forward.1} parent=87 // pred_check_branch
          %986 = sbr.rel (%p984) target = $region152
        $region151: #{metadata_regressor_forward.1} parent=87 // pred_region
          %v987 = vld [vmem:[%s0] sm:$0xff]
          %v988 = vld [vmem:[%s0 + $0x8] sm:$0xff]
          %v989 = vld [vmem:[%s0 + $0x10] sm:$0xff]
          %v990 = vld [vmem:[%s0 + $0x18] sm:$0xff]
          %v991 = vld [vmem:[%s0 + $0x20] sm:$0xff]
          %v992 = vld [vmem:[%s0 + $0x28] sm:$0xff]
          %v993 = vld [vmem:[#allocation4] sm:$0x7]
          %v994 = vld [vmem:[#allocation6] sm:$0x7]
          %v995 = vadd.f32 %v987, %v988
          %v996 = vadd.f32 %v995, %v989
          %997 = vadd.xlane.f32.xlu0 %v996
          %v998 = vpop.xlane.xlu0 %997
          %v999 = vadd.f32 %v990, %v991
          %v1000 = vadd.f32 %v999, %v992
          %1001 = vadd.xlane.f32.xlu0 %v1000
          %v1002 = vpop.xlane.xlu0 %1001
          %v1003 = vrcp.pop 384.0
          %v1004 = vmul.f32 %v998, %v1003
          %v1005 = vmul.f32 %v1002, %v1003
          %v1006 = vsub.f32 %v987, %v1004
          %v1007 = vsub.f32 %v988, %v1004
          %v1008 = vsub.f32 %v989, %v1004
          %v1009 = vsub.f32 %v990, %v1005
          %v1010 = vsub.f32 %v991, %v1005
          %v1011 = vsub.f32 %v992, %v1005
          %v1012 = vmul.f32 %v1006, %v1006
          %v1013 = vmul.f32 %v1007, %v1007
          %v1014 = vmul.f32 %v1008, %v1008
          %v1015 = vmul.f32 %v1009, %v1009
          %v1016 = vmul.f32 %v1010, %v1010
          %v1017 = vmul.f32 %v1011, %v1011
          %v1018 = vadd.f32 %v1012, %v1013
          %v1019 = vadd.f32 %v1018, %v1014
          %1020 = vadd.xlane.f32.xlu0 %v1019
          %v1021 = vpop.xlane.xlu0 %1020
          %v1022 = vadd.f32 %v1015, %v1016
          %v1023 = vadd.f32 %v1022, %v1017
          %1024 = vadd.xlane.f32.xlu0 %v1023
          %v1025 = vpop.xlane.xlu0 %1024
          %v1026 = vmul.f32 %v1021, %v1003
          %v1027 = vmul.f32 %v1025, %v1003
          %v1028 = vadd.f32 %v1026, 1e-12
          %v1029 = vadd.f32 %v1027, 1e-12
          %v1030 = vrsqrt.pop %v1028
          %v1031 = vrsqrt.pop %v1029
          %v1032 = vmul.f32 %v1006, %v1030
          %v1033 = vmul.f32 %v1007, %v1030
          %v1034 = vmul.f32 %v1008, %v1030
          %v1035 = vmul.f32 %v1009, %v1031
          %v1036 = vmul.f32 %v1010, %v1031
          %v1037 = vmul.f32 %v1011, %v1031
          %v1039 = vlaneseq
          %v1040 = vshrl.u32 %v1039, 7
          %v1041 = vsub.s32 0, %v1040
          %v1042 = vrot.slane %v993, %v1041
          %v1043 = vlaneseq
          %v1044 = vshrl.u32 %v1043, 7
          %v1045 = vsub.s32 1, %v1044
          %v1046 = vrot.slane %v993, %v1045
          %v1047 = vlaneseq
          %v1048 = vshrl.u32 %v1047, 7
          %v1049 = vsub.s32 2, %v1048
          %v1050 = vrot.slane %v993, %v1049
          %v1054 = vmul.f32 %v1032, %v1042
          %v1055 = vmul.f32 %v1033, %v1046
          %v1056 = vmul.f32 %v1034, %v1050
          %v1057 = vmul.f32 %v1035, %v1042
          %v1058 = vmul.f32 %v1036, %v1046
          %v1059 = vmul.f32 %v1037, %v1050
          %v1061 = vlaneseq
          %v1062 = vshrl.u32 %v1061, 7
          %v1063 = vsub.s32 0, %v1062
          %v1064 = vrot.slane %v994, %v1063
          %v1065 = vlaneseq
          %v1066 = vshrl.u32 %v1065, 7
          %v1067 = vsub.s32 1, %v1066
          %v1068 = vrot.slane %v994, %v1067
          %v1069 = vlaneseq
          %v1070 = vshrl.u32 %v1069, 7
          %v1071 = vsub.s32 2, %v1070
          %v1072 = vrot.slane %v994, %v1071
          %v1076 = vadd.f32 %v1054, %v1064
          %v1077 = vadd.f32 %v1055, %v1068
          %v1078 = vadd.f32 %v1056, %v1072
          %v1079 = vadd.f32 %v1057, %v1064
          %v1080 = vadd.f32 %v1058, %v1068
          %v1081 = vadd.f32 %v1059, %v1072
          %1082 = vst [vmem:[#allocation2] sm:$0xff] %v1076
          %1083 = vst [vmem:[#allocation2 + $0x8] sm:$0xff] %v1077
          %1084 = vst [vmem:[#allocation2 + $0x10] sm:$0xff] %v1078
          %1085 = vst [vmem:[#allocation2 + $0x18] sm:$0xff] %v1079
          %1086 = vst [vmem:[#allocation2 + $0x20] sm:$0xff] %v1080
          %1087 = vst [vmem:[#allocation2 + $0x28] sm:$0xff] %v1081
        $region152: #{metadata_regressor_forward.1} parent=87 // pred_fallthru
          _
        %v1088 = vld [vmem:[#allocation2] sm:$0xff]
        %v1089 = vld [vmem:[#allocation2 + $0x8] sm:$0xff]
        %v1090 = vld [vmem:[#allocation2 + $0x10] sm:$0xff]
        %v1091 = vld [vmem:[#allocation2 + $0x18] sm:$0xff]
        %v1092 = vld [vmem:[#allocation2 + $0x20] sm:$0xff]
        %v1093 = vld [vmem:[#allocation2 + $0x28] sm:$0xff]
        %v1094 = vld [vmem:[%s778] sm:$0xff]
        %v1095 = vld [vmem:[%s778 + $0x8] sm:$0xff]
        %v1096 = vld [vmem:[%s778 + $0x10] sm:$0xff]
        %v1097 = vld [vmem:[%s778 + $0x18] sm:$0xff]
        %v1098 = vld [vmem:[%s778 + $0x20] sm:$0xf]
        %v1099 = vld [vmem:[%s778 + $0x24] sm:$0xff]
        %v1100 = vld [vmem:[%s778 + $0x2c] sm:$0xff]
        %v1101 = vld [vmem:[%s778 + $0x34] sm:$0xff]
        %v1102 = vld [vmem:[%s778 + $0x3c] sm:$0xff]
        %v1103 = vld [vmem:[%s778 + $0x44] sm:$0xf]
        %v1104 = vld [vmem:[%s778 + $0x48] sm:$0xff]
        %v1105 = vld [vmem:[%s778 + $0x50] sm:$0xff]
        %v1106 = vld [vmem:[%s778 + $0x58] sm:$0xff]
        %v1107 = vld [vmem:[%s778 + $0x60] sm:$0xff]
        %v1108 = vld [vmem:[%s778 + $0x68] sm:$0xf]
        %v1109 = vld [vmem:[%s778 + $0x6c] sm:$0xff]
        %v1110 = vld [vmem:[%s778 + $0x74] sm:$0xff]
        %v1111 = vld [vmem:[%s778 + $0x7c] sm:$0xff]
        %v1112 = vld [vmem:[%s778 + $0x84] sm:$0xff]
        %v1113 = vld [vmem:[%s778 + $0x8c] sm:$0xf]
        %v1114 = vld [vmem:[%s778 + $0x90] sm:$0xff]
        %v1115 = vld [vmem:[%s778 + $0x98] sm:$0xff]
        %v1116 = vld [vmem:[%s778 + $0xa0] sm:$0xff]
        %v1117 = vld [vmem:[%s778 + $0xa8] sm:$0xff]
        %v1118 = vld [vmem:[%s778 + $0xb0] sm:$0xf]
        %v1119 = vld [vmem:[%s778 + $0xb4] sm:$0xff]
        %v1120 = vld [vmem:[%s778 + $0xbc] sm:$0xff]
        %v1121 = vld [vmem:[%s778 + $0xc4] sm:$0xff]
        %v1122 = vld [vmem:[%s778 + $0xcc] sm:$0xff]
        %v1123 = vld [vmem:[%s778 + $0xd4] sm:$0xf]
        %v1124 = vld [vmem:[%s778 + $0xd8] sm:$0xff]
        %v1125 = vld [vmem:[%s778 + $0xe0] sm:$0xff]
        %v1126 = vld [vmem:[%s778 + $0xe8] sm:$0xff]
        %v1127 = vld [vmem:[%s778 + $0xf0] sm:$0xff]
        %v1128 = vld [vmem:[%s778 + $0xf8] sm:$0xf]
        %v1129 = vld [vmem:[%s778 + $0xfc] sm:$0xff]
        %v1130 = vld [vmem:[%s778 + $0x104] sm:$0xff]
        %v1131 = vld [vmem:[%s778 + $0x10c] sm:$0xff]
        %v1132 = vld [vmem:[%s778 + $0x114] sm:$0xff]
        %v1133 = vld [vmem:[%s778 + $0x11c] sm:$0xf]
        %v1134 = vld [vmem:[%s778 + $0x120] sm:$0xff]
        %v1135 = vld [vmem:[%s778 + $0x128] sm:$0xff]
        %v1136 = vld [vmem:[%s778 + $0x130] sm:$0xff]
        %v1137 = vld [vmem:[%s778 + $0x138] sm:$0xff]
        %v1138 = vld [vmem:[%s778 + $0x140] sm:$0xf]
        %v1139 = vld [vmem:[%s778 + $0x144] sm:$0xff]
        %v1140 = vld [vmem:[%s778 + $0x14c] sm:$0xff]
        %v1141 = vld [vmem:[%s778 + $0x154] sm:$0xff]
        %v1142 = vld [vmem:[%s778 + $0x15c] sm:$0xff]
        %v1143 = vld [vmem:[%s778 + $0x164] sm:$0xf]
        %v1144 = vld [vmem:[%s778 + $0x168] sm:$0xff]
        %v1145 = vld [vmem:[%s778 + $0x170] sm:$0xff]
        %v1146 = vld [vmem:[%s778 + $0x178] sm:$0xff]
        %v1147 = vld [vmem:[%s778 + $0x180] sm:$0xff]
        %v1148 = vld [vmem:[%s778 + $0x188] sm:$0xf]
        %v1149 = vld [vmem:[%s778 + $0x18c] sm:$0xff]
        %v1150 = vld [vmem:[%s778 + $0x194] sm:$0xff]
        %v1151 = vld [vmem:[%s778 + $0x19c] sm:$0xff]
        %v1152 = vld [vmem:[%s778 + $0x1a4] sm:$0xff]
        %v1153 = vld [vmem:[%s778 + $0x1ac] sm:$0xf]
        %v1154 = vld [vmem:[%s778 + $0x1b0] sm:$0xff]
        %v1155 = vld [vmem:[%s778 + $0x1b8] sm:$0xff]
        %v1156 = vld [vmem:[%s778 + $0x1c0] sm:$0xff]
        %v1157 = vld [vmem:[%s778 + $0x1c8] sm:$0xff]
        %v1158 = vld [vmem:[%s778 + $0x1d0] sm:$0xf]
        %v1159 = vld [vmem:[%s778 + $0x1d4] sm:$0xff]
        %v1160 = vld [vmem:[%s778 + $0x1dc] sm:$0xff]
        %v1161 = vld [vmem:[%s778 + $0x1e4] sm:$0xff]
        %v1162 = vld [vmem:[%s778 + $0x1ec] sm:$0xff]
        %v1163 = vld [vmem:[%s778 + $0x1f4] sm:$0xf]
        %v1164 = vld [vmem:[%s778 + $0x1f8] sm:$0xff]
        %v1165 = vld [vmem:[%s778 + $0x200] sm:$0xff]
        %v1166 = vld [vmem:[%s778 + $0x208] sm:$0xff]
        %v1167 = vld [vmem:[%s778 + $0x210] sm:$0xff]
        %v1168 = vld [vmem:[%s778 + $0x218] sm:$0xf]
        %v1169 = vld [vmem:[%s778 + $0x21c] sm:$0xff]
        %v1170 = vld [vmem:[%s778 + $0x224] sm:$0xff]
        %v1171 = vld [vmem:[%s778 + $0x22c] sm:$0xff]
        %v1172 = vld [vmem:[%s778 + $0x234] sm:$0xff]
        %v1173 = vld [vmem:[%s778 + $0x23c] sm:$0xf]
        %v1174 = vld [vmem:[%s778 + $0x240] sm:$0xff]
        %v1175 = vld [vmem:[%s778 + $0x248] sm:$0xff]
        %v1176 = vld [vmem:[%s778 + $0x250] sm:$0xff]
        %v1177 = vld [vmem:[%s778 + $0x258] sm:$0xff]
        %v1178 = vld [vmem:[%s778 + $0x260] sm:$0xf]
        %v1179 = vld [vmem:[%s778 + $0x264] sm:$0xff]
        %v1180 = vld [vmem:[%s778 + $0x26c] sm:$0xff]
        %v1181 = vld [vmem:[%s778 + $0x274] sm:$0xff]
        %v1182 = vld [vmem:[%s778 + $0x27c] sm:$0xff]
        %v1183 = vld [vmem:[%s778 + $0x284] sm:$0xf]
        %v1184 = vld [vmem:[%s778 + $0x288] sm:$0xff]
        %v1185 = vld [vmem:[%s778 + $0x290] sm:$0xff]
        %v1186 = vld [vmem:[%s778 + $0x298] sm:$0xff]
        %v1187 = vld [vmem:[%s778 + $0x2a0] sm:$0xff]
        %v1188 = vld [vmem:[%s778 + $0x2a8] sm:$0xf]
        %v1189 = vld [vmem:[%s778 + $0x2ac] sm:$0xff]
        %v1190 = vld [vmem:[%s778 + $0x2b4] sm:$0xff]
        %v1191 = vld [vmem:[%s778 + $0x2bc] sm:$0xff]
        %v1192 = vld [vmem:[%s778 + $0x2c4] sm:$0xff]
        %v1193 = vld [vmem:[%s778 + $0x2cc] sm:$0xf]
        %v1194 = vld [vmem:[%s778 + $0x2d0] sm:$0xff]
        %v1195 = vld [vmem:[%s778 + $0x2d8] sm:$0xff]
        %v1196 = vld [vmem:[%s778 + $0x2e0] sm:$0xff]
        %v1197 = vld [vmem:[%s778 + $0x2e8] sm:$0xff]
        %v1198 = vld [vmem:[%s778 + $0x2f0] sm:$0xf]
        %v1199 = vld [vmem:[%s778 + $0x2f4] sm:$0xff]
        %v1200 = vld [vmem:[%s778 + $0x2fc] sm:$0xff]
        %v1201 = vld [vmem:[%s778 + $0x304] sm:$0xff]
        %v1202 = vld [vmem:[%s778 + $0x30c] sm:$0xff]
        %v1203 = vld [vmem:[%s778 + $0x314] sm:$0xf]
        %v1204 = vld [vmem:[%s778 + $0x318] sm:$0xff]
        %v1205 = vld [vmem:[%s778 + $0x320] sm:$0xff]
        %v1206 = vld [vmem:[%s778 + $0x328] sm:$0xff]
        %v1207 = vld [vmem:[%s778 + $0x330] sm:$0xff]
        %v1208 = vld [vmem:[%s778 + $0x338] sm:$0xf]
        %v1209 = vld [vmem:[%s778 + $0x33c] sm:$0xff]
        %v1210 = vld [vmem:[%s778 + $0x344] sm:$0xff]
        %v1211 = vld [vmem:[%s778 + $0x34c] sm:$0xff]
        %v1212 = vld [vmem:[%s778 + $0x354] sm:$0xff]
        %v1213 = vld [vmem:[%s778 + $0x35c] sm:$0xf]
        %v1214 = vld [vmem:[%s778 + $0x360] sm:$0xff]
        %v1215 = vld [vmem:[%s778 + $0x368] sm:$0xff]
        %v1216 = vld [vmem:[%s778 + $0x370] sm:$0xff]
        %v1217 = vld [vmem:[%s778 + $0x378] sm:$0xff]
        %v1218 = vld [vmem:[%s778 + $0x380] sm:$0xf]
        %v1219 = vld [vmem:[%s778 + $0x384] sm:$0xff]
        %v1220 = vld [vmem:[%s778 + $0x38c] sm:$0xff]
        %v1221 = vld [vmem:[%s778 + $0x394] sm:$0xff]
        %v1222 = vld [vmem:[%s778 + $0x39c] sm:$0xff]
        %v1223 = vld [vmem:[%s778 + $0x3a4] sm:$0xf]
        %v1224 = vld [vmem:[%s778 + $0x3a8] sm:$0xff]
        %v1225 = vld [vmem:[%s778 + $0x3b0] sm:$0xff]
        %v1226 = vld [vmem:[%s778 + $0x3b8] sm:$0xff]
        %v1227 = vld [vmem:[%s778 + $0x3c0] sm:$0xff]
        %v1228 = vld [vmem:[%s778 + $0x3c8] sm:$0xf]
        %v1229 = vld [vmem:[%s778 + $0x3cc] sm:$0xff]
        %v1230 = vld [vmem:[%s778 + $0x3d4] sm:$0xff]
        %v1231 = vld [vmem:[%s778 + $0x3dc] sm:$0xff]
        %v1232 = vld [vmem:[%s778 + $0x3e4] sm:$0xff]
        %v1233 = vld [vmem:[%s778 + $0x3ec] sm:$0xf]
        %v1234 = vld [vmem:[%s778 + $0x3f0] sm:$0xff]
        %v1235 = vld [vmem:[%s778 + $0x3f8] sm:$0xff]
        %v1236 = vld [vmem:[%s778 + $0x400] sm:$0xff]
        %v1237 = vld [vmem:[%s778 + $0x408] sm:$0xff]
        %v1238 = vld [vmem:[%s778 + $0x410] sm:$0xf]
        %v1239 = vld [vmem:[%s778 + $0x414] sm:$0xff]
        %v1240 = vld [vmem:[%s778 + $0x41c] sm:$0xff]
        %v1241 = vld [vmem:[%s778 + $0x424] sm:$0xff]
        %v1242 = vld [vmem:[%s778 + $0x42c] sm:$0xff]
        %v1243 = vld [vmem:[%s778 + $0x434] sm:$0xf]
        %v1244 = vld [vmem:[%s778 + $0x438] sm:$0xff]
        %v1245 = vld [vmem:[%s778 + $0x440] sm:$0xff]
        %v1246 = vld [vmem:[%s778 + $0x448] sm:$0xff]
        %v1247 = vld [vmem:[%s778 + $0x450] sm:$0xff]
        %v1248 = vld [vmem:[%s778 + $0x458] sm:$0xf]
        %v1249 = vld [vmem:[%s778 + $0x45c] sm:$0xff]
        %v1250 = vld [vmem:[%s778 + $0x464] sm:$0xff]
        %v1251 = vld [vmem:[%s778 + $0x46c] sm:$0xff]
        %v1252 = vld [vmem:[%s778 + $0x474] sm:$0xff]
        %v1253 = vld [vmem:[%s778 + $0x47c] sm:$0xf]
        %v1254 = vld [vmem:[%s778 + $0x480] sm:$0xff]
        %v1255 = vld [vmem:[%s778 + $0x488] sm:$0xff]
        %v1256 = vld [vmem:[%s778 + $0x490] sm:$0xff]
        %v1257 = vld [vmem:[%s778 + $0x498] sm:$0xff]
        %v1258 = vld [vmem:[%s778 + $0x4a0] sm:$0xf]
        %v1259 = vld [vmem:[%s778 + $0x4a4] sm:$0xff]
        %v1260 = vld [vmem:[%s778 + $0x4ac] sm:$0xff]
        %v1261 = vld [vmem:[%s778 + $0x4b4] sm:$0xff]
        %v1262 = vld [vmem:[%s778 + $0x4bc] sm:$0xff]
        %v1263 = vld [vmem:[%s778 + $0x4c4] sm:$0xf]
        %v1264 = vld [vmem:[%s778 + $0x4c8] sm:$0xff]
        %v1265 = vld [vmem:[%s778 + $0x4d0] sm:$0xff]
        %v1266 = vld [vmem:[%s778 + $0x4d8] sm:$0xff]
        %v1267 = vld [vmem:[%s778 + $0x4e0] sm:$0xff]
        %v1268 = vld [vmem:[%s778 + $0x4e8] sm:$0xf]
        %v1269 = vld [vmem:[%s778 + $0x4ec] sm:$0xff]
        %v1270 = vld [vmem:[%s778 + $0x4f4] sm:$0xff]
        %v1271 = vld [vmem:[%s778 + $0x4fc] sm:$0xff]
        %v1272 = vld [vmem:[%s778 + $0x504] sm:$0xff]
        %v1273 = vld [vmem:[%s778 + $0x50c] sm:$0xf]
        %v1274 = vld [vmem:[%s778 + $0x510] sm:$0xff]
        %v1275 = vld [vmem:[%s778 + $0x518] sm:$0xff]
        %v1276 = vld [vmem:[%s778 + $0x520] sm:$0xff]
        %v1277 = vld [vmem:[%s778 + $0x528] sm:$0xff]
        %v1278 = vld [vmem:[%s778 + $0x530] sm:$0xf]
        %v1279 = vld [vmem:[%s778 + $0x534] sm:$0xff]
        %v1280 = vld [vmem:[%s778 + $0x53c] sm:$0xff]
        %v1281 = vld [vmem:[%s778 + $0x544] sm:$0xff]
        %v1282 = vld [vmem:[%s778 + $0x54c] sm:$0xff]
        %v1283 = vld [vmem:[%s778 + $0x554] sm:$0xf]
        %v1284 = vld [vmem:[%s778 + $0x558] sm:$0xff]
        %v1285 = vld [vmem:[%s778 + $0x560] sm:$0xff]
        %v1286 = vld [vmem:[%s778 + $0x568] sm:$0xff]
        %v1287 = vld [vmem:[%s778 + $0x570] sm:$0xff]
        %v1288 = vld [vmem:[%s778 + $0x578] sm:$0xf]
        %v1289 = vld [vmem:[%s778 + $0x57c] sm:$0xff]
        %v1290 = vld [vmem:[%s778 + $0x584] sm:$0xff]
        %v1291 = vld [vmem:[%s778 + $0x58c] sm:$0xff]
        %v1292 = vld [vmem:[%s778 + $0x594] sm:$0xff]
        %v1293 = vld [vmem:[%s778 + $0x59c] sm:$0xf]
        %v1294 = vld [vmem:[%s778 + $0x5a0] sm:$0xff]
        %v1295 = vld [vmem:[%s778 + $0x5a8] sm:$0xff]
        %v1296 = vld [vmem:[%s778 + $0x5b0] sm:$0xff]
        %v1297 = vld [vmem:[%s778 + $0x5b8] sm:$0xff]
        %v1298 = vld [vmem:[%s778 + $0x5c0] sm:$0xf]
        %v1299 = vld [vmem:[%s778 + $0x5c4] sm:$0xff]
        %v1300 = vld [vmem:[%s778 + $0x5cc] sm:$0xff]
        %v1301 = vld [vmem:[%s778 + $0x5d4] sm:$0xff]
        %v1302 = vld [vmem:[%s778 + $0x5dc] sm:$0xff]
        %v1303 = vld [vmem:[%s778 + $0x5e4] sm:$0xf]
        %v1304 = vld [vmem:[%s778 + $0x5e8] sm:$0xff]
        %v1305 = vld [vmem:[%s778 + $0x5f0] sm:$0xff]
        %v1306 = vld [vmem:[%s778 + $0x5f8] sm:$0xff]
        %v1307 = vld [vmem:[%s778 + $0x600] sm:$0xff]
        %v1308 = vld [vmem:[%s778 + $0x608] sm:$0xf]
        %v1309 = vld [vmem:[%s778 + $0x60c] sm:$0xff]
        %v1310 = vld [vmem:[%s778 + $0x614] sm:$0xff]
        %v1311 = vld [vmem:[%s778 + $0x61c] sm:$0xff]
        %v1312 = vld [vmem:[%s778 + $0x624] sm:$0xff]
        %v1313 = vld [vmem:[%s778 + $0x62c] sm:$0xf]
        %v1314 = vld [vmem:[%s778 + $0x630] sm:$0xff]
        %v1315 = vld [vmem:[%s778 + $0x638] sm:$0xff]
        %v1316 = vld [vmem:[%s778 + $0x640] sm:$0xff]
        %v1317 = vld [vmem:[%s778 + $0x648] sm:$0xff]
        %v1318 = vld [vmem:[%s778 + $0x650] sm:$0xf]
        %v1319 = vld [vmem:[%s778 + $0x654] sm:$0xff]
        %v1320 = vld [vmem:[%s778 + $0x65c] sm:$0xff]
        %v1321 = vld [vmem:[%s778 + $0x664] sm:$0xff]
        %v1322 = vld [vmem:[%s778 + $0x66c] sm:$0xff]
        %v1323 = vld [vmem:[%s778 + $0x674] sm:$0xf]
        %v1324 = vld [vmem:[%s778 + $0x678] sm:$0xff]
        %v1325 = vld [vmem:[%s778 + $0x680] sm:$0xff]
        %v1326 = vld [vmem:[%s778 + $0x688] sm:$0xff]
        %v1327 = vld [vmem:[%s778 + $0x690] sm:$0xff]
        %v1328 = vld [vmem:[%s778 + $0x698] sm:$0xf]
        %v1329 = vld [vmem:[%s778 + $0x69c] sm:$0xff]
        %v1330 = vld [vmem:[%s778 + $0x6a4] sm:$0xff]
        %v1331 = vld [vmem:[%s778 + $0x6ac] sm:$0xff]
        %v1332 = vld [vmem:[%s778 + $0x6b4] sm:$0xff]
        %v1333 = vld [vmem:[%s778 + $0x6bc] sm:$0xf]
        %v1334 = vld [vmem:[%s787] sm:$0xff]
        %v1335 = vld [vmem:[%s787 + $0x8] sm:$0x1]
        %v1336 = vpack.c.bf16 %v1091, %v1088
        %v1337 = vpack.c.bf16 %v1092, %v1089
        %v1338 = vpack.c.bf16 %v1093, %v1090
        %v1341 = vlaneseq
        %v1342 = vshrl.u32 %v1341, 7
        %v1343 = vsub.s32 0, %v1342
        %v1344 = vrot.slane %v1334, %v1343
        %v1345 = vlaneseq
        %v1346 = vshrl.u32 %v1345, 7
        %v1347 = vsub.s32 1, %v1346
        %v1348 = vrot.slane %v1334, %v1347
        %v1349 = vlaneseq
        %v1350 = vshrl.u32 %v1349, 7
        %v1351 = vsub.s32 2, %v1350
        %v1352 = vrot.slane %v1334, %v1351
        %v1353 = vlaneseq
        %v1354 = vshrl.u32 %v1353, 7
        %v1355 = vsub.s32 3, %v1354
        %v1356 = vrot.slane %v1334, %v1355
        %v1357 = vlaneseq
        %v1358 = vshrl.u32 %v1357, 7
        %v1359 = vsub.s32 4, %v1358
        %v1360 = vrot.slane %v1334, %v1359
        %v1361 = vlaneseq
        %v1362 = vshrl.u32 %v1361, 7
        %v1363 = vsub.s32 5, %v1362
        %v1364 = vrot.slane %v1334, %v1363
        %v1365 = vlaneseq
        %v1366 = vshrl.u32 %v1365, 7
        %v1367 = vsub.s32 6, %v1366
        %v1368 = vrot.slane %v1334, %v1367
        %v1369 = vlaneseq
        %v1370 = vshrl.u32 %v1369, 7
        %v1371 = vsub.s32 7, %v1370
        %v1372 = vrot.slane %v1334, %v1371
        %v1373 = vlaneseq
        %v1374 = vshrl.u32 %v1373, 7
        %v1375 = vsub.s32 0, %v1374
        %v1376 = vrot.slane %v1335, %v1375
        %v1626 = vunpack.c.l.b16 %v1094
        %v1627 = vunpack.c.h.b16 %v1094
        %v1628 = vunpack.c.l.b16 %v1095
        %v1629 = vunpack.c.h.b16 %v1095
        %v1630 = vunpack.c.l.b16 %v1096
        %v1631 = vunpack.c.h.b16 %v1096
        %v1632 = vunpack.c.l.b16 %v1097
        %v1633 = vunpack.c.h.b16 %v1097
        %v1634 = vunpack.c.l.b16 %v1098
        %v1635 = vunpack.c.l.b16 %v1099
        %v1636 = vunpack.c.h.b16 %v1099
        %v1637 = vunpack.c.l.b16 %v1100
        %v1638 = vunpack.c.h.b16 %v1100
        %v1639 = vunpack.c.l.b16 %v1101
        %v1640 = vunpack.c.h.b16 %v1101
        %v1641 = vunpack.c.l.b16 %v1102
        %v1642 = vunpack.c.h.b16 %v1102
        %v1643 = vunpack.c.l.b16 %v1103
        %v1644 = vunpack.c.l.b16 %v1104
        %v1645 = vunpack.c.h.b16 %v1104
        %v1646 = vunpack.c.l.b16 %v1105
        %v1647 = vunpack.c.h.b16 %v1105
        %v1648 = vunpack.c.l.b16 %v1106
        %v1649 = vunpack.c.h.b16 %v1106
        %v1650 = vunpack.c.l.b16 %v1107
        %v1651 = vunpack.c.h.b16 %v1107
        %v1652 = vunpack.c.l.b16 %v1108
        %v1653 = vunpack.c.l.b16 %v1109
        %v1654 = vunpack.c.h.b16 %v1109
        %v1655 = vunpack.c.l.b16 %v1110
        %v1656 = vunpack.c.h.b16 %v1110
        %v1657 = vunpack.c.l.b16 %v1111
        %v1658 = vunpack.c.h.b16 %v1111
        %v1659 = vunpack.c.l.b16 %v1112
        %v1660 = vunpack.c.h.b16 %v1112
        %v1661 = vunpack.c.l.b16 %v1113
        %v1662 = vunpack.c.l.b16 %v1114
        %v1663 = vunpack.c.h.b16 %v1114
        %v1664 = vunpack.c.l.b16 %v1115
        %v1665 = vunpack.c.h.b16 %v1115
        %v1666 = vunpack.c.l.b16 %v1116
        %v1667 = vunpack.c.h.b16 %v1116
        %v1668 = vunpack.c.l.b16 %v1117
        %v1669 = vunpack.c.h.b16 %v1117
        %v1670 = vunpack.c.l.b16 %v1118
        %v1671 = vunpack.c.l.b16 %v1119
        %v1672 = vunpack.c.h.b16 %v1119
        %v1673 = vunpack.c.l.b16 %v1120
        %v1674 = vunpack.c.h.b16 %v1120
        %v1675 = vunpack.c.l.b16 %v1121
        %v1676 = vunpack.c.h.b16 %v1121
        %v1677 = vunpack.c.l.b16 %v1122
        %v1678 = vunpack.c.h.b16 %v1122
        %v1679 = vunpack.c.l.b16 %v1123
        %v1680 = vunpack.c.l.b16 %v1124
        %v1681 = vunpack.c.h.b16 %v1124
        %v1682 = vunpack.c.l.b16 %v1125
        %v1683 = vunpack.c.h.b16 %v1125
        %v1684 = vunpack.c.l.b16 %v1126
        %v1685 = vunpack.c.h.b16 %v1126
        %v1686 = vunpack.c.l.b16 %v1127
        %v1687 = vunpack.c.h.b16 %v1127
        %v1688 = vunpack.c.l.b16 %v1128
        %v1689 = vunpack.c.l.b16 %v1129
        %v1690 = vunpack.c.h.b16 %v1129
        %v1691 = vunpack.c.l.b16 %v1130
        %v1692 = vunpack.c.h.b16 %v1130
        %v1693 = vunpack.c.l.b16 %v1131
        %v1694 = vunpack.c.h.b16 %v1131
        %v1695 = vunpack.c.l.b16 %v1132
        %v1696 = vunpack.c.h.b16 %v1132
        %v1697 = vunpack.c.l.b16 %v1133
        %v1698 = vunpack.c.l.b16 %v1134
        %v1699 = vunpack.c.h.b16 %v1134
        %v1700 = vunpack.c.l.b16 %v1135
        %v1701 = vunpack.c.h.b16 %v1135
        %v1702 = vunpack.c.l.b16 %v1136
        %v1703 = vunpack.c.h.b16 %v1136
        %v1704 = vunpack.c.l.b16 %v1137
        %v1705 = vunpack.c.h.b16 %v1137
        %v1706 = vunpack.c.l.b16 %v1138
        %v1707 = vunpack.c.l.b16 %v1139
        %v1708 = vunpack.c.h.b16 %v1139
        %v1709 = vunpack.c.l.b16 %v1140
        %v1710 = vunpack.c.h.b16 %v1140
        %v1711 = vunpack.c.l.b16 %v1141
        %v1712 = vunpack.c.h.b16 %v1141
        %v1713 = vunpack.c.l.b16 %v1142
        %v1714 = vunpack.c.h.b16 %v1142
        %v1715 = vunpack.c.l.b16 %v1143
        %v1716 = vunpack.c.l.b16 %v1144
        %v1717 = vunpack.c.h.b16 %v1144
        %v1718 = vunpack.c.l.b16 %v1145
        %v1719 = vunpack.c.h.b16 %v1145
        %v1720 = vunpack.c.l.b16 %v1146
        %v1721 = vunpack.c.h.b16 %v1146
        %v1722 = vunpack.c.l.b16 %v1147
        %v1723 = vunpack.c.h.b16 %v1147
        %v1724 = vunpack.c.l.b16 %v1148
        %v1725 = vunpack.c.l.b16 %v1149
        %v1726 = vunpack.c.h.b16 %v1149
        %v1727 = vunpack.c.l.b16 %v1150
        %v1728 = vunpack.c.h.b16 %v1150
        %v1729 = vunpack.c.l.b16 %v1151
        %v1730 = vunpack.c.h.b16 %v1151
        %v1731 = vunpack.c.l.b16 %v1152
        %v1732 = vunpack.c.h.b16 %v1152
        %v1733 = vunpack.c.l.b16 %v1153
        %v1734 = vunpack.c.l.b16 %v1154
        %v1735 = vunpack.c.h.b16 %v1154
        %v1736 = vunpack.c.l.b16 %v1155
        %v1737 = vunpack.c.h.b16 %v1155
        %v1738 = vunpack.c.l.b16 %v1156
        %v1739 = vunpack.c.h.b16 %v1156
        %v1740 = vunpack.c.l.b16 %v1157
        %v1741 = vunpack.c.h.b16 %v1157
        %v1742 = vunpack.c.l.b16 %v1158
        %v1743 = vunpack.c.l.b16 %v1159
        %v1744 = vunpack.c.h.b16 %v1159
        %v1745 = vunpack.c.l.b16 %v1160
        %v1746 = vunpack.c.h.b16 %v1160
        %v1747 = vunpack.c.l.b16 %v1161
        %v1748 = vunpack.c.h.b16 %v1161
        %v1749 = vunpack.c.l.b16 %v1162
        %v1750 = vunpack.c.h.b16 %v1162
        %v1751 = vunpack.c.l.b16 %v1163
        %v1752 = vunpack.c.l.b16 %v1164
        %v1753 = vunpack.c.h.b16 %v1164
        %v1754 = vunpack.c.l.b16 %v1165
        %v1755 = vunpack.c.h.b16 %v1165
        %v1756 = vunpack.c.l.b16 %v1166
        %v1757 = vunpack.c.h.b16 %v1166
        %v1758 = vunpack.c.l.b16 %v1167
        %v1759 = vunpack.c.h.b16 %v1167
        %v1760 = vunpack.c.l.b16 %v1168
        %v1761 = vunpack.c.l.b16 %v1169
        %v1762 = vunpack.c.h.b16 %v1169
        %v1763 = vunpack.c.l.b16 %v1170
        %v1764 = vunpack.c.h.b16 %v1170
        %v1765 = vunpack.c.l.b16 %v1171
        %v1766 = vunpack.c.h.b16 %v1171
        %v1767 = vunpack.c.l.b16 %v1172
        %v1768 = vunpack.c.h.b16 %v1172
        %v1769 = vunpack.c.l.b16 %v1173
        %v1770 = vunpack.c.l.b16 %v1174
        %v1771 = vunpack.c.h.b16 %v1174
        %v1772 = vunpack.c.l.b16 %v1175
        %v1773 = vunpack.c.h.b16 %v1175
        %v1774 = vunpack.c.l.b16 %v1176
        %v1775 = vunpack.c.h.b16 %v1176
        %v1776 = vunpack.c.l.b16 %v1177
        %v1777 = vunpack.c.h.b16 %v1177
        %v1778 = vunpack.c.l.b16 %v1178
        %v1779 = vunpack.c.l.b16 %v1179
        %v1780 = vunpack.c.h.b16 %v1179
        %v1781 = vunpack.c.l.b16 %v1180
        %v1782 = vunpack.c.h.b16 %v1180
        %v1783 = vunpack.c.l.b16 %v1181
        %v1784 = vunpack.c.h.b16 %v1181
        %v1785 = vunpack.c.l.b16 %v1182
        %v1786 = vunpack.c.h.b16 %v1182
        %v1787 = vunpack.c.l.b16 %v1183
        %v1788 = vunpack.c.l.b16 %v1184
        %v1789 = vunpack.c.h.b16 %v1184
        %v1790 = vunpack.c.l.b16 %v1185
        %v1791 = vunpack.c.h.b16 %v1185
        %v1792 = vunpack.c.l.b16 %v1186
        %v1793 = vunpack.c.h.b16 %v1186
        %v1794 = vunpack.c.l.b16 %v1187
        %v1795 = vunpack.c.h.b16 %v1187
        %v1796 = vunpack.c.l.b16 %v1188
        %v1797 = vunpack.c.l.b16 %v1189
        %v1798 = vunpack.c.h.b16 %v1189
        %v1799 = vunpack.c.l.b16 %v1190
        %v1800 = vunpack.c.h.b16 %v1190
        %v1801 = vunpack.c.l.b16 %v1191
        %v1802 = vunpack.c.h.b16 %v1191
        %v1803 = vunpack.c.l.b16 %v1192
        %v1804 = vunpack.c.h.b16 %v1192
        %v1805 = vunpack.c.l.b16 %v1193
        %v1806 = vunpack.c.l.b16 %v1194
        %v1807 = vunpack.c.h.b16 %v1194
        %v1808 = vunpack.c.l.b16 %v1195
        %v1809 = vunpack.c.h.b16 %v1195
        %v1810 = vunpack.c.l.b16 %v1196
        %v1811 = vunpack.c.h.b16 %v1196
        %v1812 = vunpack.c.l.b16 %v1197
        %v1813 = vunpack.c.h.b16 %v1197
        %v1814 = vunpack.c.l.b16 %v1198
        %v1815 = vunpack.c.l.b16 %v1199
        %v1816 = vunpack.c.h.b16 %v1199
        %v1817 = vunpack.c.l.b16 %v1200
        %v1818 = vunpack.c.h.b16 %v1200
        %v1819 = vunpack.c.l.b16 %v1201
        %v1820 = vunpack.c.h.b16 %v1201
        %v1821 = vunpack.c.l.b16 %v1202
        %v1822 = vunpack.c.h.b16 %v1202
        %v1823 = vunpack.c.l.b16 %v1203
        %v1824 = vunpack.c.l.b16 %v1204
        %v1825 = vunpack.c.h.b16 %v1204
        %v1826 = vunpack.c.l.b16 %v1205
        %v1827 = vunpack.c.h.b16 %v1205
        %v1828 = vunpack.c.l.b16 %v1206
        %v1829 = vunpack.c.h.b16 %v1206
        %v1830 = vunpack.c.l.b16 %v1207
        %v1831 = vunpack.c.h.b16 %v1207
        %v1832 = vunpack.c.l.b16 %v1208
        %v1833 = vunpack.c.l.b16 %v1209
        %v1834 = vunpack.c.h.b16 %v1209
        %v1835 = vunpack.c.l.b16 %v1210
        %v1836 = vunpack.c.h.b16 %v1210
        %v1837 = vunpack.c.l.b16 %v1211
        %v1838 = vunpack.c.h.b16 %v1211
        %v1839 = vunpack.c.l.b16 %v1212
        %v1840 = vunpack.c.h.b16 %v1212
        %v1841 = vunpack.c.l.b16 %v1213
        %v1842 = vunpack.c.l.b16 %v1214
        %v1843 = vunpack.c.h.b16 %v1214
        %v1844 = vunpack.c.l.b16 %v1215
        %v1845 = vunpack.c.h.b16 %v1215
        %v1846 = vunpack.c.l.b16 %v1216
        %v1847 = vunpack.c.h.b16 %v1216
        %v1848 = vunpack.c.l.b16 %v1217
        %v1849 = vunpack.c.h.b16 %v1217
        %v1850 = vunpack.c.l.b16 %v1218
        %v1851 = vunpack.c.l.b16 %v1219
        %v1852 = vunpack.c.h.b16 %v1219
        %v1853 = vunpack.c.l.b16 %v1220
        %v1854 = vunpack.c.h.b16 %v1220
        %v1855 = vunpack.c.l.b16 %v1221
        %v1856 = vunpack.c.h.b16 %v1221
        %v1857 = vunpack.c.l.b16 %v1222
        %v1858 = vunpack.c.h.b16 %v1222
        %v1859 = vunpack.c.l.b16 %v1223
        %v1860 = vunpack.c.l.b16 %v1224
        %v1861 = vunpack.c.h.b16 %v1224
        %v1862 = vunpack.c.l.b16 %v1225
        %v1863 = vunpack.c.h.b16 %v1225
        %v1864 = vunpack.c.l.b16 %v1226
        %v1865 = vunpack.c.h.b16 %v1226
        %v1866 = vunpack.c.l.b16 %v1227
        %v1867 = vunpack.c.h.b16 %v1227
        %v1868 = vunpack.c.l.b16 %v1228
        %v1869 = vunpack.c.l.b16 %v1229
        %v1870 = vunpack.c.h.b16 %v1229
        %v1871 = vunpack.c.l.b16 %v1230
        %v1872 = vunpack.c.h.b16 %v1230
        %v1873 = vunpack.c.l.b16 %v1231
        %v1874 = vunpack.c.h.b16 %v1231
        %v1875 = vunpack.c.l.b16 %v1232
        %v1876 = vunpack.c.h.b16 %v1232
        %v1877 = vunpack.c.l.b16 %v1233
        %v1878 = vunpack.c.l.b16 %v1234
        %v1879 = vunpack.c.h.b16 %v1234
        %v1880 = vunpack.c.l.b16 %v1235
        %v1881 = vunpack.c.h.b16 %v1235
        %v1882 = vunpack.c.l.b16 %v1236
        %v1883 = vunpack.c.h.b16 %v1236
        %v1884 = vunpack.c.l.b16 %v1237
        %v1885 = vunpack.c.h.b16 %v1237
        %v1886 = vunpack.c.l.b16 %v1238
        %v1887 = vunpack.c.l.b16 %v1239
        %v1888 = vunpack.c.h.b16 %v1239
        %v1889 = vunpack.c.l.b16 %v1240
        %v1890 = vunpack.c.h.b16 %v1240
        %v1891 = vunpack.c.l.b16 %v1241
        %v1892 = vunpack.c.h.b16 %v1241
        %v1893 = vunpack.c.l.b16 %v1242
        %v1894 = vunpack.c.h.b16 %v1242
        %v1895 = vunpack.c.l.b16 %v1243
        %v1896 = vunpack.c.l.b16 %v1244
        %v1897 = vunpack.c.h.b16 %v1244
        %v1898 = vunpack.c.l.b16 %v1245
        %v1899 = vunpack.c.h.b16 %v1245
        %v1900 = vunpack.c.l.b16 %v1246
        %v1901 = vunpack.c.h.b16 %v1246
        %v1902 = vunpack.c.l.b16 %v1247
        %v1903 = vunpack.c.h.b16 %v1247
        %v1904 = vunpack.c.l.b16 %v1248
        %v1905 = vunpack.c.l.b16 %v1249
        %v1906 = vunpack.c.h.b16 %v1249
        %v1907 = vunpack.c.l.b16 %v1250
        %v1908 = vunpack.c.h.b16 %v1250
        %v1909 = vunpack.c.l.b16 %v1251
        %v1910 = vunpack.c.h.b16 %v1251
        %v1911 = vunpack.c.l.b16 %v1252
        %v1912 = vunpack.c.h.b16 %v1252
        %v1913 = vunpack.c.l.b16 %v1253
        %v1914 = vunpack.c.l.b16 %v1254
        %v1915 = vunpack.c.h.b16 %v1254
        %v1916 = vunpack.c.l.b16 %v1255
        %v1917 = vunpack.c.h.b16 %v1255
        %v1918 = vunpack.c.l.b16 %v1256
        %v1919 = vunpack.c.h.b16 %v1256
        %v1920 = vunpack.c.l.b16 %v1257
        %v1921 = vunpack.c.h.b16 %v1257
        %v1922 = vunpack.c.l.b16 %v1258
        %v1923 = vunpack.c.l.b16 %v1259
        %v1924 = vunpack.c.h.b16 %v1259
        %v1925 = vunpack.c.l.b16 %v1260
        %v1926 = vunpack.c.h.b16 %v1260
        %v1927 = vunpack.c.l.b16 %v1261
        %v1928 = vunpack.c.h.b16 %v1261
        %v1929 = vunpack.c.l.b16 %v1262
        %v1930 = vunpack.c.h.b16 %v1262
        %v1931 = vunpack.c.l.b16 %v1263
        %v1932 = vunpack.c.l.b16 %v1264
        %v1933 = vunpack.c.h.b16 %v1264
        %v1934 = vunpack.c.l.b16 %v1265
        %v1935 = vunpack.c.h.b16 %v1265
        %v1936 = vunpack.c.l.b16 %v1266
        %v1937 = vunpack.c.h.b16 %v1266
        %v1938 = vunpack.c.l.b16 %v1267
        %v1939 = vunpack.c.h.b16 %v1267
        %v1940 = vunpack.c.l.b16 %v1268
        %v1941 = vunpack.c.l.b16 %v1269
        %v1942 = vunpack.c.h.b16 %v1269
        %v1943 = vunpack.c.l.b16 %v1270
        %v1944 = vunpack.c.h.b16 %v1270
        %v1945 = vunpack.c.l.b16 %v1271
        %v1946 = vunpack.c.h.b16 %v1271
        %v1947 = vunpack.c.l.b16 %v1272
        %v1948 = vunpack.c.h.b16 %v1272
        %v1949 = vunpack.c.l.b16 %v1273
        %v1950 = vunpack.c.l.b16 %v1274
        %v1951 = vunpack.c.h.b16 %v1274
        %v1952 = vunpack.c.l.b16 %v1275
        %v1953 = vunpack.c.h.b16 %v1275
        %v1954 = vunpack.c.l.b16 %v1276
        %v1955 = vunpack.c.h.b16 %v1276
        %v1956 = vunpack.c.l.b16 %v1277
        %v1957 = vunpack.c.h.b16 %v1277
        %v1958 = vunpack.c.l.b16 %v1278
        %v1959 = vunpack.c.l.b16 %v1279
        %v1960 = vunpack.c.h.b16 %v1279
        %v1961 = vunpack.c.l.b16 %v1280
        %v1962 = vunpack.c.h.b16 %v1280
        %v1963 = vunpack.c.l.b16 %v1281
        %v1964 = vunpack.c.h.b16 %v1281
        %v1965 = vunpack.c.l.b16 %v1282
        %v1966 = vunpack.c.h.b16 %v1282
        %v1967 = vunpack.c.l.b16 %v1283
        %v1968 = vunpack.c.l.b16 %v1284
        %v1969 = vunpack.c.h.b16 %v1284
        %v1970 = vunpack.c.l.b16 %v1285
        %v1971 = vunpack.c.h.b16 %v1285
        %v1972 = vunpack.c.l.b16 %v1286
        %v1973 = vunpack.c.h.b16 %v1286
        %v1974 = vunpack.c.l.b16 %v1287
        %v1975 = vunpack.c.h.b16 %v1287
        %v1976 = vunpack.c.l.b16 %v1288
        %v1977 = vunpack.c.l.b16 %v1289
        %v1978 = vunpack.c.h.b16 %v1289
        %v1979 = vunpack.c.l.b16 %v1290
        %v1980 = vunpack.c.h.b16 %v1290
        %v1981 = vunpack.c.l.b16 %v1291
        %v1982 = vunpack.c.h.b16 %v1291
        %v1983 = vunpack.c.l.b16 %v1292
        %v1984 = vunpack.c.h.b16 %v1292
        %v1985 = vunpack.c.l.b16 %v1293
        %v1986 = vunpack.c.l.b16 %v1294
        %v1987 = vunpack.c.h.b16 %v1294
        %v1988 = vunpack.c.l.b16 %v1295
        %v1989 = vunpack.c.h.b16 %v1295
        %v1990 = vunpack.c.l.b16 %v1296
        %v1991 = vunpack.c.h.b16 %v1296
        %v1992 = vunpack.c.l.b16 %v1297
        %v1993 = vunpack.c.h.b16 %v1297
        %v1994 = vunpack.c.l.b16 %v1298
        %v1995 = vunpack.c.l.b16 %v1299
        %v1996 = vunpack.c.h.b16 %v1299
        %v1997 = vunpack.c.l.b16 %v1300
        %v1998 = vunpack.c.h.b16 %v1300
        %v1999 = vunpack.c.l.b16 %v1301
        %v2000 = vunpack.c.h.b16 %v1301
        %v2001 = vunpack.c.l.b16 %v1302
        %v2002 = vunpack.c.h.b16 %v1302
        %v2003 = vunpack.c.l.b16 %v1303
        %v2004 = vunpack.c.l.b16 %v1304
        %v2005 = vunpack.c.h.b16 %v1304
        %v2006 = vunpack.c.l.b16 %v1305
        %v2007 = vunpack.c.h.b16 %v1305
        %v2008 = vunpack.c.l.b16 %v1306
        %v2009 = vunpack.c.h.b16 %v1306
        %v2010 = vunpack.c.l.b16 %v1307
        %v2011 = vunpack.c.h.b16 %v1307
        %v2012 = vunpack.c.l.b16 %v1308
        %v2013 = vunpack.c.l.b16 %v1309
        %v2014 = vunpack.c.h.b16 %v1309
        %v2015 = vunpack.c.l.b16 %v1310
        %v2016 = vunpack.c.h.b16 %v1310
        %v2017 = vunpack.c.l.b16 %v1311
        %v2018 = vunpack.c.h.b16 %v1311
        %v2019 = vunpack.c.l.b16 %v1312
        %v2020 = vunpack.c.h.b16 %v1312
        %v2021 = vunpack.c.l.b16 %v1313
        %v2022 = vunpack.c.l.b16 %v1314
        %v2023 = vunpack.c.h.b16 %v1314
        %v2024 = vunpack.c.l.b16 %v1315
        %v2025 = vunpack.c.h.b16 %v1315
        %v2026 = vunpack.c.l.b16 %v1316
        %v2027 = vunpack.c.h.b16 %v1316
        %v2028 = vunpack.c.l.b16 %v1317
        %v2029 = vunpack.c.h.b16 %v1317
        %v2030 = vunpack.c.l.b16 %v1318
        %v2031 = vunpack.c.l.b16 %v1319
        %v2032 = vunpack.c.h.b16 %v1319
        %v2033 = vunpack.c.l.b16 %v1320
        %v2034 = vunpack.c.h.b16 %v1320
        %v2035 = vunpack.c.l.b16 %v1321
        %v2036 = vunpack.c.h.b16 %v1321
        %v2037 = vunpack.c.l.b16 %v1322
        %v2038 = vunpack.c.h.b16 %v1322
        %v2039 = vunpack.c.l.b16 %v1323
        %v2040 = vunpack.c.l.b16 %v1324
        %v2041 = vunpack.c.h.b16 %v1324
        %v2042 = vunpack.c.l.b16 %v1325
        %v2043 = vunpack.c.h.b16 %v1325
        %v2044 = vunpack.c.l.b16 %v1326
        %v2045 = vunpack.c.h.b16 %v1326
        %v2046 = vunpack.c.l.b16 %v1327
        %v2047 = vunpack.c.h.b16 %v1327
        %v2048 = vunpack.c.l.b16 %v1328
        %v2049 = vunpack.c.l.b16 %v1329
        %v2050 = vunpack.c.h.b16 %v1329
        %v2051 = vunpack.c.l.b16 %v1330
        %v2052 = vunpack.c.h.b16 %v1330
        %v2053 = vunpack.c.l.b16 %v1331
        %v2054 = vunpack.c.h.b16 %v1331
        %v2055 = vunpack.c.l.b16 %v1332
        %v2056 = vunpack.c.h.b16 %v1332
        %v2057 = vunpack.c.l.b16 %v1333
        %v2058 = vpack.c.b16 %v1635, %v1626
        %v2059 = vpack.c.b16 %v1636, %v1627
        %v2060 = vpack.c.b16 %v1637, %v1628
        %v2061 = vpack.c.b16 %v1638, %v1629
        %v2062 = vpack.c.b16 %v1639, %v1630
        %v2063 = vpack.c.b16 %v1640, %v1631
        %v2064 = vpack.c.b16 %v1641, %v1632
        %v2065 = vpack.c.b16 %v1642, %v1633
        %v2066 = vpack.c.b16 %v1643, %v1634
        %v2067 = vpack.c.b16 %v1653, %v1644
        %v2068 = vpack.c.b16 %v1654, %v1645
        %v2069 = vpack.c.b16 %v1655, %v1646
        %v2070 = vpack.c.b16 %v1656, %v1647
        %v2071 = vpack.c.b16 %v1657, %v1648
        %v2072 = vpack.c.b16 %v1658, %v1649
        %v2073 = vpack.c.b16 %v1659, %v1650
        %v2074 = vpack.c.b16 %v1660, %v1651
        %v2075 = vpack.c.b16 %v1661, %v1652
        %v2076 = vpack.c.b16 %v1671, %v1662
        %v2077 = vpack.c.b16 %v1672, %v1663
        %v2078 = vpack.c.b16 %v1673, %v1664
        %v2079 = vpack.c.b16 %v1674, %v1665
        %v2080 = vpack.c.b16 %v1675, %v1666
        %v2081 = vpack.c.b16 %v1676, %v1667
        %v2082 = vpack.c.b16 %v1677, %v1668
        %v2083 = vpack.c.b16 %v1678, %v1669
        %v2084 = vpack.c.b16 %v1679, %v1670
        %v2085 = vpack.c.b16 %v1689, %v1680
        %v2086 = vpack.c.b16 %v1690, %v1681
        %v2087 = vpack.c.b16 %v1691, %v1682
        %v2088 = vpack.c.b16 %v1692, %v1683
        %v2089 = vpack.c.b16 %v1693, %v1684
        %v2090 = vpack.c.b16 %v1694, %v1685
        %v2091 = vpack.c.b16 %v1695, %v1686
        %v2092 = vpack.c.b16 %v1696, %v1687
        %v2093 = vpack.c.b16 %v1697, %v1688
        %v2094 = vpack.c.b16 %v1707, %v1698
        %v2095 = vpack.c.b16 %v1708, %v1699
        %v2096 = vpack.c.b16 %v1709, %v1700
        %v2097 = vpack.c.b16 %v1710, %v1701
        %v2098 = vpack.c.b16 %v1711, %v1702
        %v2099 = vpack.c.b16 %v1712, %v1703
        %v2100 = vpack.c.b16 %v1713, %v1704
        %v2101 = vpack.c.b16 %v1714, %v1705
        %v2102 = vpack.c.b16 %v1715, %v1706
        %v2103 = vpack.c.b16 %v1725, %v1716
        %v2104 = vpack.c.b16 %v1726, %v1717
        %v2105 = vpack.c.b16 %v1727, %v1718
        %v2106 = vpack.c.b16 %v1728, %v1719
        %v2107 = vpack.c.b16 %v1729, %v1720
        %v2108 = vpack.c.b16 %v1730, %v1721
        %v2109 = vpack.c.b16 %v1731, %v1722
        %v2110 = vpack.c.b16 %v1732, %v1723
        %v2111 = vpack.c.b16 %v1733, %v1724
        %v2112 = vpack.c.b16 %v1743, %v1734
        %v2113 = vpack.c.b16 %v1744, %v1735
        %v2114 = vpack.c.b16 %v1745, %v1736
        %v2115 = vpack.c.b16 %v1746, %v1737
        %v2116 = vpack.c.b16 %v1747, %v1738
        %v2117 = vpack.c.b16 %v1748, %v1739
        %v2118 = vpack.c.b16 %v1749, %v1740
        %v2119 = vpack.c.b16 %v1750, %v1741
        %v2120 = vpack.c.b16 %v1751, %v1742
        %v2121 = vpack.c.b16 %v1761, %v1752
        %v2122 = vpack.c.b16 %v1762, %v1753
        %v2123 = vpack.c.b16 %v1763, %v1754
        %v2124 = vpack.c.b16 %v1764, %v1755
        %v2125 = vpack.c.b16 %v1765, %v1756
        %v2126 = vpack.c.b16 %v1766, %v1757
        %v2127 = vpack.c.b16 %v1767, %v1758
        %v2128 = vpack.c.b16 %v1768, %v1759
        %v2129 = vpack.c.b16 %v1769, %v1760
        %v2130 = vpack.c.b16 %v1779, %v1770
        %v2131 = vpack.c.b16 %v1780, %v1771
        %v2132 = vpack.c.b16 %v1781, %v1772
        %v2133 = vpack.c.b16 %v1782, %v1773
        %v2134 = vpack.c.b16 %v1783, %v1774
        %v2135 = vpack.c.b16 %v1784, %v1775
        %v2136 = vpack.c.b16 %v1785, %v1776
        %v2137 = vpack.c.b16 %v1786, %v1777
        %v2138 = vpack.c.b16 %v1787, %v1778
        %v2139 = vpack.c.b16 %v1797, %v1788
        %v2140 = vpack.c.b16 %v1798, %v1789
        %v2141 = vpack.c.b16 %v1799, %v1790
        %v2142 = vpack.c.b16 %v1800, %v1791
        %v2143 = vpack.c.b16 %v1801, %v1792
        %v2144 = vpack.c.b16 %v1802, %v1793
        %v2145 = vpack.c.b16 %v1803, %v1794
        %v2146 = vpack.c.b16 %v1804, %v1795
        %v2147 = vpack.c.b16 %v1805, %v1796
        %v2148 = vpack.c.b16 %v1815, %v1806
        %v2149 = vpack.c.b16 %v1816, %v1807
        %v2150 = vpack.c.b16 %v1817, %v1808
        %v2151 = vpack.c.b16 %v1818, %v1809
        %v2152 = vpack.c.b16 %v1819, %v1810
        %v2153 = vpack.c.b16 %v1820, %v1811
        %v2154 = vpack.c.b16 %v1821, %v1812
        %v2155 = vpack.c.b16 %v1822, %v1813
        %v2156 = vpack.c.b16 %v1823, %v1814
        %v2157 = vpack.c.b16 %v1833, %v1824
        %v2158 = vpack.c.b16 %v1834, %v1825
        %v2159 = vpack.c.b16 %v1835, %v1826
        %v2160 = vpack.c.b16 %v1836, %v1827
        %v2161 = vpack.c.b16 %v1837, %v1828
        %v2162 = vpack.c.b16 %v1838, %v1829
        %v2163 = vpack.c.b16 %v1839, %v1830
        %v2164 = vpack.c.b16 %v1840, %v1831
        %v2165 = vpack.c.b16 %v1841, %v1832
        %v2166 = vpack.c.b16 %v1851, %v1842
        %v2167 = vpack.c.b16 %v1852, %v1843
        %v2168 = vpack.c.b16 %v1853, %v1844
        %v2169 = vpack.c.b16 %v1854, %v1845
        %v2170 = vpack.c.b16 %v1855, %v1846
        %v2171 = vpack.c.b16 %v1856, %v1847
        %v2172 = vpack.c.b16 %v1857, %v1848
        %v2173 = vpack.c.b16 %v1858, %v1849
        %v2174 = vpack.c.b16 %v1859, %v1850
        %v2175 = vpack.c.b16 %v1869, %v1860
        %v2176 = vpack.c.b16 %v1870, %v1861
        %v2177 = vpack.c.b16 %v1871, %v1862
        %v2178 = vpack.c.b16 %v1872, %v1863
        %v2179 = vpack.c.b16 %v1873, %v1864
        %v2180 = vpack.c.b16 %v1874, %v1865
        %v2181 = vpack.c.b16 %v1875, %v1866
        %v2182 = vpack.c.b16 %v1876, %v1867
        %v2183 = vpack.c.b16 %v1877, %v1868
        %v2184 = vpack.c.b16 %v1887, %v1878
        %v2185 = vpack.c.b16 %v1888, %v1879
        %v2186 = vpack.c.b16 %v1889, %v1880
        %v2187 = vpack.c.b16 %v1890, %v1881
        %v2188 = vpack.c.b16 %v1891, %v1882
        %v2189 = vpack.c.b16 %v1892, %v1883
        %v2190 = vpack.c.b16 %v1893, %v1884
        %v2191 = vpack.c.b16 %v1894, %v1885
        %v2192 = vpack.c.b16 %v1895, %v1886
        %v2193 = vpack.c.b16 %v1905, %v1896
        %v2194 = vpack.c.b16 %v1906, %v1897
        %v2195 = vpack.c.b16 %v1907, %v1898
        %v2196 = vpack.c.b16 %v1908, %v1899
        %v2197 = vpack.c.b16 %v1909, %v1900
        %v2198 = vpack.c.b16 %v1910, %v1901
        %v2199 = vpack.c.b16 %v1911, %v1902
        %v2200 = vpack.c.b16 %v1912, %v1903
        %v2201 = vpack.c.b16 %v1913, %v1904
        %v2202 = vpack.c.b16 %v1923, %v1914
        %v2203 = vpack.c.b16 %v1924, %v1915
        %v2204 = vpack.c.b16 %v1925, %v1916
        %v2205 = vpack.c.b16 %v1926, %v1917
        %v2206 = vpack.c.b16 %v1927, %v1918
        %v2207 = vpack.c.b16 %v1928, %v1919
        %v2208 = vpack.c.b16 %v1929, %v1920
        %v2209 = vpack.c.b16 %v1930, %v1921
        %v2210 = vpack.c.b16 %v1931, %v1922
        %v2211 = vpack.c.b16 %v1941, %v1932
        %v2212 = vpack.c.b16 %v1942, %v1933
        %v2213 = vpack.c.b16 %v1943, %v1934
        %v2214 = vpack.c.b16 %v1944, %v1935
        %v2215 = vpack.c.b16 %v1945, %v1936
        %v2216 = vpack.c.b16 %v1946, %v1937
        %v2217 = vpack.c.b16 %v1947, %v1938
        %v2218 = vpack.c.b16 %v1948, %v1939
        %v2219 = vpack.c.b16 %v1949, %v1940
        %v2220 = vpack.c.b16 %v1959, %v1950
        %v2221 = vpack.c.b16 %v1960, %v1951
        %v2222 = vpack.c.b16 %v1961, %v1952
        %v2223 = vpack.c.b16 %v1962, %v1953
        %v2224 = vpack.c.b16 %v1963, %v1954
        %v2225 = vpack.c.b16 %v1964, %v1955
        %v2226 = vpack.c.b16 %v1965, %v1956
        %v2227 = vpack.c.b16 %v1966, %v1957
        %v2228 = vpack.c.b16 %v1967, %v1958
        %v2229 = vpack.c.b16 %v1977, %v1968
        %v2230 = vpack.c.b16 %v1978, %v1969
        %v2231 = vpack.c.b16 %v1979, %v1970
        %v2232 = vpack.c.b16 %v1980, %v1971
        %v2233 = vpack.c.b16 %v1981, %v1972
        %v2234 = vpack.c.b16 %v1982, %v1973
        %v2235 = vpack.c.b16 %v1983, %v1974
        %v2236 = vpack.c.b16 %v1984, %v1975
        %v2237 = vpack.c.b16 %v1985, %v1976
        %v2238 = vpack.c.b16 %v1995, %v1986
        %v2239 = vpack.c.b16 %v1996, %v1987
        %v2240 = vpack.c.b16 %v1997, %v1988
        %v2241 = vpack.c.b16 %v1998, %v1989
        %v2242 = vpack.c.b16 %v1999, %v1990
        %v2243 = vpack.c.b16 %v2000, %v1991
        %v2244 = vpack.c.b16 %v2001, %v1992
        %v2245 = vpack.c.b16 %v2002, %v1993
        %v2246 = vpack.c.b16 %v2003, %v1994
        %v2247 = vpack.c.b16 %v2013, %v2004
        %v2248 = vpack.c.b16 %v2014, %v2005
        %v2249 = vpack.c.b16 %v2015, %v2006
        %v2250 = vpack.c.b16 %v2016, %v2007
        %v2251 = vpack.c.b16 %v2017, %v2008
        %v2252 = vpack.c.b16 %v2018, %v2009
        %v2253 = vpack.c.b16 %v2019, %v2010
        %v2254 = vpack.c.b16 %v2020, %v2011
        %v2255 = vpack.c.b16 %v2021, %v2012
        %v2256 = vpack.c.b16 %v2031, %v2022
        %v2257 = vpack.c.b16 %v2032, %v2023
        %v2258 = vpack.c.b16 %v2033, %v2024
        %v2259 = vpack.c.b16 %v2034, %v2025
        %v2260 = vpack.c.b16 %v2035, %v2026
        %v2261 = vpack.c.b16 %v2036, %v2027
        %v2262 = vpack.c.b16 %v2037, %v2028
        %v2263 = vpack.c.b16 %v2038, %v2029
        %v2264 = vpack.c.b16 %v2039, %v2030
        %v2265 = vpack.c.b16 %v2049, %v2040
        %v2266 = vpack.c.b16 %v2050, %v2041
        %v2267 = vpack.c.b16 %v2051, %v2042
        %v2268 = vpack.c.b16 %v2052, %v2043
        %v2269 = vpack.c.b16 %v2053, %v2044
        %v2270 = vpack.c.b16 %v2054, %v2045
        %v2271 = vpack.c.b16 %v2055, %v2046
        %v2272 = vpack.c.b16 %v2056, %v2047
        %v2273 = vpack.c.b16 %v2057, %v2048
        %2490 = vmatprep.subr.bf16.mxu0 %v2059
        %2491 = vmatpush1.bf16.msra.mxu0 %v2058
        %2492 = vmatprep.subr.bf16.mxu0 %v2068
        %2493 = vmatpush1.bf16.msra.mxu0 %v2067
        %2494 = vmatprep.subr.bf16.mxu0 %v2077
        %2495 = vmatpush1.bf16.msra.mxu0 %v2076
        %2496 = vmatprep.subr.bf16.mxu0 %v2086
        %2497 = vmatpush1.bf16.msra.mxu0 %v2085
        %2498 = vmatprep.subr.bf16.mxu0 %v2095
        %2499 = vmatpush1.bf16.msra.mxu0 %v2094
        %2500 = vmatprep.subr.bf16.mxu0 %v2104
        %2501 = vmatpush1.bf16.msra.mxu0 %v2103
        %2502 = vmatprep.subr.bf16.mxu0 %v2113
        %2503 = vmatpush1.bf16.msra.mxu0 %v2112
        %2504 = vmatprep.subr.bf16.mxu0 %v2122
        %2505 = vmatpush1.bf16.msra.mxu0 %v2121
        %2506 = vmatprep.subr.bf16.mxu0 %v2131
        %2507 = vmatpush1.bf16.msra.mxu0 %v2130
        %2508 = vmatprep.subr.bf16.mxu0 %v2140
        %2509 = vmatpush1.bf16.msra.mxu0 %v2139
        %2510 = vmatprep.subr.bf16.mxu0 %v2149
        %2511 = vmatpush1.bf16.msra.mxu0 %v2148
        %2512 = vmatprep.subr.bf16.mxu0 %v2158
        %2513 = vmatpush1.bf16.msra.mxu0 %v2157
        %2514 = vmatprep.subr.bf16.mxu0 %v2167
        %2515 = vmatpush1.bf16.msra.mxu0 %v2166
        %2516 = vmatprep.subr.bf16.mxu0 %v2176
        %2517 = vmatpush1.bf16.msra.mxu0 %v2175
        %2518 = vmatprep.subr.bf16.mxu0 %v2185
        %2519 = vmatpush1.bf16.msra.mxu0 %v2184
        %2520 = vmatprep.subr.bf16.mxu0 %v2194
        %2521 = vmatpush1.bf16.msra.mxu0 %v2193
        %2522 = vmatprep.mubr.bf16.mxu0 %v1337
        %2523 = vmatmul.mubr.bf16.gmra.mrb[0].mxu0 %v1336
        %v2524 = vpop.f32.mrb[0].mxu0
        %v2525 = vadd.f32 %v1344, %v2524
        %v2526 = vpop.f32.mrb[0].mxu0
        %v2527 = vadd.f32 %v1348, %v2526
        %v2528 = vpop.f32.mrb[0].mxu0
        %v2529 = vadd.f32 %v1344, %v2528
        %v2530 = vpop.f32.mrb[0].mxu0
        %v2531 = vadd.f32 %v1348, %v2530
        %2532 = vdwg.mxu0
        %2533 = vmatprep.subr.bf16.mxu0 %v2203
        %2534 = vmatpush1.bf16.msra.mxu0 %v2202
        %2535 = vmatprep.subr.bf16.mxu0 %v2212
        %2536 = vmatpush1.bf16.msra.mxu0 %v2211
        %2537 = vmatprep.subr.bf16.mxu0 %v2221
        %2538 = vmatpush1.bf16.msra.mxu0 %v2220
        %2539 = vmatprep.subr.bf16.mxu0 %v2230
        %2540 = vmatpush1.bf16.msra.mxu0 %v2229
        %2541 = vmatprep.subr.bf16.mxu0 %v2239
        %2542 = vmatpush1.bf16.msra.mxu0 %v2238
        %2543 = vmatprep.subr.bf16.mxu0 %v2248
        %2544 = vmatpush1.bf16.msra.mxu0 %v2247
        %2545 = vmatprep.subr.bf16.mxu0 %v2257
        %2546 = vmatpush1.bf16.msra.mxu0 %v2256
        %2547 = vmatprep.subr.bf16.mxu0 %v2266
        %2548 = vmatpush1.bf16.msra.mxu0 %v2265
        %2549 = vmatprep.subr.bf16.mxu0 0
        %2550 = vmatpush1.bf16.msra.mxu0 0
        %2551 = vmatprep.subr.bf16.mxu0 0
        %2552 = vmatpush1.bf16.msra.mxu0 0
        %2553 = vmatprep.subr.bf16.mxu0 0
        %2554 = vmatpush1.bf16.msra.mxu0 0
        %2555 = vmatprep.subr.bf16.mxu0 0
        %2556 = vmatpush1.bf16.msra.mxu0 0
        %2557 = vmatprep.subr.bf16.mxu0 0
        %2558 = vmatpush1.bf16.msra.mxu0 0
        %2559 = vmatprep.subr.bf16.mxu0 0
        %2560 = vmatpush1.bf16.msra.mxu0 0
        %2561 = vmatprep.subr.bf16.mxu0 0
        %2562 = vmatpush1.bf16.msra.mxu0 0
        %2563 = vmatprep.subr.bf16.mxu0 0
        %2564 = vmatpush1.bf16.msra.mxu0 0
        %2565 = vmatprep.mubr.bf16.mxu0 0
        %2566 = vmatmul.mubr.bf16.gmra.mrb[0].mxu0 %v1338
        %v2567 = vpop.f32.mrb[0].mxu0
        %v2568 = vadd.f32 %v2525, %v2567
        %v2569 = vpop.f32.mrb[0].mxu0
        %v2570 = vadd.f32 %v2527, %v2569
        %v2571 = vpop.f32.mrb[0].mxu0
        %v2572 = vadd.f32 %v2529, %v2571
        %v2573 = vpop.f32.mrb[0].mxu0
        %v2574 = vadd.f32 %v2531, %v2573
        %2575 = vdwg.mxu0
        %2576 = vmatprep.subr.bf16.mxu0 %v2061
        %2577 = vmatpush1.bf16.msra.mxu0 %v2060
        %2578 = vmatprep.subr.bf16.mxu0 %v2070
        %2579 = vmatpush1.bf16.msra.mxu0 %v2069
        %2580 = vmatprep.subr.bf16.mxu0 %v2079
        %2581 = vmatpush1.bf16.msra.mxu0 %v2078
        %2582 = vmatprep.subr.bf16.mxu0 %v2088
        %2583 = vmatpush1.bf16.msra.mxu0 %v2087
        %2584 = vmatprep.subr.bf16.mxu0 %v2097
        %2585 = vmatpush1.bf16.msra.mxu0 %v2096
        %2586 = vmatprep.subr.bf16.mxu0 %v2106
        %2587 = vmatpush1.bf16.msra.mxu0 %v2105
        %2588 = vmatprep.subr.bf16.mxu0 %v2115
        %2589 = vmatpush1.bf16.msra.mxu0 %v2114
        %2590 = vmatprep.subr.bf16.mxu0 %v2124
        %2591 = vmatpush1.bf16.msra.mxu0 %v2123
        %2592 = vmatprep.subr.bf16.mxu0 %v2133
        %2593 = vmatpush1.bf16.msra.mxu0 %v2132
        %2594 = vmatprep.subr.bf16.mxu0 %v2142
        %2595 = vmatpush1.bf16.msra.mxu0 %v2141
        %2596 = vmatprep.subr.bf16.mxu0 %v2151
        %2597 = vmatpush1.bf16.msra.mxu0 %v2150
        %2598 = vmatprep.subr.bf16.mxu0 %v2160
        %2599 = vmatpush1.bf16.msra.mxu0 %v2159
        %2600 = vmatprep.subr.bf16.mxu0 %v2169
        %2601 = vmatpush1.bf16.msra.mxu0 %v2168
        %2602 = vmatprep.subr.bf16.mxu0 %v2178
        %2603 = vmatpush1.bf16.msra.mxu0 %v2177
        %2604 = vmatprep.subr.bf16.mxu0 %v2187
        %2605 = vmatpush1.bf16.msra.mxu0 %v2186
        %2606 = vmatprep.subr.bf16.mxu0 %v2196
        %2607 = vmatpush1.bf16.msra.mxu0 %v2195
        %2608 = vmatprep.mubr.bf16.mxu0 %v1337
        %2609 = vmatmul.mubr.bf16.gmra.mrb[0].mxu0 %v1336
        %v2610 = vpop.f32.mrb[0].mxu0
        %v2611 = vadd.f32 %v1352, %v2610
        %v2612 = vpop.f32.mrb[0].mxu0
        %v2613 = vadd.f32 %v1356, %v2612
        %v2614 = vpop.f32.mrb[0].mxu0
        %v2615 = vadd.f32 %v1352, %v2614
        %v2616 = vpop.f32.mrb[0].mxu0
        %v2617 = vadd.f32 %v1356, %v2616
        %2618 = vdwg.mxu0
        %2619 = vmatprep.subr.bf16.mxu0 %v2205
        %2620 = vmatpush1.bf16.msra.mxu0 %v2204
        %2621 = vmatprep.subr.bf16.mxu0 %v2214
        %2622 = vmatpush1.bf16.msra.mxu0 %v2213
        %2623 = vmatprep.subr.bf16.mxu0 %v2223
        %2624 = vmatpush1.bf16.msra.mxu0 %v2222
        %2625 = vmatprep.subr.bf16.mxu0 %v2232
        %2626 = vmatpush1.bf16.msra.mxu0 %v2231
        %2627 = vmatprep.subr.bf16.mxu0 %v2241
        %2628 = vmatpush1.bf16.msra.mxu0 %v2240
        %2629 = vmatprep.subr.bf16.mxu0 %v2250
        %2630 = vmatpush1.bf16.msra.mxu0 %v2249
        %2631 = vmatprep.subr.bf16.mxu0 %v2259
        %2632 = vmatpush1.bf16.msra.mxu0 %v2258
        %2633 = vmatprep.subr.bf16.mxu0 %v2268
        %2634 = vmatpush1.bf16.msra.mxu0 %v2267
        %2635 = vmatprep.subr.bf16.mxu0 0
        %2636 = vmatpush1.bf16.msra.mxu0 0
        %2637 = vmatprep.subr.bf16.mxu0 0
        %2638 = vmatpush1.bf16.msra.mxu0 0
        %2639 = vmatprep.subr.bf16.mxu0 0
        %2640 = vmatpush1.bf16.msra.mxu0 0
        %2641 = vmatprep.subr.bf16.mxu0 0
        %2642 = vmatpush1.bf16.msra.mxu0 0
        %2643 = vmatprep.subr.bf16.mxu0 0
        %2644 = vmatpush1.bf16.msra.mxu0 0
        %2645 = vmatprep.subr.bf16.mxu0 0
        %2646 = vmatpush1.bf16.msra.mxu0 0
        %2647 = vmatprep.subr.bf16.mxu0 0
        %2648 = vmatpush1.bf16.msra.mxu0 0
        %2649 = vmatprep.subr.bf16.mxu0 0
        %2650 = vmatpush1.bf16.msra.mxu0 0
        %2651 = vmatprep.mubr.bf16.mxu0 0
        %2652 = vmatmul.mubr.bf16.gmra.mrb[0].mxu0 %v1338
        %v2653 = vpop.f32.mrb[0].mxu0
        %v2654 = vadd.f32 %v2611, %v2653
        %v2655 = vpop.f32.mrb[0].mxu0
        %v2656 = vadd.f32 %v2613, %v2655
        %v2657 = vpop.f32.mrb[0].mxu0
        %v2658 = vadd.f32 %v2615, %v2657
        %v2659 = vpop.f32.mrb[0].mxu0
        %v2660 = vadd.f32 %v2617, %v2659
        %2661 = vdwg.mxu0
        %2662 = vmatprep.subr.bf16.mxu0 %v2063
        %2663 = vmatpush1.bf16.msra.mxu0 %v2062
        %2664 = vmatprep.subr.bf16.mxu0 %v2072
        %2665 = vmatpush1.bf16.msra.mxu0 %v2071
        %2666 = vmatprep.subr.bf16.mxu0 %v2081
        %2667 = vmatpush1.bf16.msra.mxu0 %v2080
        %2668 = vmatprep.subr.bf16.mxu0 %v2090
        %2669 = vmatpush1.bf16.msra.mxu0 %v2089
        %2670 = vmatprep.subr.bf16.mxu0 %v2099
        %2671 = vmatpush1.bf16.msra.mxu0 %v2098
        %2672 = vmatprep.subr.bf16.mxu0 %v2108
        %2673 = vmatpush1.bf16.msra.mxu0 %v2107
        %2674 = vmatprep.subr.bf16.mxu0 %v2117
        %2675 = vmatpush1.bf16.msra.mxu0 %v2116
        %2676 = vmatprep.subr.bf16.mxu0 %v2126
        %2677 = vmatpush1.bf16.msra.mxu0 %v2125
        %2678 = vmatprep.subr.bf16.mxu0 %v2135
        %2679 = vmatpush1.bf16.msra.mxu0 %v2134
        %2680 = vmatprep.subr.bf16.mxu0 %v2144
        %2681 = vmatpush1.bf16.msra.mxu0 %v2143
        %2682 = vmatprep.subr.bf16.mxu0 %v2153
        %2683 = vmatpush1.bf16.msra.mxu0 %v2152
        %2684 = vmatprep.subr.bf16.mxu0 %v2162
        %2685 = vmatpush1.bf16.msra.mxu0 %v2161
        %2686 = vmatprep.subr.bf16.mxu0 %v2171
        %2687 = vmatpush1.bf16.msra.mxu0 %v2170
        %2688 = vmatprep.subr.bf16.mxu0 %v2180
        %2689 = vmatpush1.bf16.msra.mxu0 %v2179
        %2690 = vmatprep.subr.bf16.mxu0 %v2189
        %2691 = vmatpush1.bf16.msra.mxu0 %v2188
        %2692 = vmatprep.subr.bf16.mxu0 %v2198
        %2693 = vmatpush1.bf16.msra.mxu0 %v2197
        %2694 = vmatprep.mubr.bf16.mxu0 %v1337
        %2695 = vmatmul.mubr.bf16.gmra.mrb[0].mxu0 %v1336
        %v2696 = vpop.f32.mrb[0].mxu0
        %v2697 = vadd.f32 %v1360, %v2696
        %v2698 = vpop.f32.mrb[0].mxu0
        %v2699 = vadd.f32 %v1364, %v2698
        %v2700 = vpop.f32.mrb[0].mxu0
        %v2701 = vadd.f32 %v1360, %v2700
        %v2702 = vpop.f32.mrb[0].mxu0
        %v2703 = vadd.f32 %v1364, %v2702
        %2704 = vdwg.mxu0
        %2705 = vmatprep.subr.bf16.mxu0 %v2207
        %2706 = vmatpush1.bf16.msra.mxu0 %v2206
        %2707 = vmatprep.subr.bf16.mxu0 %v2216
        %2708 = vmatpush1.bf16.msra.mxu0 %v2215
        %2709 = vmatprep.subr.bf16.mxu0 %v2225
        %2710 = vmatpush1.bf16.msra.mxu0 %v2224
        %2711 = vmatprep.subr.bf16.mxu0 %v2234
        %2712 = vmatpush1.bf16.msra.mxu0 %v2233
        %2713 = vmatprep.subr.bf16.mxu0 %v2243
        %2714 = vmatpush1.bf16.msra.mxu0 %v2242
        %2715 = vmatprep.subr.bf16.mxu0 %v2252
        %2716 = vmatpush1.bf16.msra.mxu0 %v2251
        %2717 = vmatprep.subr.bf16.mxu0 %v2261
        %2718 = vmatpush1.bf16.msra.mxu0 %v2260
        %2719 = vmatprep.subr.bf16.mxu0 %v2270
        %2720 = vmatpush1.bf16.msra.mxu0 %v2269
        %2721 = vmatprep.subr.bf16.mxu0 0
        %2722 = vmatpush1.bf16.msra.mxu0 0
        %2723 = vmatprep.subr.bf16.mxu0 0
        %2724 = vmatpush1.bf16.msra.mxu0 0
        %2725 = vmatprep.subr.bf16.mxu0 0
        %2726 = vmatpush1.bf16.msra.mxu0 0
        %2727 = vmatprep.subr.bf16.mxu0 0
        %2728 = vmatpush1.bf16.msra.mxu0 0
        %2729 = vmatprep.subr.bf16.mxu0 0
        %2730 = vmatpush1.bf16.msra.mxu0 0
        %2731 = vmatprep.subr.bf16.mxu0 0
        %2732 = vmatpush1.bf16.msra.mxu0 0
        %2733 = vmatprep.subr.bf16.mxu0 0
        %2734 = vmatpush1.bf16.msra.mxu0 0
        %2735 = vmatprep.subr.bf16.mxu0 0
        %2736 = vmatpush1.bf16.msra.mxu0 0
        %2737 = vmatprep.mubr.bf16.mxu0 0
        %2738 = vmatmul.mubr.bf16.gmra.mrb[0].mxu0 %v1338
        %v2739 = vpop.f32.mrb[0].mxu0
        %v2740 = vadd.f32 %v2697, %v2739
        %v2741 = vpop.f32.mrb[0].mxu0
        %v2742 = vadd.f32 %v2699, %v2741
        %v2743 = vpop.f32.mrb[0].mxu0
        %v2744 = vadd.f32 %v2701, %v2743
        %v2745 = vpop.f32.mrb[0].mxu0
        %v2746 = vadd.f32 %v2703, %v2745
        %2747 = vdwg.mxu0
        %2748 = vmatprep.subr.bf16.mxu0 %v2065
        %2749 = vmatpush1.bf16.msra.mxu0 %v2064
        %2750 = vmatprep.subr.bf16.mxu0 %v2074
        %2751 = vmatpush1.bf16.msra.mxu0 %v2073
        %2752 = vmatprep.subr.bf16.mxu0 %v2083
        %2753 = vmatpush1.bf16.msra.mxu0 %v2082
        %2754 = vmatprep.subr.bf16.mxu0 %v2092
        %2755 = vmatpush1.bf16.msra.mxu0 %v2091
        %2756 = vmatprep.subr.bf16.mxu0 %v2101
        %2757 = vmatpush1.bf16.msra.mxu0 %v2100
        %2758 = vmatprep.subr.bf16.mxu0 %v2110
        %2759 = vmatpush1.bf16.msra.mxu0 %v2109
        %2760 = vmatprep.subr.bf16.mxu0 %v2119
        %2761 = vmatpush1.bf16.msra.mxu0 %v2118
        %2762 = vmatprep.subr.bf16.mxu0 %v2128
        %2763 = vmatpush1.bf16.msra.mxu0 %v2127
        %2764 = vmatprep.subr.bf16.mxu0 %v2137
        %2765 = vmatpush1.bf16.msra.mxu0 %v2136
        %2766 = vmatprep.subr.bf16.mxu0 %v2146
        %2767 = vmatpush1.bf16.msra.mxu0 %v2145
        %2768 = vmatprep.subr.bf16.mxu0 %v2155
        %2769 = vmatpush1.bf16.msra.mxu0 %v2154
        %2770 = vmatprep.subr.bf16.mxu0 %v2164
        %2771 = vmatpush1.bf16.msra.mxu0 %v2163
        %2772 = vmatprep.subr.bf16.mxu0 %v2173
        %2773 = vmatpush1.bf16.msra.mxu0 %v2172
        %2774 = vmatprep.subr.bf16.mxu0 %v2182
        %2775 = vmatpush1.bf16.msra.mxu0 %v2181
        %2776 = vmatprep.subr.bf16.mxu0 %v2191
        %2777 = vmatpush1.bf16.msra.mxu0 %v2190
        %2778 = vmatprep.subr.bf16.mxu0 %v2200
        %2779 = vmatpush1.bf16.msra.mxu0 %v2199
        %2780 = vmatprep.mubr.bf16.mxu0 %v1337
        %2781 = vmatmul.mubr.bf16.gmra.mrb[0].mxu0 %v1336
        %v2782 = vpop.f32.mrb[0].mxu0
        %v2783 = vadd.f32 %v1368, %v2782
        %v2784 = vpop.f32.mrb[0].mxu0
        %v2785 = vadd.f32 %v1372, %v2784
        %v2786 = vpop.f32.mrb[0].mxu0
        %v2787 = vadd.f32 %v1368, %v2786
        %v2788 = vpop.f32.mrb[0].mxu0
        %v2789 = vadd.f32 %v1372, %v2788
        %2790 = vdwg.mxu0
        %2791 = vmatprep.subr.bf16.mxu0 %v2209
        %2792 = vmatpush1.bf16.msra.mxu0 %v2208
        %2793 = vmatprep.subr.bf16.mxu0 %v2218
        %2794 = vmatpush1.bf16.msra.mxu0 %v2217
        %2795 = vmatprep.subr.bf16.mxu0 %v2227
        %2796 = vmatpush1.bf16.msra.mxu0 %v2226
        %2797 = vmatprep.subr.bf16.mxu0 %v2236
        %2798 = vmatpush1.bf16.msra.mxu0 %v2235
        %2799 = vmatprep.subr.bf16.mxu0 %v2245
        %2800 = vmatpush1.bf16.msra.mxu0 %v2244
        %2801 = vmatprep.subr.bf16.mxu0 %v2254
        %2802 = vmatpush1.bf16.msra.mxu0 %v2253
        %2803 = vmatprep.subr.bf16.mxu0 %v2263
        %2804 = vmatpush1.bf16.msra.mxu0 %v2262
        %2805 = vmatprep.subr.bf16.mxu0 %v2272
        %2806 = vmatpush1.bf16.msra.mxu0 %v2271
        %2807 = vmatprep.subr.bf16.mxu0 0
        %2808 = vmatpush1.bf16.msra.mxu0 0
        %2809 = vmatprep.subr.bf16.mxu0 0
        %2810 = vmatpush1.bf16.msra.mxu0 0
        %2811 = vmatprep.subr.bf16.mxu0 0
        %2812 = vmatpush1.bf16.msra.mxu0 0
        %2813 = vmatprep.subr.bf16.mxu0 0
        %2814 = vmatpush1.bf16.msra.mxu0 0
        %2815 = vmatprep.subr.bf16.mxu0 0
        %2816 = vmatpush1.bf16.msra.mxu0 0
        %2817 = vmatprep.subr.bf16.mxu0 0
        %2818 = vmatpush1.bf16.msra.mxu0 0
        %2819 = vmatprep.subr.bf16.mxu0 0
        %2820 = vmatpush1.bf16.msra.mxu0 0
        %2821 = vmatprep.subr.bf16.mxu0 0
        %2822 = vmatpush1.bf16.msra.mxu0 0
        %2823 = vmatprep.mubr.bf16.mxu0 0
        %2824 = vmatmul.mubr.bf16.gmra.mrb[0].mxu0 %v1338
        %v2825 = vpop.f32.mrb[0].mxu0
        %v2826 = vadd.f32 %v2783, %v2825
        %v2827 = vpop.f32.mrb[0].mxu0
        %v2828 = vadd.f32 %v2785, %v2827
        %v2829 = vpop.f32.mrb[0].mxu0
        %v2830 = vadd.f32 %v2787, %v2829
        %v2831 = vpop.f32.mrb[0].mxu0
        %v2832 = vadd.f32 %v2789, %v2831
        %2833 = vdwg.mxu0
        %2834 = vmatprep.subr.bf16.mxu0 0
        %2835 = vmatpush1.bf16.msra.mxu0 %v2066
        %2836 = vmatprep.subr.bf16.mxu0 0
        %2837 = vmatpush1.bf16.msra.mxu0 %v2075
        %2838 = vmatprep.subr.bf16.mxu0 0
        %2839 = vmatpush1.bf16.msra.mxu0 %v2084
        %2840 = vmatprep.subr.bf16.mxu0 0
        %2841 = vmatpush1.bf16.msra.mxu0 %v2093
        %2842 = vmatprep.subr.bf16.mxu0 0
        %2843 = vmatpush1.bf16.msra.mxu0 %v2102
        %2844 = vmatprep.subr.bf16.mxu0 0
        %2845 = vmatpush1.bf16.msra.mxu0 %v2111
        %2846 = vmatprep.subr.bf16.mxu0 0
        %2847 = vmatpush1.bf16.msra.mxu0 %v2120
        %2848 = vmatprep.subr.bf16.mxu0 0
        %2849 = vmatpush1.bf16.msra.mxu0 %v2129
        %2850 = vmatprep.subr.bf16.mxu0 0
        %2851 = vmatpush1.bf16.msra.mxu0 %v2138
        %2852 = vmatprep.subr.bf16.mxu0 0
        %2853 = vmatpush1.bf16.msra.mxu0 %v2147
        %2854 = vmatprep.subr.bf16.mxu0 0
        %2855 = vmatpush1.bf16.msra.mxu0 %v2156
        %2856 = vmatprep.subr.bf16.mxu0 0
        %2857 = vmatpush1.bf16.msra.mxu0 %v2165
        %2858 = vmatprep.subr.bf16.mxu0 0
        %2859 = vmatpush1.bf16.msra.mxu0 %v2174
        %2860 = vmatprep.subr.bf16.mxu0 0
        %2861 = vmatpush1.bf16.msra.mxu0 %v2183
        %2862 = vmatprep.subr.bf16.mxu0 0
        %2863 = vmatpush1.bf16.msra.mxu0 %v2192
        %2864 = vmatprep.subr.bf16.mxu0 0
        %2865 = vmatpush1.bf16.msra.mxu0 %v2201
        %2866 = vmatprep.mubr.bf16.mxu0 %v1337
        %2867 = vmatmul.mubr.bf16.gmra.mrb[0].mxu0 %v1336
        %v2868 = vpop.f32.mrb[0].mxu0
        %v2869 = vadd.f32 %v1376, %v2868
        %v2870 = vpop.f32.mrb[0].mxu0
        %v2871 = vpop.f32.mrb[0].mxu0
        %v2872 = vadd.f32 %v1376, %v2871
        %v2873 = vpop.f32.mrb[0].mxu0
        %2874 = vdwg.mxu0
        %2875 = vmatprep.subr.bf16.mxu0 0
        %2876 = vmatpush1.bf16.msra.mxu0 %v2210
        %2877 = vmatprep.subr.bf16.mxu0 0
        %2878 = vmatpush1.bf16.msra.mxu0 %v2219
        %2879 = vmatprep.subr.bf16.mxu0 0
        %2880 = vmatpush1.bf16.msra.mxu0 %v2228
        %2881 = vmatprep.subr.bf16.mxu0 0
        %2882 = vmatpush1.bf16.msra.mxu0 %v2237
        %2883 = vmatprep.subr.bf16.mxu0 0
        %2884 = vmatpush1.bf16.msra.mxu0 %v2246
        %2885 = vmatprep.subr.bf16.mxu0 0
        %2886 = vmatpush1.bf16.msra.mxu0 %v2255
        %2887 = vmatprep.subr.bf16.mxu0 0
        %2888 = vmatpush1.bf16.msra.mxu0 %v2264
        %2889 = vmatprep.subr.bf16.mxu0 0
        %2890 = vmatpush1.bf16.msra.mxu0 %v2273
        %2891 = vmatprep.subr.bf16.mxu0 0
        %2892 = vmatpush1.bf16.msra.mxu0 0
        %2893 = vmatprep.subr.bf16.mxu0 0
        %2894 = vmatpush1.bf16.msra.mxu0 0
        %2895 = vmatprep.subr.bf16.mxu0 0
        %2896 = vmatpush1.bf16.msra.mxu0 0
        %2897 = vmatprep.subr.bf16.mxu0 0
        %2898 = vmatpush1.bf16.msra.mxu0 0
        %2899 = vmatprep.subr.bf16.mxu0 0
        %2900 = vmatpush1.bf16.msra.mxu0 0
        %2901 = vmatprep.subr.bf16.mxu0 0
        %2902 = vmatpush1.bf16.msra.mxu0 0
        %2903 = vmatprep.subr.bf16.mxu0 0
        %2904 = vmatpush1.bf16.msra.mxu0 0
        %2905 = vmatprep.subr.bf16.mxu0 0
        %2906 = vmatpush1.bf16.msra.mxu0 0
        %2907 = vmatprep.mubr.bf16.mxu0 0
        %2908 = vmatmul.mubr.bf16.gmra.mrb[0].mxu0 %v1338
        %v2909 = vpop.f32.mrb[0].mxu0
        %v2910 = vadd.f32 %v2869, %v2909
        %v2911 = vpop.f32.mrb[0].mxu0
        %v2912 = vpop.f32.mrb[0].mxu0
        %v2913 = vadd.f32 %v2872, %v2912
        %v2914 = vpop.f32.mrb[0].mxu0
        %2915 = vdwg.mxu0
        %v2916 = vlaneseq
        %v2917 = vand.u32 %v2916, 127
        %vm2918 = vcmp.lt.s32.totalorder %v2917, 5
        %v2919 = vsel %vm2918, 0.0, -1e+09
        %vm2920 = vcmask 523264
        %v2922 = vsel %vm2920, %v2568, 0
        %v2925 = vsel %vm2920, %v2656, 0
        %2927 = vmatprep.subr.mxu0 0.0
        %2928 = vmatpush1.xpose.msra.mxu0 %v2925
        %2929 = vmatprep.subr.mxu0 0.0
        %2930 = vmatpush1.xpose.msra.mxu0 0.0
        %2931 = vmatprep.subr.mxu0 0.0
        %2932 = vmatpush1.xpose.msra.mxu0 0.0
        %2933 = vmatprep.subr.mxu0 0.0
        %2934 = vmatpush1.xpose.msra.mxu0 0.0
        %2935 = vmatprep.subr.mxu0 0.0
        %2936 = vmatpush1.xpose.msra.mxu0 0.0
        %2937 = vmatprep.subr.mxu0 0.0
        %2938 = vmatpush1.xpose.msra.mxu0 0.0
        %2939 = vmatprep.subr.mxu0 0.0
        %2940 = vmatpush1.xpose.msra.mxu0 0.0
        %2941 = vmatprep.subr.mxu0 0.0
        %2942 = vmatpush1.xpose.msra.mxu0 0.0
        %2943 = vmatprep.subr.mxu0 0.0
        %2944 = vmatpush1.xpose.msra.mxu0 0.0
        %2945 = vmatprep.subr.mxu0 0.0
        %2946 = vmatpush1.xpose.msra.mxu0 0.0
        %2947 = vmatprep.subr.mxu0 0.0
        %2948 = vmatpush1.xpose.msra.mxu0 0.0
        %2949 = vmatprep.subr.mxu0 0.0
        %2950 = vmatpush1.xpose.msra.mxu0 0.0
        %2951 = vmatprep.subr.mxu0 0.0
        %2952 = vmatpush1.xpose.msra.mxu0 0.0
        %2953 = vmatprep.subr.mxu0 0.0
        %2954 = vmatpush1.xpose.msra.mxu0 0.0
        %2955 = vmatprep.subr.mxu0 0.0
        %2956 = vmatpush1.xpose.msra.mxu0 0.0
        %2957 = vmatprep.subr.mxu0 0.0
        %2958 = vmatpush1.xpose.msra.mxu0 0.0
        %2959 = vmatprep.subr.mxu0 0.0
        %2960 = vmatpush1.xpose.msra.mxu0 0.0
        %2961 = vmatprep.subr.mxu0 0.0
        %2962 = vmatpush1.xpose.msra.mxu0 0.0
        %2963 = vmatprep.subr.mxu0 0.0
        %2964 = vmatpush1.xpose.msra.mxu0 0.0
        %2965 = vmatprep.subr.mxu0 0.0
        %2966 = vmatpush1.xpose.msra.mxu0 0.0
        %2967 = vmatprep.subr.mxu0 0.0
        %2968 = vmatpush1.xpose.msra.mxu0 0.0
        %2969 = vmatprep.subr.mxu0 0.0
        %2970 = vmatpush1.xpose.msra.mxu0 0.0
        %2971 = vmatprep.subr.mxu0 0.0
        %2972 = vmatpush1.xpose.msra.mxu0 0.0
        %2973 = vmatprep.subr.mxu0 0.0
        %2974 = vmatpush1.xpose.msra.mxu0 0.0
        %2975 = vmatprep.subr.mxu0 0.0
        %2976 = vmatpush1.xpose.msra.mxu0 0.0
        %2977 = vmatprep.subr.mxu0 0.0
        %2978 = vmatpush1.xpose.msra.mxu0 0.0
        %2979 = vmatprep.subr.mxu0 0.0
        %2980 = vmatpush1.xpose.msra.mxu0 0.0
        %2981 = vmatprep.subr.mxu0 0.0
        %2982 = vmatpush1.xpose.msra.mxu0 0.0
        %2983 = vmatprep.subr.mxu0 0.0
        %2984 = vmatpush1.xpose.msra.mxu0 0.0
        %2985 = vmatprep.subr.mxu0 0.0
        %2986 = vmatpush1.xpose.msra.mxu0 0.0
        %2987 = vmatprep.subr.mxu0 0.0
        %2988 = vmatpush1.xpose.msra.mxu0 0.0
        %2989 = vmatprep.subr.mxu0 0.0
        %2990 = vmatpush1.xpose.msra.mxu0 0.0
        %2991 = vmatprep.mubr.f32.mxu0 0.0
        %2992 = vmatmul.mubr.f32.gmra.mrb[0].mxu0 %v2922
        %v2993 = vpop.f32.mrb[0].mxu0
        %v2994 = vadd.f32 0.0, %v2993
        %v2995 = vpop.f32.mrb[0].mxu0
        %2996 = vdwg.mxu0
        %v2998 = vsel %vm2920, %v2572, 0
        %v3001 = vsel %vm2920, %v2660, 0
        %3003 = vmatprep.subr.mxu0 0.0
        %3004 = vmatpush1.xpose.msra.mxu0 %v3001
        %3005 = vmatprep.subr.mxu0 0.0
        %3006 = vmatpush1.xpose.msra.mxu0 0.0
        %3007 = vmatprep.subr.mxu0 0.0
        %3008 = vmatpush1.xpose.msra.mxu0 0.0
        %3009 = vmatprep.subr.mxu0 0.0
        %3010 = vmatpush1.xpose.msra.mxu0 0.0
        %3011 = vmatprep.subr.mxu0 0.0
        %3012 = vmatpush1.xpose.msra.mxu0 0.0
        %3013 = vmatprep.subr.mxu0 0.0
        %3014 = vmatpush1.xpose.msra.mxu0 0.0
        %3015 = vmatprep.subr.mxu0 0.0
        %3016 = vmatpush1.xpose.msra.mxu0 0.0
        %3017 = vmatprep.subr.mxu0 0.0
        %3018 = vmatpush1.xpose.msra.mxu0 0.0
        %3019 = vmatprep.subr.mxu0 0.0
        %3020 = vmatpush1.xpose.msra.mxu0 0.0
        %3021 = vmatprep.subr.mxu0 0.0
        %3022 = vmatpush1.xpose.msra.mxu0 0.0
        %3023 = vmatprep.subr.mxu0 0.0
        %3024 = vmatpush1.xpose.msra.mxu0 0.0
        %3025 = vmatprep.subr.mxu0 0.0
        %3026 = vmatpush1.xpose.msra.mxu0 0.0
        %3027 = vmatprep.subr.mxu0 0.0
        %3028 = vmatpush1.xpose.msra.mxu0 0.0
        %3029 = vmatprep.subr.mxu0 0.0
        %3030 = vmatpush1.xpose.msra.mxu0 0.0
        %3031 = vmatprep.subr.mxu0 0.0
        %3032 = vmatpush1.xpose.msra.mxu0 0.0
        %3033 = vmatprep.subr.mxu0 0.0
        %3034 = vmatpush1.xpose.msra.mxu0 0.0
        %3035 = vmatprep.subr.mxu0 0.0
        %3036 = vmatpush1.xpose.msra.mxu0 0.0
        %3037 = vmatprep.subr.mxu0 0.0
        %3038 = vmatpush1.xpose.msra.mxu0 0.0
        %3039 = vmatprep.subr.mxu0 0.0
        %3040 = vmatpush1.xpose.msra.mxu0 0.0
        %3041 = vmatprep.subr.mxu0 0.0
        %3042 = vmatpush1.xpose.msra.mxu0 0.0
        %3043 = vmatprep.subr.mxu0 0.0
        %3044 = vmatpush1.xpose.msra.mxu0 0.0
        %3045 = vmatprep.subr.mxu0 0.0
        %3046 = vmatpush1.xpose.msra.mxu0 0.0
        %3047 = vmatprep.subr.mxu0 0.0
        %3048 = vmatpush1.xpose.msra.mxu0 0.0
        %3049 = vmatprep.subr.mxu0 0.0
        %3050 = vmatpush1.xpose.msra.mxu0 0.0
        %3051 = vmatprep.subr.mxu0 0.0
        %3052 = vmatpush1.xpose.msra.mxu0 0.0
        %3053 = vmatprep.subr.mxu0 0.0
        %3054 = vmatpush1.xpose.msra.mxu0 0.0
        %3055 = vmatprep.subr.mxu0 0.0
        %3056 = vmatpush1.xpose.msra.mxu0 0.0
        %3057 = vmatprep.subr.mxu0 0.0
        %3058 = vmatpush1.xpose.msra.mxu0 0.0
        %3059 = vmatprep.subr.mxu0 0.0
        %3060 = vmatpush1.xpose.msra.mxu0 0.0
        %3061 = vmatprep.subr.mxu0 0.0
        %3062 = vmatpush1.xpose.msra.mxu0 0.0
        %3063 = vmatprep.subr.mxu0 0.0
        %3064 = vmatpush1.xpose.msra.mxu0 0.0
        %3065 = vmatprep.subr.mxu0 0.0
        %3066 = vmatpush1.xpose.msra.mxu0 0.0
        %3067 = vmatprep.mubr.f32.mxu0 0.0
        %3068 = vmatmul.mubr.f32.gmra.mrb[0].mxu0 %v2998
        %v3069 = vpop.f32.mrb[0].mxu0
        %v3070 = vadd.f32 0.0, %v3069
        %v3071 = vpop.f32.mrb[0].mxu0
        %3072 = vdwg.mxu0
        %v3073 = vmul.f32 %v2994, 0.125
        %v3074 = vmul.f32 %v3070, 0.125
        %v3075 = vadd.f32 %v3073, %v2919
        %v3076 = vadd.f32 %v3074, %v2919
        %vm3077 = vcmask 64512
        %v3078 = vsel %vm3077, %v3075, -inf
        %3079 = vmax.xlane.f32.xlu0 %v3078
        %v3080 = vpop.xlane.xlu0 %3079
        %v3081 = vsel %vm3077, %v3076, -inf
        %3082 = vmax.xlane.f32.xlu0 %v3081
        %v3083 = vpop.xlane.xlu0 %3082
        %v3084 = vsub.f32 %v3075, %v3080
        %v3085 = vsub.f32 %v3076, %v3083
        %v3086 = vmul.f32 %v3084, 1.442695
        %v3087 = vpow.pop %v3086
        %v3088 = vmul.f32 %v3085, 1.442695
        %v3089 = vpow.pop %v3088
        %v3090 = vsel %vm3077, %v3087, 0.0
        %3091 = vadd.xlane.f32.xlu0 %v3090
        %v3092 = vpop.xlane.xlu0 %3091
        %v3093 = vsel %vm3077, %v3089, 0.0
        %3094 = vadd.xlane.f32.xlu0 %v3093
        %v3095 = vpop.xlane.xlu0 %3094
        %v3096 = vrcp.pop %v3092
        %v3097 = vmul.f32 %v3087, %v3096
        %v3098 = vrcp.pop %v3095
        %v3099 = vmul.f32 %v3089, %v3098
        %v3101 = vsel %vm3077, %v3097, 0
        %3103 = vmatprep.subr.mxu0 0.0
        %3104 = vmatpush1.msra.mxu0 %v2826
        %3105 = vmatprep.subr.mxu0 0.0
        %3106 = vmatpush1.msra.mxu0 0.0
        %3107 = vmatprep.subr.mxu0 0.0
        %3108 = vmatpush1.msra.mxu0 0.0
        %3109 = vmatprep.subr.mxu0 0.0
        %3110 = vmatpush1.msra.mxu0 0.0
        %3111 = vmatprep.subr.mxu0 0.0
        %3112 = vmatpush1.msra.mxu0 0.0
        %3113 = vmatprep.subr.mxu0 0.0
        %3114 = vmatpush1.msra.mxu0 0.0
        %3115 = vmatprep.subr.mxu0 0.0
        %3116 = vmatpush1.msra.mxu0 0.0
        %3117 = vmatprep.subr.mxu0 0.0
        %3118 = vmatpush1.msra.mxu0 0.0
        %3119 = vmatprep.subr.mxu0 0.0
        %3120 = vmatpush1.msra.mxu0 0.0
        %3121 = vmatprep.subr.mxu0 0.0
        %3122 = vmatpush1.msra.mxu0 0.0
        %3123 = vmatprep.subr.mxu0 0.0
        %3124 = vmatpush1.msra.mxu0 0.0
        %3125 = vmatprep.subr.mxu0 0.0
        %3126 = vmatpush1.msra.mxu0 0.0
        %3127 = vmatprep.subr.mxu0 0.0
        %3128 = vmatpush1.msra.mxu0 0.0
        %3129 = vmatprep.subr.mxu0 0.0
        %3130 = vmatpush1.msra.mxu0 0.0
        %3131 = vmatprep.subr.mxu0 0.0
        %3132 = vmatpush1.msra.mxu0 0.0
        %3133 = vmatprep.subr.mxu0 0.0
        %3134 = vmatpush1.msra.mxu0 0.0
        %3135 = vmatprep.subr.mxu0 0.0
        %3136 = vmatpush1.msra.mxu0 0.0
        %3137 = vmatprep.subr.mxu0 0.0
        %3138 = vmatpush1.msra.mxu0 0.0
        %3139 = vmatprep.subr.mxu0 0.0
        %3140 = vmatpush1.msra.mxu0 0.0
        %3141 = vmatprep.subr.mxu0 0.0
        %3142 = vmatpush1.msra.mxu0 0.0
        %3143 = vmatprep.subr.mxu0 0.0
        %3144 = vmatpush1.msra.mxu0 0.0
        %3145 = vmatprep.subr.mxu0 0.0
        %3146 = vmatpush1.msra.mxu0 0.0
        %3147 = vmatprep.subr.mxu0 0.0
        %3148 = vmatpush1.msra.mxu0 0.0
        %3149 = vmatprep.subr.mxu0 0.0
        %3150 = vmatpush1.msra.mxu0 0.0
        %3151 = vmatprep.subr.mxu0 0.0
        %3152 = vmatpush1.msra.mxu0 0.0
        %3153 = vmatprep.subr.mxu0 0.0
        %3154 = vmatpush1.msra.mxu0 0.0
        %3155 = vmatprep.subr.mxu0 0.0
        %3156 = vmatpush1.msra.mxu0 0.0
        %3157 = vmatprep.subr.mxu0 0.0
        %3158 = vmatpush1.msra.mxu0 0.0
        %3159 = vmatprep.subr.mxu0 0.0
        %3160 = vmatpush1.msra.mxu0 0.0
        %3161 = vmatprep.subr.mxu0 0.0
        %3162 = vmatpush1.msra.mxu0 0.0
        %3163 = vmatprep.subr.mxu0 0.0
        %3164 = vmatpush1.msra.mxu0 0.0
        %3165 = vmatprep.subr.mxu0 0.0
        %3166 = vmatpush1.msra.mxu0 0.0
        %3167 = vmatprep.mubr.f32.mxu0 0.0
        %3168 = vmatmul.mubr.f32.gmra.mrb[0].mxu0 %v3101
        %v3169 = vpop.f32.mrb[0].mxu0
        %v3170 = vadd.f32 0.0, %v3169
        %v3171 = vpop.f32.mrb[0].mxu0
        %3172 = vdwg.mxu0
        %v3174 = vsel %vm3077, %v3099, 0
        %3176 = vmatprep.subr.mxu0 0.0
        %3177 = vmatpush1.msra.mxu0 %v2830
        %3178 = vmatprep.subr.mxu0 0.0
        %3179 = vmatpush1.msra.mxu0 0.0
        %3180 = vmatprep.subr.mxu0 0.0
        %3181 = vmatpush1.msra.mxu0 0.0
        %3182 = vmatprep.subr.mxu0 0.0
        %3183 = vmatpush1.msra.mxu0 0.0
        %3184 = vmatprep.subr.mxu0 0.0
        %3185 = vmatpush1.msra.mxu0 0.0
        %3186 = vmatprep.subr.mxu0 0.0
        %3187 = vmatpush1.msra.mxu0 0.0
        %3188 = vmatprep.subr.mxu0 0.0
        %3189 = vmatpush1.msra.mxu0 0.0
        %3190 = vmatprep.subr.mxu0 0.0
        %3191 = vmatpush1.msra.mxu0 0.0
        %3192 = vmatprep.subr.mxu0 0.0
        %3193 = vmatpush1.msra.mxu0 0.0
        %3194 = vmatprep.subr.mxu0 0.0
        %3195 = vmatpush1.msra.mxu0 0.0
        %3196 = vmatprep.subr.mxu0 0.0
        %3197 = vmatpush1.msra.mxu0 0.0
        %3198 = vmatprep.subr.mxu0 0.0
        %3199 = vmatpush1.msra.mxu0 0.0
        %3200 = vmatprep.subr.mxu0 0.0
        %3201 = vmatpush1.msra.mxu0 0.0
        %3202 = vmatprep.subr.mxu0 0.0
        %3203 = vmatpush1.msra.mxu0 0.0
        %3204 = vmatprep.subr.mxu0 0.0
        %3205 = vmatpush1.msra.mxu0 0.0
        %3206 = vmatprep.subr.mxu0 0.0
        %3207 = vmatpush1.msra.mxu0 0.0
        %3208 = vmatprep.subr.mxu0 0.0
        %3209 = vmatpush1.msra.mxu0 0.0
        %3210 = vmatprep.subr.mxu0 0.0
        %3211 = vmatpush1.msra.mxu0 0.0
        %3212 = vmatprep.subr.mxu0 0.0
        %3213 = vmatpush1.msra.mxu0 0.0
        %3214 = vmatprep.subr.mxu0 0.0
        %3215 = vmatpush1.msra.mxu0 0.0
        %3216 = vmatprep.subr.mxu0 0.0
        %3217 = vmatpush1.msra.mxu0 0.0
        %3218 = vmatprep.subr.mxu0 0.0
        %3219 = vmatpush1.msra.mxu0 0.0
        %3220 = vmatprep.subr.mxu0 0.0
        %3221 = vmatpush1.msra.mxu0 0.0
        %3222 = vmatprep.subr.mxu0 0.0
        %3223 = vmatpush1.msra.mxu0 0.0
        %3224 = vmatprep.subr.mxu0 0.0
        %3225 = vmatpush1.msra.mxu0 0.0
        %3226 = vmatprep.subr.mxu0 0.0
        %3227 = vmatpush1.msra.mxu0 0.0
        %3228 = vmatprep.subr.mxu0 0.0
        %3229 = vmatpush1.msra.mxu0 0.0
        %3230 = vmatprep.subr.mxu0 0.0
        %3231 = vmatpush1.msra.mxu0 0.0
        %3232 = vmatprep.subr.mxu0 0.0
        %3233 = vmatpush1.msra.mxu0 0.0
        %3234 = vmatprep.subr.mxu0 0.0
        %3235 = vmatpush1.msra.mxu0 0.0
        %3236 = vmatprep.subr.mxu0 0.0
        %3237 = vmatpush1.msra.mxu0 0.0
        %3238 = vmatprep.subr.mxu0 0.0
        %3239 = vmatpush1.msra.mxu0 0.0
        %3240 = vmatprep.mubr.f32.mxu0 0.0
        %3241 = vmatmul.mubr.f32.gmra.mrb[0].mxu0 %v3174
        %v3242 = vpop.f32.mrb[0].mxu0
        %v3243 = vadd.f32 0.0, %v3242
        %v3244 = vpop.f32.mrb[0].mxu0
        %3245 = vdwg.mxu0
        %3246 = vrot.lane.b32.xlu0 %v2568, 64
        %v3247 = vpop.permute.xlu0 %3246
        %3248 = vrot.lane.b32.xlu0 %v2656, 64
        %v3249 = vpop.permute.xlu0 %3248
        %v3250 = vsel %vm2920, %v3247, 0
        %v3252 = vsel %vm2920, %v3249, 0
        %3254 = vmatprep.subr.mxu0 0.0
        %3255 = vmatpush1.xpose.msra.mxu0 %v3252
        %3256 = vmatprep.subr.mxu0 0.0
        %3257 = vmatpush1.xpose.msra.mxu0 0.0
        %3258 = vmatprep.subr.mxu0 0.0
        %3259 = vmatpush1.xpose.msra.mxu0 0.0
        %3260 = vmatprep.subr.mxu0 0.0
        %3261 = vmatpush1.xpose.msra.mxu0 0.0
        %3262 = vmatprep.subr.mxu0 0.0
        %3263 = vmatpush1.xpose.msra.mxu0 0.0
        %3264 = vmatprep.subr.mxu0 0.0
        %3265 = vmatpush1.xpose.msra.mxu0 0.0
        %3266 = vmatprep.subr.mxu0 0.0
        %3267 = vmatpush1.xpose.msra.mxu0 0.0
        %3268 = vmatprep.subr.mxu0 0.0
        %3269 = vmatpush1.xpose.msra.mxu0 0.0
        %3270 = vmatprep.subr.mxu0 0.0
        %3271 = vmatpush1.xpose.msra.mxu0 0.0
        %3272 = vmatprep.subr.mxu0 0.0
        %3273 = vmatpush1.xpose.msra.mxu0 0.0
        %3274 = vmatprep.subr.mxu0 0.0
        %3275 = vmatpush1.xpose.msra.mxu0 0.0
        %3276 = vmatprep.subr.mxu0 0.0
        %3277 = vmatpush1.xpose.msra.mxu0 0.0
        %3278 = vmatprep.subr.mxu0 0.0
        %3279 = vmatpush1.xpose.msra.mxu0 0.0
        %3280 = vmatprep.subr.mxu0 0.0
        %3281 = vmatpush1.xpose.msra.mxu0 0.0
        %3282 = vmatprep.subr.mxu0 0.0
        %3283 = vmatpush1.xpose.msra.mxu0 0.0
        %3284 = vmatprep.subr.mxu0 0.0
        %3285 = vmatpush1.xpose.msra.mxu0 0.0
        %3286 = vmatprep.subr.mxu0 0.0
        %3287 = vmatpush1.xpose.msra.mxu0 0.0
        %3288 = vmatprep.subr.mxu0 0.0
        %3289 = vmatpush1.xpose.msra.mxu0 0.0
        %3290 = vmatprep.subr.mxu0 0.0
        %3291 = vmatpush1.xpose.msra.mxu0 0.0
        %3292 = vmatprep.subr.mxu0 0.0
        %3293 = vmatpush1.xpose.msra.mxu0 0.0
        %3294 = vmatprep.subr.mxu0 0.0
        %3295 = vmatpush1.xpose.msra.mxu0 0.0
        %3296 = vmatprep.subr.mxu0 0.0
        %3297 = vmatpush1.xpose.msra.mxu0 0.0
        %3298 = vmatprep.subr.mxu0 0.0
        %3299 = vmatpush1.xpose.msra.mxu0 0.0
        %3300 = vmatprep.subr.mxu0 0.0
        %3301 = vmatpush1.xpose.msra.mxu0 0.0
        %3302 = vmatprep.subr.mxu0 0.0
        %3303 = vmatpush1.xpose.msra.mxu0 0.0
        %3304 = vmatprep.subr.mxu0 0.0
        %3305 = vmatpush1.xpose.msra.mxu0 0.0
        %3306 = vmatprep.subr.mxu0 0.0
        %3307 = vmatpush1.xpose.msra.mxu0 0.0
        %3308 = vmatprep.subr.mxu0 0.0
        %3309 = vmatpush1.xpose.msra.mxu0 0.0
        %3310 = vmatprep.subr.mxu0 0.0
        %3311 = vmatpush1.xpose.msra.mxu0 0.0
        %3312 = vmatprep.subr.mxu0 0.0
        %3313 = vmatpush1.xpose.msra.mxu0 0.0
        %3314 = vmatprep.subr.mxu0 0.0
        %3315 = vmatpush1.xpose.msra.mxu0 0.0
        %3316 = vmatprep.subr.mxu0 0.0
        %3317 = vmatpush1.xpose.msra.mxu0 0.0
        %3318 = vmatprep.mubr.f32.mxu0 0.0
        %3319 = vmatmul.mubr.f32.gmra.mrb[0].mxu0 %v3250
        %v3320 = vpop.f32.mrb[0].mxu0
        %v3321 = vadd.f32 0.0, %v3320
        %v3322 = vpop.f32.mrb[0].mxu0
        %3323 = vdwg.mxu0
        %3324 = vrot.lane.b32.xlu0 %v2572, 64
        %v3325 = vpop.permute.xlu0 %3324
        %3326 = vrot.lane.b32.xlu0 %v2660, 64
        %v3327 = vpop.permute.xlu0 %3326
        %v3328 = vsel %vm2920, %v3325, 0
        %v3330 = vsel %vm2920, %v3327, 0
        %3332 = vmatprep.subr.mxu0 0.0
        %3333 = vmatpush1.xpose.msra.mxu0 %v3330
        %3334 = vmatprep.subr.mxu0 0.0
        %3335 = vmatpush1.xpose.msra.mxu0 0.0
        %3336 = vmatprep.subr.mxu0 0.0
        %3337 = vmatpush1.xpose.msra.mxu0 0.0
        %3338 = vmatprep.subr.mxu0 0.0
        %3339 = vmatpush1.xpose.msra.mxu0 0.0
        %3340 = vmatprep.subr.mxu0 0.0
        %3341 = vmatpush1.xpose.msra.mxu0 0.0
        %3342 = vmatprep.subr.mxu0 0.0
        %3343 = vmatpush1.xpose.msra.mxu0 0.0
        %3344 = vmatprep.subr.mxu0 0.0
        %3345 = vmatpush1.xpose.msra.mxu0 0.0
        %3346 = vmatprep.subr.mxu0 0.0
        %3347 = vmatpush1.xpose.msra.mxu0 0.0
        %3348 = vmatprep.subr.mxu0 0.0
        %3349 = vmatpush1.xpose.msra.mxu0 0.0
        %3350 = vmatprep.subr.mxu0 0.0
        %3351 = vmatpush1.xpose.msra.mxu0 0.0
        %3352 = vmatprep.subr.mxu0 0.0
        %3353 = vmatpush1.xpose.msra.mxu0 0.0
        %3354 = vmatprep.subr.mxu0 0.0
        %3355 = vmatpush1.xpose.msra.mxu0 0.0
        %3356 = vmatprep.subr.mxu0 0.0
        %3357 = vmatpush1.xpose.msra.mxu0 0.0
        %3358 = vmatprep.subr.mxu0 0.0
        %3359 = vmatpush1.xpose.msra.mxu0 0.0
        %3360 = vmatprep.subr.mxu0 0.0
        %3361 = vmatpush1.xpose.msra.mxu0 0.0
        %3362 = vmatprep.subr.mxu0 0.0
        %3363 = vmatpush1.xpose.msra.mxu0 0.0
        %3364 = vmatprep.subr.mxu0 0.0
        %3365 = vmatpush1.xpose.msra.mxu0 0.0
        %3366 = vmatprep.subr.mxu0 0.0
        %3367 = vmatpush1.xpose.msra.mxu0 0.0
        %3368 = vmatprep.subr.mxu0 0.0
        %3369 = vmatpush1.xpose.msra.mxu0 0.0
        %3370 = vmatprep.subr.mxu0 0.0
        %3371 = vmatpush1.xpose.msra.mxu0 0.0
        %3372 = vmatprep.subr.mxu0 0.0
        %3373 = vmatpush1.xpose.msra.mxu0 0.0
        %3374 = vmatprep.subr.mxu0 0.0
        %3375 = vmatpush1.xpose.msra.mxu0 0.0
        %3376 = vmatprep.subr.mxu0 0.0
        %3377 = vmatpush1.xpose.msra.mxu0 0.0
        %3378 = vmatprep.subr.mxu0 0.0
        %3379 = vmatpush1.xpose.msra.mxu0 0.0
        %3380 = vmatprep.subr.mxu0 0.0
        %3381 = vmatpush1.xpose.msra.mxu0 0.0
        %3382 = vmatprep.subr.mxu0 0.0
        %3383 = vmatpush1.xpose.msra.mxu0 0.0
        %3384 = vmatprep.subr.mxu0 0.0
        %3385 = vmatpush1.xpose.msra.mxu0 0.0
        %3386 = vmatprep.subr.mxu0 0.0
        %3387 = vmatpush1.xpose.msra.mxu0 0.0
        %3388 = vmatprep.subr.mxu0 0.0
        %3389 = vmatpush1.xpose.msra.mxu0 0.0
        %3390 = vmatprep.subr.mxu0 0.0
        %3391 = vmatpush1.xpose.msra.mxu0 0.0
        %3392 = vmatprep.subr.mxu0 0.0
        %3393 = vmatpush1.xpose.msra.mxu0 0.0
        %3394 = vmatprep.subr.mxu0 0.0
        %3395 = vmatpush1.xpose.msra.mxu0 0.0
        %3396 = vmatprep.mubr.f32.mxu0 0.0
        %3397 = vmatmul.mubr.f32.gmra.mrb[0].mxu0 %v3328
        %v3398 = vpop.f32.mrb[0].mxu0
        %v3399 = vadd.f32 0.0, %v3398
        %v3400 = vpop.f32.mrb[0].mxu0
        %3401 = vdwg.mxu0
        %v3402 = vmul.f32 %v3321, 0.125
        %v3403 = vmul.f32 %v3399, 0.125
        %v3404 = vadd.f32 %v3402, %v2919
        %v3405 = vadd.f32 %v3403, %v2919
        %v3406 = vsel %vm3077, %v3404, -inf
        %3407 = vmax.xlane.f32.xlu0 %v3406
        %v3408 = vpop.xlane.xlu0 %3407
        %v3409 = vsel %vm3077, %v3405, -inf
        %3410 = vmax.xlane.f32.xlu0 %v3409
        %v3411 = vpop.xlane.xlu0 %3410
        %v3412 = vsub.f32 %v3404, %v3408
        %v3413 = vsub.f32 %v3405, %v3411
        %v3414 = vmul.f32 %v3412, 1.442695
        %v3415 = vpow.pop %v3414
        %v3416 = vmul.f32 %v3413, 1.442695
        %v3417 = vpow.pop %v3416
        %v3418 = vsel %vm3077, %v3415, 0.0
        %3419 = vadd.xlane.f32.xlu0 %v3418
        %v3420 = vpop.xlane.xlu0 %3419
        %v3421 = vsel %vm3077, %v3417, 0.0
        %3422 = vadd.xlane.f32.xlu0 %v3421
        %v3423 = vpop.xlane.xlu0 %3422
        %v3424 = vrcp.pop %v3420
        %v3425 = vmul.f32 %v3415, %v3424
        %v3426 = vrcp.pop %v3423
        %v3427 = vmul.f32 %v3417, %v3426
        %3429 = vrot.lane.b32.xlu0 %v2826, 64
        %v3430 = vpop.permute.xlu0 %3429
        %v3433 = vsel %vm3077, %v3425, 0
        %3435 = vmatprep.subr.mxu0 0.0
        %3436 = vmatpush1.msra.mxu0 %v3430
        %3437 = vmatprep.subr.mxu0 0.0
        %3438 = vmatpush1.msra.mxu0 0.0
        %3439 = vmatprep.subr.mxu0 0.0
        %3440 = vmatpush1.msra.mxu0 0.0
        %3441 = vmatprep.subr.mxu0 0.0
        %3442 = vmatpush1.msra.mxu0 0.0
        %3443 = vmatprep.subr.mxu0 0.0
        %3444 = vmatpush1.msra.mxu0 0.0
        %3445 = vmatprep.subr.mxu0 0.0
        %3446 = vmatpush1.msra.mxu0 0.0
        %3447 = vmatprep.subr.mxu0 0.0
        %3448 = vmatpush1.msra.mxu0 0.0
        %3449 = vmatprep.subr.mxu0 0.0
        %3450 = vmatpush1.msra.mxu0 0.0
        %3451 = vmatprep.subr.mxu0 0.0
        %3452 = vmatpush1.msra.mxu0 0.0
        %3453 = vmatprep.subr.mxu0 0.0
        %3454 = vmatpush1.msra.mxu0 0.0
        %3455 = vmatprep.subr.mxu0 0.0
        %3456 = vmatpush1.msra.mxu0 0.0
        %3457 = vmatprep.subr.mxu0 0.0
        %3458 = vmatpush1.msra.mxu0 0.0
        %3459 = vmatprep.subr.mxu0 0.0
        %3460 = vmatpush1.msra.mxu0 0.0
        %3461 = vmatprep.subr.mxu0 0.0
        %3462 = vmatpush1.msra.mxu0 0.0
        %3463 = vmatprep.subr.mxu0 0.0
        %3464 = vmatpush1.msra.mxu0 0.0
        %3465 = vmatprep.subr.mxu0 0.0
        %3466 = vmatpush1.msra.mxu0 0.0
        %3467 = vmatprep.subr.mxu0 0.0
        %3468 = vmatpush1.msra.mxu0 0.0
        %3469 = vmatprep.subr.mxu0 0.0
        %3470 = vmatpush1.msra.mxu0 0.0
        %3471 = vmatprep.subr.mxu0 0.0
        %3472 = vmatpush1.msra.mxu0 0.0
        %3473 = vmatprep.subr.mxu0 0.0
        %3474 = vmatpush1.msra.mxu0 0.0
        %3475 = vmatprep.subr.mxu0 0.0
        %3476 = vmatpush1.msra.mxu0 0.0
        %3477 = vmatprep.subr.mxu0 0.0
        %3478 = vmatpush1.msra.mxu0 0.0
        %3479 = vmatprep.subr.mxu0 0.0
        %3480 = vmatpush1.msra.mxu0 0.0
        %3481 = vmatprep.subr.mxu0 0.0
        %3482 = vmatpush1.msra.mxu0 0.0
        %3483 = vmatprep.subr.mxu0 0.0
        %3484 = vmatpush1.msra.mxu0 0.0
        %3485 = vmatprep.subr.mxu0 0.0
        %3486 = vmatpush1.msra.mxu0 0.0
        %3487 = vmatprep.subr.mxu0 0.0
        %3488 = vmatpush1.msra.mxu0 0.0
        %3489 = vmatprep.subr.mxu0 0.0
        %3490 = vmatpush1.msra.mxu0 0.0
        %3491 = vmatprep.subr.mxu0 0.0
        %3492 = vmatpush1.msra.mxu0 0.0
        %3493 = vmatprep.subr.mxu0 0.0
        %3494 = vmatpush1.msra.mxu0 0.0
        %3495 = vmatprep.subr.mxu0 0.0
        %3496 = vmatpush1.msra.mxu0 0.0
        %3497 = vmatprep.subr.mxu0 0.0
        %3498 = vmatpush1.msra.mxu0 0.0
        %3499 = vmatprep.mubr.f32.mxu0 0.0
        %3500 = vmatmul.mubr.f32.gmra.mrb[0].mxu0 %v3433
        %v3501 = vpop.f32.mrb[0].mxu0
        %v3502 = vadd.f32 0.0, %v3501
        %v3503 = vpop.f32.mrb[0].mxu0
        %3504 = vdwg.mxu0
        %3506 = vrot.lane.b32.xlu0 %v2830, 64
        %v3507 = vpop.permute.xlu0 %3506
        %v3510 = vsel %vm3077, %v3427, 0
        %3512 = vmatprep.subr.mxu0 0.0
        %3513 = vmatpush1.msra.mxu0 %v3507
        %3514 = vmatprep.subr.mxu0 0.0
        %3515 = vmatpush1.msra.mxu0 0.0
        %3516 = vmatprep.subr.mxu0 0.0
        %3517 = vmatpush1.msra.mxu0 0.0
        %3518 = vmatprep.subr.mxu0 0.0
        %3519 = vmatpush1.msra.mxu0 0.0
        %3520 = vmatprep.subr.mxu0 0.0
        %3521 = vmatpush1.msra.mxu0 0.0
        %3522 = vmatprep.subr.mxu0 0.0
        %3523 = vmatpush1.msra.mxu0 0.0
        %3524 = vmatprep.subr.mxu0 0.0
        %3525 = vmatpush1.msra.mxu0 0.0
        %3526 = vmatprep.subr.mxu0 0.0
        %3527 = vmatpush1.msra.mxu0 0.0
        %3528 = vmatprep.subr.mxu0 0.0
        %3529 = vmatpush1.msra.mxu0 0.0
        %3530 = vmatprep.subr.mxu0 0.0
        %3531 = vmatpush1.msra.mxu0 0.0
        %3532 = vmatprep.subr.mxu0 0.0
        %3533 = vmatpush1.msra.mxu0 0.0
        %3534 = vmatprep.subr.mxu0 0.0
        %3535 = vmatpush1.msra.mxu0 0.0
        %3536 = vmatprep.subr.mxu0 0.0
        %3537 = vmatpush1.msra.mxu0 0.0
        %3538 = vmatprep.subr.mxu0 0.0
        %3539 = vmatpush1.msra.mxu0 0.0
        %3540 = vmatprep.subr.mxu0 0.0
        %3541 = vmatpush1.msra.mxu0 0.0
        %3542 = vmatprep.subr.mxu0 0.0
        %3543 = vmatpush1.msra.mxu0 0.0
        %3544 = vmatprep.subr.mxu0 0.0
        %3545 = vmatpush1.msra.mxu0 0.0
        %3546 = vmatprep.subr.mxu0 0.0
        %3547 = vmatpush1.msra.mxu0 0.0
        %3548 = vmatprep.subr.mxu0 0.0
        %3549 = vmatpush1.msra.mxu0 0.0
        %3550 = vmatprep.subr.mxu0 0.0
        %3551 = vmatpush1.msra.mxu0 0.0
        %3552 = vmatprep.subr.mxu0 0.0
        %3553 = vmatpush1.msra.mxu0 0.0
        %3554 = vmatprep.subr.mxu0 0.0
        %3555 = vmatpush1.msra.mxu0 0.0
        %3556 = vmatprep.subr.mxu0 0.0
        %3557 = vmatpush1.msra.mxu0 0.0
        %3558 = vmatprep.subr.mxu0 0.0
        %3559 = vmatpush1.msra.mxu0 0.0
        %3560 = vmatprep.subr.mxu0 0.0
        %3561 = vmatpush1.msra.mxu0 0.0
        %3562 = vmatprep.subr.mxu0 0.0
        %3563 = vmatpush1.msra.mxu0 0.0
        %3564 = vmatprep.subr.mxu0 0.0
        %3565 = vmatpush1.msra.mxu0 0.0
        %3566 = vmatprep.subr.mxu0 0.0
        %3567 = vmatpush1.msra.mxu0 0.0
        %3568 = vmatprep.subr.mxu0 0.0
        %3569 = vmatpush1.msra.mxu0 0.0
        %3570 = vmatprep.subr.mxu0 0.0
        %3571 = vmatpush1.msra.mxu0 0.0
        %3572 = vmatprep.subr.mxu0 0.0
        %3573 = vmatpush1.msra.mxu0 0.0
        %3574 = vmatprep.subr.mxu0 0.0
        %3575 = vmatpush1.msra.mxu0 0.0
        %3576 = vmatprep.mubr.f32.mxu0 0.0
        %3577 = vmatmul.mubr.f32.gmra.mrb[0].mxu0 %v3510
        %v3578 = vpop.f32.mrb[0].mxu0
        %v3579 = vadd.f32 0.0, %v3578
        %v3580 = vpop.f32.mrb[0].mxu0
        %3581 = vdwg.mxu0
        %3584 = vrot.lane.b32.xlu0 %v3502, 64
        %v3585 = vpop.permute.xlu0 %3584
        %3586 = vrot.lane.b32.xlu0 %v3579, 64
        %v3587 = vpop.permute.xlu0 %3586
        %v3590 = vsel %vm2920, %v3170, %v3585
        %v3591 = vsel %vm2920, %v3243, %v3587
        %v3593 = vsel %vm2920, %v2570, 0
        %v3596 = vsel %vm2920, %v2740, 0
        %3598 = vmatprep.subr.mxu0 0.0
        %3599 = vmatpush1.xpose.msra.mxu0 %v3596
        %3600 = vmatprep.subr.mxu0 0.0
        %3601 = vmatpush1.xpose.msra.mxu0 0.0
        %3602 = vmatprep.subr.mxu0 0.0
        %3603 = vmatpush1.xpose.msra.mxu0 0.0
        %3604 = vmatprep.subr.mxu0 0.0
        %3605 = vmatpush1.xpose.msra.mxu0 0.0
        %3606 = vmatprep.subr.mxu0 0.0
        %3607 = vmatpush1.xpose.msra.mxu0 0.0
        %3608 = vmatprep.subr.mxu0 0.0
        %3609 = vmatpush1.xpose.msra.mxu0 0.0
        %3610 = vmatprep.subr.mxu0 0.0
        %3611 = vmatpush1.xpose.msra.mxu0 0.0
        %3612 = vmatprep.subr.mxu0 0.0
        %3613 = vmatpush1.xpose.msra.mxu0 0.0
        %3614 = vmatprep.subr.mxu0 0.0
        %3615 = vmatpush1.xpose.msra.mxu0 0.0
        %3616 = vmatprep.subr.mxu0 0.0
        %3617 = vmatpush1.xpose.msra.mxu0 0.0
        %3618 = vmatprep.subr.mxu0 0.0
        %3619 = vmatpush1.xpose.msra.mxu0 0.0
        %3620 = vmatprep.subr.mxu0 0.0
        %3621 = vmatpush1.xpose.msra.mxu0 0.0
        %3622 = vmatprep.subr.mxu0 0.0
        %3623 = vmatpush1.xpose.msra.mxu0 0.0
        %3624 = vmatprep.subr.mxu0 0.0
        %3625 = vmatpush1.xpose.msra.mxu0 0.0
        %3626 = vmatprep.subr.mxu0 0.0
        %3627 = vmatpush1.xpose.msra.mxu0 0.0
        %3628 = vmatprep.subr.mxu0 0.0
        %3629 = vmatpush1.xpose.msra.mxu0 0.0
        %3630 = vmatprep.subr.mxu0 0.0
        %3631 = vmatpush1.xpose.msra.mxu0 0.0
        %3632 = vmatprep.subr.mxu0 0.0
        %3633 = vmatpush1.xpose.msra.mxu0 0.0
        %3634 = vmatprep.subr.mxu0 0.0
        %3635 = vmatpush1.xpose.msra.mxu0 0.0
        %3636 = vmatprep.subr.mxu0 0.0
        %3637 = vmatpush1.xpose.msra.mxu0 0.0
        %3638 = vmatprep.subr.mxu0 0.0
        %3639 = vmatpush1.xpose.msra.mxu0 0.0
        %3640 = vmatprep.subr.mxu0 0.0
        %3641 = vmatpush1.xpose.msra.mxu0 0.0
        %3642 = vmatprep.subr.mxu0 0.0
        %3643 = vmatpush1.xpose.msra.mxu0 0.0
        %3644 = vmatprep.subr.mxu0 0.0
        %3645 = vmatpush1.xpose.msra.mxu0 0.0
        %3646 = vmatprep.subr.mxu0 0.0
        %3647 = vmatpush1.xpose.msra.mxu0 0.0
        %3648 = vmatprep.subr.mxu0 0.0
        %3649 = vmatpush1.xpose.msra.mxu0 0.0
        %3650 = vmatprep.subr.mxu0 0.0
        %3651 = vmatpush1.xpose.msra.mxu0 0.0
        %3652 = vmatprep.subr.mxu0 0.0
        %3653 = vmatpush1.xpose.msra.mxu0 0.0
        %3654 = vmatprep.subr.mxu0 0.0
        %3655 = vmatpush1.xpose.msra.mxu0 0.0
        %3656 = vmatprep.subr.mxu0 0.0
        %3657 = vmatpush1.xpose.msra.mxu0 0.0
        %3658 = vmatprep.subr.mxu0 0.0
        %3659 = vmatpush1.xpose.msra.mxu0 0.0
        %3660 = vmatprep.subr.mxu0 0.0
        %3661 = vmatpush1.xpose.msra.mxu0 0.0
        %3662 = vmatprep.mubr.f32.mxu0 0.0
        %3663 = vmatmul.mubr.f32.gmra.mrb[0].mxu0 %v3593
        %v3664 = vpop.f32.mrb[0].mxu0
        %v3665 = vadd.f32 0.0, %v3664
        %v3666 = vpop.f32.mrb[0].mxu0
        %3667 = vdwg.mxu0
        %v3669 = vsel %vm2920, %v2574, 0
        %v3672 = vsel %vm2920, %v2744, 0
        %3674 = vmatprep.subr.mxu0 0.0
        %3675 = vmatpush1.xpose.msra.mxu0 %v3672
        %3676 = vmatprep.subr.mxu0 0.0
        %3677 = vmatpush1.xpose.msra.mxu0 0.0
        %3678 = vmatprep.subr.mxu0 0.0
        %3679 = vmatpush1.xpose.msra.mxu0 0.0
        %3680 = vmatprep.subr.mxu0 0.0
        %3681 = vmatpush1.xpose.msra.mxu0 0.0
        %3682 = vmatprep.subr.mxu0 0.0
        %3683 = vmatpush1.xpose.msra.mxu0 0.0
        %3684 = vmatprep.subr.mxu0 0.0
        %3685 = vmatpush1.xpose.msra.mxu0 0.0
        %3686 = vmatprep.subr.mxu0 0.0
        %3687 = vmatpush1.xpose.msra.mxu0 0.0
        %3688 = vmatprep.subr.mxu0 0.0
        %3689 = vmatpush1.xpose.msra.mxu0 0.0
        %3690 = vmatprep.subr.mxu0 0.0
        %3691 = vmatpush1.xpose.msra.mxu0 0.0
        %3692 = vmatprep.subr.mxu0 0.0
        %3693 = vmatpush1.xpose.msra.mxu0 0.0
        %3694 = vmatprep.subr.mxu0 0.0
        %3695 = vmatpush1.xpose.msra.mxu0 0.0
        %3696 = vmatprep.subr.mxu0 0.0
        %3697 = vmatpush1.xpose.msra.mxu0 0.0
        %3698 = vmatprep.subr.mxu0 0.0
        %3699 = vmatpush1.xpose.msra.mxu0 0.0
        %3700 = vmatprep.subr.mxu0 0.0
        %3701 = vmatpush1.xpose.msra.mxu0 0.0
        %3702 = vmatprep.subr.mxu0 0.0
        %3703 = vmatpush1.xpose.msra.mxu0 0.0
        %3704 = vmatprep.subr.mxu0 0.0
        %3705 = vmatpush1.xpose.msra.mxu0 0.0
        %3706 = vmatprep.subr.mxu0 0.0
        %3707 = vmatpush1.xpose.msra.mxu0 0.0
        %3708 = vmatprep.subr.mxu0 0.0
        %3709 = vmatpush1.xpose.msra.mxu0 0.0
        %3710 = vmatprep.subr.mxu0 0.0
        %3711 = vmatpush1.xpose.msra.mxu0 0.0
        %3712 = vmatprep.subr.mxu0 0.0
        %3713 = vmatpush1.xpose.msra.mxu0 0.0
        %3714 = vmatprep.subr.mxu0 0.0
        %3715 = vmatpush1.xpose.msra.mxu0 0.0
        %3716 = vmatprep.subr.mxu0 0.0
        %3717 = vmatpush1.xpose.msra.mxu0 0.0
        %3718 = vmatprep.subr.mxu0 0.0
        %3719 = vmatpush1.xpose.msra.mxu0 0.0
        %3720 = vmatprep.subr.mxu0 0.0
        %3721 = vmatpush1.xpose.msra.mxu0 0.0
        %3722 = vmatprep.subr.mxu0 0.0
        %3723 = vmatpush1.xpose.msra.mxu0 0.0
        %3724 = vmatprep.subr.mxu0 0.0
        %3725 = vmatpush1.xpose.msra.mxu0 0.0
        %3726 = vmatprep.subr.mxu0 0.0
        %3727 = vmatpush1.xpose.msra.mxu0 0.0
        %3728 = vmatprep.subr.mxu0 0.0
        %3729 = vmatpush1.xpose.msra.mxu0 0.0
        %3730 = vmatprep.subr.mxu0 0.0
        %3731 = vmatpush1.xpose.msra.mxu0 0.0
        %3732 = vmatprep.subr.mxu0 0.0
        %3733 = vmatpush1.xpose.msra.mxu0 0.0
        %3734 = vmatprep.subr.mxu0 0.0
        %3735 = vmatpush1.xpose.msra.mxu0 0.0
        %3736 = vmatprep.subr.mxu0 0.0
        %3737 = vmatpush1.xpose.msra.mxu0 0.0
        %3738 = vmatprep.mubr.f32.mxu0 0.0
        %3739 = vmatmul.mubr.f32.gmra.mrb[0].mxu0 %v3669
        %v3740 = vpop.f32.mrb[0].mxu0
        %v3741 = vadd.f32 0.0, %v3740
        %v3742 = vpop.f32.mrb[0].mxu0
        %3743 = vdwg.mxu0
        %v3744 = vmul.f32 %v3665, 0.125
        %v3745 = vmul.f32 %v3741, 0.125
        %v3746 = vadd.f32 %v3744, %v2919
        %v3747 = vadd.f32 %v3745, %v2919
        %v3748 = vsel %vm3077, %v3746, -inf
        %3749 = vmax.xlane.f32.xlu0 %v3748
        %v3750 = vpop.xlane.xlu0 %3749
        %v3751 = vsel %vm3077, %v3747, -inf
        %3752 = vmax.xlane.f32.xlu0 %v3751
        %v3753 = vpop.xlane.xlu0 %3752
        %v3754 = vsub.f32 %v3746, %v3750
        %v3755 = vsub.f32 %v3747, %v3753
        %v3756 = vmul.f32 %v3754, 1.442695
        %v3757 = vpow.pop %v3756
        %v3758 = vmul.f32 %v3755, 1.442695
        %v3759 = vpow.pop %v3758
        %v3760 = vsel %vm3077, %v3757, 0.0
        %3761 = vadd.xlane.f32.xlu0 %v3760
        %v3762 = vpop.xlane.xlu0 %3761
        %v3763 = vsel %vm3077, %v3759, 0.0
        %3764 = vadd.xlane.f32.xlu0 %v3763
        %v3765 = vpop.xlane.xlu0 %3764
        %v3766 = vrcp.pop %v3762
        %v3767 = vmul.f32 %v3757, %v3766
        %v3768 = vrcp.pop %v3765
        %v3769 = vmul.f32 %v3759, %v3768
        %v3771 = vsel %vm3077, %v3767, 0
        %3773 = vmatprep.subr.mxu0 0.0
        %3774 = vmatpush1.msra.mxu0 %v2828
        %3775 = vmatprep.subr.mxu0 0.0
        %3776 = vmatpush1.msra.mxu0 0.0
        %3777 = vmatprep.subr.mxu0 0.0
        %3778 = vmatpush1.msra.mxu0 0.0
        %3779 = vmatprep.subr.mxu0 0.0
        %3780 = vmatpush1.msra.mxu0 0.0
        %3781 = vmatprep.subr.mxu0 0.0
        %3782 = vmatpush1.msra.mxu0 0.0
        %3783 = vmatprep.subr.mxu0 0.0
        %3784 = vmatpush1.msra.mxu0 0.0
        %3785 = vmatprep.subr.mxu0 0.0
        %3786 = vmatpush1.msra.mxu0 0.0
        %3787 = vmatprep.subr.mxu0 0.0
        %3788 = vmatpush1.msra.mxu0 0.0
        %3789 = vmatprep.subr.mxu0 0.0
        %3790 = vmatpush1.msra.mxu0 0.0
        %3791 = vmatprep.subr.mxu0 0.0
        %3792 = vmatpush1.msra.mxu0 0.0
        %3793 = vmatprep.subr.mxu0 0.0
        %3794 = vmatpush1.msra.mxu0 0.0
        %3795 = vmatprep.subr.mxu0 0.0
        %3796 = vmatpush1.msra.mxu0 0.0
        %3797 = vmatprep.subr.mxu0 0.0
        %3798 = vmatpush1.msra.mxu0 0.0
        %3799 = vmatprep.subr.mxu0 0.0
        %3800 = vmatpush1.msra.mxu0 0.0
        %3801 = vmatprep.subr.mxu0 0.0
        %3802 = vmatpush1.msra.mxu0 0.0
        %3803 = vmatprep.subr.mxu0 0.0
        %3804 = vmatpush1.msra.mxu0 0.0
        %3805 = vmatprep.subr.mxu0 0.0
        %3806 = vmatpush1.msra.mxu0 0.0
        %3807 = vmatprep.subr.mxu0 0.0
        %3808 = vmatpush1.msra.mxu0 0.0
        %3809 = vmatprep.subr.mxu0 0.0
        %3810 = vmatpush1.msra.mxu0 0.0
        %3811 = vmatprep.subr.mxu0 0.0
        %3812 = vmatpush1.msra.mxu0 0.0
        %3813 = vmatprep.subr.mxu0 0.0
        %3814 = vmatpush1.msra.mxu0 0.0
        %3815 = vmatprep.subr.mxu0 0.0
        %3816 = vmatpush1.msra.mxu0 0.0
        %3817 = vmatprep.subr.mxu0 0.0
        %3818 = vmatpush1.msra.mxu0 0.0
        %3819 = vmatprep.subr.mxu0 0.0
        %3820 = vmatpush1.msra.mxu0 0.0
        %3821 = vmatprep.subr.mxu0 0.0
        %3822 = vmatpush1.msra.mxu0 0.0
        %3823 = vmatprep.subr.mxu0 0.0
        %3824 = vmatpush1.msra.mxu0 0.0
        %3825 = vmatprep.subr.mxu0 0.0
        %3826 = vmatpush1.msra.mxu0 0.0
        %3827 = vmatprep.subr.mxu0 0.0
        %3828 = vmatpush1.msra.mxu0 0.0
        %3829 = vmatprep.subr.mxu0 0.0
        %3830 = vmatpush1.msra.mxu0 0.0
        %3831 = vmatprep.subr.mxu0 0.0
        %3832 = vmatpush1.msra.mxu0 0.0
        %3833 = vmatprep.subr.mxu0 0.0
        %3834 = vmatpush1.msra.mxu0 0.0
        %3835 = vmatprep.subr.mxu0 0.0
        %3836 = vmatpush1.msra.mxu0 0.0
        %3837 = vmatprep.mubr.f32.mxu0 0.0
        %3838 = vmatmul.mubr.f32.gmra.mrb[0].mxu0 %v3771
        %v3839 = vpop.f32.mrb[0].mxu0
        %v3840 = vadd.f32 0.0, %v3839
        %v3841 = vpop.f32.mrb[0].mxu0
        %3842 = vdwg.mxu0
        %v3844 = vsel %vm3077, %v3769, 0
        %3846 = vmatprep.subr.mxu0 0.0
        %3847 = vmatpush1.msra.mxu0 %v2832
        %3848 = vmatprep.subr.mxu0 0.0
        %3849 = vmatpush1.msra.mxu0 0.0
        %3850 = vmatprep.subr.mxu0 0.0
        %3851 = vmatpush1.msra.mxu0 0.0
        %3852 = vmatprep.subr.mxu0 0.0
        %3853 = vmatpush1.msra.mxu0 0.0
        %3854 = vmatprep.subr.mxu0 0.0
        %3855 = vmatpush1.msra.mxu0 0.0
        %3856 = vmatprep.subr.mxu0 0.0
        %3857 = vmatpush1.msra.mxu0 0.0
        %3858 = vmatprep.subr.mxu0 0.0
        %3859 = vmatpush1.msra.mxu0 0.0
        %3860 = vmatprep.subr.mxu0 0.0
        %3861 = vmatpush1.msra.mxu0 0.0
        %3862 = vmatprep.subr.mxu0 0.0
        %3863 = vmatpush1.msra.mxu0 0.0
        %3864 = vmatprep.subr.mxu0 0.0
        %3865 = vmatpush1.msra.mxu0 0.0
        %3866 = vmatprep.subr.mxu0 0.0
        %3867 = vmatpush1.msra.mxu0 0.0
        %3868 = vmatprep.subr.mxu0 0.0
        %3869 = vmatpush1.msra.mxu0 0.0
        %3870 = vmatprep.subr.mxu0 0.0
        %3871 = vmatpush1.msra.mxu0 0.0
        %3872 = vmatprep.subr.mxu0 0.0
        %3873 = vmatpush1.msra.mxu0 0.0
        %3874 = vmatprep.subr.mxu0 0.0
        %3875 = vmatpush1.msra.mxu0 0.0
        %3876 = vmatprep.subr.mxu0 0.0
        %3877 = vmatpush1.msra.mxu0 0.0
        %3878 = vmatprep.subr.mxu0 0.0
        %3879 = vmatpush1.msra.mxu0 0.0
        %3880 = vmatprep.subr.mxu0 0.0
        %3881 = vmatpush1.msra.mxu0 0.0
        %3882 = vmatprep.subr.mxu0 0.0
        %3883 = vmatpush1.msra.mxu0 0.0
        %3884 = vmatprep.subr.mxu0 0.0
        %3885 = vmatpush1.msra.mxu0 0.0
        %3886 = vmatprep.subr.mxu0 0.0
        %3887 = vmatpush1.msra.mxu0 0.0
        %3888 = vmatprep.subr.mxu0 0.0
        %3889 = vmatpush1.msra.mxu0 0.0
        %3890 = vmatprep.subr.mxu0 0.0
        %3891 = vmatpush1.msra.mxu0 0.0
        %3892 = vmatprep.subr.mxu0 0.0
        %3893 = vmatpush1.msra.mxu0 0.0
        %3894 = vmatprep.subr.mxu0 0.0
        %3895 = vmatpush1.msra.mxu0 0.0
        %3896 = vmatprep.subr.mxu0 0.0
        %3897 = vmatpush1.msra.mxu0 0.0
        %3898 = vmatprep.subr.mxu0 0.0
        %3899 = vmatpush1.msra.mxu0 0.0
        %3900 = vmatprep.subr.mxu0 0.0
        %3901 = vmatpush1.msra.mxu0 0.0
        %3902 = vmatprep.subr.mxu0 0.0
        %3903 = vmatpush1.msra.mxu0 0.0
        %3904 = vmatprep.subr.mxu0 0.0
        %3905 = vmatpush1.msra.mxu0 0.0
        %3906 = vmatprep.subr.mxu0 0.0
        %3907 = vmatpush1.msra.mxu0 0.0
        %3908 = vmatprep.subr.mxu0 0.0
        %3909 = vmatpush1.msra.mxu0 0.0
        %3910 = vmatprep.mubr.f32.mxu0 0.0
        %3911 = vmatmul.mubr.f32.gmra.mrb[0].mxu0 %v3844
        %v3912 = vpop.f32.mrb[0].mxu0
        %v3913 = vadd.f32 0.0, %v3912
        %v3914 = vpop.f32.mrb[0].mxu0
        %3915 = vdwg.mxu0
        %3916 = vrot.lane.b32.xlu0 %v2570, 64
        %v3917 = vpop.permute.xlu0 %3916
        %3918 = vrot.lane.b32.xlu0 %v2740, 64
        %v3919 = vpop.permute.xlu0 %3918
        %v3920 = vsel %vm2920, %v3917, 0
        %v3922 = vsel %vm2920, %v3919, 0
        %3924 = vmatprep.subr.mxu0 0.0
        %3925 = vmatpush1.xpose.msra.mxu0 %v3922
        %3926 = vmatprep.subr.mxu0 0.0
        %3927 = vmatpush1.xpose.msra.mxu0 0.0
        %3928 = vmatprep.subr.mxu0 0.0
        %3929 = vmatpush1.xpose.msra.mxu0 0.0
        %3930 = vmatprep.subr.mxu0 0.0
        %3931 = vmatpush1.xpose.msra.mxu0 0.0
        %3932 = vmatprep.subr.mxu0 0.0
        %3933 = vmatpush1.xpose.msra.mxu0 0.0
        %3934 = vmatprep.subr.mxu0 0.0
        %3935 = vmatpush1.xpose.msra.mxu0 0.0
        %3936 = vmatprep.subr.mxu0 0.0
        %3937 = vmatpush1.xpose.msra.mxu0 0.0
        %3938 = vmatprep.subr.mxu0 0.0
        %3939 = vmatpush1.xpose.msra.mxu0 0.0
        %3940 = vmatprep.subr.mxu0 0.0
        %3941 = vmatpush1.xpose.msra.mxu0 0.0
        %3942 = vmatprep.subr.mxu0 0.0
        %3943 = vmatpush1.xpose.msra.mxu0 0.0
        %3944 = vmatprep.subr.mxu0 0.0
        %3945 = vmatpush1.xpose.msra.mxu0 0.0
        %3946 = vmatprep.subr.mxu0 0.0
        %3947 = vmatpush1.xpose.msra.mxu0 0.0
        %3948 = vmatprep.subr.mxu0 0.0
        %3949 = vmatpush1.xpose.msra.mxu0 0.0
        %3950 = vmatprep.subr.mxu0 0.0
        %3951 = vmatpush1.xpose.msra.mxu0 0.0
        %3952 = vmatprep.subr.mxu0 0.0
        %3953 = vmatpush1.xpose.msra.mxu0 0.0
        %3954 = vmatprep.subr.mxu0 0.0
        %3955 = vmatpush1.xpose.msra.mxu0 0.0
        %3956 = vmatprep.subr.mxu0 0.0
        %3957 = vmatpush1.xpose.msra.mxu0 0.0
        %3958 = vmatprep.subr.mxu0 0.0
        %3959 = vmatpush1.xpose.msra.mxu0 0.0
        %3960 = vmatprep.subr.mxu0 0.0
        %3961 = vmatpush1.xpose.msra.mxu0 0.0
        %3962 = vmatprep.subr.mxu0 0.0
        %3963 = vmatpush1.xpose.msra.mxu0 0.0
        %3964 = vmatprep.subr.mxu0 0.0
        %3965 = vmatpush1.xpose.msra.mxu0 0.0
        %3966 = vmatprep.subr.mxu0 0.0
        %3967 = vmatpush1.xpose.msra.mxu0 0.0
        %3968 = vmatprep.subr.mxu0 0.0
        %3969 = vmatpush1.xpose.msra.mxu0 0.0
        %3970 = vmatprep.subr.mxu0 0.0
        %3971 = vmatpush1.xpose.msra.mxu0 0.0
        %3972 = vmatprep.subr.mxu0 0.0
        %3973 = vmatpush1.xpose.msra.mxu0 0.0
        %3974 = vmatprep.subr.mxu0 0.0
        %3975 = vmatpush1.xpose.msra.mxu0 0.0
        %3976 = vmatprep.subr.mxu0 0.0
        %3977 = vmatpush1.xpose.msra.mxu0 0.0
        %3978 = vmatprep.subr.mxu0 0.0
        %3979 = vmatpush1.xpose.msra.mxu0 0.0
        %3980 = vmatprep.subr.mxu0 0.0
        %3981 = vmatpush1.xpose.msra.mxu0 0.0
        %3982 = vmatprep.subr.mxu0 0.0
        %3983 = vmatpush1.xpose.msra.mxu0 0.0
        %3984 = vmatprep.subr.mxu0 0.0
        %3985 = vmatpush1.xpose.msra.mxu0 0.0
        %3986 = vmatprep.subr.mxu0 0.0
        %3987 = vmatpush1.xpose.msra.mxu0 0.0
        %3988 = vmatprep.mubr.f32.mxu0 0.0
        %3989 = vmatmul.mubr.f32.gmra.mrb[0].mxu0 %v3920
        %v3990 = vpop.f32.mrb[0].mxu0
        %v3991 = vadd.f32 0.0, %v3990
        %v3992 = vpop.f32.mrb[0].mxu0
        %3993 = vdwg.mxu0
        %3994 = vrot.lane.b32.xlu0 %v2574, 64
        %v3995 = vpop.permute.xlu0 %3994
        %3996 = vrot.lane.b32.xlu0 %v2744, 64
        %v3997 = vpop.permute.xlu0 %3996
        %v3998 = vsel %vm2920, %v3995, 0
        %v4000 = vsel %vm2920, %v3997, 0
        %4002 = vmatprep.subr.mxu0 0.0
        %4003 = vmatpush1.xpose.msra.mxu0 %v4000
        %4004 = vmatprep.subr.mxu0 0.0
        %4005 = vmatpush1.xpose.msra.mxu0 0.0
        %4006 = vmatprep.subr.mxu0 0.0
        %4007 = vmatpush1.xpose.msra.mxu0 0.0
        %4008 = vmatprep.subr.mxu0 0.0
        %4009 = vmatpush1.xpose.msra.mxu0 0.0
        %4010 = vmatprep.subr.mxu0 0.0
        %4011 = vmatpush1.xpose.msra.mxu0 0.0
        %4012 = vmatprep.subr.mxu0 0.0
        %4013 = vmatpush1.xpose.msra.mxu0 0.0
        %4014 = vmatprep.subr.mxu0 0.0
        %4015 = vmatpush1.xpose.msra.mxu0 0.0
        %4016 = vmatprep.subr.mxu0 0.0
        %4017 = vmatpush1.xpose.msra.mxu0 0.0
        %4018 = vmatprep.subr.mxu0 0.0
        %4019 = vmatpush1.xpose.msra.mxu0 0.0
        %4020 = vmatprep.subr.mxu0 0.0
        %4021 = vmatpush1.xpose.msra.mxu0 0.0
        %4022 = vmatprep.subr.mxu0 0.0
        %4023 = vmatpush1.xpose.msra.mxu0 0.0
        %4024 = vmatprep.subr.mxu0 0.0
        %4025 = vmatpush1.xpose.msra.mxu0 0.0
        %4026 = vmatprep.subr.mxu0 0.0
        %4027 = vmatpush1.xpose.msra.mxu0 0.0
        %4028 = vmatprep.subr.mxu0 0.0
        %4029 = vmatpush1.xpose.msra.mxu0 0.0
        %4030 = vmatprep.subr.mxu0 0.0
        %4031 = vmatpush1.xpose.msra.mxu0 0.0
        %4032 = vmatprep.subr.mxu0 0.0
        %4033 = vmatpush1.xpose.msra.mxu0 0.0
        %4034 = vmatprep.subr.mxu0 0.0
        %4035 = vmatpush1.xpose.msra.mxu0 0.0
        %4036 = vmatprep.subr.mxu0 0.0
        %4037 = vmatpush1.xpose.msra.mxu0 0.0
        %4038 = vmatprep.subr.mxu0 0.0
        %4039 = vmatpush1.xpose.msra.mxu0 0.0
        %4040 = vmatprep.subr.mxu0 0.0
        %4041 = vmatpush1.xpose.msra.mxu0 0.0
        %4042 = vmatprep.subr.mxu0 0.0
        %4043 = vmatpush1.xpose.msra.mxu0 0.0
        %4044 = vmatprep.subr.mxu0 0.0
        %4045 = vmatpush1.xpose.msra.mxu0 0.0
        %4046 = vmatprep.subr.mxu0 0.0
        %4047 = vmatpush1.xpose.msra.mxu0 0.0
        %4048 = vmatprep.subr.mxu0 0.0
        %4049 = vmatpush1.xpose.msra.mxu0 0.0
        %4050 = vmatprep.subr.mxu0 0.0
        %4051 = vmatpush1.xpose.msra.mxu0 0.0
        %4052 = vmatprep.subr.mxu0 0.0
        %4053 = vmatpush1.xpose.msra.mxu0 0.0
        %4054 = vmatprep.subr.mxu0 0.0
        %4055 = vmatpush1.xpose.msra.mxu0 0.0
        %4056 = vmatprep.subr.mxu0 0.0
        %4057 = vmatpush1.xpose.msra.mxu0 0.0
        %4058 = vmatprep.subr.mxu0 0.0
        %4059 = vmatpush1.xpose.msra.mxu0 0.0
        %4060 = vmatprep.subr.mxu0 0.0
        %4061 = vmatpush1.xpose.msra.mxu0 0.0
        %4062 = vmatprep.subr.mxu0 0.0
        %4063 = vmatpush1.xpose.msra.mxu0 0.0
        %4064 = vmatprep.subr.mxu0 0.0
        %4065 = vmatpush1.xpose.msra.mxu0 0.0
        %4066 = vmatprep.mubr.f32.mxu0 0.0
        %4067 = vmatmul.mubr.f32.gmra.mrb[0].mxu0 %v3998
        %v4068 = vpop.f32.mrb[0].mxu0
        %v4069 = vadd.f32 0.0, %v4068
        %v4070 = vpop.f32.mrb[0].mxu0
        %4071 = vdwg.mxu0
        %v4072 = vmul.f32 %v3991, 0.125
        %v4073 = vmul.f32 %v4069, 0.125
        %v4074 = vadd.f32 %v4072, %v2919
        %v4075 = vadd.f32 %v4073, %v2919
        %v4076 = vsel %vm3077, %v4074, -inf
        %4077 = vmax.xlane.f32.xlu0 %v4076
        %v4078 = vpop.xlane.xlu0 %4077
        %v4079 = vsel %vm3077, %v4075, -inf
        %4080 = vmax.xlane.f32.xlu0 %v4079
        %v4081 = vpop.xlane.xlu0 %4080
        %v4082 = vsub.f32 %v4074, %v4078
        %v4083 = vsub.f32 %v4075, %v4081
        %v4084 = vmul.f32 %v4082, 1.442695
        %v4085 = vpow.pop %v4084
        %v4086 = vmul.f32 %v4083, 1.442695
        %v4087 = vpow.pop %v4086
        %v4088 = vsel %vm3077, %v4085, 0.0
        %4089 = vadd.xlane.f32.xlu0 %v4088
        %v4090 = vpop.xlane.xlu0 %4089
        %v4091 = vsel %vm3077, %v4087, 0.0
        %4092 = vadd.xlane.f32.xlu0 %v4091
        %v4093 = vpop.xlane.xlu0 %4092
        %v4094 = vrcp.pop %v4090
        %v4095 = vmul.f32 %v4085, %v4094
        %v4096 = vrcp.pop %v4093
        %v4097 = vmul.f32 %v4087, %v4096
        %4099 = vrot.lane.b32.xlu0 %v2828, 64
        %v4100 = vpop.permute.xlu0 %4099
        %v4103 = vsel %vm3077, %v4095, 0
        %4105 = vmatprep.subr.mxu0 0.0
        %4106 = vmatpush1.msra.mxu0 %v4100
        %4107 = vmatprep.subr.mxu0 0.0
        %4108 = vmatpush1.msra.mxu0 0.0
        %4109 = vmatprep.subr.mxu0 0.0
        %4110 = vmatpush1.msra.mxu0 0.0
        %4111 = vmatprep.subr.mxu0 0.0
        %4112 = vmatpush1.msra.mxu0 0.0
        %4113 = vmatprep.subr.mxu0 0.0
        %4114 = vmatpush1.msra.mxu0 0.0
        %4115 = vmatprep.subr.mxu0 0.0
        %4116 = vmatpush1.msra.mxu0 0.0
        %4117 = vmatprep.subr.mxu0 0.0
        %4118 = vmatpush1.msra.mxu0 0.0
        %4119 = vmatprep.subr.mxu0 0.0
        %4120 = vmatpush1.msra.mxu0 0.0
        %4121 = vmatprep.subr.mxu0 0.0
        %4122 = vmatpush1.msra.mxu0 0.0
        %4123 = vmatprep.subr.mxu0 0.0
        %4124 = vmatpush1.msra.mxu0 0.0
        %4125 = vmatprep.subr.mxu0 0.0
        %4126 = vmatpush1.msra.mxu0 0.0
        %4127 = vmatprep.subr.mxu0 0.0
        %4128 = vmatpush1.msra.mxu0 0.0
        %4129 = vmatprep.subr.mxu0 0.0
        %4130 = vmatpush1.msra.mxu0 0.0
        %4131 = vmatprep.subr.mxu0 0.0
        %4132 = vmatpush1.msra.mxu0 0.0
        %4133 = vmatprep.subr.mxu0 0.0
        %4134 = vmatpush1.msra.mxu0 0.0
        %4135 = vmatprep.subr.mxu0 0.0
        %4136 = vmatpush1.msra.mxu0 0.0
        %4137 = vmatprep.subr.mxu0 0.0
        %4138 = vmatpush1.msra.mxu0 0.0
        %4139 = vmatprep.subr.mxu0 0.0
        %4140 = vmatpush1.msra.mxu0 0.0
        %4141 = vmatprep.subr.mxu0 0.0
        %4142 = vmatpush1.msra.mxu0 0.0
        %4143 = vmatprep.subr.mxu0 0.0
        %4144 = vmatpush1.msra.mxu0 0.0
        %4145 = vmatprep.subr.mxu0 0.0
        %4146 = vmatpush1.msra.mxu0 0.0
        %4147 = vmatprep.subr.mxu0 0.0
        %4148 = vmatpush1.msra.mxu0 0.0
        %4149 = vmatprep.subr.mxu0 0.0
        %4150 = vmatpush1.msra.mxu0 0.0
        %4151 = vmatprep.subr.mxu0 0.0
        %4152 = vmatpush1.msra.mxu0 0.0
        %4153 = vmatprep.subr.mxu0 0.0
        %4154 = vmatpush1.msra.mxu0 0.0
        %4155 = vmatprep.subr.mxu0 0.0
        %4156 = vmatpush1.msra.mxu0 0.0
        %4157 = vmatprep.subr.mxu0 0.0
        %4158 = vmatpush1.msra.mxu0 0.0
        %4159 = vmatprep.subr.mxu0 0.0
        %4160 = vmatpush1.msra.mxu0 0.0
        %4161 = vmatprep.subr.mxu0 0.0
        %4162 = vmatpush1.msra.mxu0 0.0
        %4163 = vmatprep.subr.mxu0 0.0
        %4164 = vmatpush1.msra.mxu0 0.0
        %4165 = vmatprep.subr.mxu0 0.0
        %4166 = vmatpush1.msra.mxu0 0.0
        %4167 = vmatprep.subr.mxu0 0.0
        %4168 = vmatpush1.msra.mxu0 0.0
        %4169 = vmatprep.mubr.f32.mxu0 0.0
        %4170 = vmatmul.mubr.f32.gmra.mrb[0].mxu0 %v4103
        %v4171 = vpop.f32.mrb[0].mxu0
        %v4172 = vadd.f32 0.0, %v4171
        %v4173 = vpop.f32.mrb[0].mxu0
        %4174 = vdwg.mxu0
        %4176 = vrot.lane.b32.xlu0 %v2832, 64
        %v4177 = vpop.permute.xlu0 %4176
        %v4180 = vsel %vm3077, %v4097, 0
        %4182 = vmatprep.subr.mxu0 0.0
        %4183 = vmatpush1.msra.mxu0 %v4177
        %4184 = vmatprep.subr.mxu0 0.0
        %4185 = vmatpush1.msra.mxu0 0.0
        %4186 = vmatprep.subr.mxu0 0.0
        %4187 = vmatpush1.msra.mxu0 0.0
        %4188 = vmatprep.subr.mxu0 0.0
        %4189 = vmatpush1.msra.mxu0 0.0
        %4190 = vmatprep.subr.mxu0 0.0
        %4191 = vmatpush1.msra.mxu0 0.0
        %4192 = vmatprep.subr.mxu0 0.0
        %4193 = vmatpush1.msra.mxu0 0.0
        %4194 = vmatprep.subr.mxu0 0.0
        %4195 = vmatpush1.msra.mxu0 0.0
        %4196 = vmatprep.subr.mxu0 0.0
        %4197 = vmatpush1.msra.mxu0 0.0
        %4198 = vmatprep.subr.mxu0 0.0
        %4199 = vmatpush1.msra.mxu0 0.0
        %4200 = vmatprep.subr.mxu0 0.0
        %4201 = vmatpush1.msra.mxu0 0.0
        %4202 = vmatprep.subr.mxu0 0.0
        %4203 = vmatpush1.msra.mxu0 0.0
        %4204 = vmatprep.subr.mxu0 0.0
        %4205 = vmatpush1.msra.mxu0 0.0
        %4206 = vmatprep.subr.mxu0 0.0
        %4207 = vmatpush1.msra.mxu0 0.0
        %4208 = vmatprep.subr.mxu0 0.0
        %4209 = vmatpush1.msra.mxu0 0.0
        %4210 = vmatprep.subr.mxu0 0.0
        %4211 = vmatpush1.msra.mxu0 0.0
        %4212 = vmatprep.subr.mxu0 0.0
        %4213 = vmatpush1.msra.mxu0 0.0
        %4214 = vmatprep.subr.mxu0 0.0
        %4215 = vmatpush1.msra.mxu0 0.0
        %4216 = vmatprep.subr.mxu0 0.0
        %4217 = vmatpush1.msra.mxu0 0.0
        %4218 = vmatprep.subr.mxu0 0.0
        %4219 = vmatpush1.msra.mxu0 0.0
        %4220 = vmatprep.subr.mxu0 0.0
        %4221 = vmatpush1.msra.mxu0 0.0
        %4222 = vmatprep.subr.mxu0 0.0
        %4223 = vmatpush1.msra.mxu0 0.0
        %4224 = vmatprep.subr.mxu0 0.0
        %4225 = vmatpush1.msra.mxu0 0.0
        %4226 = vmatprep.subr.mxu0 0.0
        %4227 = vmatpush1.msra.mxu0 0.0
        %4228 = vmatprep.subr.mxu0 0.0
        %4229 = vmatpush1.msra.mxu0 0.0
        %4230 = vmatprep.subr.mxu0 0.0
        %4231 = vmatpush1.msra.mxu0 0.0
        %4232 = vmatprep.subr.mxu0 0.0
        %4233 = vmatpush1.msra.mxu0 0.0
        %4234 = vmatprep.subr.mxu0 0.0
        %4235 = vmatpush1.msra.mxu0 0.0
        %4236 = vmatprep.subr.mxu0 0.0
        %4237 = vmatpush1.msra.mxu0 0.0
        %4238 = vmatprep.subr.mxu0 0.0
        %4239 = vmatpush1.msra.mxu0 0.0
        %4240 = vmatprep.subr.mxu0 0.0
        %4241 = vmatpush1.msra.mxu0 0.0
        %4242 = vmatprep.subr.mxu0 0.0
        %4243 = vmatpush1.msra.mxu0 0.0
        %4244 = vmatprep.subr.mxu0 0.0
        %4245 = vmatpush1.msra.mxu0 0.0
        %4246 = vmatprep.mubr.f32.mxu0 0.0
        %4247 = vmatmul.mubr.f32.gmra.mrb[0].mxu0 %v4180
        %v4248 = vpop.f32.mrb[0].mxu0
        %v4249 = vadd.f32 0.0, %v4248
        %v4250 = vpop.f32.mrb[0].mxu0
        %4251 = vdwg.mxu0
        %4254 = vrot.lane.b32.xlu0 %v4172, 64
        %v4255 = vpop.permute.xlu0 %4254
        %4256 = vrot.lane.b32.xlu0 %v4249, 64
        %v4257 = vpop.permute.xlu0 %4256
        %v4260 = vsel %vm2920, %v3840, %v4255
        %v4261 = vsel %vm2920, %v3913, %v4257
        %v4263 = vsel %vm2920, %v2654, 0
        %v4266 = vsel %vm2920, %v2742, 0
        %4268 = vmatprep.subr.mxu0 0.0
        %4269 = vmatpush1.xpose.msra.mxu0 %v4266
        %4270 = vmatprep.subr.mxu0 0.0
        %4271 = vmatpush1.xpose.msra.mxu0 0.0
        %4272 = vmatprep.subr.mxu0 0.0
        %4273 = vmatpush1.xpose.msra.mxu0 0.0
        %4274 = vmatprep.subr.mxu0 0.0
        %4275 = vmatpush1.xpose.msra.mxu0 0.0
        %4276 = vmatprep.subr.mxu0 0.0
        %4277 = vmatpush1.xpose.msra.mxu0 0.0
        %4278 = vmatprep.subr.mxu0 0.0
        %4279 = vmatpush1.xpose.msra.mxu0 0.0
        %4280 = vmatprep.subr.mxu0 0.0
        %4281 = vmatpush1.xpose.msra.mxu0 0.0
        %4282 = vmatprep.subr.mxu0 0.0
        %4283 = vmatpush1.xpose.msra.mxu0 0.0
        %4284 = vmatprep.subr.mxu0 0.0
        %4285 = vmatpush1.xpose.msra.mxu0 0.0
        %4286 = vmatprep.subr.mxu0 0.0
        %4287 = vmatpush1.xpose.msra.mxu0 0.0
        %4288 = vmatprep.subr.mxu0 0.0
        %4289 = vmatpush1.xpose.msra.mxu0 0.0
        %4290 = vmatprep.subr.mxu0 0.0
        %4291 = vmatpush1.xpose.msra.mxu0 0.0
        %4292 = vmatprep.subr.mxu0 0.0
        %4293 = vmatpush1.xpose.msra.mxu0 0.0
        %4294 = vmatprep.subr.mxu0 0.0
        %4295 = vmatpush1.xpose.msra.mxu0 0.0
        %4296 = vmatprep.subr.mxu0 0.0
        %4297 = vmatpush1.xpose.msra.mxu0 0.0
        %4298 = vmatprep.subr.mxu0 0.0
        %4299 = vmatpush1.xpose.msra.mxu0 0.0
        %4300 = vmatprep.subr.mxu0 0.0
        %4301 = vmatpush1.xpose.msra.mxu0 0.0
        %4302 = vmatprep.subr.mxu0 0.0
        %4303 = vmatpush1.xpose.msra.mxu0 0.0
        %4304 = vmatprep.subr.mxu0 0.0
        %4305 = vmatpush1.xpose.msra.mxu0 0.0
        %4306 = vmatprep.subr.mxu0 0.0
        %4307 = vmatpush1.xpose.msra.mxu0 0.0
        %4308 = vmatprep.subr.mxu0 0.0
        %4309 = vmatpush1.xpose.msra.mxu0 0.0
        %4310 = vmatprep.subr.mxu0 0.0
        %4311 = vmatpush1.xpose.msra.mxu0 0.0
        %4312 = vmatprep.subr.mxu0 0.0
        %4313 = vmatpush1.xpose.msra.mxu0 0.0
        %4314 = vmatprep.subr.mxu0 0.0
        %4315 = vmatpush1.xpose.msra.mxu0 0.0
        %4316 = vmatprep.subr.mxu0 0.0
        %4317 = vmatpush1.xpose.msra.mxu0 0.0
        %4318 = vmatprep.subr.mxu0 0.0
        %4319 = vmatpush1.xpose.msra.mxu0 0.0
        %4320 = vmatprep.subr.mxu0 0.0
        %4321 = vmatpush1.xpose.msra.mxu0 0.0
        %4322 = vmatprep.subr.mxu0 0.0
        %4323 = vmatpush1.xpose.msra.mxu0 0.0
        %4324 = vmatprep.subr.mxu0 0.0
        %4325 = vmatpush1.xpose.msra.mxu0 0.0
        %4326 = vmatprep.subr.mxu0 0.0
        %4327 = vmatpush1.xpose.msra.mxu0 0.0
        %4328 = vmatprep.subr.mxu0 0.0
        %4329 = vmatpush1.xpose.msra.mxu0 0.0
        %4330 = vmatprep.subr.mxu0 0.0
        %4331 = vmatpush1.xpose.msra.mxu0 0.0
        %4332 = vmatprep.mubr.f32.mxu0 0.0
        %4333 = vmatmul.mubr.f32.gmra.mrb[0].mxu0 %v4263
        %v4334 = vpop.f32.mrb[0].mxu0
        %v4335 = vadd.f32 0.0, %v4334
        %v4336 = vpop.f32.mrb[0].mxu0
        %4337 = vdwg.mxu0
        %v4339 = vsel %vm2920, %v2658, 0
        %v4342 = vsel %vm2920, %v2746, 0
        %4344 = vmatprep.subr.mxu0 0.0
        %4345 = vmatpush1.xpose.msra.mxu0 %v4342
        %4346 = vmatprep.subr.mxu0 0.0
        %4347 = vmatpush1.xpose.msra.mxu0 0.0
        %4348 = vmatprep.subr.mxu0 0.0
        %4349 = vmatpush1.xpose.msra.mxu0 0.0
        %4350 = vmatprep.subr.mxu0 0.0
        %4351 = vmatpush1.xpose.msra.mxu0 0.0
        %4352 = vmatprep.subr.mxu0 0.0
        %4353 = vmatpush1.xpose.msra.mxu0 0.0
        %4354 = vmatprep.subr.mxu0 0.0
        %4355 = vmatpush1.xpose.msra.mxu0 0.0
        %4356 = vmatprep.subr.mxu0 0.0
        %4357 = vmatpush1.xpose.msra.mxu0 0.0
        %4358 = vmatprep.subr.mxu0 0.0
        %4359 = vmatpush1.xpose.msra.mxu0 0.0
        %4360 = vmatprep.subr.mxu0 0.0
        %4361 = vmatpush1.xpose.msra.mxu0 0.0
        %4362 = vmatprep.subr.mxu0 0.0
        %4363 = vmatpush1.xpose.msra.mxu0 0.0
        %4364 = vmatprep.subr.mxu0 0.0
        %4365 = vmatpush1.xpose.msra.mxu0 0.0
        %4366 = vmatprep.subr.mxu0 0.0
        %4367 = vmatpush1.xpose.msra.mxu0 0.0
        %4368 = vmatprep.subr.mxu0 0.0
        %4369 = vmatpush1.xpose.msra.mxu0 0.0
        %4370 = vmatprep.subr.mxu0 0.0
        %4371 = vmatpush1.xpose.msra.mxu0 0.0
        %4372 = vmatprep.subr.mxu0 0.0
        %4373 = vmatpush1.xpose.msra.mxu0 0.0
        %4374 = vmatprep.subr.mxu0 0.0
        %4375 = vmatpush1.xpose.msra.mxu0 0.0
        %4376 = vmatprep.subr.mxu0 0.0
        %4377 = vmatpush1.xpose.msra.mxu0 0.0
        %4378 = vmatprep.subr.mxu0 0.0
        %4379 = vmatpush1.xpose.msra.mxu0 0.0
        %4380 = vmatprep.subr.mxu0 0.0
        %4381 = vmatpush1.xpose.msra.mxu0 0.0
        %4382 = vmatprep.subr.mxu0 0.0
        %4383 = vmatpush1.xpose.msra.mxu0 0.0
        %4384 = vmatprep.subr.mxu0 0.0
        %4385 = vmatpush1.xpose.msra.mxu0 0.0
        %4386 = vmatprep.subr.mxu0 0.0
        %4387 = vmatpush1.xpose.msra.mxu0 0.0
        %4388 = vmatprep.subr.mxu0 0.0
        %4389 = vmatpush1.xpose.msra.mxu0 0.0
        %4390 = vmatprep.subr.mxu0 0.0
        %4391 = vmatpush1.xpose.msra.mxu0 0.0
        %4392 = vmatprep.subr.mxu0 0.0
        %4393 = vmatpush1.xpose.msra.mxu0 0.0
        %4394 = vmatprep.subr.mxu0 0.0
        %4395 = vmatpush1.xpose.msra.mxu0 0.0
        %4396 = vmatprep.subr.mxu0 0.0
        %4397 = vmatpush1.xpose.msra.mxu0 0.0
        %4398 = vmatprep.subr.mxu0 0.0
        %4399 = vmatpush1.xpose.msra.mxu0 0.0
        %4400 = vmatprep.subr.mxu0 0.0
        %4401 = vmatpush1.xpose.msra.mxu0 0.0
        %4402 = vmatprep.subr.mxu0 0.0
        %4403 = vmatpush1.xpose.msra.mxu0 0.0
        %4404 = vmatprep.subr.mxu0 0.0
        %4405 = vmatpush1.xpose.msra.mxu0 0.0
        %4406 = vmatprep.subr.mxu0 0.0
        %4407 = vmatpush1.xpose.msra.mxu0 0.0
        %4408 = vmatprep.mubr.f32.mxu0 0.0
        %4409 = vmatmul.mubr.f32.gmra.mrb[0].mxu0 %v4339
        %v4410 = vpop.f32.mrb[0].mxu0
        %v4411 = vadd.f32 0.0, %v4410
        %v4412 = vpop.f32.mrb[0].mxu0
        %4413 = vdwg.mxu0
        %v4414 = vmul.f32 %v4335, 0.125
        %v4415 = vmul.f32 %v4411, 0.125
        %v4416 = vadd.f32 %v4414, %v2919
        %v4417 = vadd.f32 %v4415, %v2919
        %v4418 = vsel %vm3077, %v4416, -inf
        %4419 = vmax.xlane.f32.xlu0 %v4418
        %v4420 = vpop.xlane.xlu0 %4419
        %v4421 = vsel %vm3077, %v4417, -inf
        %4422 = vmax.xlane.f32.xlu0 %v4421
        %v4423 = vpop.xlane.xlu0 %4422
        %v4424 = vsub.f32 %v4416, %v4420
        %v4425 = vsub.f32 %v4417, %v4423
        %v4426 = vmul.f32 %v4424, 1.442695
        %v4427 = vpow.pop %v4426
        %v4428 = vmul.f32 %v4425, 1.442695
        %v4429 = vpow.pop %v4428
        %v4430 = vsel %vm3077, %v4427, 0.0
        %4431 = vadd.xlane.f32.xlu0 %v4430
        %v4432 = vpop.xlane.xlu0 %4431
        %v4433 = vsel %vm3077, %v4429, 0.0
        %4434 = vadd.xlane.f32.xlu0 %v4433
        %v4435 = vpop.xlane.xlu0 %4434
        %v4436 = vrcp.pop %v4432
        %v4437 = vmul.f32 %v4427, %v4436
        %v4438 = vrcp.pop %v4435
        %v4439 = vmul.f32 %v4429, %v4438
        %v4441 = vsel %vm3077, %v4437, 0
        %4443 = vmatprep.subr.mxu0 0.0
        %4444 = vmatpush1.msra.mxu0 %v2910
        %4445 = vmatprep.subr.mxu0 0.0
        %4446 = vmatpush1.msra.mxu0 0.0
        %4447 = vmatprep.subr.mxu0 0.0
        %4448 = vmatpush1.msra.mxu0 0.0
        %4449 = vmatprep.subr.mxu0 0.0
        %4450 = vmatpush1.msra.mxu0 0.0
        %4451 = vmatprep.subr.mxu0 0.0
        %4452 = vmatpush1.msra.mxu0 0.0
        %4453 = vmatprep.subr.mxu0 0.0
        %4454 = vmatpush1.msra.mxu0 0.0
        %4455 = vmatprep.subr.mxu0 0.0
        %4456 = vmatpush1.msra.mxu0 0.0
        %4457 = vmatprep.subr.mxu0 0.0
        %4458 = vmatpush1.msra.mxu0 0.0
        %4459 = vmatprep.subr.mxu0 0.0
        %4460 = vmatpush1.msra.mxu0 0.0
        %4461 = vmatprep.subr.mxu0 0.0
        %4462 = vmatpush1.msra.mxu0 0.0
        %4463 = vmatprep.subr.mxu0 0.0
        %4464 = vmatpush1.msra.mxu0 0.0
        %4465 = vmatprep.subr.mxu0 0.0
        %4466 = vmatpush1.msra.mxu0 0.0
        %4467 = vmatprep.subr.mxu0 0.0
        %4468 = vmatpush1.msra.mxu0 0.0
        %4469 = vmatprep.subr.mxu0 0.0
        %4470 = vmatpush1.msra.mxu0 0.0
        %4471 = vmatprep.subr.mxu0 0.0
        %4472 = vmatpush1.msra.mxu0 0.0
        %4473 = vmatprep.subr.mxu0 0.0
        %4474 = vmatpush1.msra.mxu0 0.0
        %4475 = vmatprep.subr.mxu0 0.0
        %4476 = vmatpush1.msra.mxu0 0.0
        %4477 = vmatprep.subr.mxu0 0.0
        %4478 = vmatpush1.msra.mxu0 0.0
        %4479 = vmatprep.subr.mxu0 0.0
        %4480 = vmatpush1.msra.mxu0 0.0
        %4481 = vmatprep.subr.mxu0 0.0
        %4482 = vmatpush1.msra.mxu0 0.0
        %4483 = vmatprep.subr.mxu0 0.0
        %4484 = vmatpush1.msra.mxu0 0.0
        %4485 = vmatprep.subr.mxu0 0.0
        %4486 = vmatpush1.msra.mxu0 0.0
        %4487 = vmatprep.subr.mxu0 0.0
        %4488 = vmatpush1.msra.mxu0 0.0
        %4489 = vmatprep.subr.mxu0 0.0
        %4490 = vmatpush1.msra.mxu0 0.0
        %4491 = vmatprep.subr.mxu0 0.0
        %4492 = vmatpush1.msra.mxu0 0.0
        %4493 = vmatprep.subr.mxu0 0.0
        %4494 = vmatpush1.msra.mxu0 0.0
        %4495 = vmatprep.subr.mxu0 0.0
        %4496 = vmatpush1.msra.mxu0 0.0
        %4497 = vmatprep.subr.mxu0 0.0
        %4498 = vmatpush1.msra.mxu0 0.0
        %4499 = vmatprep.subr.mxu0 0.0
        %4500 = vmatpush1.msra.mxu0 0.0
        %4501 = vmatprep.subr.mxu0 0.0
        %4502 = vmatpush1.msra.mxu0 0.0
        %4503 = vmatprep.subr.mxu0 0.0
        %4504 = vmatpush1.msra.mxu0 0.0
        %4505 = vmatprep.subr.mxu0 0.0
        %4506 = vmatpush1.msra.mxu0 0.0
        %4507 = vmatprep.mubr.f32.mxu0 0.0
        %4508 = vmatmul.mubr.f32.gmra.mrb[0].mxu0 %v4441
        %v4509 = vpop.f32.mrb[0].mxu0
        %v4510 = vadd.f32 0.0, %v4509
        %v4511 = vpop.f32.mrb[0].mxu0
        %4512 = vdwg.mxu0
        %v4514 = vsel %vm3077, %v4439, 0
        %4516 = vmatprep.subr.mxu0 0.0
        %4517 = vmatpush1.msra.mxu0 %v2913
        %4518 = vmatprep.subr.mxu0 0.0
        %4519 = vmatpush1.msra.mxu0 0.0
        %4520 = vmatprep.subr.mxu0 0.0
        %4521 = vmatpush1.msra.mxu0 0.0
        %4522 = vmatprep.subr.mxu0 0.0
        %4523 = vmatpush1.msra.mxu0 0.0
        %4524 = vmatprep.subr.mxu0 0.0
        %4525 = vmatpush1.msra.mxu0 0.0
        %4526 = vmatprep.subr.mxu0 0.0
        %4527 = vmatpush1.msra.mxu0 0.0
        %4528 = vmatprep.subr.mxu0 0.0
        %4529 = vmatpush1.msra.mxu0 0.0
        %4530 = vmatprep.subr.mxu0 0.0
        %4531 = vmatpush1.msra.mxu0 0.0
        %4532 = vmatprep.subr.mxu0 0.0
        %4533 = vmatpush1.msra.mxu0 0.0
        %4534 = vmatprep.subr.mxu0 0.0
        %4535 = vmatpush1.msra.mxu0 0.0
        %4536 = vmatprep.subr.mxu0 0.0
        %4537 = vmatpush1.msra.mxu0 0.0
        %4538 = vmatprep.subr.mxu0 0.0
        %4539 = vmatpush1.msra.mxu0 0.0
        %4540 = vmatprep.subr.mxu0 0.0
        %4541 = vmatpush1.msra.mxu0 0.0
        %4542 = vmatprep.subr.mxu0 0.0
        %4543 = vmatpush1.msra.mxu0 0.0
        %4544 = vmatprep.subr.mxu0 0.0
        %4545 = vmatpush1.msra.mxu0 0.0
        %4546 = vmatprep.subr.mxu0 0.0
        %4547 = vmatpush1.msra.mxu0 0.0
        %4548 = vmatprep.subr.mxu0 0.0
        %4549 = vmatpush1.msra.mxu0 0.0
        %4550 = vmatprep.subr.mxu0 0.0
        %4551 = vmatpush1.msra.mxu0 0.0
        %4552 = vmatprep.subr.mxu0 0.0
        %4553 = vmatpush1.msra.mxu0 0.0
        %4554 = vmatprep.subr.mxu0 0.0
        %4555 = vmatpush1.msra.mxu0 0.0
        %4556 = vmatprep.subr.mxu0 0.0
        %4557 = vmatpush1.msra.mxu0 0.0
        %4558 = vmatprep.subr.mxu0 0.0
        %4559 = vmatpush1.msra.mxu0 0.0
        %4560 = vmatprep.subr.mxu0 0.0
        %4561 = vmatpush1.msra.mxu0 0.0
        %4562 = vmatprep.subr.mxu0 0.0
        %4563 = vmatpush1.msra.mxu0 0.0
        %4564 = vmatprep.subr.mxu0 0.0
        %4565 = vmatpush1.msra.mxu0 0.0
        %4566 = vmatprep.subr.mxu0 0.0
        %4567 = vmatpush1.msra.mxu0 0.0
        %4568 = vmatprep.subr.mxu0 0.0
        %4569 = vmatpush1.msra.mxu0 0.0
        %4570 = vmatprep.subr.mxu0 0.0
        %4571 = vmatpush1.msra.mxu0 0.0
        %4572 = vmatprep.subr.mxu0 0.0
        %4573 = vmatpush1.msra.mxu0 0.0
        %4574 = vmatprep.subr.mxu0 0.0
        %4575 = vmatpush1.msra.mxu0 0.0
        %4576 = vmatprep.subr.mxu0 0.0
        %4577 = vmatpush1.msra.mxu0 0.0
        %4578 = vmatprep.subr.mxu0 0.0
        %4579 = vmatpush1.msra.mxu0 0.0
        %4580 = vmatprep.mubr.f32.mxu0 0.0
        %4581 = vmatmul.mubr.f32.gmra.mrb[0].mxu0 %v4514
        %v4582 = vpop.f32.mrb[0].mxu0
        %v4583 = vadd.f32 0.0, %v4582
        %v4584 = vpop.f32.mrb[0].mxu0
        %4585 = vdwg.mxu0
        %4586 = vrot.lane.b32.xlu0 %v2654, 64
        %v4587 = vpop.permute.xlu0 %4586
        %4588 = vrot.lane.b32.xlu0 %v2742, 64
        %v4589 = vpop.permute.xlu0 %4588
        %v4590 = vsel %vm2920, %v4587, 0
        %v4592 = vsel %vm2920, %v4589, 0
        %4594 = vmatprep.subr.mxu0 0.0
        %4595 = vmatpush1.xpose.msra.mxu0 %v4592
        %4596 = vmatprep.subr.mxu0 0.0
        %4597 = vmatpush1.xpose.msra.mxu0 0.0
        %4598 = vmatprep.subr.mxu0 0.0
        %4599 = vmatpush1.xpose.msra.mxu0 0.0
        %4600 = vmatprep.subr.mxu0 0.0
        %4601 = vmatpush1.xpose.msra.mxu0 0.0
        %4602 = vmatprep.subr.mxu0 0.0
        %4603 = vmatpush1.xpose.msra.mxu0 0.0
        %4604 = vmatprep.subr.mxu0 0.0
        %4605 = vmatpush1.xpose.msra.mxu0 0.0
        %4606 = vmatprep.subr.mxu0 0.0
        %4607 = vmatpush1.xpose.msra.mxu0 0.0
        %4608 = vmatprep.subr.mxu0 0.0
        %4609 = vmatpush1.xpose.msra.mxu0 0.0
        %4610 = vmatprep.subr.mxu0 0.0
        %4611 = vmatpush1.xpose.msra.mxu0 0.0
        %4612 = vmatprep.subr.mxu0 0.0
        %4613 = vmatpush1.xpose.msra.mxu0 0.0
        %4614 = vmatprep.subr.mxu0 0.0
        %4615 = vmatpush1.xpose.msra.mxu0 0.0
        %4616 = vmatprep.subr.mxu0 0.0
        %4617 = vmatpush1.xpose.msra.mxu0 0.0
        %4618 = vmatprep.subr.mxu0 0.0
        %4619 = vmatpush1.xpose.msra.mxu0 0.0
        %4620 = vmatprep.subr.mxu0 0.0
        %4621 = vmatpush1.xpose.msra.mxu0 0.0
        %4622 = vmatprep.subr.mxu0 0.0
        %4623 = vmatpush1.xpose.msra.mxu0 0.0
        %4624 = vmatprep.subr.mxu0 0.0
        %4625 = vmatpush1.xpose.msra.mxu0 0.0
        %4626 = vmatprep.subr.mxu0 0.0
        %4627 = vmatpush1.xpose.msra.mxu0 0.0
        %4628 = vmatprep.subr.mxu0 0.0
        %4629 = vmatpush1.xpose.msra.mxu0 0.0
        %4630 = vmatprep.subr.mxu0 0.0
        %4631 = vmatpush1.xpose.msra.mxu0 0.0
        %4632 = vmatprep.subr.mxu0 0.0
        %4633 = vmatpush1.xpose.msra.mxu0 0.0
        %4634 = vmatprep.subr.mxu0 0.0
        %4635 = vmatpush1.xpose.msra.mxu0 0.0
        %4636 = vmatprep.subr.mxu0 0.0
        %4637 = vmatpush1.xpose.msra.mxu0 0.0
        %4638 = vmatprep.subr.mxu0 0.0
        %4639 = vmatpush1.xpose.msra.mxu0 0.0
        %4640 = vmatprep.subr.mxu0 0.0
        %4641 = vmatpush1.xpose.msra.mxu0 0.0
        %4642 = vmatprep.subr.mxu0 0.0
        %4643 = vmatpush1.xpose.msra.mxu0 0.0
        %4644 = vmatprep.subr.mxu0 0.0
        %4645 = vmatpush1.xpose.msra.mxu0 0.0
        %4646 = vmatprep.subr.mxu0 0.0
        %4647 = vmatpush1.xpose.msra.mxu0 0.0
        %4648 = vmatprep.subr.mxu0 0.0
        %4649 = vmatpush1.xpose.msra.mxu0 0.0
        %4650 = vmatprep.subr.mxu0 0.0
        %4651 = vmatpush1.xpose.msra.mxu0 0.0
        %4652 = vmatprep.subr.mxu0 0.0
        %4653 = vmatpush1.xpose.msra.mxu0 0.0
        %4654 = vmatprep.subr.mxu0 0.0
        %4655 = vmatpush1.xpose.msra.mxu0 0.0
        %4656 = vmatprep.subr.mxu0 0.0
        %4657 = vmatpush1.xpose.msra.mxu0 0.0
        %4658 = vmatprep.mubr.f32.mxu0 0.0
        %4659 = vmatmul.mubr.f32.gmra.mrb[0].mxu0 %v4590
        %v4660 = vpop.f32.mrb[0].mxu0
        %v4661 = vadd.f32 0.0, %v4660
        %v4662 = vpop.f32.mrb[0].mxu0
        %4663 = vdwg.mxu0
        %4664 = vrot.lane.b32.xlu0 %v2658, 64
        %v4665 = vpop.permute.xlu0 %4664
        %4666 = vrot.lane.b32.xlu0 %v2746, 64
        %v4667 = vpop.permute.xlu0 %4666
        %v4668 = vsel %vm2920, %v4665, 0
        %v4670 = vsel %vm2920, %v4667, 0
        %4672 = vmatprep.subr.mxu0 0.0
        %4673 = vmatpush1.xpose.msra.mxu0 %v4670
        %4674 = vmatprep.subr.mxu0 0.0
        %4675 = vmatpush1.xpose.msra.mxu0 0.0
        %4676 = vmatprep.subr.mxu0 0.0
        %4677 = vmatpush1.xpose.msra.mxu0 0.0
        %4678 = vmatprep.subr.mxu0 0.0
        %4679 = vmatpush1.xpose.msra.mxu0 0.0
        %4680 = vmatprep.subr.mxu0 0.0
        %4681 = vmatpush1.xpose.msra.mxu0 0.0
        %4682 = vmatprep.subr.mxu0 0.0
        %4683 = vmatpush1.xpose.msra.mxu0 0.0
        %4684 = vmatprep.subr.mxu0 0.0
        %4685 = vmatpush1.xpose.msra.mxu0 0.0
        %4686 = vmatprep.subr.mxu0 0.0
        %4687 = vmatpush1.xpose.msra.mxu0 0.0
        %4688 = vmatprep.subr.mxu0 0.0
        %4689 = vmatpush1.xpose.msra.mxu0 0.0
        %4690 = vmatprep.subr.mxu0 0.0
        %4691 = vmatpush1.xpose.msra.mxu0 0.0
        %4692 = vmatprep.subr.mxu0 0.0
        %4693 = vmatpush1.xpose.msra.mxu0 0.0
        %4694 = vmatprep.subr.mxu0 0.0
        %4695 = vmatpush1.xpose.msra.mxu0 0.0
        %4696 = vmatprep.subr.mxu0 0.0
        %4697 = vmatpush1.xpose.msra.mxu0 0.0
        %4698 = vmatprep.subr.mxu0 0.0
        %4699 = vmatpush1.xpose.msra.mxu0 0.0
        %4700 = vmatprep.subr.mxu0 0.0
        %4701 = vmatpush1.xpose.msra.mxu0 0.0
        %4702 = vmatprep.subr.mxu0 0.0
        %4703 = vmatpush1.xpose.msra.mxu0 0.0
        %4704 = vmatprep.subr.mxu0 0.0
        %4705 = vmatpush1.xpose.msra.mxu0 0.0
        %4706 = vmatprep.subr.mxu0 0.0
        %4707 = vmatpush1.xpose.msra.mxu0 0.0
        %4708 = vmatprep.subr.mxu0 0.0
        %4709 = vmatpush1.xpose.msra.mxu0 0.0
        %4710 = vmatprep.subr.mxu0 0.0
        %4711 = vmatpush1.xpose.msra.mxu0 0.0
        %4712 = vmatprep.subr.mxu0 0.0
        %4713 = vmatpush1.xpose.msra.mxu0 0.0
        %4714 = vmatprep.subr.mxu0 0.0
        %4715 = vmatpush1.xpose.msra.mxu0 0.0
        %4716 = vmatprep.subr.mxu0 0.0
        %4717 = vmatpush1.xpose.msra.mxu0 0.0
        %4718 = vmatprep.subr.mxu0 0.0
        %4719 = vmatpush1.xpose.msra.mxu0 0.0
        %4720 = vmatprep.subr.mxu0 0.0
        %4721 = vmatpush1.xpose.msra.mxu0 0.0
        %4722 = vmatprep.subr.mxu0 0.0
        %4723 = vmatpush1.xpose.msra.mxu0 0.0
        %4724 = vmatprep.subr.mxu0 0.0
        %4725 = vmatpush1.xpose.msra.mxu0 0.0
        %4726 = vmatprep.subr.mxu0 0.0
        %4727 = vmatpush1.xpose.msra.mxu0 0.0
        %4728 = vmatprep.subr.mxu0 0.0
        %4729 = vmatpush1.xpose.msra.mxu0 0.0
        %4730 = vmatprep.subr.mxu0 0.0
        %4731 = vmatpush1.xpose.msra.mxu0 0.0
        %4732 = vmatprep.subr.mxu0 0.0
        %4733 = vmatpush1.xpose.msra.mxu0 0.0
        %4734 = vmatprep.subr.mxu0 0.0
        %4735 = vmatpush1.xpose.msra.mxu0 0.0
        %4736 = vmatprep.mubr.f32.mxu0 0.0
        %4737 = vmatmul.mubr.f32.gmra.mrb[0].mxu0 %v4668
        %v4738 = vpop.f32.mrb[0].mxu0
        %v4739 = vadd.f32 0.0, %v4738
        %v4740 = vpop.f32.mrb[0].mxu0
        %4741 = vdwg.mxu0
        %v4742 = vmul.f32 %v4661, 0.125
        %v4743 = vmul.f32 %v4739, 0.125
        %v4744 = vadd.f32 %v4742, %v2919
        %v4745 = vadd.f32 %v4743, %v2919
        %v4746 = vsel %vm3077, %v4744, -inf
        %4747 = vmax.xlane.f32.xlu0 %v4746
        %v4748 = vpop.xlane.xlu0 %4747
        %v4749 = vsel %vm3077, %v4745, -inf
        %4750 = vmax.xlane.f32.xlu0 %v4749
        %v4751 = vpop.xlane.xlu0 %4750
        %v4752 = vsub.f32 %v4744, %v4748
        %v4753 = vsub.f32 %v4745, %v4751
        %v4754 = vmul.f32 %v4752, 1.442695
        %v4755 = vpow.pop %v4754
        %v4756 = vmul.f32 %v4753, 1.442695
        %v4757 = vpow.pop %v4756
        %v4758 = vsel %vm3077, %v4755, 0.0
        %4759 = vadd.xlane.f32.xlu0 %v4758
        %v4760 = vpop.xlane.xlu0 %4759
        %v4761 = vsel %vm3077, %v4757, 0.0
        %4762 = vadd.xlane.f32.xlu0 %v4761
        %v4763 = vpop.xlane.xlu0 %4762
        %v4764 = vrcp.pop %v4760
        %v4765 = vmul.f32 %v4755, %v4764
        %v4766 = vrcp.pop %v4763
        %v4767 = vmul.f32 %v4757, %v4766
        %4769 = vrot.lane.b32.xlu0 %v2910, 64
        %v4770 = vpop.permute.xlu0 %4769
        %v4773 = vsel %vm3077, %v4765, 0
        %4775 = vmatprep.subr.mxu0 0.0
        %4776 = vmatpush1.msra.mxu0 %v4770
        %4777 = vmatprep.subr.mxu0 0.0
        %4778 = vmatpush1.msra.mxu0 0.0
        %4779 = vmatprep.subr.mxu0 0.0
        %4780 = vmatpush1.msra.mxu0 0.0
        %4781 = vmatprep.subr.mxu0 0.0
        %4782 = vmatpush1.msra.mxu0 0.0
        %4783 = vmatprep.subr.mxu0 0.0
        %4784 = vmatpush1.msra.mxu0 0.0
        %4785 = vmatprep.subr.mxu0 0.0
        %4786 = vmatpush1.msra.mxu0 0.0
        %4787 = vmatprep.subr.mxu0 0.0
        %4788 = vmatpush1.msra.mxu0 0.0
        %4789 = vmatprep.subr.mxu0 0.0
        %4790 = vmatpush1.msra.mxu0 0.0
        %4791 = vmatprep.subr.mxu0 0.0
        %4792 = vmatpush1.msra.mxu0 0.0
        %4793 = vmatprep.subr.mxu0 0.0
        %4794 = vmatpush1.msra.mxu0 0.0
        %4795 = vmatprep.subr.mxu0 0.0
        %4796 = vmatpush1.msra.mxu0 0.0
        %4797 = vmatprep.subr.mxu0 0.0
        %4798 = vmatpush1.msra.mxu0 0.0
        %4799 = vmatprep.subr.mxu0 0.0
        %4800 = vmatpush1.msra.mxu0 0.0
        %4801 = vmatprep.subr.mxu0 0.0
        %4802 = vmatpush1.msra.mxu0 0.0
        %4803 = vmatprep.subr.mxu0 0.0
        %4804 = vmatpush1.msra.mxu0 0.0
        %4805 = vmatprep.subr.mxu0 0.0
        %4806 = vmatpush1.msra.mxu0 0.0
        %4807 = vmatprep.subr.mxu0 0.0
        %4808 = vmatpush1.msra.mxu0 0.0
        %4809 = vmatprep.subr.mxu0 0.0
        %4810 = vmatpush1.msra.mxu0 0.0
        %4811 = vmatprep.subr.mxu0 0.0
        %4812 = vmatpush1.msra.mxu0 0.0
        %4813 = vmatprep.subr.mxu0 0.0
        %4814 = vmatpush1.msra.mxu0 0.0
        %4815 = vmatprep.subr.mxu0 0.0
        %4816 = vmatpush1.msra.mxu0 0.0
        %4817 = vmatprep.subr.mxu0 0.0
        %4818 = vmatpush1.msra.mxu0 0.0
        %4819 = vmatprep.subr.mxu0 0.0
        %4820 = vmatpush1.msra.mxu0 0.0
        %4821 = vmatprep.subr.mxu0 0.0
        %4822 = vmatpush1.msra.mxu0 0.0
        %4823 = vmatprep.subr.mxu0 0.0
        %4824 = vmatpush1.msra.mxu0 0.0
        %4825 = vmatprep.subr.mxu0 0.0
        %4826 = vmatpush1.msra.mxu0 0.0
        %4827 = vmatprep.subr.mxu0 0.0
        %4828 = vmatpush1.msra.mxu0 0.0
        %4829 = vmatprep.subr.mxu0 0.0
        %4830 = vmatpush1.msra.mxu0 0.0
        %4831 = vmatprep.subr.mxu0 0.0
        %4832 = vmatpush1.msra.mxu0 0.0
        %4833 = vmatprep.subr.mxu0 0.0
        %4834 = vmatpush1.msra.mxu0 0.0
        %4835 = vmatprep.subr.mxu0 0.0
        %4836 = vmatpush1.msra.mxu0 0.0
        %4837 = vmatprep.subr.mxu0 0.0
        %4838 = vmatpush1.msra.mxu0 0.0
        %4839 = vmatprep.mubr.f32.mxu0 0.0
        %4840 = vmatmul.mubr.f32.gmra.mrb[0].mxu0 %v4773
        %v4841 = vpop.f32.mrb[0].mxu0
        %v4842 = vadd.f32 0.0, %v4841
        %v4843 = vpop.f32.mrb[0].mxu0
        %4844 = vdwg.mxu0
        %4846 = vrot.lane.b32.xlu0 %v2913, 64
        %v4847 = vpop.permute.xlu0 %4846
        %v4850 = vsel %vm3077, %v4767, 0
        %4852 = vmatprep.subr.mxu0 0.0
        %4853 = vmatpush1.msra.mxu0 %v4847
        %4854 = vmatprep.subr.mxu0 0.0
        %4855 = vmatpush1.msra.mxu0 0.0
        %4856 = vmatprep.subr.mxu0 0.0
        %4857 = vmatpush1.msra.mxu0 0.0
        %4858 = vmatprep.subr.mxu0 0.0
        %4859 = vmatpush1.msra.mxu0 0.0
        %4860 = vmatprep.subr.mxu0 0.0
        %4861 = vmatpush1.msra.mxu0 0.0
        %4862 = vmatprep.subr.mxu0 0.0
        %4863 = vmatpush1.msra.mxu0 0.0
        %4864 = vmatprep.subr.mxu0 0.0
        %4865 = vmatpush1.msra.mxu0 0.0
        %4866 = vmatprep.subr.mxu0 0.0
        %4867 = vmatpush1.msra.mxu0 0.0
        %4868 = vmatprep.subr.mxu0 0.0
        %4869 = vmatpush1.msra.mxu0 0.0
        %4870 = vmatprep.subr.mxu0 0.0
        %4871 = vmatpush1.msra.mxu0 0.0
        %4872 = vmatprep.subr.mxu0 0.0
        %4873 = vmatpush1.msra.mxu0 0.0
        %4874 = vmatprep.subr.mxu0 0.0
        %4875 = vmatpush1.msra.mxu0 0.0
        %4876 = vmatprep.subr.mxu0 0.0
        %4877 = vmatpush1.msra.mxu0 0.0
        %4878 = vmatprep.subr.mxu0 0.0
        %4879 = vmatpush1.msra.mxu0 0.0
        %4880 = vmatprep.subr.mxu0 0.0
        %4881 = vmatpush1.msra.mxu0 0.0
        %4882 = vmatprep.subr.mxu0 0.0
        %4883 = vmatpush1.msra.mxu0 0.0
        %4884 = vmatprep.subr.mxu0 0.0
        %4885 = vmatpush1.msra.mxu0 0.0
        %4886 = vmatprep.subr.mxu0 0.0
        %4887 = vmatpush1.msra.mxu0 0.0
        %4888 = vmatprep.subr.mxu0 0.0
        %4889 = vmatpush1.msra.mxu0 0.0
        %4890 = vmatprep.subr.mxu0 0.0
        %4891 = vmatpush1.msra.mxu0 0.0
        %4892 = vmatprep.subr.mxu0 0.0
        %4893 = vmatpush1.msra.mxu0 0.0
        %4894 = vmatprep.subr.mxu0 0.0
        %4895 = vmatpush1.msra.mxu0 0.0
        %4896 = vmatprep.subr.mxu0 0.0
        %4897 = vmatpush1.msra.mxu0 0.0
        %4898 = vmatprep.subr.mxu0 0.0
        %4899 = vmatpush1.msra.mxu0 0.0
        %4900 = vmatprep.subr.mxu0 0.0
        %4901 = vmatpush1.msra.mxu0 0.0
        %4902 = vmatprep.subr.mxu0 0.0
        %4903 = vmatpush1.msra.mxu0 0.0
        %4904 = vmatprep.subr.mxu0 0.0
        %4905 = vmatpush1.msra.mxu0 0.0
        %4906 = vmatprep.subr.mxu0 0.0
        %4907 = vmatpush1.msra.mxu0 0.0
        %4908 = vmatprep.subr.mxu0 0.0
        %4909 = vmatpush1.msra.mxu0 0.0
        %4910 = vmatprep.subr.mxu0 0.0
        %4911 = vmatpush1.msra.mxu0 0.0
        %4912 = vmatprep.subr.mxu0 0.0
        %4913 = vmatpush1.msra.mxu0 0.0
        %4914 = vmatprep.subr.mxu0 0.0
        %4915 = vmatpush1.msra.mxu0 0.0
        %4916 = vmatprep.mubr.f32.mxu0 0.0
        %4917 = vmatmul.mubr.f32.gmra.mrb[0].mxu0 %v4850
        %v4918 = vpop.f32.mrb[0].mxu0
        %v4919 = vadd.f32 0.0, %v4918
        %v4920 = vpop.f32.mrb[0].mxu0
        %4921 = vdwg.mxu0
        %4924 = vrot.lane.b32.xlu0 %v4842, 64
        %v4925 = vpop.permute.xlu0 %4924
        %4926 = vrot.lane.b32.xlu0 %v4919, 64
        %v4927 = vpop.permute.xlu0 %4926
        %v4930 = vsel %vm2920, %v4510, %v4925
        %v4931 = vsel %vm2920, %v4583, %v4927
        %v4932 = vld [vmem:[%s796] sm:$0xff]
        %v4933 = vld [vmem:[%s796 + $0x8] sm:$0xf]
        %v4934 = vld [vmem:[%s796 + $0xc] sm:$0xff]
        %v4935 = vld [vmem:[%s796 + $0x14] sm:$0xf]
        %v4936 = vld [vmem:[%s796 + $0x18] sm:$0xff]
        %v4937 = vld [vmem:[%s796 + $0x20] sm:$0xf]
        %v4938 = vld [vmem:[%s796 + $0x24] sm:$0xff]
        %v4939 = vld [vmem:[%s796 + $0x2c] sm:$0xf]
        %v4940 = vld [vmem:[%s796 + $0x30] sm:$0xff]
        %v4941 = vld [vmem:[%s796 + $0x38] sm:$0xf]
        %v4942 = vld [vmem:[%s796 + $0x3c] sm:$0xff]
        %v4943 = vld [vmem:[%s796 + $0x44] sm:$0xf]
        %v4944 = vld [vmem:[%s796 + $0x48] sm:$0xff]
        %v4945 = vld [vmem:[%s796 + $0x50] sm:$0xf]
        %v4946 = vld [vmem:[%s796 + $0x54] sm:$0xff]
        %v4947 = vld [vmem:[%s796 + $0x5c] sm:$0xf]
        %v4948 = vld [vmem:[%s796 + $0x60] sm:$0xff]
        %v4949 = vld [vmem:[%s796 + $0x68] sm:$0xf]
        %v4950 = vld [vmem:[%s796 + $0x6c] sm:$0xff]
        %v4951 = vld [vmem:[%s796 + $0x74] sm:$0xf]
        %v4952 = vld [vmem:[%s796 + $0x78] sm:$0xff]
        %v4953 = vld [vmem:[%s796 + $0x80] sm:$0xf]
        %v4954 = vld [vmem:[%s796 + $0x84] sm:$0xff]
        %v4955 = vld [vmem:[%s796 + $0x8c] sm:$0xf]
        %v4956 = vld [vmem:[%s796 + $0x90] sm:$0xff]
        %v4957 = vld [vmem:[%s796 + $0x98] sm:$0xf]
        %v4958 = vld [vmem:[%s796 + $0x9c] sm:$0xff]
        %v4959 = vld [vmem:[%s796 + $0xa4] sm:$0xf]
        %v4960 = vld [vmem:[%s796 + $0xa8] sm:$0xff]
        %v4961 = vld [vmem:[%s796 + $0xb0] sm:$0xf]
        %v4962 = vld [vmem:[%s796 + $0xb4] sm:$0xff]
        %v4963 = vld [vmem:[%s796 + $0xbc] sm:$0xf]
        %v4964 = vld [vmem:[%s796 + $0xc0] sm:$0xff]
        %v4965 = vld [vmem:[%s796 + $0xc8] sm:$0xf]
        %v4966 = vld [vmem:[%s796 + $0xcc] sm:$0xff]
        %v4967 = vld [vmem:[%s796 + $0xd4] sm:$0xf]
        %v4968 = vld [vmem:[%s796 + $0xd8] sm:$0xff]
        %v4969 = vld [vmem:[%s796 + $0xe0] sm:$0xf]
        %v4970 = vld [vmem:[%s796 + $0xe4] sm:$0xff]
        %v4971 = vld [vmem:[%s796 + $0xec] sm:$0xf]
        %v4972 = vld [vmem:[%s796 + $0xf0] sm:$0xff]
        %v4973 = vld [vmem:[%s796 + $0xf8] sm:$0xf]
        %v4974 = vld [vmem:[%s796 + $0xfc] sm:$0xff]
        %v4975 = vld [vmem:[%s796 + $0x104] sm:$0xf]
        %v4976 = vld [vmem:[%s796 + $0x108] sm:$0xff]
        %v4977 = vld [vmem:[%s796 + $0x110] sm:$0xf]
        %v4978 = vld [vmem:[%s796 + $0x114] sm:$0xff]
        %v4979 = vld [vmem:[%s796 + $0x11c] sm:$0xf]
        %v4980 = vld [vmem:[%s796 + $0x120] sm:$0xff]
        %v4981 = vld [vmem:[%s796 + $0x128] sm:$0xf]
        %v4982 = vld [vmem:[%s796 + $0x12c] sm:$0xff]
        %v4983 = vld [vmem:[%s796 + $0x134] sm:$0xf]
        %v4984 = vld [vmem:[%s796 + $0x138] sm:$0xff]
        %v4985 = vld [vmem:[%s796 + $0x140] sm:$0xf]
        %v4986 = vld [vmem:[%s796 + $0x144] sm:$0xff]
        %v4987 = vld [vmem:[%s796 + $0x14c] sm:$0xf]
        %v4988 = vld [vmem:[%s796 + $0x150] sm:$0xff]
        %v4989 = vld [vmem:[%s796 + $0x158] sm:$0xf]
        %v4990 = vld [vmem:[%s796 + $0x15c] sm:$0xff]
        %v4991 = vld [vmem:[%s796 + $0x164] sm:$0xf]
        %v4992 = vld [vmem:[%s796 + $0x168] sm:$0xff]
        %v4993 = vld [vmem:[%s796 + $0x170] sm:$0xf]
        %v4994 = vld [vmem:[%s796 + $0x174] sm:$0xff]
        %v4995 = vld [vmem:[%s796 + $0x17c] sm:$0xf]
        %v4996 = vld [vmem:[%s796 + $0x180] sm:$0xff]
        %v4997 = vld [vmem:[%s796 + $0x188] sm:$0xf]
        %v4998 = vld [vmem:[%s796 + $0x18c] sm:$0xff]
        %v4999 = vld [vmem:[%s796 + $0x194] sm:$0xf]
        %v5000 = vld [vmem:[%s796 + $0x198] sm:$0xff]
        %v5001 = vld [vmem:[%s796 + $0x1a0] sm:$0xf]
        %v5002 = vld [vmem:[%s796 + $0x1a4] sm:$0xff]
        %v5003 = vld [vmem:[%s796 + $0x1ac] sm:$0xf]
        %v5004 = vld [vmem:[%s796 + $0x1b0] sm:$0xff]
        %v5005 = vld [vmem:[%s796 + $0x1b8] sm:$0xf]
        %v5006 = vld [vmem:[%s796 + $0x1bc] sm:$0xff]
        %v5007 = vld [vmem:[%s796 + $0x1c4] sm:$0xf]
        %v5008 = vld [vmem:[%s796 + $0x1c8] sm:$0xff]
        %v5009 = vld [vmem:[%s796 + $0x1d0] sm:$0xf]
        %v5010 = vld [vmem:[%s796 + $0x1d4] sm:$0xff]
        %v5011 = vld [vmem:[%s796 + $0x1dc] sm:$0xf]
        %v5012 = vld [vmem:[%s796 + $0x1e0] sm:$0xff]
        %v5013 = vld [vmem:[%s796 + $0x1e8] sm:$0xf]
        %v5014 = vld [vmem:[%s796 + $0x1ec] sm:$0xff]
        %v5015 = vld [vmem:[%s796 + $0x1f4] sm:$0xf]
        %v5016 = vld [vmem:[%s796 + $0x1f8] sm:$0xff]
        %v5017 = vld [vmem:[%s796 + $0x200] sm:$0xf]
        %v5018 = vld [vmem:[%s796 + $0x204] sm:$0xff]
        %v5019 = vld [vmem:[%s796 + $0x20c] sm:$0xf]
        %v5020 = vld [vmem:[%s796 + $0x210] sm:$0xff]
        %v5021 = vld [vmem:[%s796 + $0x218] sm:$0xf]
        %v5022 = vld [vmem:[%s796 + $0x21c] sm:$0xff]
        %v5023 = vld [vmem:[%s796 + $0x224] sm:$0xf]
        %v5024 = vld [vmem:[%s796 + $0x228] sm:$0xff]
        %v5025 = vld [vmem:[%s796 + $0x230] sm:$0xf]
        %v5026 = vld [vmem:[%s796 + $0x234] sm:$0xff]
        %v5027 = vld [vmem:[%s796 + $0x23c] sm:$0xf]
        %v5028 = vld [vmem:[%s805] sm:$0x7]
        %v5029 = vpack.c.bf16 %v3591, %v3590
        %v5030 = vpack.c.bf16 %v4261, %v4260
        %v5031 = vpack.c.bf16 %v4931, %v4930
        %v5033 = vlaneseq
        %v5034 = vshrl.u32 %v5033, 7
        %v5035 = vsub.s32 0, %v5034
        %v5036 = vrot.slane %v5028, %v5035
        %v5037 = vlaneseq
        %v5038 = vshrl.u32 %v5037, 7
        %v5039 = vsub.s32 1, %v5038
        %v5040 = vrot.slane %v5028, %v5039
        %v5041 = vlaneseq
        %v5042 = vshrl.u32 %v5041, 7
        %v5043 = vsub.s32 2, %v5042
        %v5044 = vrot.slane %v5028, %v5043
        %v5144 = vunpack.c.l.b16 %v4932
        %v5145 = vunpack.c.h.b16 %v4932
        %v5146 = vunpack.c.l.b16 %v4933
        %v5147 = vunpack.c.l.b16 %v4934
        %v5148 = vunpack.c.h.b16 %v4934
        %v5149 = vunpack.c.l.b16 %v4935
        %v5150 = vunpack.c.l.b16 %v4936
        %v5151 = vunpack.c.h.b16 %v4936
        %v5152 = vunpack.c.l.b16 %v4937
        %v5153 = vunpack.c.l.b16 %v4938
        %v5154 = vunpack.c.h.b16 %v4938
        %v5155 = vunpack.c.l.b16 %v4939
        %v5156 = vunpack.c.l.b16 %v4940
        %v5157 = vunpack.c.h.b16 %v4940
        %v5158 = vunpack.c.l.b16 %v4941
        %v5159 = vunpack.c.l.b16 %v4942
        %v5160 = vunpack.c.h.b16 %v4942
        %v5161 = vunpack.c.l.b16 %v4943
        %v5162 = vunpack.c.l.b16 %v4944
        %v5163 = vunpack.c.h.b16 %v4944
        %v5164 = vunpack.c.l.b16 %v4945
        %v5165 = vunpack.c.l.b16 %v4946
        %v5166 = vunpack.c.h.b16 %v4946
        %v5167 = vunpack.c.l.b16 %v4947
        %v5168 = vunpack.c.l.b16 %v4948
        %v5169 = vunpack.c.h.b16 %v4948
        %v5170 = vunpack.c.l.b16 %v4949
        %v5171 = vunpack.c.l.b16 %v4950
        %v5172 = vunpack.c.h.b16 %v4950
        %v5173 = vunpack.c.l.b16 %v4951
        %v5174 = vunpack.c.l.b16 %v4952
        %v5175 = vunpack.c.h.b16 %v4952
        %v5176 = vunpack.c.l.b16 %v4953
        %v5177 = vunpack.c.l.b16 %v4954
        %v5178 = vunpack.c.h.b16 %v4954
        %v5179 = vunpack.c.l.b16 %v4955
        %v5180 = vunpack.c.l.b16 %v4956
        %v5181 = vunpack.c.h.b16 %v4956
        %v5182 = vunpack.c.l.b16 %v4957
        %v5183 = vunpack.c.l.b16 %v4958
        %v5184 = vunpack.c.h.b16 %v4958
        %v5185 = vunpack.c.l.b16 %v4959
        %v5186 = vunpack.c.l.b16 %v4960
        %v5187 = vunpack.c.h.b16 %v4960
        %v5188 = vunpack.c.l.b16 %v4961
        %v5189 = vunpack.c.l.b16 %v4962
        %v5190 = vunpack.c.h.b16 %v4962
        %v5191 = vunpack.c.l.b16 %v4963
        %v5192 = vunpack.c.l.b16 %v4964
        %v5193 = vunpack.c.h.b16 %v4964
        %v5194 = vunpack.c.l.b16 %v4965
        %v5195 = vunpack.c.l.b16 %v4966
        %v5196 = vunpack.c.h.b16 %v4966
        %v5197 = vunpack.c.l.b16 %v4967
        %v5198 = vunpack.c.l.b16 %v4968
        %v5199 = vunpack.c.h.b16 %v4968
        %v5200 = vunpack.c.l.b16 %v4969
        %v5201 = vunpack.c.l.b16 %v4970
        %v5202 = vunpack.c.h.b16 %v4970
        %v5203 = vunpack.c.l.b16 %v4971
        %v5204 = vunpack.c.l.b16 %v4972
        %v5205 = vunpack.c.h.b16 %v4972
        %v5206 = vunpack.c.l.b16 %v4973
        %v5207 = vunpack.c.l.b16 %v4974
        %v5208 = vunpack.c.h.b16 %v4974
        %v5209 = vunpack.c.l.b16 %v4975
        %v5210 = vunpack.c.l.b16 %v4976
        %v5211 = vunpack.c.h.b16 %v4976
        %v5212 = vunpack.c.l.b16 %v4977
        %v5213 = vunpack.c.l.b16 %v4978
        %v5214 = vunpack.c.h.b16 %v4978
        %v5215 = vunpack.c.l.b16 %v4979
        %v5216 = vunpack.c.l.b16 %v4980
        %v5217 = vunpack.c.h.b16 %v4980
        %v5218 = vunpack.c.l.b16 %v4981
        %v5219 = vunpack.c.l.b16 %v4982
        %v5220 = vunpack.c.h.b16 %v4982
        %v5221 = vunpack.c.l.b16 %v4983
        %v5222 = vunpack.c.l.b16 %v4984
        %v5223 = vunpack.c.h.b16 %v4984
        %v5224 = vunpack.c.l.b16 %v4985
        %v5225 = vunpack.c.l.b16 %v4986
        %v5226 = vunpack.c.h.b16 %v4986
        %v5227 = vunpack.c.l.b16 %v4987
        %v5228 = vunpack.c.l.b16 %v4988
        %v5229 = vunpack.c.h.b16 %v4988
        %v5230 = vunpack.c.l.b16 %v4989
        %v5231 = vunpack.c.l.b16 %v4990
        %v5232 = vunpack.c.h.b16 %v4990
        %v5233 = vunpack.c.l.b16 %v4991
        %v5234 = vunpack.c.l.b16 %v4992
        %v5235 = vunpack.c.h.b16 %v4992
        %v5236 = vunpack.c.l.b16 %v4993
        %v5237 = vunpack.c.l.b16 %v4994
        %v5238 = vunpack.c.h.b16 %v4994
        %v5239 = vunpack.c.l.b16 %v4995
        %v5240 = vunpack.c.l.b16 %v4996
        %v5241 = vunpack.c.h.b16 %v4996
        %v5242 = vunpack.c.l.b16 %v4997
        %v5243 = vunpack.c.l.b16 %v4998
        %v5244 = vunpack.c.h.b16 %v4998
        %v5245 = vunpack.c.l.b16 %v4999
        %v5246 = vunpack.c.l.b16 %v5000
        %v5247 = vunpack.c.h.b16 %v5000
        %v5248 = vunpack.c.l.b16 %v5001
        %v5249 = vunpack.c.l.b16 %v5002
        %v5250 = vunpack.c.h.b16 %v5002
        %v5251 = vunpack.c.l.b16 %v5003
        %v5252 = vunpack.c.l.b16 %v5004
        %v5253 = vunpack.c.h.b16 %v5004
        %v5254 = vunpack.c.l.b16 %v5005
        %v5255 = vunpack.c.l.b16 %v5006
        %v5256 = vunpack.c.h.b16 %v5006
        %v5257 = vunpack.c.l.b16 %v5007
        %v5258 = vunpack.c.l.b16 %v5008
        %v5259 = vunpack.c.h.b16 %v5008
        %v5260 = vunpack.c.l.b16 %v5009
        %v5261 = vunpack.c.l.b16 %v5010
        %v5262 = vunpack.c.h.b16 %v5010
        %v5263 = vunpack.c.l.b16 %v5011
        %v5264 = vunpack.c.l.b16 %v5012
        %v5265 = vunpack.c.h.b16 %v5012
        %v5266 = vunpack.c.l.b16 %v5013
        %v5267 = vunpack.c.l.b16 %v5014
        %v5268 = vunpack.c.h.b16 %v5014
        %v5269 = vunpack.c.l.b16 %v5015
        %v5270 = vunpack.c.l.b16 %v5016
        %v5271 = vunpack.c.h.b16 %v5016
        %v5272 = vunpack.c.l.b16 %v5017
        %v5273 = vunpack.c.l.b16 %v5018
        %v5274 = vunpack.c.h.b16 %v5018
        %v5275 = vunpack.c.l.b16 %v5019
        %v5276 = vunpack.c.l.b16 %v5020
        %v5277 = vunpack.c.h.b16 %v5020
        %v5278 = vunpack.c.l.b16 %v5021
        %v5279 = vunpack.c.l.b16 %v5022
        %v5280 = vunpack.c.h.b16 %v5022
        %v5281 = vunpack.c.l.b16 %v5023
        %v5282 = vunpack.c.l.b16 %v5024
        %v5283 = vunpack.c.h.b16 %v5024
        %v5284 = vunpack.c.l.b16 %v5025
        %v5285 = vunpack.c.l.b16 %v5026
        %v5286 = vunpack.c.h.b16 %v5026
        %v5287 = vunpack.c.l.b16 %v5027
        %v5288 = vpack.c.b16 %v5147, %v5144
        %v5289 = vpack.c.b16 %v5148, %v5145
        %v5290 = vpack.c.b16 %v5149, %v5146
        %v5291 = vpack.c.b16 %v5153, %v5150
        %v5292 = vpack.c.b16 %v5154, %v5151
        %v5293 = vpack.c.b16 %v5155, %v5152
        %v5294 = vpack.c.b16 %v5159, %v5156
        %v5295 = vpack.c.b16 %v5160, %v5157
        %v5296 = vpack.c.b16 %v5161, %v5158
        %v5297 = vpack.c.b16 %v5165, %v5162
        %v5298 = vpack.c.b16 %v5166, %v5163
        %v5299 = vpack.c.b16 %v5167, %v5164
        %v5300 = vpack.c.b16 %v5171, %v5168
        %v5301 = vpack.c.b16 %v5172, %v5169
        %v5302 = vpack.c.b16 %v5173, %v5170
        %v5303 = vpack.c.b16 %v5177, %v5174
        %v5304 = vpack.c.b16 %v5178, %v5175
        %v5305 = vpack.c.b16 %v5179, %v5176
        %v5306 = vpack.c.b16 %v5183, %v5180
        %v5307 = vpack.c.b16 %v5184, %v5181
        %v5308 = vpack.c.b16 %v5185, %v5182
        %v5309 = vpack.c.b16 %v5189, %v5186
        %v5310 = vpack.c.b16 %v5190, %v5187
        %v5311 = vpack.c.b16 %v5191, %v5188
        %v5312 = vpack.c.b16 %v5195, %v5192
        %v5313 = vpack.c.b16 %v5196, %v5193
        %v5314 = vpack.c.b16 %v5197, %v5194
        %v5315 = vpack.c.b16 %v5201, %v5198
        %v5316 = vpack.c.b16 %v5202, %v5199
        %v5317 = vpack.c.b16 %v5203, %v5200
        %v5318 = vpack.c.b16 %v5207, %v5204
        %v5319 = vpack.c.b16 %v5208, %v5205
        %v5320 = vpack.c.b16 %v5209, %v5206
        %v5321 = vpack.c.b16 %v5213, %v5210
        %v5322 = vpack.c.b16 %v5214, %v5211
        %v5323 = vpack.c.b16 %v5215, %v5212
        %v5324 = vpack.c.b16 %v5219, %v5216
        %v5325 = vpack.c.b16 %v5220, %v5217
        %v5326 = vpack.c.b16 %v5221, %v5218
        %v5327 = vpack.c.b16 %v5225, %v5222
        %v5328 = vpack.c.b16 %v5226, %v5223
        %v5329 = vpack.c.b16 %v5227, %v5224
        %v5330 = vpack.c.b16 %v5231, %v5228
        %v5331 = vpack.c.b16 %v5232, %v5229
        %v5332 = vpack.c.b16 %v5233, %v5230
        %v5333 = vpack.c.b16 %v5237, %v5234
        %v5334 = vpack.c.b16 %v5238, %v5235
        %v5335 = vpack.c.b16 %v5239, %v5236
        %v5336 = vpack.c.b16 %v5243, %v5240
        %v5337 = vpack.c.b16 %v5244, %v5241
        %v5338 = vpack.c.b16 %v5245, %v5242
        %v5339 = vpack.c.b16 %v5249, %v5246
        %v5340 = vpack.c.b16 %v5250, %v5247
        %v5341 = vpack.c.b16 %v5251, %v5248
        %v5342 = vpack.c.b16 %v5255, %v5252
        %v5343 = vpack.c.b16 %v5256, %v5253
        %v5344 = vpack.c.b16 %v5257, %v5254
        %v5345 = vpack.c.b16 %v5261, %v5258
        %v5346 = vpack.c.b16 %v5262, %v5259
        %v5347 = vpack.c.b16 %v5263, %v5260
        %v5348 = vpack.c.b16 %v5267, %v5264
        %v5349 = vpack.c.b16 %v5268, %v5265
        %v5350 = vpack.c.b16 %v5269, %v5266
        %v5351 = vpack.c.b16 %v5273, %v5270
        %v5352 = vpack.c.b16 %v5274, %v5271
        %v5353 = vpack.c.b16 %v5275, %v5272
        %v5354 = vpack.c.b16 %v5279, %v5276
        %v5355 = vpack.c.b16 %v5280, %v5277
        %v5356 = vpack.c.b16 %v5281, %v5278
        %v5357 = vpack.c.b16 %v5285, %v5282
        %v5358 = vpack.c.b16 %v5286, %v5283
        %v5359 = vpack.c.b16 %v5287, %v5284
        %5432 = vmatprep.subr.bf16.mxu0 %v5289
        %5433 = vmatpush1.bf16.msra.mxu0 %v5288
        %5434 = vmatprep.subr.bf16.mxu0 %v5292
        %5435 = vmatpush1.bf16.msra.mxu0 %v5291
        %5436 = vmatprep.subr.bf16.mxu0 %v5295
        %5437 = vmatpush1.bf16.msra.mxu0 %v5294
        %5438 = vmatprep.subr.bf16.mxu0 %v5298
        %5439 = vmatpush1.bf16.msra.mxu0 %v5297
        %5440 = vmatprep.subr.bf16.mxu0 %v5301
        %5441 = vmatpush1.bf16.msra.mxu0 %v5300
        %5442 = vmatprep.subr.bf16.mxu0 %v5304
        %5443 = vmatpush1.bf16.msra.mxu0 %v5303
        %5444 = vmatprep.subr.bf16.mxu0 %v5307
        %5445 = vmatpush1.bf16.msra.mxu0 %v5306
        %5446 = vmatprep.subr.bf16.mxu0 %v5310
        %5447 = vmatpush1.bf16.msra.mxu0 %v5309
        %5448 = vmatprep.subr.bf16.mxu0 %v5313
        %5449 = vmatpush1.bf16.msra.mxu0 %v5312
        %5450 = vmatprep.subr.bf16.mxu0 %v5316
        %5451 = vmatpush1.bf16.msra.mxu0 %v5315
        %5452 = vmatprep.subr.bf16.mxu0 %v5319
        %5453 = vmatpush1.bf16.msra.mxu0 %v5318
        %5454 = vmatprep.subr.bf16.mxu0 %v5322
        %5455 = vmatpush1.bf16.msra.mxu0 %v5321
        %5456 = vmatprep.subr.bf16.mxu0 %v5325
        %5457 = vmatpush1.bf16.msra.mxu0 %v5324
        %5458 = vmatprep.subr.bf16.mxu0 %v5328
        %5459 = vmatpush1.bf16.msra.mxu0 %v5327
        %5460 = vmatprep.subr.bf16.mxu0 %v5331
        %5461 = vmatpush1.bf16.msra.mxu0 %v5330
        %5462 = vmatprep.subr.bf16.mxu0 %v5334
        %5463 = vmatpush1.bf16.msra.mxu0 %v5333
        %5464 = vmatprep.mubr.bf16.mxu0 %v5030
        %5465 = vmatmul.mubr.bf16.gmra.mrb[0].mxu0 %v5029
        %v5466 = vpop.f32.mrb[0].mxu0
        %v5467 = vadd.f32 %v5036, %v5466
        %v5468 = vpop.f32.mrb[0].mxu0
        %v5469 = vadd.f32 %v5040, %v5468
        %v5470 = vpop.f32.mrb[0].mxu0
        %v5471 = vadd.f32 %v5036, %v5470
        %v5472 = vpop.f32.mrb[0].mxu0
        %v5473 = vadd.f32 %v5040, %v5472
        %5474 = vdwg.mxu0
        %5475 = vmatprep.subr.bf16.mxu0 %v5337
        %5476 = vmatpush1.bf16.msra.mxu0 %v5336
        %5477 = vmatprep.subr.bf16.mxu0 %v5340
        %5478 = vmatpush1.bf16.msra.mxu0 %v5339
        %5479 = vmatprep.subr.bf16.mxu0 %v5343
        %5480 = vmatpush1.bf16.msra.mxu0 %v5342
        %5481 = vmatprep.subr.bf16.mxu0 %v5346
        %5482 = vmatpush1.bf16.msra.mxu0 %v5345
        %5483 = vmatprep.subr.bf16.mxu0 %v5349
        %5484 = vmatpush1.bf16.msra.mxu0 %v5348
        %5485 = vmatprep.subr.bf16.mxu0 %v5352
        %5486 = vmatpush1.bf16.msra.mxu0 %v5351
        %5487 = vmatprep.subr.bf16.mxu0 %v5355
        %5488 = vmatpush1.bf16.msra.mxu0 %v5354
        %5489 = vmatprep.subr.bf16.mxu0 %v5358
        %5490 = vmatpush1.bf16.msra.mxu0 %v5357
        %5491 = vmatprep.subr.bf16.mxu0 0
        %5492 = vmatpush1.bf16.msra.mxu0 0
        %5493 = vmatprep.subr.bf16.mxu0 0
        %5494 = vmatpush1.bf16.msra.mxu0 0
        %5495 = vmatprep.subr.bf16.mxu0 0
        %5496 = vmatpush1.bf16.msra.mxu0 0
        %5497 = vmatprep.subr.bf16.mxu0 0
        %5498 = vmatpush1.bf16.msra.mxu0 0
        %5499 = vmatprep.subr.bf16.mxu0 0
        %5500 = vmatpush1.bf16.msra.mxu0 0
        %5501 = vmatprep.subr.bf16.mxu0 0
        %5502 = vmatpush1.bf16.msra.mxu0 0
        %5503 = vmatprep.subr.bf16.mxu0 0
        %5504 = vmatpush1.bf16.msra.mxu0 0
        %5505 = vmatprep.subr.bf16.mxu0 0
        %5506 = vmatpush1.bf16.msra.mxu0 0
        %5507 = vmatprep.mubr.bf16.mxu0 0
        %5508 = vmatmul.mubr.bf16.gmra.mrb[0].mxu0 %v5031
        %v5509 = vpop.f32.mrb[0].mxu0
        %v5510 = vadd.f32 %v5467, %v5509
        %v5511 = vpop.f32.mrb[0].mxu0
        %v5512 = vadd.f32 %v5469, %v5511
        %v5513 = vpop.f32.mrb[0].mxu0
        %v5514 = vadd.f32 %v5471, %v5513
        %v5515 = vpop.f32.mrb[0].mxu0
        %v5516 = vadd.f32 %v5473, %v5515
        %5517 = vdwg.mxu0
        %5518 = vmatprep.subr.bf16.mxu0 0
        %5519 = vmatpush1.bf16.msra.mxu0 %v5290
        %5520 = vmatprep.subr.bf16.mxu0 0
        %5521 = vmatpush1.bf16.msra.mxu0 %v5293
        %5522 = vmatprep.subr.bf16.mxu0 0
        %5523 = vmatpush1.bf16.msra.mxu0 %v5296
        %5524 = vmatprep.subr.bf16.mxu0 0
        %5525 = vmatpush1.bf16.msra.mxu0 %v5299
        %5526 = vmatprep.subr.bf16.mxu0 0
        %5527 = vmatpush1.bf16.msra.mxu0 %v5302
        %5528 = vmatprep.subr.bf16.mxu0 0
        %5529 = vmatpush1.bf16.msra.mxu0 %v5305
        %5530 = vmatprep.subr.bf16.mxu0 0
        %5531 = vmatpush1.bf16.msra.mxu0 %v5308
        %5532 = vmatprep.subr.bf16.mxu0 0
        %5533 = vmatpush1.bf16.msra.mxu0 %v5311
        %5534 = vmatprep.subr.bf16.mxu0 0
        %5535 = vmatpush1.bf16.msra.mxu0 %v5314
        %5536 = vmatprep.subr.bf16.mxu0 0
        %5537 = vmatpush1.bf16.msra.mxu0 %v5317
        %5538 = vmatprep.subr.bf16.mxu0 0
        %5539 = vmatpush1.bf16.msra.mxu0 %v5320
        %5540 = vmatprep.subr.bf16.mxu0 0
        %5541 = vmatpush1.bf16.msra.mxu0 %v5323
        %5542 = vmatprep.subr.bf16.mxu0 0
        %5543 = vmatpush1.bf16.msra.mxu0 %v5326
        %5544 = vmatprep.subr.bf16.mxu0 0
        %5545 = vmatpush1.bf16.msra.mxu0 %v5329
        %5546 = vmatprep.subr.bf16.mxu0 0
        %5547 = vmatpush1.bf16.msra.mxu0 %v5332
        %5548 = vmatprep.subr.bf16.mxu0 0
        %5549 = vmatpush1.bf16.msra.mxu0 %v5335
        %5550 = vmatprep.mubr.bf16.mxu0 %v5030
        %5551 = vmatmul.mubr.bf16.gmra.mrb[0].mxu0 %v5029
        %v5552 = vpop.f32.mrb[0].mxu0
        %v5553 = vadd.f32 %v5044, %v5552
        %v5554 = vpop.f32.mrb[0].mxu0
        %v5555 = vpop.f32.mrb[0].mxu0
        %v5556 = vadd.f32 %v5044, %v5555
        %v5557 = vpop.f32.mrb[0].mxu0
        %5558 = vdwg.mxu0
        %5559 = vmatprep.subr.bf16.mxu0 0
        %5560 = vmatpush1.bf16.msra.mxu0 %v5338
        %5561 = vmatprep.subr.bf16.mxu0 0
        %5562 = vmatpush1.bf16.msra.mxu0 %v5341
        %5563 = vmatprep.subr.bf16.mxu0 0
        %5564 = vmatpush1.bf16.msra.mxu0 %v5344
        %5565 = vmatprep.subr.bf16.mxu0 0
        %5566 = vmatpush1.bf16.msra.mxu0 %v5347
        %5567 = vmatprep.subr.bf16.mxu0 0
        %5568 = vmatpush1.bf16.msra.mxu0 %v5350
        %5569 = vmatprep.subr.bf16.mxu0 0
        %5570 = vmatpush1.bf16.msra.mxu0 %v5353
        %5571 = vmatprep.subr.bf16.mxu0 0
        %5572 = vmatpush1.bf16.msra.mxu0 %v5356
        %5573 = vmatprep.subr.bf16.mxu0 0
        %5574 = vmatpush1.bf16.msra.mxu0 %v5359
        %5575 = vmatprep.subr.bf16.mxu0 0
        %5576 = vmatpush1.bf16.msra.mxu0 0
        %5577 = vmatprep.subr.bf16.mxu0 0
        %5578 = vmatpush1.bf16.msra.mxu0 0
        %5579 = vmatprep.subr.bf16.mxu0 0
        %5580 = vmatpush1.bf16.msra.mxu0 0
        %5581 = vmatprep.subr.bf16.mxu0 0
        %5582 = vmatpush1.bf16.msra.mxu0 0
        %5583 = vmatprep.subr.bf16.mxu0 0
        %5584 = vmatpush1.bf16.msra.mxu0 0
        %5585 = vmatprep.subr.bf16.mxu0 0
        %5586 = vmatpush1.bf16.msra.mxu0 0
        %5587 = vmatprep.subr.bf16.mxu0 0
        %5588 = vmatpush1.bf16.msra.mxu0 0
        %5589 = vmatprep.subr.bf16.mxu0 0
        %5590 = vmatpush1.bf16.msra.mxu0 0
        %5591 = vmatprep.mubr.bf16.mxu0 0
        %5592 = vmatmul.mubr.bf16.gmra.mrb[0].mxu0 %v5031
        %v5593 = vpop.f32.mrb[0].mxu0
        %v5594 = vadd.f32 %v5553, %v5593
        %v5595 = vpop.f32.mrb[0].mxu0
        %v5596 = vpop.f32.mrb[0].mxu0
        %v5597 = vadd.f32 %v5556, %v5596
        %v5598 = vpop.f32.mrb[0].mxu0
        %5599 = vdwg.mxu0
        %v5600 = vadd.f32 %v1088, %v5510
        %v5601 = vadd.f32 %v1089, %v5512
        %v5602 = vadd.f32 %v1090, %v5594
        %v5603 = vadd.f32 %v1091, %v5514
        %v5604 = vadd.f32 %v1092, %v5516
        %v5605 = vadd.f32 %v1093, %v5597
        %v5606 = vld [vmem:[%s814] sm:$0x7]
        %v5607 = vld [vmem:[%s823] sm:$0x7]
        %v5608 = vadd.f32 %v5600, %v5601
        %v5609 = vadd.f32 %v5608, %v5602
        %5610 = vadd.xlane.f32.xlu0 %v5609
        %v5611 = vpop.xlane.xlu0 %5610
        %v5612 = vadd.f32 %v5603, %v5604
        %v5613 = vadd.f32 %v5612, %v5605
        %5614 = vadd.xlane.f32.xlu0 %v5613
        %v5615 = vpop.xlane.xlu0 %5614
        %v5616 = vrcp.pop 384.0
        %v5617 = vmul.f32 %v5611, %v5616
        %v5618 = vmul.f32 %v5615, %v5616
        %v5619 = vsub.f32 %v5600, %v5617
        %v5620 = vsub.f32 %v5601, %v5617
        %v5621 = vsub.f32 %v5602, %v5617
        %v5622 = vsub.f32 %v5603, %v5618
        %v5623 = vsub.f32 %v5604, %v5618
        %v5624 = vsub.f32 %v5605, %v5618
        %v5625 = vmul.f32 %v5619, %v5619
        %v5626 = vmul.f32 %v5620, %v5620
        %v5627 = vmul.f32 %v5621, %v5621
        %v5628 = vmul.f32 %v5622, %v5622
        %v5629 = vmul.f32 %v5623, %v5623
        %v5630 = vmul.f32 %v5624, %v5624
        %v5631 = vadd.f32 %v5625, %v5626
        %v5632 = vadd.f32 %v5631, %v5627
        %5633 = vadd.xlane.f32.xlu0 %v5632
        %v5634 = vpop.xlane.xlu0 %5633
        %v5635 = vadd.f32 %v5628, %v5629
        %v5636 = vadd.f32 %v5635, %v5630
        %5637 = vadd.xlane.f32.xlu0 %v5636
        %v5638 = vpop.xlane.xlu0 %5637
        %v5639 = vmul.f32 %v5634, %v5616
        %v5640 = vmul.f32 %v5638, %v5616
        %v5641 = vadd.f32 %v5639, 1e-12
        %v5642 = vadd.f32 %v5640, 1e-12
        %v5643 = vrsqrt.pop %v5641
        %v5644 = vrsqrt.pop %v5642
        %v5645 = vmul.f32 %v5619, %v5643
        %v5646 = vmul.f32 %v5620, %v5643
        %v5647 = vmul.f32 %v5621, %v5643
        %v5648 = vmul.f32 %v5622, %v5644
        %v5649 = vmul.f32 %v5623, %v5644
        %v5650 = vmul.f32 %v5624, %v5644
        %v5652 = vlaneseq
        %v5653 = vshrl.u32 %v5652, 7
        %v5654 = vsub.s32 0, %v5653
        %v5655 = vrot.slane %v5606, %v5654
        %v5656 = vlaneseq
        %v5657 = vshrl.u32 %v5656, 7
        %v5658 = vsub.s32 1, %v5657
        %v5659 = vrot.slane %v5606, %v5658
        %v5660 = vlaneseq
        %v5661 = vshrl.u32 %v5660, 7
        %v5662 = vsub.s32 2, %v5661
        %v5663 = vrot.slane %v5606, %v5662
        %v5667 = vmul.f32 %v5645, %v5655
        %v5668 = vmul.f32 %v5646, %v5659
        %v5669 = vmul.f32 %v5647, %v5663
        %v5670 = vmul.f32 %v5648, %v5655
        %v5671 = vmul.f32 %v5649, %v5659
        %v5672 = vmul.f32 %v5650, %v5663
        %v5674 = vlaneseq
        %v5675 = vshrl.u32 %v5674, 7
        %v5676 = vsub.s32 0, %v5675
        %v5677 = vrot.slane %v5607, %v5676
        %v5678 = vlaneseq
        %v5679 = vshrl.u32 %v5678, 7
        %v5680 = vsub.s32 1, %v5679
        %v5681 = vrot.slane %v5607, %v5680
        %v5682 = vlaneseq
        %v5683 = vshrl.u32 %v5682, 7
        %v5684 = vsub.s32 2, %v5683
        %v5685 = vrot.slane %v5607, %v5684
        %v5689 = vadd.f32 %v5667, %v5677
        %v5690 = vadd.f32 %v5668, %v5681
        %v5691 = vadd.f32 %v5669, %v5685
        %v5692 = vadd.f32 %v5670, %v5677
        %v5693 = vadd.f32 %v5671, %v5681
        %v5694 = vadd.f32 %v5672, %v5685
        %v5695 = vld [vmem:[%s832] sm:$0xff]
        %v5696 = vld [vmem:[%s832 + $0x8] sm:$0xff]
        %v5697 = vld [vmem:[%s832 + $0x10] sm:$0xff]
        %v5698 = vld [vmem:[%s832 + $0x18] sm:$0xff]
        %v5699 = vld [vmem:[%s832 + $0x20] sm:$0xff]
        %v5700 = vld [vmem:[%s832 + $0x28] sm:$0xff]
        %v5701 = vld [vmem:[%s832 + $0x30] sm:$0xff]
        %v5702 = vld [vmem:[%s832 + $0x38] sm:$0xff]
        %v5703 = vld [vmem:[%s832 + $0x40] sm:$0xff]
        %v5704 = vld [vmem:[%s832 + $0x48] sm:$0xff]
        %v5705 = vld [vmem:[%s832 + $0x50] sm:$0xff]
        %v5706 = vld [vmem:[%s832 + $0x58] sm:$0xff]
        %v5707 = vld [vmem:[%s832 + $0x60] sm:$0xff]
        %v5708 = vld [vmem:[%s832 + $0x68] sm:$0xff]
        %v5709 = vld [vmem:[%s832 + $0x70] sm:$0xff]
        %v5710 = vld [vmem:[%s832 + $0x78] sm:$0xff]
        %v5711 = vld [vmem:[%s832 + $0x80] sm:$0xff]
        %v5712 = vld [vmem:[%s832 + $0x88] sm:$0xff]
        %v5713 = vld [vmem:[%s832 + $0x90] sm:$0xff]
        %v5714 = vld [vmem:[%s832 + $0x98] sm:$0xff]
        %v5715 = vld [vmem:[%s832 + $0xa0] sm:$0xff]
        %v5716 = vld [vmem:[%s832 + $0xa8] sm:$0xff]
        %v5717 = vld [vmem:[%s832 + $0xb0] sm:$0xff]
        %v5718 = vld [vmem:[%s832 + $0xb8] sm:$0xff]
        %v5719 = vld [vmem:[%s832 + $0xc0] sm:$0xff]
        %v5720 = vld [vmem:[%s832 + $0xc8] sm:$0xff]
        %v5721 = vld [vmem:[%s832 + $0xd0] sm:$0xff]
        %v5722 = vld [vmem:[%s832 + $0xd8] sm:$0xff]
        %v5723 = vld [vmem:[%s832 + $0xe0] sm:$0xff]
        %v5724 = vld [vmem:[%s832 + $0xe8] sm:$0xff]
        %v5725 = vld [vmem:[%s832 + $0xf0] sm:$0xff]
        %v5726 = vld [vmem:[%s832 + $0xf8] sm:$0xff]
        %v5727 = vld [vmem:[%s832 + $0x100] sm:$0xff]
        %v5728 = vld [vmem:[%s832 + $0x108] sm:$0xff]
        %v5729 = vld [vmem:[%s832 + $0x110] sm:$0xff]
        %v5730 = vld [vmem:[%s832 + $0x118] sm:$0xff]
        %v5731 = vld [vmem:[%s832 + $0x120] sm:$0xff]
        %v5732 = vld [vmem:[%s832 + $0x128] sm:$0xff]
        %v5733 = vld [vmem:[%s832 + $0x130] sm:$0xff]
        %v5734 = vld [vmem:[%s832 + $0x138] sm:$0xff]
        %v5735 = vld [vmem:[%s832 + $0x140] sm:$0xff]
        %v5736 = vld [vmem:[%s832 + $0x148] sm:$0xff]
        %v5737 = vld [vmem:[%s832 + $0x150] sm:$0xff]
        %v5738 = vld [vmem:[%s832 + $0x158] sm:$0xff]
        %v5739 = vld [vmem:[%s832 + $0x160] sm:$0xff]
        %v5740 = vld [vmem:[%s832 + $0x168] sm:$0xff]
        %v5741 = vld [vmem:[%s832 + $0x170] sm:$0xff]
        %v5742 = vld [vmem:[%s832 + $0x178] sm:$0xff]
        %v5743 = vld [vmem:[%s832 + $0x180] sm:$0xff]
        %v5744 = vld [vmem:[%s832 + $0x188] sm:$0xff]
        %v5745 = vld [vmem:[%s832 + $0x190] sm:$0xff]
        %v5746 = vld [vmem:[%s832 + $0x198] sm:$0xff]
        %v5747 = vld [vmem:[%s832 + $0x1a0] sm:$0xff]
        %v5748 = vld [vmem:[%s832 + $0x1a8] sm:$0xff]
        %v5749 = vld [vmem:[%s832 + $0x1b0] sm:$0xff]
        %v5750 = vld [vmem:[%s832 + $0x1b8] sm:$0xff]
        %v5751 = vld [vmem:[%s832 + $0x1c0] sm:$0xff]
        %v5752 = vld [vmem:[%s832 + $0x1c8] sm:$0xff]
        %v5753 = vld [vmem:[%s832 + $0x1d0] sm:$0xff]
        %v5754 = vld [vmem:[%s832 + $0x1d8] sm:$0xff]
        %v5755 = vld [vmem:[%s832 + $0x1e0] sm:$0xff]
        %v5756 = vld [vmem:[%s832 + $0x1e8] sm:$0xff]
        %v5757 = vld [vmem:[%s832 + $0x1f0] sm:$0xff]
        %v5758 = vld [vmem:[%s832 + $0x1f8] sm:$0xff]
        %v5759 = vld [vmem:[%s832 + $0x200] sm:$0xff]
        %v5760 = vld [vmem:[%s832 + $0x208] sm:$0xff]
        %v5761 = vld [vmem:[%s832 + $0x210] sm:$0xff]
        %v5762 = vld [vmem:[%s832 + $0x218] sm:$0xff]
        %v5763 = vld [vmem:[%s832 + $0x220] sm:$0xff]
        %v5764 = vld [vmem:[%s832 + $0x228] sm:$0xff]
        %v5765 = vld [vmem:[%s832 + $0x230] sm:$0xff]
        %v5766 = vld [vmem:[%s832 + $0x238] sm:$0xff]
        %v5767 = vld [vmem:[%s832 + $0x240] sm:$0xff]
        %v5768 = vld [vmem:[%s832 + $0x248] sm:$0xff]
        %v5769 = vld [vmem:[%s832 + $0x250] sm:$0xff]
        %v5770 = vld [vmem:[%s832 + $0x258] sm:$0xff]
        %v5771 = vld [vmem:[%s832 + $0x260] sm:$0xff]
        %v5772 = vld [vmem:[%s832 + $0x268] sm:$0xff]
        %v5773 = vld [vmem:[%s832 + $0x270] sm:$0xff]
        %v5774 = vld [vmem:[%s832 + $0x278] sm:$0xff]
        %v5775 = vld [vmem:[%s832 + $0x280] sm:$0xff]
        %v5776 = vld [vmem:[%s832 + $0x288] sm:$0xff]
        %v5777 = vld [vmem:[%s832 + $0x290] sm:$0xff]
        %v5778 = vld [vmem:[%s832 + $0x298] sm:$0xff]
        %v5779 = vld [vmem:[%s832 + $0x2a0] sm:$0xff]
        %v5780 = vld [vmem:[%s832 + $0x2a8] sm:$0xff]
        %v5781 = vld [vmem:[%s832 + $0x2b0] sm:$0xff]
        %v5782 = vld [vmem:[%s832 + $0x2b8] sm:$0xff]
        %v5783 = vld [vmem:[%s832 + $0x2c0] sm:$0xff]
        %v5784 = vld [vmem:[%s832 + $0x2c8] sm:$0xff]
        %v5785 = vld [vmem:[%s832 + $0x2d0] sm:$0xff]
        %v5786 = vld [vmem:[%s832 + $0x2d8] sm:$0xff]
        %v5787 = vld [vmem:[%s832 + $0x2e0] sm:$0xff]
        %v5788 = vld [vmem:[%s832 + $0x2e8] sm:$0xff]
        %v5789 = vld [vmem:[%s832 + $0x2f0] sm:$0xff]
        %v5790 = vld [vmem:[%s832 + $0x2f8] sm:$0xff]
        %v5791 = vld [vmem:[%s832 + $0x300] sm:$0xff]
        %v5792 = vld [vmem:[%s832 + $0x308] sm:$0xff]
        %v5793 = vld [vmem:[%s832 + $0x310] sm:$0xff]
        %v5794 = vld [vmem:[%s832 + $0x318] sm:$0xff]
        %v5795 = vld [vmem:[%s832 + $0x320] sm:$0xff]
        %v5796 = vld [vmem:[%s832 + $0x328] sm:$0xff]
        %v5797 = vld [vmem:[%s832 + $0x330] sm:$0xff]
        %v5798 = vld [vmem:[%s832 + $0x338] sm:$0xff]
        %v5799 = vld [vmem:[%s832 + $0x340] sm:$0xff]
        %v5800 = vld [vmem:[%s832 + $0x348] sm:$0xff]
        %v5801 = vld [vmem:[%s832 + $0x350] sm:$0xff]
        %v5802 = vld [vmem:[%s832 + $0x358] sm:$0xff]
        %v5803 = vld [vmem:[%s832 + $0x360] sm:$0xff]
        %v5804 = vld [vmem:[%s832 + $0x368] sm:$0xff]
        %v5805 = vld [vmem:[%s832 + $0x370] sm:$0xff]
        %v5806 = vld [vmem:[%s832 + $0x378] sm:$0xff]
        %v5807 = vld [vmem:[%s832 + $0x380] sm:$0xff]
        %v5808 = vld [vmem:[%s832 + $0x388] sm:$0xff]
        %v5809 = vld [vmem:[%s832 + $0x390] sm:$0xff]
        %v5810 = vld [vmem:[%s832 + $0x398] sm:$0xff]
        %v5811 = vld [vmem:[%s832 + $0x3a0] sm:$0xff]
        %v5812 = vld [vmem:[%s832 + $0x3a8] sm:$0xff]
        %v5813 = vld [vmem:[%s832 + $0x3b0] sm:$0xff]
        %v5814 = vld [vmem:[%s832 + $0x3b8] sm:$0xff]
        %v5815 = vld [vmem:[%s832 + $0x3c0] sm:$0xff]
        %v5816 = vld [vmem:[%s832 + $0x3c8] sm:$0xff]
        %v5817 = vld [vmem:[%s832 + $0x3d0] sm:$0xff]
        %v5818 = vld [vmem:[%s832 + $0x3d8] sm:$0xff]
        %v5819 = vld [vmem:[%s832 + $0x3e0] sm:$0xff]
        %v5820 = vld [vmem:[%s832 + $0x3e8] sm:$0xff]
        %v5821 = vld [vmem:[%s832 + $0x3f0] sm:$0xff]
        %v5822 = vld [vmem:[%s832 + $0x3f8] sm:$0xff]
        %v5823 = vld [vmem:[%s832 + $0x400] sm:$0xff]
        %v5824 = vld [vmem:[%s832 + $0x408] sm:$0xff]
        %v5825 = vld [vmem:[%s832 + $0x410] sm:$0xff]
        %v5826 = vld [vmem:[%s832 + $0x418] sm:$0xff]
        %v5827 = vld [vmem:[%s832 + $0x420] sm:$0xff]
        %v5828 = vld [vmem:[%s832 + $0x428] sm:$0xff]
        %v5829 = vld [vmem:[%s832 + $0x430] sm:$0xff]
        %v5830 = vld [vmem:[%s832 + $0x438] sm:$0xff]
        %v5831 = vld [vmem:[%s832 + $0x440] sm:$0xff]
        %v5832 = vld [vmem:[%s832 + $0x448] sm:$0xff]
        %v5833 = vld [vmem:[%s832 + $0x450] sm:$0xff]
        %v5834 = vld [vmem:[%s832 + $0x458] sm:$0xff]
        %v5835 = vld [vmem:[%s832 + $0x460] sm:$0xff]
        %v5836 = vld [vmem:[%s832 + $0x468] sm:$0xff]
        %v5837 = vld [vmem:[%s832 + $0x470] sm:$0xff]
        %v5838 = vld [vmem:[%s832 + $0x478] sm:$0xff]
        %v5839 = vld [vmem:[%s832 + $0x480] sm:$0xff]
        %v5840 = vld [vmem:[%s832 + $0x488] sm:$0xff]
        %v5841 = vld [vmem:[%s832 + $0x490] sm:$0xff]
        %v5842 = vld [vmem:[%s832 + $0x498] sm:$0xff]
        %v5843 = vld [vmem:[%s832 + $0x4a0] sm:$0xff]
        %v5844 = vld [vmem:[%s832 + $0x4a8] sm:$0xff]
        %v5845 = vld [vmem:[%s832 + $0x4b0] sm:$0xff]
        %v5846 = vld [vmem:[%s832 + $0x4b8] sm:$0xff]
        %v5847 = vld [vmem:[%s832 + $0x4c0] sm:$0xff]
        %v5848 = vld [vmem:[%s832 + $0x4c8] sm:$0xff]
        %v5849 = vld [vmem:[%s832 + $0x4d0] sm:$0xff]
        %v5850 = vld [vmem:[%s832 + $0x4d8] sm:$0xff]
        %v5851 = vld [vmem:[%s832 + $0x4e0] sm:$0xff]
        %v5852 = vld [vmem:[%s832 + $0x4e8] sm:$0xff]
        %v5853 = vld [vmem:[%s832 + $0x4f0] sm:$0xff]
        %v5854 = vld [vmem:[%s832 + $0x4f8] sm:$0xff]
        %v5855 = vld [vmem:[%s832 + $0x500] sm:$0xff]
        %v5856 = vld [vmem:[%s832 + $0x508] sm:$0xff]
        %v5857 = vld [vmem:[%s832 + $0x510] sm:$0xff]
        %v5858 = vld [vmem:[%s832 + $0x518] sm:$0xff]
        %v5859 = vld [vmem:[%s832 + $0x520] sm:$0xff]
        %v5860 = vld [vmem:[%s832 + $0x528] sm:$0xff]
        %v5861 = vld [vmem:[%s832 + $0x530] sm:$0xff]
        %v5862 = vld [vmem:[%s832 + $0x538] sm:$0xff]
        %v5863 = vld [vmem:[%s832 + $0x540] sm:$0xff]
        %v5864 = vld [vmem:[%s832 + $0x548] sm:$0xff]
        %v5865 = vld [vmem:[%s832 + $0x550] sm:$0xff]
        %v5866 = vld [vmem:[%s832 + $0x558] sm:$0xff]
        %v5867 = vld [vmem:[%s832 + $0x560] sm:$0xff]
        %v5868 = vld [vmem:[%s832 + $0x568] sm:$0xff]
        %v5869 = vld [vmem:[%s832 + $0x570] sm:$0xff]
        %v5870 = vld [vmem:[%s832 + $0x578] sm:$0xff]
        %v5871 = vld [vmem:[%s832 + $0x580] sm:$0xff]
        %v5872 = vld [vmem:[%s832 + $0x588] sm:$0xff]
        %v5873 = vld [vmem:[%s832 + $0x590] sm:$0xff]
        %v5874 = vld [vmem:[%s832 + $0x598] sm:$0xff]
        %v5875 = vld [vmem:[%s832 + $0x5a0] sm:$0xff]
        %v5876 = vld [vmem:[%s832 + $0x5a8] sm:$0xff]
        %v5877 = vld [vmem:[%s832 + $0x5b0] sm:$0xff]
        %v5878 = vld [vmem:[%s832 + $0x5b8] sm:$0xff]
        %v5879 = vld [vmem:[%s832 + $0x5c0] sm:$0xff]
        %v5880 = vld [vmem:[%s832 + $0x5c8] sm:$0xff]
        %v5881 = vld [vmem:[%s832 + $0x5d0] sm:$0xff]
        %v5882 = vld [vmem:[%s832 + $0x5d8] sm:$0xff]
        %v5883 = vld [vmem:[%s832 + $0x5e0] sm:$0xff]
        %v5884 = vld [vmem:[%s832 + $0x5e8] sm:$0xff]
        %v5885 = vld [vmem:[%s832 + $0x5f0] sm:$0xff]
        %v5886 = vld [vmem:[%s832 + $0x5f8] sm:$0xff]
        %v5887 = vld [vmem:[%s832 + $0x600] sm:$0xff]
        %v5888 = vld [vmem:[%s832 + $0x608] sm:$0xff]
        %v5889 = vld [vmem:[%s832 + $0x610] sm:$0xff]
        %v5890 = vld [vmem:[%s832 + $0x618] sm:$0xff]
        %v5891 = vld [vmem:[%s832 + $0x620] sm:$0xff]
        %v5892 = vld [vmem:[%s832 + $0x628] sm:$0xff]
        %v5893 = vld [vmem:[%s832 + $0x630] sm:$0xff]
        %v5894 = vld [vmem:[%s832 + $0x638] sm:$0xff]
        %v5895 = vld [vmem:[%s832 + $0x640] sm:$0xff]
        %v5896 = vld [vmem:[%s832 + $0x648] sm:$0xff]
        %v5897 = vld [vmem:[%s832 + $0x650] sm:$0xff]
        %v5898 = vld [vmem:[%s832 + $0x658] sm:$0xff]
        %v5899 = vld [vmem:[%s832 + $0x660] sm:$0xff]
        %v5900 = vld [vmem:[%s832 + $0x668] sm:$0xff]
        %v5901 = vld [vmem:[%s832 + $0x670] sm:$0xff]
        %v5902 = vld [vmem:[%s832 + $0x678] sm:$0xff]
        %v5903 = vld [vmem:[%s832 + $0x680] sm:$0xff]
        %v5904 = vld [vmem:[%s832 + $0x688] sm:$0xff]
        %v5905 = vld [vmem:[%s832 + $0x690] sm:$0xff]
        %v5906 = vld [vmem:[%s832 + $0x698] sm:$0xff]
        %v5907 = vld [vmem:[%s832 + $0x6a0] sm:$0xff]
        %v5908 = vld [vmem:[%s832 + $0x6a8] sm:$0xff]
        %v5909 = vld [vmem:[%s832 + $0x6b0] sm:$0xff]
        %v5910 = vld [vmem:[%s832 + $0x6b8] sm:$0xff]
        %v5911 = vld [vmem:[%s832 + $0x6c0] sm:$0xff]
        %v5912 = vld [vmem:[%s832 + $0x6c8] sm:$0xff]
        %v5913 = vld [vmem:[%s832 + $0x6d0] sm:$0xff]
        %v5914 = vld [vmem:[%s832 + $0x6d8] sm:$0xff]
        %v5915 = vld [vmem:[%s832 + $0x6e0] sm:$0xff]
        %v5916 = vld [vmem:[%s832 + $0x6e8] sm:$0xff]
        %v5917 = vld [vmem:[%s832 + $0x6f0] sm:$0xff]
        %v5918 = vld [vmem:[%s832 + $0x6f8] sm:$0xff]
        %v5919 = vld [vmem:[%s832 + $0x700] sm:$0xff]
        %v5920 = vld [vmem:[%s832 + $0x708] sm:$0xff]
        %v5921 = vld [vmem:[%s832 + $0x710] sm:$0xff]
        %v5922 = vld [vmem:[%s832 + $0x718] sm:$0xff]
        %v5923 = vld [vmem:[%s832 + $0x720] sm:$0xff]
        %v5924 = vld [vmem:[%s832 + $0x728] sm:$0xff]
        %v5925 = vld [vmem:[%s832 + $0x730] sm:$0xff]
        %v5926 = vld [vmem:[%s832 + $0x738] sm:$0xff]
        %v5927 = vld [vmem:[%s832 + $0x740] sm:$0xff]
        %v5928 = vld [vmem:[%s832 + $0x748] sm:$0xff]
        %v5929 = vld [vmem:[%s832 + $0x750] sm:$0xff]
        %v5930 = vld [vmem:[%s832 + $0x758] sm:$0xff]
        %v5931 = vld [vmem:[%s832 + $0x760] sm:$0xff]
        %v5932 = vld [vmem:[%s832 + $0x768] sm:$0xff]
        %v5933 = vld [vmem:[%s832 + $0x770] sm:$0xff]
        %v5934 = vld [vmem:[%s832 + $0x778] sm:$0xff]
        %v5935 = vld [vmem:[%s832 + $0x780] sm:$0xff]
        %v5936 = vld [vmem:[%s832 + $0x788] sm:$0xff]
        %v5937 = vld [vmem:[%s832 + $0x790] sm:$0xff]
        %v5938 = vld [vmem:[%s832 + $0x798] sm:$0xff]
        %v5939 = vld [vmem:[%s832 + $0x7a0] sm:$0xff]
        %v5940 = vld [vmem:[%s832 + $0x7a8] sm:$0xff]
        %v5941 = vld [vmem:[%s832 + $0x7b0] sm:$0xff]
        %v5942 = vld [vmem:[%s832 + $0x7b8] sm:$0xff]
        %v5943 = vld [vmem:[%s832 + $0x7c0] sm:$0xff]
        %v5944 = vld [vmem:[%s832 + $0x7c8] sm:$0xff]
        %v5945 = vld [vmem:[%s832 + $0x7d0] sm:$0xff]
        %v5946 = vld [vmem:[%s832 + $0x7d8] sm:$0xff]
        %v5947 = vld [vmem:[%s832 + $0x7e0] sm:$0xff]
        %v5948 = vld [vmem:[%s832 + $0x7e8] sm:$0xff]
        %v5949 = vld [vmem:[%s832 + $0x7f0] sm:$0xff]
        %v5950 = vld [vmem:[%s832 + $0x7f8] sm:$0xff]
        %v5951 = vld [vmem:[%s832 + $0x800] sm:$0xff]
        %v5952 = vld [vmem:[%s832 + $0x808] sm:$0xff]
        %v5953 = vld [vmem:[%s832 + $0x810] sm:$0xff]
        %v5954 = vld [vmem:[%s832 + $0x818] sm:$0xff]
        %v5955 = vld [vmem:[%s832 + $0x820] sm:$0xff]
        %v5956 = vld [vmem:[%s832 + $0x828] sm:$0xff]
        %v5957 = vld [vmem:[%s832 + $0x830] sm:$0xff]
        %v5958 = vld [vmem:[%s832 + $0x838] sm:$0xff]
        %v5959 = vld [vmem:[%s832 + $0x840] sm:$0xff]
        %v5960 = vld [vmem:[%s832 + $0x848] sm:$0xff]
        %v5961 = vld [vmem:[%s832 + $0x850] sm:$0xff]
        %v5962 = vld [vmem:[%s832 + $0x858] sm:$0xff]
        %v5963 = vld [vmem:[%s832 + $0x860] sm:$0xff]
        %v5964 = vld [vmem:[%s832 + $0x868] sm:$0xff]
        %v5965 = vld [vmem:[%s832 + $0x870] sm:$0xff]
        %v5966 = vld [vmem:[%s832 + $0x878] sm:$0xff]
        %v5967 = vld [vmem:[%s832 + $0x880] sm:$0xff]
        %v5968 = vld [vmem:[%s832 + $0x888] sm:$0xff]
        %v5969 = vld [vmem:[%s832 + $0x890] sm:$0xff]
        %v5970 = vld [vmem:[%s832 + $0x898] sm:$0xff]
        %v5971 = vld [vmem:[%s832 + $0x8a0] sm:$0xff]
        %v5972 = vld [vmem:[%s832 + $0x8a8] sm:$0xff]
        %v5973 = vld [vmem:[%s832 + $0x8b0] sm:$0xff]
        %v5974 = vld [vmem:[%s832 + $0x8b8] sm:$0xff]
        %v5975 = vld [vmem:[%s832 + $0x8c0] sm:$0xff]
        %v5976 = vld [vmem:[%s832 + $0x8c8] sm:$0xff]
        %v5977 = vld [vmem:[%s832 + $0x8d0] sm:$0xff]
        %v5978 = vld [vmem:[%s832 + $0x8d8] sm:$0xff]
        %v5979 = vld [vmem:[%s832 + $0x8e0] sm:$0xff]
        %v5980 = vld [vmem:[%s832 + $0x8e8] sm:$0xff]
        %v5981 = vld [vmem:[%s832 + $0x8f0] sm:$0xff]
        %v5982 = vld [vmem:[%s832 + $0x8f8] sm:$0xff]
        %v5983 = vld [vmem:[%s841] sm:$0xff]
        %v5984 = vld [vmem:[%s841 + $0x8] sm:$0xf]
        %v5985 = vpack.c.bf16 %v5692, %v5689
        %v5986 = vpack.c.bf16 %v5693, %v5690
        %v5987 = vpack.c.bf16 %v5694, %v5691
        %v5990 = vlaneseq
        %v5991 = vshrl.u32 %v5990, 7
        %v5992 = vsub.s32 0, %v5991
        %v5993 = vrot.slane %v5983, %v5992
        %v5994 = vlaneseq
        %v5995 = vshrl.u32 %v5994, 7
        %v5996 = vsub.s32 1, %v5995
        %v5997 = vrot.slane %v5983, %v5996
        %v5998 = vlaneseq
        %v5999 = vshrl.u32 %v5998, 7
        %v6000 = vsub.s32 2, %v5999
        %v6001 = vrot.slane %v5983, %v6000
        %v6002 = vlaneseq
        %v6003 = vshrl.u32 %v6002, 7
        %v6004 = vsub.s32 3, %v6003
        %v6005 = vrot.slane %v5983, %v6004
        %v6006 = vlaneseq
        %v6007 = vshrl.u32 %v6006, 7
        %v6008 = vsub.s32 4, %v6007
        %v6009 = vrot.slane %v5983, %v6008
        %v6010 = vlaneseq
        %v6011 = vshrl.u32 %v6010, 7
        %v6012 = vsub.s32 5, %v6011
        %v6013 = vrot.slane %v5983, %v6012
        %v6014 = vlaneseq
        %v6015 = vshrl.u32 %v6014, 7
        %v6016 = vsub.s32 6, %v6015
        %v6017 = vrot.slane %v5983, %v6016
        %v6018 = vlaneseq
        %v6019 = vshrl.u32 %v6018, 7
        %v6020 = vsub.s32 7, %v6019
        %v6021 = vrot.slane %v5983, %v6020
        %v6022 = vlaneseq
        %v6023 = vshrl.u32 %v6022, 7
        %v6024 = vsub.s32 0, %v6023
        %v6025 = vrot.slane %v5984, %v6024
        %v6026 = vlaneseq
        %v6027 = vshrl.u32 %v6026, 7
        %v6028 = vsub.s32 1, %v6027
        %v6029 = vrot.slane %v5984, %v6028
        %v6030 = vlaneseq
        %v6031 = vshrl.u32 %v6030, 7
        %v6032 = vsub.s32 2, %v6031
        %v6033 = vrot.slane %v5984, %v6032
        %v6034 = vlaneseq
        %v6035 = vshrl.u32 %v6034, 7
        %v6036 = vsub.s32 3, %v6035
        %v6037 = vrot.slane %v5984, %v6036
        %v6338 = vunpack.c.l.b16 %v5695
        %v6339 = vunpack.c.h.b16 %v5695
        %v6340 = vunpack.c.l.b16 %v5696
        %v6341 = vunpack.c.h.b16 %v5696
        %v6342 = vunpack.c.l.b16 %v5697
        %v6343 = vunpack.c.h.b16 %v5697
        %v6344 = vunpack.c.l.b16 %v5698
        %v6345 = vunpack.c.h.b16 %v5698
        %v6346 = vunpack.c.l.b16 %v5699
        %v6347 = vunpack.c.h.b16 %v5699
        %v6348 = vunpack.c.l.b16 %v5700
        %v6349 = vunpack.c.h.b16 %v5700
        %v6350 = vunpack.c.l.b16 %v5701
        %v6351 = vunpack.c.h.b16 %v5701
        %v6352 = vunpack.c.l.b16 %v5702
        %v6353 = vunpack.c.h.b16 %v5702
        %v6354 = vunpack.c.l.b16 %v5703
        %v6355 = vunpack.c.h.b16 %v5703
        %v6356 = vunpack.c.l.b16 %v5704
        %v6357 = vunpack.c.h.b16 %v5704
        %v6358 = vunpack.c.l.b16 %v5705
        %v6359 = vunpack.c.h.b16 %v5705
        %v6360 = vunpack.c.l.b16 %v5706
        %v6361 = vunpack.c.h.b16 %v5706
        %v6362 = vunpack.c.l.b16 %v5707
        %v6363 = vunpack.c.h.b16 %v5707
        %v6364 = vunpack.c.l.b16 %v5708
        %v6365 = vunpack.c.h.b16 %v5708
        %v6366 = vunpack.c.l.b16 %v5709
        %v6367 = vunpack.c.h.b16 %v5709
        %v6368 = vunpack.c.l.b16 %v5710
        %v6369 = vunpack.c.h.b16 %v5710
        %v6370 = vunpack.c.l.b16 %v5711
        %v6371 = vunpack.c.h.b16 %v5711
        %v6372 = vunpack.c.l.b16 %v5712
        %v6373 = vunpack.c.h.b16 %v5712
        %v6374 = vunpack.c.l.b16 %v5713
        %v6375 = vunpack.c.h.b16 %v5713
        %v6376 = vunpack.c.l.b16 %v5714
        %v6377 = vunpack.c.h.b16 %v5714
        %v6378 = vunpack.c.l.b16 %v5715
        %v6379 = vunpack.c.h.b16 %v5715
        %v6380 = vunpack.c.l.b16 %v5716
        %v6381 = vunpack.c.h.b16 %v5716
        %v6382 = vunpack.c.l.b16 %v5717
        %v6383 = vunpack.c.h.b16 %v5717
        %v6384 = vunpack.c.l.b16 %v5718
        %v6385 = vunpack.c.h.b16 %v5718
        %v6386 = vunpack.c.l.b16 %v5719
        %v6387 = vunpack.c.h.b16 %v5719
        %v6388 = vunpack.c.l.b16 %v5720
        %v6389 = vunpack.c.h.b16 %v5720
        %v6390 = vunpack.c.l.b16 %v5721
        %v6391 = vunpack.c.h.b16 %v5721
        %v6392 = vunpack.c.l.b16 %v5722
        %v6393 = vunpack.c.h.b16 %v5722
        %v6394 = vunpack.c.l.b16 %v5723
        %v6395 = vunpack.c.h.b16 %v5723
        %v6396 = vunpack.c.l.b16 %v5724
        %v6397 = vunpack.c.h.b16 %v5724
        %v6398 = vunpack.c.l.b16 %v5725
        %v6399 = vunpack.c.h.b16 %v5725
        %v6400 = vunpack.c.l.b16 %v5726
        %v6401 = vunpack.c.h.b16 %v5726
        %v6402 = vunpack.c.l.b16 %v5727
        %v6403 = vunpack.c.h.b16 %v5727
        %v6404 = vunpack.c.l.b16 %v5728
        %v6405 = vunpack.c.h.b16 %v5728
        %v6406 = vunpack.c.l.b16 %v5729
        %v6407 = vunpack.c.h.b16 %v5729
        %v6408 = vunpack.c.l.b16 %v5730
        %v6409 = vunpack.c.h.b16 %v5730
        %v6410 = vunpack.c.l.b16 %v5731
        %v6411 = vunpack.c.h.b16 %v5731
        %v6412 = vunpack.c.l.b16 %v5732
        %v6413 = vunpack.c.h.b16 %v5732
        %v6414 = vunpack.c.l.b16 %v5733
        %v6415 = vunpack.c.h.b16 %v5733
        %v6416 = vunpack.c.l.b16 %v5734
        %v6417 = vunpack.c.h.b16 %v5734
        %v6418 = vunpack.c.l.b16 %v5735
        %v6419 = vunpack.c.h.b16 %v5735
        %v6420 = vunpack.c.l.b16 %v5736
        %v6421 = vunpack.c.h.b16 %v5736
        %v6422 = vunpack.c.l.b16 %v5737
        %v6423 = vunpack.c.h.b16 %v5737
        %v6424 = vunpack.c.l.b16 %v5738
        %v6425 = vunpack.c.h.b16 %v5738
        %v6426 = vunpack.c.l.b16 %v5739
        %v6427 = vunpack.c.h.b16 %v5739
        %v6428 = vunpack.c.l.b16 %v5740
        %v6429 = vunpack.c.h.b16 %v5740
        %v6430 = vunpack.c.l.b16 %v5741
        %v6431 = vunpack.c.h.b16 %v5741
        %v6432 = vunpack.c.l.b16 %v5742
        %v6433 = vunpack.c.h.b16 %v5742
        %v6434 = vunpack.c.l.b16 %v5743
        %v6435 = vunpack.c.h.b16 %v5743
        %v6436 = vunpack.c.l.b16 %v5744
        %v6437 = vunpack.c.h.b16 %v5744
        %v6438 = vunpack.c.l.b16 %v5745
        %v6439 = vunpack.c.h.b16 %v5745
        %v6440 = vunpack.c.l.b16 %v5746
        %v6441 = vunpack.c.h.b16 %v5746
        %v6442 = vunpack.c.l.b16 %v5747
        %v6443 = vunpack.c.h.b16 %v5747
        %v6444 = vunpack.c.l.b16 %v5748
        %v6445 = vunpack.c.h.b16 %v5748
        %v6446 = vunpack.c.l.b16 %v5749
        %v6447 = vunpack.c.h.b16 %v5749
        %v6448 = vunpack.c.l.b16 %v5750
        %v6449 = vunpack.c.h.b16 %v5750
        %v6450 = vunpack.c.l.b16 %v5751
        %v6451 = vunpack.c.h.b16 %v5751
        %v6452 = vunpack.c.l.b16 %v5752
        %v6453 = vunpack.c.h.b16 %v5752
        %v6454 = vunpack.c.l.b16 %v5753
        %v6455 = vunpack.c.h.b16 %v5753
        %v6456 = vunpack.c.l.b16 %v5754
        %v6457 = vunpack.c.h.b16 %v5754
        %v6458 = vunpack.c.l.b16 %v5755
        %v6459 = vunpack.c.h.b16 %v5755
        %v6460 = vunpack.c.l.b16 %v5756
        %v6461 = vunpack.c.h.b16 %v5756
        %v6462 = vunpack.c.l.b16 %v5757
        %v6463 = vunpack.c.h.b16 %v5757
        %v6464 = vunpack.c.l.b16 %v5758
        %v6465 = vunpack.c.h.b16 %v5758
        %v6466 = vunpack.c.l.b16 %v5759
        %v6467 = vunpack.c.h.b16 %v5759
        %v6468 = vunpack.c.l.b16 %v5760
        %v6469 = vunpack.c.h.b16 %v5760
        %v6470 = vunpack.c.l.b16 %v5761
        %v6471 = vunpack.c.h.b16 %v5761
        %v6472 = vunpack.c.l.b16 %v5762
        %v6473 = vunpack.c.h.b16 %v5762
        %v6474 = vunpack.c.l.b16 %v5763
        %v6475 = vunpack.c.h.b16 %v5763
        %v6476 = vunpack.c.l.b16 %v5764
        %v6477 = vunpack.c.h.b16 %v5764
        %v6478 = vunpack.c.l.b16 %v5765
        %v6479 = vunpack.c.h.b16 %v5765
        %v6480 = vunpack.c.l.b16 %v5766
        %v6481 = vunpack.c.h.b16 %v5766
        %v6482 = vunpack.c.l.b16 %v5767
        %v6483 = vunpack.c.h.b16 %v5767
        %v6484 = vunpack.c.l.b16 %v5768
        %v6485 = vunpack.c.h.b16 %v5768
        %v6486 = vunpack.c.l.b16 %v5769
        %v6487 = vunpack.c.h.b16 %v5769
        %v6488 = vunpack.c.l.b16 %v5770
        %v6489 = vunpack.c.h.b16 %v5770
        %v6490 = vunpack.c.l.b16 %v5771
        %v6491 = vunpack.c.h.b16 %v5771
        %v6492 = vunpack.c.l.b16 %v5772
        %v6493 = vunpack.c.h.b16 %v5772
        %v6494 = vunpack.c.l.b16 %v5773
        %v6495 = vunpack.c.h.b16 %v5773
        %v6496 = vunpack.c.l.b16 %v5774
        %v6497 = vunpack.c.h.b16 %v5774
        %v6498 = vunpack.c.l.b16 %v5775
        %v6499 = vunpack.c.h.b16 %v5775
        %v6500 = vunpack.c.l.b16 %v5776
        %v6501 = vunpack.c.h.b16 %v5776
        %v6502 = vunpack.c.l.b16 %v5777
        %v6503 = vunpack.c.h.b16 %v5777
        %v6504 = vunpack.c.l.b16 %v5778
        %v6505 = vunpack.c.h.b16 %v5778
        %v6506 = vunpack.c.l.b16 %v5779
        %v6507 = vunpack.c.h.b16 %v5779
        %v6508 = vunpack.c.l.b16 %v5780
        %v6509 = vunpack.c.h.b16 %v5780
        %v6510 = vunpack.c.l.b16 %v5781
        %v6511 = vunpack.c.h.b16 %v5781
        %v6512 = vunpack.c.l.b16 %v5782
        %v6513 = vunpack.c.h.b16 %v5782
        %v6514 = vunpack.c.l.b16 %v5783
        %v6515 = vunpack.c.h.b16 %v5783
        %v6516 = vunpack.c.l.b16 %v5784
        %v6517 = vunpack.c.h.b16 %v5784
        %v6518 = vunpack.c.l.b16 %v5785
        %v6519 = vunpack.c.h.b16 %v5785
        %v6520 = vunpack.c.l.b16 %v5786
        %v6521 = vunpack.c.h.b16 %v5786
        %v6522 = vunpack.c.l.b16 %v5787
        %v6523 = vunpack.c.h.b16 %v5787
        %v6524 = vunpack.c.l.b16 %v5788
        %v6525 = vunpack.c.h.b16 %v5788
        %v6526 = vunpack.c.l.b16 %v5789
        %v6527 = vunpack.c.h.b16 %v5789
        %v6528 = vunpack.c.l.b16 %v5790
        %v6529 = vunpack.c.h.b16 %v5790
        %v6530 = vunpack.c.l.b16 %v5791
        %v6531 = vunpack.c.h.b16 %v5791
        %v6532 = vunpack.c.l.b16 %v5792
        %v6533 = vunpack.c.h.b16 %v5792
        %v6534 = vunpack.c.l.b16 %v5793
        %v6535 = vunpack.c.h.b16 %v5793
        %v6536 = vunpack.c.l.b16 %v5794
        %v6537 = vunpack.c.h.b16 %v5794
        %v6538 = vunpack.c.l.b16 %v5795
        %v6539 = vunpack.c.h.b16 %v5795
        %v6540 = vunpack.c.l.b16 %v5796
        %v6541 = vunpack.c.h.b16 %v5796
        %v6542 = vunpack.c.l.b16 %v5797
        %v6543 = vunpack.c.h.b16 %v5797
        %v6544 = vunpack.c.l.b16 %v5798
        %v6545 = vunpack.c.h.b16 %v5798
        %v6546 = vunpack.c.l.b16 %v5799
        %v6547 = vunpack.c.h.b16 %v5799
        %v6548 = vunpack.c.l.b16 %v5800
        %v6549 = vunpack.c.h.b16 %v5800
        %v6550 = vunpack.c.l.b16 %v5801
        %v6551 = vunpack.c.h.b16 %v5801
        %v6552 = vunpack.c.l.b16 %v5802
        %v6553 = vunpack.c.h.b16 %v5802
        %v6554 = vunpack.c.l.b16 %v5803
        %v6555 = vunpack.c.h.b16 %v5803
        %v6556 = vunpack.c.l.b16 %v5804
        %v6557 = vunpack.c.h.b16 %v5804
        %v6558 = vunpack.c.l.b16 %v5805
        %v6559 = vunpack.c.h.b16 %v5805
        %v6560 = vunpack.c.l.b16 %v5806
        %v6561 = vunpack.c.h.b16 %v5806
        %v6562 = vunpack.c.l.b16 %v5807
        %v6563 = vunpack.c.h.b16 %v5807
        %v6564 = vunpack.c.l.b16 %v5808
        %v6565 = vunpack.c.h.b16 %v5808
        %v6566 = vunpack.c.l.b16 %v5809
        %v6567 = vunpack.c.h.b16 %v5809
        %v6568 = vunpack.c.l.b16 %v5810
        %v6569 = vunpack.c.h.b16 %v5810
        %v6570 = vunpack.c.l.b16 %v5811
        %v6571 = vunpack.c.h.b16 %v5811
        %v6572 = vunpack.c.l.b16 %v5812
        %v6573 = vunpack.c.h.b16 %v5812
        %v6574 = vunpack.c.l.b16 %v5813
        %v6575 = vunpack.c.h.b16 %v5813
        %v6576 = vunpack.c.l.b16 %v5814
        %v6577 = vunpack.c.h.b16 %v5814
        %v6578 = vunpack.c.l.b16 %v5815
        %v6579 = vunpack.c.h.b16 %v5815
        %v6580 = vunpack.c.l.b16 %v5816
        %v6581 = vunpack.c.h.b16 %v5816
        %v6582 = vunpack.c.l.b16 %v5817
        %v6583 = vunpack.c.h.b16 %v5817
        %v6584 = vunpack.c.l.b16 %v5818
        %v6585 = vunpack.c.h.b16 %v5818
        %v6586 = vunpack.c.l.b16 %v5819
        %v6587 = vunpack.c.h.b16 %v5819
        %v6588 = vunpack.c.l.b16 %v5820
        %v6589 = vunpack.c.h.b16 %v5820
        %v6590 = vunpack.c.l.b16 %v5821
        %v6591 = vunpack.c.h.b16 %v5821
        %v6592 = vunpack.c.l.b16 %v5822
        %v6593 = vunpack.c.h.b16 %v5822
        %v6594 = vunpack.c.l.b16 %v5823
        %v6595 = vunpack.c.h.b16 %v5823
        %v6596 = vunpack.c.l.b16 %v5824
        %v6597 = vunpack.c.h.b16 %v5824
        %v6598 = vunpack.c.l.b16 %v5825
        %v6599 = vunpack.c.h.b16 %v5825
        %v6600 = vunpack.c.l.b16 %v5826
        %v6601 = vunpack.c.h.b16 %v5826
        %v6602 = vunpack.c.l.b16 %v5827
        %v6603 = vunpack.c.h.b16 %v5827
        %v6604 = vunpack.c.l.b16 %v5828
        %v6605 = vunpack.c.h.b16 %v5828
        %v6606 = vunpack.c.l.b16 %v5829
        %v6607 = vunpack.c.h.b16 %v5829
        %v6608 = vunpack.c.l.b16 %v5830
        %v6609 = vunpack.c.h.b16 %v5830
        %v6610 = vunpack.c.l.b16 %v5831
        %v6611 = vunpack.c.h.b16 %v5831
        %v6612 = vunpack.c.l.b16 %v5832
        %v6613 = vunpack.c.h.b16 %v5832
        %v6614 = vunpack.c.l.b16 %v5833
        %v6615 = vunpack.c.h.b16 %v5833
        %v6616 = vunpack.c.l.b16 %v5834
        %v6617 = vunpack.c.h.b16 %v5834
        %v6618 = vunpack.c.l.b16 %v5835
        %v6619 = vunpack.c.h.b16 %v5835
        %v6620 = vunpack.c.l.b16 %v5836
        %v6621 = vunpack.c.h.b16 %v5836
        %v6622 = vunpack.c.l.b16 %v5837
        %v6623 = vunpack.c.h.b16 %v5837
        %v6624 = vunpack.c.l.b16 %v5838
        %v6625 = vunpack.c.h.b16 %v5838
        %v6626 = vunpack.c.l.b16 %v5839
        %v6627 = vunpack.c.h.b16 %v5839
        %v6628 = vunpack.c.l.b16 %v5840
        %v6629 = vunpack.c.h.b16 %v5840
        %v6630 = vunpack.c.l.b16 %v5841
        %v6631 = vunpack.c.h.b16 %v5841
        %v6632 = vunpack.c.l.b16 %v5842
        %v6633 = vunpack.c.h.b16 %v5842
        %v6634 = vunpack.c.l.b16 %v5843
        %v6635 = vunpack.c.h.b16 %v5843
        %v6636 = vunpack.c.l.b16 %v5844
        %v6637 = vunpack.c.h.b16 %v5844
        %v6638 = vunpack.c.l.b16 %v5845
        %v6639 = vunpack.c.h.b16 %v5845
        %v6640 = vunpack.c.l.b16 %v5846
        %v6641 = vunpack.c.h.b16 %v5846
        %v6642 = vunpack.c.l.b16 %v5847
        %v6643 = vunpack.c.h.b16 %v5847
        %v6644 = vunpack.c.l.b16 %v5848
        %v6645 = vunpack.c.h.b16 %v5848
        %v6646 = vunpack.c.l.b16 %v5849
        %v6647 = vunpack.c.h.b16 %v5849
        %v6648 = vunpack.c.l.b16 %v5850
        %v6649 = vunpack.c.h.b16 %v5850
        %v6650 = vunpack.c.l.b16 %v5851
        %v6651 = vunpack.c.h.b16 %v5851
        %v6652 = vunpack.c.l.b16 %v5852
        %v6653 = vunpack.c.h.b16 %v5852
        %v6654 = vunpack.c.l.b16 %v5853
        %v6655 = vunpack.c.h.b16 %v5853
        %v6656 = vunpack.c.l.b16 %v5854
        %v6657 = vunpack.c.h.b16 %v5854
        %v6658 = vunpack.c.l.b16 %v5855
        %v6659 = vunpack.c.h.b16 %v5855
        %v6660 = vunpack.c.l.b16 %v5856
        %v6661 = vunpack.c.h.b16 %v5856
        %v6662 = vunpack.c.l.b16 %v5857
        %v6663 = vunpack.c.h.b16 %v5857
        %v6664 = vunpack.c.l.b16 %v5858
        %v6665 = vunpack.c.h.b16 %v5858
        %v6666 = vunpack.c.l.b16 %v5859
        %v6667 = vunpack.c.h.b16 %v5859
        %v6668 = vunpack.c.l.b16 %v5860
        %v6669 = vunpack.c.h.b16 %v5860
        %v6670 = vunpack.c.l.b16 %v5861
        %v6671 = vunpack.c.h.b16 %v5861
        %v6672 = vunpack.c.l.b16 %v5862
        %v6673 = vunpack.c.h.b16 %v5862
        %v6674 = vunpack.c.l.b16 %v5863
        %v6675 = vunpack.c.h.b16 %v5863
        %v6676 = vunpack.c.l.b16 %v5864
        %v6677 = vunpack.c.h.b16 %v5864
        %v6678 = vunpack.c.l.b16 %v5865
        %v6679 = vunpack.c.h.b16 %v5865
        %v6680 = vunpack.c.l.b16 %v5866
        %v6681 = vunpack.c.h.b16 %v5866
        %v6682 = vunpack.c.l.b16 %v5867
        %v6683 = vunpack.c.h.b16 %v5867
        %v6684 = vunpack.c.l.b16 %v5868
        %v6685 = vunpack.c.h.b16 %v5868
        %v6686 = vunpack.c.l.b16 %v5869
        %v6687 = vunpack.c.h.b16 %v5869
        %v6688 = vunpack.c.l.b16 %v5870
        %v6689 = vunpack.c.h.b16 %v5870
        %v6690 = vunpack.c.l.b16 %v5871
        %v6691 = vunpack.c.h.b16 %v5871
        %v6692 = vunpack.c.l.b16 %v5872
        %v6693 = vunpack.c.h.b16 %v5872
        %v6694 = vunpack.c.l.b16 %v5873
        %v6695 = vunpack.c.h.b16 %v5873
        %v6696 = vunpack.c.l.b16 %v5874
        %v6697 = vunpack.c.h.b16 %v5874
        %v6698 = vunpack.c.l.b16 %v5875
        %v6699 = vunpack.c.h.b16 %v5875
        %v6700 = vunpack.c.l.b16 %v5876
        %v6701 = vunpack.c.h.b16 %v5876
        %v6702 = vunpack.c.l.b16 %v5877
        %v6703 = vunpack.c.h.b16 %v5877
        %v6704 = vunpack.c.l.b16 %v5878
        %v6705 = vunpack.c.h.b16 %v5878
        %v6706 = vunpack.c.l.b16 %v5879
        %v6707 = vunpack.c.h.b16 %v5879
        %v6708 = vunpack.c.l.b16 %v5880
        %v6709 = vunpack.c.h.b16 %v5880
        %v6710 = vunpack.c.l.b16 %v5881
        %v6711 = vunpack.c.h.b16 %v5881
        %v6712 = vunpack.c.l.b16 %v5882
        %v6713 = vunpack.c.h.b16 %v5882
        %v6714 = vunpack.c.l.b16 %v5883
        %v6715 = vunpack.c.h.b16 %v5883
        %v6716 = vunpack.c.l.b16 %v5884
        %v6717 = vunpack.c.h.b16 %v5884
        %v6718 = vunpack.c.l.b16 %v5885
        %v6719 = vunpack.c.h.b16 %v5885
        %v6720 = vunpack.c.l.b16 %v5886
        %v6721 = vunpack.c.h.b16 %v5886
        %v6722 = vunpack.c.l.b16 %v5887
        %v6723 = vunpack.c.h.b16 %v5887
        %v6724 = vunpack.c.l.b16 %v5888
        %v6725 = vunpack.c.h.b16 %v5888
        %v6726 = vunpack.c.l.b16 %v5889
        %v6727 = vunpack.c.h.b16 %v5889
        %v6728 = vunpack.c.l.b16 %v5890
        %v6729 = vunpack.c.h.b16 %v5890
        %v6730 = vunpack.c.l.b16 %v5891
        %v6731 = vunpack.c.h.b16 %v5891
        %v6732 = vunpack.c.l.b16 %v5892
        %v6733 = vunpack.c.h.b16 %v5892
        %v6734 = vunpack.c.l.b16 %v5893
        %v6735 = vunpack.c.h.b16 %v5893
        %v6736 = vunpack.c.l.b16 %v5894
        %v6737 = vunpack.c.h.b16 %v5894
        %v6738 = vunpack.c.l.b16 %v5895
        %v6739 = vunpack.c.h.b16 %v5895
        %v6740 = vunpack.c.l.b16 %v5896
        %v6741 = vunpack.c.h.b16 %v5896
        %v6742 = vunpack.c.l.b16 %v5897
        %v6743 = vunpack.c.h.b16 %v5897
        %v6744 = vunpack.c.l.b16 %v5898
        %v6745 = vunpack.c.h.b16 %v5898
        %v6746 = vunpack.c.l.b16 %v5899
        %v6747 = vunpack.c.h.b16 %v5899
        %v6748 = vunpack.c.l.b16 %v5900
        %v6749 = vunpack.c.h.b16 %v5900
        %v6750 = vunpack.c.l.b16 %v5901
        %v6751 = vunpack.c.h.b16 %v5901
        %v6752 = vunpack.c.l.b16 %v5902
        %v6753 = vunpack.c.h.b16 %v5902
        %v6754 = vunpack.c.l.b16 %v5903
        %v6755 = vunpack.c.h.b16 %v5903
        %v6756 = vunpack.c.l.b16 %v5904
        %v6757 = vunpack.c.h.b16 %v5904
        %v6758 = vunpack.c.l.b16 %v5905
        %v6759 = vunpack.c.h.b16 %v5905
        %v6760 = vunpack.c.l.b16 %v5906
        %v6761 = vunpack.c.h.b16 %v5906
        %v6762 = vunpack.c.l.b16 %v5907
        %v6763 = vunpack.c.h.b16 %v5907
        %v6764 = vunpack.c.l.b16 %v5908
        %v6765 = vunpack.c.h.b16 %v5908
        %v6766 = vunpack.c.l.b16 %v5909
        %v6767 = vunpack.c.h.b16 %v5909
        %v6768 = vunpack.c.l.b16 %v5910
        %v6769 = vunpack.c.h.b16 %v5910
        %v6770 = vunpack.c.l.b16 %v5911
        %v6771 = vunpack.c.h.b16 %v5911
        %v6772 = vunpack.c.l.b16 %v5912
        %v6773 = vunpack.c.h.b16 %v5912
        %v6774 = vunpack.c.l.b16 %v5913
        %v6775 = vunpack.c.h.b16 %v5913
        %v6776 = vunpack.c.l.b16 %v5914
        %v6777 = vunpack.c.h.b16 %v5914
        %v6778 = vunpack.c.l.b16 %v5915
        %v6779 = vunpack.c.h.b16 %v5915
        %v6780 = vunpack.c.l.b16 %v5916
        %v6781 = vunpack.c.h.b16 %v5916
        %v6782 = vunpack.c.l.b16 %v5917
        %v6783 = vunpack.c.h.b16 %v5917
        %v6784 = vunpack.c.l.b16 %v5918
        %v6785 = vunpack.c.h.b16 %v5918
        %v6786 = vunpack.c.l.b16 %v5919
        %v6787 = vunpack.c.h.b16 %v5919
        %v6788 = vunpack.c.l.b16 %v5920
        %v6789 = vunpack.c.h.b16 %v5920
        %v6790 = vunpack.c.l.b16 %v5921
        %v6791 = vunpack.c.h.b16 %v5921
        %v6792 = vunpack.c.l.b16 %v5922
        %v6793 = vunpack.c.h.b16 %v5922
        %v6794 = vunpack.c.l.b16 %v5923
        %v6795 = vunpack.c.h.b16 %v5923
        %v6796 = vunpack.c.l.b16 %v5924
        %v6797 = vunpack.c.h.b16 %v5924
        %v6798 = vunpack.c.l.b16 %v5925
        %v6799 = vunpack.c.h.b16 %v5925
        %v6800 = vunpack.c.l.b16 %v5926
        %v6801 = vunpack.c.h.b16 %v5926
        %v6802 = vunpack.c.l.b16 %v5927
        %v6803 = vunpack.c.h.b16 %v5927
        %v6804 = vunpack.c.l.b16 %v5928
        %v6805 = vunpack.c.h.b16 %v5928
        %v6806 = vunpack.c.l.b16 %v5929
        %v6807 = vunpack.c.h.b16 %v5929
        %v6808 = vunpack.c.l.b16 %v5930
        %v6809 = vunpack.c.h.b16 %v5930
        %v6810 = vunpack.c.l.b16 %v5931
        %v6811 = vunpack.c.h.b16 %v5931
        %v6812 = vunpack.c.l.b16 %v5932
        %v6813 = vunpack.c.h.b16 %v5932
        %v6814 = vunpack.c.l.b16 %v5933
        %v6815 = vunpack.c.h.b16 %v5933
        %v6816 = vunpack.c.l.b16 %v5934
        %v6817 = vunpack.c.h.b16 %v5934
        %v6818 = vunpack.c.l.b16 %v5935
        %v6819 = vunpack.c.h.b16 %v5935
        %v6820 = vunpack.c.l.b16 %v5936
        %v6821 = vunpack.c.h.b16 %v5936
        %v6822 = vunpack.c.l.b16 %v5937
        %v6823 = vunpack.c.h.b16 %v5937
        %v6824 = vunpack.c.l.b16 %v5938
        %v6825 = vunpack.c.h.b16 %v5938
        %v6826 = vunpack.c.l.b16 %v5939
        %v6827 = vunpack.c.h.b16 %v5939
        %v6828 = vunpack.c.l.b16 %v5940
        %v6829 = vunpack.c.h.b16 %v5940
        %v6830 = vunpack.c.l.b16 %v5941
        %v6831 = vunpack.c.h.b16 %v5941
        %v6832 = vunpack.c.l.b16 %v5942
        %v6833 = vunpack.c.h.b16 %v5942
        %v6834 = vunpack.c.l.b16 %v5943
        %v6835 = vunpack.c.h.b16 %v5943
        %v6836 = vunpack.c.l.b16 %v5944
        %v6837 = vunpack.c.h.b16 %v5944
        %v6838 = vunpack.c.l.b16 %v5945
        %v6839 = vunpack.c.h.b16 %v5945
        %v6840 = vunpack.c.l.b16 %v5946
        %v6841 = vunpack.c.h.b16 %v5946
        %v6842 = vunpack.c.l.b16 %v5947
        %v6843 = vunpack.c.h.b16 %v5947
        %v6844 = vunpack.c.l.b16 %v5948
        %v6845 = vunpack.c.h.b16 %v5948
        %v6846 = vunpack.c.l.b16 %v5949
        %v6847 = vunpack.c.h.b16 %v5949
        %v6848 = vunpack.c.l.b16 %v5950
        %v6849 = vunpack.c.h.b16 %v5950
        %v6850 = vunpack.c.l.b16 %v5951
        %v6851 = vunpack.c.h.b16 %v5951
        %v6852 = vunpack.c.l.b16 %v5952
        %v6853 = vunpack.c.h.b16 %v5952
        %v6854 = vunpack.c.l.b16 %v5953
        %v6855 = vunpack.c.h.b16 %v5953
        %v6856 = vunpack.c.l.b16 %v5954
        %v6857 = vunpack.c.h.b16 %v5954
        %v6858 = vunpack.c.l.b16 %v5955
        %v6859 = vunpack.c.h.b16 %v5955
        %v6860 = vunpack.c.l.b16 %v5956
        %v6861 = vunpack.c.h.b16 %v5956
        %v6862 = vunpack.c.l.b16 %v5957
        %v6863 = vunpack.c.h.b16 %v5957
        %v6864 = vunpack.c.l.b16 %v5958
        %v6865 = vunpack.c.h.b16 %v5958
        %v6866 = vunpack.c.l.b16 %v5959
        %v6867 = vunpack.c.h.b16 %v5959
        %v6868 = vunpack.c.l.b16 %v5960
        %v6869 = vunpack.c.h.b16 %v5960
        %v6870 = vunpack.c.l.b16 %v5961
        %v6871 = vunpack.c.h.b16 %v5961
        %v6872 = vunpack.c.l.b16 %v5962
        %v6873 = vunpack.c.h.b16 %v5962
        %v6874 = vunpack.c.l.b16 %v5963
        %v6875 = vunpack.c.h.b16 %v5963
        %v6876 = vunpack.c.l.b16 %v5964
        %v6877 = vunpack.c.h.b16 %v5964
        %v6878 = vunpack.c.l.b16 %v5965
        %v6879 = vunpack.c.h.b16 %v5965
        %v6880 = vunpack.c.l.b16 %v5966
        %v6881 = vunpack.c.h.b16 %v5966
        %v6882 = vunpack.c.l.b16 %v5967
        %v6883 = vunpack.c.h.b16 %v5967
        %v6884 = vunpack.c.l.b16 %v5968
        %v6885 = vunpack.c.h.b16 %v5968
        %v6886 = vunpack.c.l.b16 %v5969
        %v6887 = vunpack.c.h.b16 %v5969
        %v6888 = vunpack.c.l.b16 %v5970
        %v6889 = vunpack.c.h.b16 %v5970
        %v6890 = vunpack.c.l.b16 %v5971
        %v6891 = vunpack.c.h.b16 %v5971
        %v6892 = vunpack.c.l.b16 %v5972
        %v6893 = vunpack.c.h.b16 %v5972
        %v6894 = vunpack.c.l.b16 %v5973
        %v6895 = vunpack.c.h.b16 %v5973
        %v6896 = vunpack.c.l.b16 %v5974
        %v6897 = vunpack.c.h.b16 %v5974
        %v6898 = vunpack.c.l.b16 %v5975
        %v6899 = vunpack.c.h.b16 %v5975
        %v6900 = vunpack.c.l.b16 %v5976
        %v6901 = vunpack.c.h.b16 %v5976
        %v6902 = vunpack.c.l.b16 %v5977
        %v6903 = vunpack.c.h.b16 %v5977
        %v6904 = vunpack.c.l.b16 %v5978
        %v6905 = vunpack.c.h.b16 %v5978
        %v6906 = vunpack.c.l.b16 %v5979
        %v6907 = vunpack.c.h.b16 %v5979
        %v6908 = vunpack.c.l.b16 %v5980
        %v6909 = vunpack.c.h.b16 %v5980
        %v6910 = vunpack.c.l.b16 %v5981
        %v6911 = vunpack.c.h.b16 %v5981
        %v6912 = vunpack.c.l.b16 %v5982
        %v6913 = vunpack.c.h.b16 %v5982
        %v6914 = vpack.c.b16 %v6350, %v6338
        %v6915 = vpack.c.b16 %v6351, %v6339
        %v6916 = vpack.c.b16 %v6352, %v6340
        %v6917 = vpack.c.b16 %v6353, %v6341
        %v6918 = vpack.c.b16 %v6354, %v6342
        %v6919 = vpack.c.b16 %v6355, %v6343
        %v6920 = vpack.c.b16 %v6356, %v6344
        %v6921 = vpack.c.b16 %v6357, %v6345
        %v6922 = vpack.c.b16 %v6358, %v6346
        %v6923 = vpack.c.b16 %v6359, %v6347
        %v6924 = vpack.c.b16 %v6360, %v6348
        %v6925 = vpack.c.b16 %v6361, %v6349
        %v6926 = vpack.c.b16 %v6374, %v6362
        %v6927 = vpack.c.b16 %v6375, %v6363
        %v6928 = vpack.c.b16 %v6376, %v6364
        %v6929 = vpack.c.b16 %v6377, %v6365
        %v6930 = vpack.c.b16 %v6378, %v6366
        %v6931 = vpack.c.b16 %v6379, %v6367
        %v6932 = vpack.c.b16 %v6380, %v6368
        %v6933 = vpack.c.b16 %v6381, %v6369
        %v6934 = vpack.c.b16 %v6382, %v6370
        %v6935 = vpack.c.b16 %v6383, %v6371
        %v6936 = vpack.c.b16 %v6384, %v6372
        %v6937 = vpack.c.b16 %v6385, %v6373
        %v6938 = vpack.c.b16 %v6398, %v6386
        %v6939 = vpack.c.b16 %v6399, %v6387
        %v6940 = vpack.c.b16 %v6400, %v6388
        %v6941 = vpack.c.b16 %v6401, %v6389
        %v6942 = vpack.c.b16 %v6402, %v6390
        %v6943 = vpack.c.b16 %v6403, %v6391
        %v6944 = vpack.c.b16 %v6404, %v6392
        %v6945 = vpack.c.b16 %v6405, %v6393
        %v6946 = vpack.c.b16 %v6406, %v6394
        %v6947 = vpack.c.b16 %v6407, %v6395
        %v6948 = vpack.c.b16 %v6408, %v6396
        %v6949 = vpack.c.b16 %v6409, %v6397
        %v6950 = vpack.c.b16 %v6422, %v6410
        %v6951 = vpack.c.b16 %v6423, %v6411
        %v6952 = vpack.c.b16 %v6424, %v6412
        %v6953 = vpack.c.b16 %v6425, %v6413
        %v6954 = vpack.c.b16 %v6426, %v6414
        %v6955 = vpack.c.b16 %v6427, %v6415
        %v6956 = vpack.c.b16 %v6428, %v6416
        %v6957 = vpack.c.b16 %v6429, %v6417
        %v6958 = vpack.c.b16 %v6430, %v6418
        %v6959 = vpack.c.b16 %v6431, %v6419
        %v6960 = vpack.c.b16 %v6432, %v6420
        %v6961 = vpack.c.b16 %v6433, %v6421
        %v6962 = vpack.c.b16 %v6446, %v6434
        %v6963 = vpack.c.b16 %v6447, %v6435
        %v6964 = vpack.c.b16 %v6448, %v6436
        %v6965 = vpack.c.b16 %v6449, %v6437
        %v6966 = vpack.c.b16 %v6450, %v6438
        %v6967 = vpack.c.b16 %v6451, %v6439
        %v6968 = vpack.c.b16 %v6452, %v6440
        %v6969 = vpack.c.b16 %v6453, %v6441
        %v6970 = vpack.c.b16 %v6454, %v6442
        %v6971 = vpack.c.b16 %v6455, %v6443
        %v6972 = vpack.c.b16 %v6456, %v6444
        %v6973 = vpack.c.b16 %v6457, %v6445
        %v6974 = vpack.c.b16 %v6470, %v6458
        %v6975 = vpack.c.b16 %v6471, %v6459
        %v6976 = vpack.c.b16 %v6472, %v6460
        %v6977 = vpack.c.b16 %v6473, %v6461
        %v6978 = vpack.c.b16 %v6474, %v6462
        %v6979 = vpack.c.b16 %v6475, %v6463
        %v6980 = vpack.c.b16 %v6476, %v6464
        %v6981 = vpack.c.b16 %v6477, %v6465
        %v6982 = vpack.c.b16 %v6478, %v6466
        %v6983 = vpack.c.b16 %v6479, %v6467
        %v6984 = vpack.c.b16 %v6480, %v6468
        %v6985 = vpack.c.b16 %v6481, %v6469
        %v6986 = vpack.c.b16 %v6494, %v6482
        %v6987 = vpack.c.b16 %v6495, %v6483
        %v6988 = vpack.c.b16 %v6496, %v6484
        %v6989 = vpack.c.b16 %v6497, %v6485
        %v6990 = vpack.c.b16 %v6498, %v6486
        %v6991 = vpack.c.b16 %v6499, %v6487
        %v6992 = vpack.c.b16 %v6500, %v6488
        %v6993 = vpack.c.b16 %v6501, %v6489
        %v6994 = vpack.c.b16 %v6502, %v6490
        %v6995 = vpack.c.b16 %v6503, %v6491
        %v6996 = vpack.c.b16 %v6504, %v6492
        %v6997 = vpack.c.b16 %v6505, %v6493
        %v6998 = vpack.c.b16 %v6518, %v6506
        %v6999 = vpack.c.b16 %v6519, %v6507
        %v7000 = vpack.c.b16 %v6520, %v6508
        %v7001 = vpack.c.b16 %v6521, %v6509
        %v7002 = vpack.c.b16 %v6522, %v6510
        %v7003 = vpack.c.b16 %v6523, %v6511
        %v7004 = vpack.c.b16 %v6524, %v6512
        %v7005 = vpack.c.b16 %v6525, %v6513
        %v7006 = vpack.c.b16 %v6526, %v6514
        %v7007 = vpack.c.b16 %v6527, %v6515
        %v7008 = vpack.c.b16 %v6528, %v6516
        %v7009 = vpack.c.b16 %v6529, %v6517
        %v7010 = vpack.c.b16 %v6542, %v6530
        %v7011 = vpack.c.b16 %v6543, %v6531
        %v7012 = vpack.c.b16 %v6544, %v6532
        %v7013 = vpack.c.b16 %v6545, %v6533
        %v7014 = vpack.c.b16 %v6546, %v6534
        %v7015 = vpack.c.b16 %v6547, %v6535
        %v7016 = vpack.c.b16 %v6548, %v6536
        %v7017 = vpack.c.b16 %v6549, %v6537
        %v7018 = vpack.c.b16 %v6550, %v6538
        %v7019 = vpack.c.b16 %v6551, %v6539
        %v7020 = vpack.c.b16 %v6552, %v6540
        %v7021 = vpack.c.b16 %v6553, %v6541
        %v7022 = vpack.c.b16 %v6566, %v6554
        %v7023 = vpack.c.b16 %v6567, %v6555
        %v7024 = vpack.c.b16 %v6568, %v6556
        %v7025 = vpack.c.b16 %v6569, %v6557
        %v7026 = vpack.c.b16 %v6570, %v6558
        %v7027 = vpack.c.b16 %v6571, %v6559
        %v7028 = vpack.c.b16 %v6572, %v6560
        %v7029 = vpack.c.b16 %v6573, %v6561
        %v7030 = vpack.c.b16 %v6574, %v6562
        %v7031 = vpack.c.b16 %v6575, %v6563
        %v7032 = vpack.c.b16 %v6576, %v6564
        %v7033 = vpack.c.b16 %v6577, %v6565
        %v7034 = vpack.c.b16 %v6590, %v6578
        %v7035 = vpack.c.b16 %v6591, %v6579
        %v7036 = vpack.c.b16 %v6592, %v6580
        %v7037 = vpack.c.b16 %v6593, %v6581
        %v7038 = vpack.c.b16 %v6594, %v6582
        %v7039 = vpack.c.b16 %v6595, %v6583
        %v7040 = vpack.c.b16 %v6596, %v6584
        %v7041 = vpack.c.b16 %v6597, %v6585
        %v7042 = vpack.c.b16 %v6598, %v6586
        %v7043 = vpack.c.b16 %v6599, %v6587
        %v7044 = vpack.c.b16 %v6600, %v6588
        %v7045 = vpack.c.b16 %v6601, %v6589
        %v7046 = vpack.c.b16 %v6614, %v6602
        %v7047 = vpack.c.b16 %v6615, %v6603
        %v7048 = vpack.c.b16 %v6616, %v6604
        %v7049 = vpack.c.b16 %v6617, %v6605
        %v7050 = vpack.c.b16 %v6618, %v6606
        %v7051 = vpack.c.b16 %v6619, %v6607
        %v7052 = vpack.c.b16 %v6620, %v6608
        %v7053 = vpack.c.b16 %v6621, %v6609
        %v7054 = vpack.c.b16 %v6622, %v6610
        %v7055 = vpack.c.b16 %v6623, %v6611
        %v7056 = vpack.c.b16 %v6624, %v6612
        %v7057 = vpack.c.b16 %v6625, %v6613
        %v7058 = vpack.c.b16 %v6638, %v6626
        %v7059 = vpack.c.b16 %v6639, %v6627
        %v7060 = vpack.c.b16 %v6640, %v6628
        %v7061 = vpack.c.b16 %v6641, %v6629
        %v7062 = vpack.c.b16 %v6642, %v6630
        %v7063 = vpack.c.b16 %v6643, %v6631
        %v7064 = vpack.c.b16 %v6644, %v6632
        %v7065 = vpack.c.b16 %v6645, %v6633
        %v7066 = vpack.c.b16 %v6646, %v6634
        %v7067 = vpack.c.b16 %v6647, %v6635
        %v7068 = vpack.c.b16 %v6648, %v6636
        %v7069 = vpack.c.b16 %v6649, %v6637
        %v7070 = vpack.c.b16 %v6662, %v6650
        %v7071 = vpack.c.b16 %v6663, %v6651
        %v7072 = vpack.c.b16 %v6664, %v6652
        %v7073 = vpack.c.b16 %v6665, %v6653
        %v7074 = vpack.c.b16 %v6666, %v6654
        %v7075 = vpack.c.b16 %v6667, %v6655
        %v7076 = vpack.c.b16 %v6668, %v6656
        %v7077 = vpack.c.b16 %v6669, %v6657
        %v7078 = vpack.c.b16 %v6670, %v6658
        %v7079 = vpack.c.b16 %v6671, %v6659
        %v7080 = vpack.c.b16 %v6672, %v6660
        %v7081 = vpack.c.b16 %v6673, %v6661
        %v7082 = vpack.c.b16 %v6686, %v6674
        %v7083 = vpack.c.b16 %v6687, %v6675
        %v7084 = vpack.c.b16 %v6688, %v6676
        %v7085 = vpack.c.b16 %v6689, %v6677
        %v7086 = vpack.c.b16 %v6690, %v6678
        %v7087 = vpack.c.b16 %v6691, %v6679
        %v7088 = vpack.c.b16 %v6692, %v6680
        %v7089 = vpack.c.b16 %v6693, %v6681
        %v7090 = vpack.c.b16 %v6694, %v6682
        %v7091 = vpack.c.b16 %v6695, %v6683
        %v7092 = vpack.c.b16 %v6696, %v6684
        %v7093 = vpack.c.b16 %v6697, %v6685
        %v7094 = vpack.c.b16 %v6710, %v6698
        %v7095 = vpack.c.b16 %v6711, %v6699
        %v7096 = vpack.c.b16 %v6712, %v6700
        %v7097 = vpack.c.b16 %v6713, %v6701
        %v7098 = vpack.c.b16 %v6714, %v6702
        %v7099 = vpack.c.b16 %v6715, %v6703
        %v7100 = vpack.c.b16 %v6716, %v6704
        %v7101 = vpack.c.b16 %v6717, %v6705
        %v7102 = vpack.c.b16 %v6718, %v6706
        %v7103 = vpack.c.b16 %v6719, %v6707
        %v7104 = vpack.c.b16 %v6720, %v6708
        %v7105 = vpack.c.b16 %v6721, %v6709
        %v7106 = vpack.c.b16 %v6734, %v6722
        %v7107 = vpack.c.b16 %v6735, %v6723
        %v7108 = vpack.c.b16 %v6736, %v6724
        %v7109 = vpack.c.b16 %v6737, %v6725
        %v7110 = vpack.c.b16 %v6738, %v6726
        %v7111 = vpack.c.b16 %v6739, %v6727
        %v7112 = vpack.c.b16 %v6740, %v6728
        %v7113 = vpack.c.b16 %v6741, %v6729
        %v7114 = vpack.c.b16 %v6742, %v6730
        %v7115 = vpack.c.b16 %v6743, %v6731
        %v7116 = vpack.c.b16 %v6744, %v6732
        %v7117 = vpack.c.b16 %v6745, %v6733
        %v7118 = vpack.c.b16 %v6758, %v6746
        %v7119 = vpack.c.b16 %v6759, %v6747
        %v7120 = vpack.c.b16 %v6760, %v6748
        %v7121 = vpack.c.b16 %v6761, %v6749
        %v7122 = vpack.c.b16 %v6762, %v6750
        %v7123 = vpack.c.b16 %v6763, %v6751
        %v7124 = vpack.c.b16 %v6764, %v6752
        %v7125 = vpack.c.b16 %v6765, %v6753
        %v7126 = vpack.c.b16 %v6766, %v6754
        %v7127 = vpack.c.b16 %v6767, %v6755
        %v7128 = vpack.c.b16 %v6768, %v6756
        %v7129 = vpack.c.b16 %v6769, %v6757
        %v7130 = vpack.c.b16 %v6782, %v6770
        %v7131 = vpack.c.b16 %v6783, %v6771
        %v7132 = vpack.c.b16 %v6784, %v6772
        %v7133 = vpack.c.b16 %v6785, %v6773
        %v7134 = vpack.c.b16 %v6786, %v6774
        %v7135 = vpack.c.b16 %v6787, %v6775
        %v7136 = vpack.c.b16 %v6788, %v6776
        %v7137 = vpack.c.b16 %v6789, %v6777
        %v7138 = vpack.c.b16 %v6790, %v6778
        %v7139 = vpack.c.b16 %v6791, %v6779
        %v7140 = vpack.c.b16 %v6792, %v6780
        %v7141 = vpack.c.b16 %v6793, %v6781
        %v7142 = vpack.c.b16 %v6806, %v6794
        %v7143 = vpack.c.b16 %v6807, %v6795
        %v7144 = vpack.c.b16 %v6808, %v6796
        %v7145 = vpack.c.b16 %v6809, %v6797
        %v7146 = vpack.c.b16 %v6810, %v6798
        %v7147 = vpack.c.b16 %v6811, %v6799
        %v7148 = vpack.c.b16 %v6812, %v6800
        %v7149 = vpack.c.b16 %v6813, %v6801
        %v7150 = vpack.c.b16 %v6814, %v6802
        %v7151 = vpack.c.b16 %v6815, %v6803
        %v7152 = vpack.c.b16 %v6816, %v6804
        %v7153 = vpack.c.b16 %v6817, %v6805
        %v7154 = vpack.c.b16 %v6830, %v6818
        %v7155 = vpack.c.b16 %v6831, %v6819
        %v7156 = vpack.c.b16 %v6832, %v6820
        %v7157 = vpack.c.b16 %v6833, %v6821
        %v7158 = vpack.c.b16 %v6834, %v6822
        %v7159 = vpack.c.b16 %v6835, %v6823
        %v7160 = vpack.c.b16 %v6836, %v6824
        %v7161 = vpack.c.b16 %v6837, %v6825
        %v7162 = vpack.c.b16 %v6838, %v6826
        %v7163 = vpack.c.b16 %v6839, %v6827
        %v7164 = vpack.c.b16 %v6840, %v6828
        %v7165 = vpack.c.b16 %v6841, %v6829
        %v7166 = vpack.c.b16 %v6854, %v6842
        %v7167 = vpack.c.b16 %v6855, %v6843
        %v7168 = vpack.c.b16 %v6856, %v6844
        %v7169 = vpack.c.b16 %v6857, %v6845
        %v7170 = vpack.c.b16 %v6858, %v6846
        %v7171 = vpack.c.b16 %v6859, %v6847
        %v7172 = vpack.c.b16 %v6860, %v6848
        %v7173 = vpack.c.b16 %v6861, %v6849
        %v7174 = vpack.c.b16 %v6862, %v6850
        %v7175 = vpack.c.b16 %v6863, %v6851
        %v7176 = vpack.c.b16 %v6864, %v6852
        %v7177 = vpack.c.b16 %v6865, %v6853
        %v7178 = vpack.c.b16 %v6878, %v6866
        %v7179 = vpack.c.b16 %v6879, %v6867
        %v7180 = vpack.c.b16 %v6880, %v6868
        %v7181 = vpack.c.b16 %v6881, %v6869
        %v7182 = vpack.c.b16 %v6882, %v6870
        %v7183 = vpack.c.b16 %v6883, %v6871
        %v7184 = vpack.c.b16 %v6884, %v6872
        %v7185 = vpack.c.b16 %v6885, %v6873
        %v7186 = vpack.c.b16 %v6886, %v6874
        %v7187 = vpack.c.b16 %v6887, %v6875
        %v7188 = vpack.c.b16 %v6888, %v6876
        %v7189 = vpack.c.b16 %v6889, %v6877
        %v7190 = vpack.c.b16 %v6902, %v6890
        %v7191 = vpack.c.b16 %v6903, %v6891
        %v7192 = vpack.c.b16 %v6904, %v6892
        %v7193 = vpack.c.b16 %v6905, %v6893
        %v7194 = vpack.c.b16 %v6906, %v6894
        %v7195 = vpack.c.b16 %v6907, %v6895
        %v7196 = vpack.c.b16 %v6908, %v6896
        %v7197 = vpack.c.b16 %v6909, %v6897
        %v7198 = vpack.c.b16 %v6910, %v6898
        %v7199 = vpack.c.b16 %v6911, %v6899
        %v7200 = vpack.c.b16 %v6912, %v6900
        %v7201 = vpack.c.b16 %v6913, %v6901
        %7490 = vmatprep.subr.bf16.mxu0 %v6915
        %7491 = vmatpush1.bf16.msra.mxu0 %v6914
        %7492 = vmatprep.subr.bf16.mxu0 %v6927
        %7493 = vmatpush1.bf16.msra.mxu0 %v6926
        %7494 = vmatprep.subr.bf16.mxu0 %v6939
        %7495 = vmatpush1.bf16.msra.mxu0 %v6938
        %7496 = vmatprep.subr.bf16.mxu0 %v6951
        %7497 = vmatpush1.bf16.msra.mxu0 %v6950
        %7498 = vmatprep.subr.bf16.mxu0 %v6963
        %7499 = vmatpush1.bf16.msra.mxu0 %v6962
        %7500 = vmatprep.subr.bf16.mxu0 %v6975
        %7501 = vmatpush1.bf16.msra.mxu0 %v6974
        %7502 = vmatprep.subr.bf16.mxu0 %v6987
        %7503 = vmatpush1.bf16.msra.mxu0 %v6986
        %7504 = vmatprep.subr.bf16.mxu0 %v6999
        %7505 = vmatpush1.bf16.msra.mxu0 %v6998
        %7506 = vmatprep.subr.bf16.mxu0 %v7011
        %7507 = vmatpush1.bf16.msra.mxu0 %v7010
        %7508 = vmatprep.subr.bf16.mxu0 %v7023
        %7509 = vmatpush1.bf16.msra.mxu0 %v7022
        %7510 = vmatprep.subr.bf16.mxu0 %v7035
        %7511 = vmatpush1.bf16.msra.mxu0 %v7034
        %7512 = vmatprep.subr.bf16.mxu0 %v7047
        %7513 = vmatpush1.bf16.msra.mxu0 %v7046
        %7514 = vmatprep.subr.bf16.mxu0 %v7059
        %7515 = vmatpush1.bf16.msra.mxu0 %v7058
        %7516 = vmatprep.subr.bf16.mxu0 %v7071
        %7517 = vmatpush1.bf16.msra.mxu0 %v7070
        %7518 = vmatprep.subr.bf16.mxu0 %v7083
        %7519 = vmatpush1.bf16.msra.mxu0 %v7082
        %7520 = vmatprep.subr.bf16.mxu0 %v7095
        %7521 = vmatpush1.bf16.msra.mxu0 %v7094
        %7522 = vmatprep.mubr.bf16.mxu0 %v5986
        %7523 = vmatmul.mubr.bf16.gmra.mrb[0].mxu0 %v5985
        %v7524 = vpop.f32.mrb[0].mxu0
        %v7525 = vadd.f32 %v5993, %v7524
        %v7526 = vpop.f32.mrb[0].mxu0
        %v7527 = vadd.f32 %v5997, %v7526
        %v7528 = vpop.f32.mrb[0].mxu0
        %v7529 = vadd.f32 %v5993, %v7528
        %v7530 = vpop.f32.mrb[0].mxu0
        %v7531 = vadd.f32 %v5997, %v7530
        %7532 = vdwg.mxu0
        %7533 = vmatprep.subr.bf16.mxu0 %v7107
        %7534 = vmatpush1.bf16.msra.mxu0 %v7106
        %7535 = vmatprep.subr.bf16.mxu0 %v7119
        %7536 = vmatpush1.bf16.msra.mxu0 %v7118
        %7537 = vmatprep.subr.bf16.mxu0 %v7131
        %7538 = vmatpush1.bf16.msra.mxu0 %v7130
        %7539 = vmatprep.subr.bf16.mxu0 %v7143
        %7540 = vmatpush1.bf16.msra.mxu0 %v7142
        %7541 = vmatprep.subr.bf16.mxu0 %v7155
        %7542 = vmatpush1.bf16.msra.mxu0 %v7154
        %7543 = vmatprep.subr.bf16.mxu0 %v7167
        %7544 = vmatpush1.bf16.msra.mxu0 %v7166
        %7545 = vmatprep.subr.bf16.mxu0 %v7179
        %7546 = vmatpush1.bf16.msra.mxu0 %v7178
        %7547 = vmatprep.subr.bf16.mxu0 %v7191
        %7548 = vmatpush1.bf16.msra.mxu0 %v7190
        %7549 = vmatprep.subr.bf16.mxu0 0
        %7550 = vmatpush1.bf16.msra.mxu0 0
        %7551 = vmatprep.subr.bf16.mxu0 0
        %7552 = vmatpush1.bf16.msra.mxu0 0
        %7553 = vmatprep.subr.bf16.mxu0 0
        %7554 = vmatpush1.bf16.msra.mxu0 0
        %7555 = vmatprep.subr.bf16.mxu0 0
        %7556 = vmatpush1.bf16.msra.mxu0 0
        %7557 = vmatprep.subr.bf16.mxu0 0
        %7558 = vmatpush1.bf16.msra.mxu0 0
        %7559 = vmatprep.subr.bf16.mxu0 0
        %7560 = vmatpush1.bf16.msra.mxu0 0
        %7561 = vmatprep.subr.bf16.mxu0 0
        %7562 = vmatpush1.bf16.msra.mxu0 0
        %7563 = vmatprep.subr.bf16.mxu0 0
        %7564 = vmatpush1.bf16.msra.mxu0 0
        %7565 = vmatprep.mubr.bf16.mxu0 0
        %7566 = vmatmul.mubr.bf16.gmra.mrb[0].mxu0 %v5987
        %v7567 = vpop.f32.mrb[0].mxu0
        %v7568 = vadd.f32 %v7525, %v7567
        %v7569 = vpop.f32.mrb[0].mxu0
        %v7570 = vadd.f32 %v7527, %v7569
        %v7571 = vpop.f32.mrb[0].mxu0
        %v7572 = vadd.f32 %v7529, %v7571
        %v7573 = vpop.f32.mrb[0].mxu0
        %v7574 = vadd.f32 %v7531, %v7573
        %7575 = vdwg.mxu0
        %7576 = vmatprep.subr.bf16.mxu0 %v6917
        %7577 = vmatpush1.bf16.msra.mxu0 %v6916
        %7578 = vmatprep.subr.bf16.mxu0 %v6929
        %7579 = vmatpush1.bf16.msra.mxu0 %v6928
        %7580 = vmatprep.subr.bf16.mxu0 %v6941
        %7581 = vmatpush1.bf16.msra.mxu0 %v6940
        %7582 = vmatprep.subr.bf16.mxu0 %v6953
        %7583 = vmatpush1.bf16.msra.mxu0 %v6952
        %7584 = vmatprep.subr.bf16.mxu0 %v6965
        %7585 = vmatpush1.bf16.msra.mxu0 %v6964
        %7586 = vmatprep.subr.bf16.mxu0 %v6977
        %7587 = vmatpush1.bf16.msra.mxu0 %v6976
        %7588 = vmatprep.subr.bf16.mxu0 %v6989
        %7589 = vmatpush1.bf16.msra.mxu0 %v6988
        %7590 = vmatprep.subr.bf16.mxu0 %v7001
        %7591 = vmatpush1.bf16.msra.mxu0 %v7000
        %7592 = vmatprep.subr.bf16.mxu0 %v7013
        %7593 = vmatpush1.bf16.msra.mxu0 %v7012
        %7594 = vmatprep.subr.bf16.mxu0 %v7025
        %7595 = vmatpush1.bf16.msra.mxu0 %v7024
        %7596 = vmatprep.subr.bf16.mxu0 %v7037
        %7597 = vmatpush1.bf16.msra.mxu0 %v7036
        %7598 = vmatprep.subr.bf16.mxu0 %v7049
        %7599 = vmatpush1.bf16.msra.mxu0 %v7048
        %7600 = vmatprep.subr.bf16.mxu0 %v7061
        %7601 = vmatpush1.bf16.msra.mxu0 %v7060
        %7602 = vmatprep.subr.bf16.mxu0 %v7073
        %7603 = vmatpush1.bf16.msra.mxu0 %v7072
        %7604 = vmatprep.subr.bf16.mxu0 %v7085
        %7605 = vmatpush1.bf16.msra.mxu0 %v7084
        %7606 = vmatprep.subr.bf16.mxu0 %v7097
        %7607 = vmatpush1.bf16.msra.mxu0 %v7096
        %7608 = vmatprep.mubr.bf16.mxu0 %v5986
        %7609 = vmatmul.mubr.bf16.gmra.mrb[0].mxu0 %v5985
        %v7610 = vpop.f32.mrb[0].mxu0
        %v7611 = vadd.f32 %v6001, %v7610
        %v7612 = vpop.f32.mrb[0].mxu0
        %v7613 = vadd.f32 %v6005, %v7612
        %v7614 = vpop.f32.mrb[0].mxu0
        %v7615 = vadd.f32 %v6001, %v7614
        %v7616 = vpop.f32.mrb[0].mxu0
        %v7617 = vadd.f32 %v6005, %v7616
        %7618 = vdwg.mxu0
        %7619 = vmatprep.subr.bf16.mxu0 %v7109
        %7620 = vmatpush1.bf16.msra.mxu0 %v7108
        %7621 = vmatprep.subr.bf16.mxu0 %v7121
        %7622 = vmatpush1.bf16.msra.mxu0 %v7120
        %7623 = vmatprep.subr.bf16.mxu0 %v7133
        %7624 = vmatpush1.bf16.msra.mxu0 %v7132
        %7625 = vmatprep.subr.bf16.mxu0 %v7145
        %7626 = vmatpush1.bf16.msra.mxu0 %v7144
        %7627 = vmatprep.subr.bf16.mxu0 %v7157
        %7628 = vmatpush1.bf16.msra.mxu0 %v7156
        %7629 = vmatprep.subr.bf16.mxu0 %v7169
        %7630 = vmatpush1.bf16.msra.mxu0 %v7168
        %7631 = vmatprep.subr.bf16.mxu0 %v7181
        %7632 = vmatpush1.bf16.msra.mxu0 %v7180
        %7633 = vmatprep.subr.bf16.mxu0 %v7193
        %7634 = vmatpush1.bf16.msra.mxu0 %v7192
        %7635 = vmatprep.subr.bf16.mxu0 0
        %7636 = vmatpush1.bf16.msra.mxu0 0
        %7637 = vmatprep.subr.bf16.mxu0 0
        %7638 = vmatpush1.bf16.msra.mxu0 0
        %7639 = vmatprep.subr.bf16.mxu0 0
        %7640 = vmatpush1.bf16.msra.mxu0 0
        %7641 = vmatprep.subr.bf16.mxu0 0
        %7642 = vmatpush1.bf16.msra.mxu0 0
        %7643 = vmatprep.subr.bf16.mxu0 0
        %7644 = vmatpush1.bf16.msra.mxu0 0
        %7645 = vmatprep.subr.bf16.mxu0 0
        %7646 = vmatpush1.bf16.msra.mxu0 0
        %7647 = vmatprep.subr.bf16.mxu0 0
        %7648 = vmatpush1.bf16.msra.mxu0 0
        %7649 = vmatprep.subr.bf16.mxu0 0
        %7650 = vmatpush1.bf16.msra.mxu0 0
        %7651 = vmatprep.mubr.bf16.mxu0 0
        %7652 = vmatmul.mubr.bf16.gmra.mrb[0].mxu0 %v5987
        %v7653 = vpop.f32.mrb[0].mxu0
        %v7654 = vadd.f32 %v7611, %v7653
        %v7655 = vpop.f32.mrb[0].mxu0
        %v7656 = vadd.f32 %v7613, %v7655
        %v7657 = vpop.f32.mrb[0].mxu0
        %v7658 = vadd.f32 %v7615, %v7657
        %v7659 = vpop.f32.mrb[0].mxu0
        %v7660 = vadd.f32 %v7617, %v7659
        %7661 = vdwg.mxu0
        %7662 = vmatprep.subr.bf16.mxu0 %v6919
        %7663 = vmatpush1.bf16.msra.mxu0 %v6918
        %7664 = vmatprep.subr.bf16.mxu0 %v6931
        %7665 = vmatpush1.bf16.msra.mxu0 %v6930
        %7666 = vmatprep.subr.bf16.mxu0 %v6943
        %7667 = vmatpush1.bf16.msra.mxu0 %v6942
        %7668 = vmatprep.subr.bf16.mxu0 %v6955
        %7669 = vmatpush1.bf16.msra.mxu0 %v6954
        %7670 = vmatprep.subr.bf16.mxu0 %v6967
        %7671 = vmatpush1.bf16.msra.mxu0 %v6966
        %7672 = vmatprep.subr.bf16.mxu0 %v6979
        %7673 = vmatpush1.bf16.msra.mxu0 %v6978
        %7674 = vmatprep.subr.bf16.mxu0 %v6991
        %7675 = vmatpush1.bf16.msra.mxu0 %v6990
        %7676 = vmatprep.subr.bf16.mxu0 %v7003
        %7677 = vmatpush1.bf16.msra.mxu0 %v7002
        %7678 = vmatprep.subr.bf16.mxu0 %v7015
        %7679 = vmatpush1.bf16.msra.mxu0 %v7014
        %7680 = vmatprep.subr.bf16.mxu0 %v7027
        %7681 = vmatpush1.bf16.msra.mxu0 %v7026
        %7682 = vmatprep.subr.bf16.mxu0 %v7039
        %7683 = vmatpush1.bf16.msra.mxu0 %v7038
        %7684 = vmatprep.subr.bf16.mxu0 %v7051
        %7685 = vmatpush1.bf16.msra.mxu0 %v7050
        %7686 = vmatprep.subr.bf16.mxu0 %v7063
        %7687 = vmatpush1.bf16.msra.mxu0 %v7062
        %7688 = vmatprep.subr.bf16.mxu0 %v7075
        %7689 = vmatpush1.bf16.msra.mxu0 %v7074
        %7690 = vmatprep.subr.bf16.mxu0 %v7087
        %7691 = vmatpush1.bf16.msra.mxu0 %v7086
        %7692 = vmatprep.subr.bf16.mxu0 %v7099
        %7693 = vmatpush1.bf16.msra.mxu0 %v7098
        %7694 = vmatprep.mubr.bf16.mxu0 %v5986
        %7695 = vmatmul.mubr.bf16.gmra.mrb[0].mxu0 %v5985
        %v7696 = vpop.f32.mrb[0].mxu0
        %v7697 = vadd.f32 %v6009, %v7696
        %v7698 = vpop.f32.mrb[0].mxu0
        %v7699 = vadd.f32 %v6013, %v7698
        %v7700 = vpop.f32.mrb[0].mxu0
        %v7701 = vadd.f32 %v6009, %v7700
        %v7702 = vpop.f32.mrb[0].mxu0
        %v7703 = vadd.f32 %v6013, %v7702
        %7704 = vdwg.mxu0
        %7705 = vmatprep.subr.bf16.mxu0 %v7111
        %7706 = vmatpush1.bf16.msra.mxu0 %v7110
        %7707 = vmatprep.subr.bf16.mxu0 %v7123
        %7708 = vmatpush1.bf16.msra.mxu0 %v7122
        %7709 = vmatprep.subr.bf16.mxu0 %v7135
        %7710 = vmatpush1.bf16.msra.mxu0 %v7134
        %7711 = vmatprep.subr.bf16.mxu0 %v7147
        %7712 = vmatpush1.bf16.msra.mxu0 %v7146
        %7713 = vmatprep.subr.bf16.mxu0 %v7159
        %7714 = vmatpush1.bf16.msra.mxu0 %v7158
        %7715 = vmatprep.subr.bf16.mxu0 %v7171
        %7716 = vmatpush1.bf16.msra.mxu0 %v7170
        %7717 = vmatprep.subr.bf16.mxu0 %v7183
        %7718 = vmatpush1.bf16.msra.mxu0 %v7182
        %7719 = vmatprep.subr.bf16.mxu0 %v7195
        %7720 = vmatpush1.bf16.msra.mxu0 %v7194
        %7721 = vmatprep.subr.bf16.mxu0 0
        %7722 = vmatpush1.bf16.msra.mxu0 0
        %7723 = vmatprep.subr.bf16.mxu0 0
        %7724 = vmatpush1.bf16.msra.mxu0 0
        %7725 = vmatprep.subr.bf16.mxu0 0
        %7726 = vmatpush1.bf16.msra.mxu0 0
        %7727 = vmatprep.subr.bf16.mxu0 0
        %7728 = vmatpush1.bf16.msra.mxu0 0
        %7729 = vmatprep.subr.bf16.mxu0 0
        %7730 = vmatpush1.bf16.msra.mxu0 0
        %7731 = vmatprep.subr.bf16.mxu0 0
        %7732 = vmatpush1.bf16.msra.mxu0 0
        %7733 = vmatprep.subr.bf16.mxu0 0
        %7734 = vmatpush1.bf16.msra.mxu0 0
        %7735 = vmatprep.subr.bf16.mxu0 0
        %7736 = vmatpush1.bf16.msra.mxu0 0
        %7737 = vmatprep.mubr.bf16.mxu0 0
        %7738 = vmatmul.mubr.bf16.gmra.mrb[0].mxu0 %v5987
        %v7739 = vpop.f32.mrb[0].mxu0
        %v7740 = vadd.f32 %v7697, %v7739
        %v7741 = vpop.f32.mrb[0].mxu0
        %v7742 = vadd.f32 %v7699, %v7741
        %v7743 = vpop.f32.mrb[0].mxu0
        %v7744 = vadd.f32 %v7701, %v7743
        %v7745 = vpop.f32.mrb[0].mxu0
        %v7746 = vadd.f32 %v7703, %v7745
        %7747 = vdwg.mxu0
        %7748 = vmatprep.subr.bf16.mxu0 %v6921
        %7749 = vmatpush1.bf16.msra.mxu0 %v6920
        %7750 = vmatprep.subr.bf16.mxu0 %v6933
        %7751 = vmatpush1.bf16.msra.mxu0 %v6932
        %7752 = vmatprep.subr.bf16.mxu0 %v6945
        %7753 = vmatpush1.bf16.msra.mxu0 %v6944
        %7754 = vmatprep.subr.bf16.mxu0 %v6957
        %7755 = vmatpush1.bf16.msra.mxu0 %v6956
        %7756 = vmatprep.subr.bf16.mxu0 %v6969
        %7757 = vmatpush1.bf16.msra.mxu0 %v6968
        %7758 = vmatprep.subr.bf16.mxu0 %v6981
        %7759 = vmatpush1.bf16.msra.mxu0 %v6980
        %7760 = vmatprep.subr.bf16.mxu0 %v6993
        %7761 = vmatpush1.bf16.msra.mxu0 %v6992
        %7762 = vmatprep.subr.bf16.mxu0 %v7005
        %7763 = vmatpush1.bf16.msra.mxu0 %v7004
        %7764 = vmatprep.subr.bf16.mxu0 %v7017
        %7765 = vmatpush1.bf16.msra.mxu0 %v7016
        %7766 = vmatprep.subr.bf16.mxu0 %v7029
        %7767 = vmatpush1.bf16.msra.mxu0 %v7028
        %7768 = vmatprep.subr.bf16.mxu0 %v7041
        %7769 = vmatpush1.bf16.msra.mxu0 %v7040
        %7770 = vmatprep.subr.bf16.mxu0 %v7053
        %7771 = vmatpush1.bf16.msra.mxu0 %v7052
        %7772 = vmatprep.subr.bf16.mxu0 %v7065
        %7773 = vmatpush1.bf16.msra.mxu0 %v7064
        %7774 = vmatprep.subr.bf16.mxu0 %v7077
        %7775 = vmatpush1.bf16.msra.mxu0 %v7076
        %7776 = vmatprep.subr.bf16.mxu0 %v7089
        %7777 = vmatpush1.bf16.msra.mxu0 %v7088
        %7778 = vmatprep.subr.bf16.mxu0 %v7101
        %7779 = vmatpush1.bf16.msra.mxu0 %v7100
        %7780 = vmatprep.mubr.bf16.mxu0 %v5986
        %7781 = vmatmul.mubr.bf16.gmra.mrb[0].mxu0 %v5985
        %v7782 = vpop.f32.mrb[0].mxu0
        %v7783 = vadd.f32 %v6017, %v7782
        %v7784 = vpop.f32.mrb[0].mxu0
        %v7785 = vadd.f32 %v6021, %v7784
        %v7786 = vpop.f32.mrb[0].mxu0
        %v7787 = vadd.f32 %v6017, %v7786
        %v7788 = vpop.f32.mrb[0].mxu0
        %v7789 = vadd.f32 %v6021, %v7788
        %7790 = vdwg.mxu0
        %7791 = vmatprep.subr.bf16.mxu0 %v7113
        %7792 = vmatpush1.bf16.msra.mxu0 %v7112
        %7793 = vmatprep.subr.bf16.mxu0 %v7125
        %7794 = vmatpush1.bf16.msra.mxu0 %v7124
        %7795 = vmatprep.subr.bf16.mxu0 %v7137
        %7796 = vmatpush1.bf16.msra.mxu0 %v7136
        %7797 = vmatprep.subr.bf16.mxu0 %v7149
        %7798 = vmatpush1.bf16.msra.mxu0 %v7148
        %7799 = vmatprep.subr.bf16.mxu0 %v7161
        %7800 = vmatpush1.bf16.msra.mxu0 %v7160
        %7801 = vmatprep.subr.bf16.mxu0 %v7173
        %7802 = vmatpush1.bf16.msra.mxu0 %v7172
        %7803 = vmatprep.subr.bf16.mxu0 %v7185
        %7804 = vmatpush1.bf16.msra.mxu0 %v7184
        %7805 = vmatprep.subr.bf16.mxu0 %v7197
        %7806 = vmatpush1.bf16.msra.mxu0 %v7196
        %7807 = vmatprep.subr.bf16.mxu0 0
        %7808 = vmatpush1.bf16.msra.mxu0 0
        %7809 = vmatprep.subr.bf16.mxu0 0
        %7810 = vmatpush1.bf16.msra.mxu0 0
        %7811 = vmatprep.subr.bf16.mxu0 0
        %7812 = vmatpush1.bf16.msra.mxu0 0
        %7813 = vmatprep.subr.bf16.mxu0 0
        %7814 = vmatpush1.bf16.msra.mxu0 0
        %7815 = vmatprep.subr.bf16.mxu0 0
        %7816 = vmatpush1.bf16.msra.mxu0 0
        %7817 = vmatprep.subr.bf16.mxu0 0
        %7818 = vmatpush1.bf16.msra.mxu0 0
        %7819 = vmatprep.subr.bf16.mxu0 0
        %7820 = vmatpush1.bf16.msra.mxu0 0
        %7821 = vmatprep.subr.bf16.mxu0 0
        %7822 = vmatpush1.bf16.msra.mxu0 0
        %7823 = vmatprep.mubr.bf16.mxu0 0
        %7824 = vmatmul.mubr.bf16.gmra.mrb[0].mxu0 %v5987
        %v7825 = vpop.f32.mrb[0].mxu0
        %v7826 = vadd.f32 %v7783, %v7825
        %v7827 = vpop.f32.mrb[0].mxu0
        %v7828 = vadd.f32 %v7785, %v7827
        %v7829 = vpop.f32.mrb[0].mxu0
        %v7830 = vadd.f32 %v7787, %v7829
        %v7831 = vpop.f32.mrb[0].mxu0
        %v7832 = vadd.f32 %v7789, %v7831
        %7833 = vdwg.mxu0
        %7834 = vmatprep.subr.bf16.mxu0 %v6923
        %7835 = vmatpush1.bf16.msra.mxu0 %v6922
        %7836 = vmatprep.subr.bf16.mxu0 %v6935
        %7837 = vmatpush1.bf16.msra.mxu0 %v6934
        %7838 = vmatprep.subr.bf16.mxu0 %v6947
        %7839 = vmatpush1.bf16.msra.mxu0 %v6946
        %7840 = vmatprep.subr.bf16.mxu0 %v6959
        %7841 = vmatpush1.bf16.msra.mxu0 %v6958
        %7842 = vmatprep.subr.bf16.mxu0 %v6971
        %7843 = vmatpush1.bf16.msra.mxu0 %v6970
        %7844 = vmatprep.subr.bf16.mxu0 %v6983
        %7845 = vmatpush1.bf16.msra.mxu0 %v6982
        %7846 = vmatprep.subr.bf16.mxu0 %v6995
        %7847 = vmatpush1.bf16.msra.mxu0 %v6994
        %7848 = vmatprep.subr.bf16.mxu0 %v7007
        %7849 = vmatpush1.bf16.msra.mxu0 %v7006
        %7850 = vmatprep.subr.bf16.mxu0 %v7019
        %7851 = vmatpush1.bf16.msra.mxu0 %v7018
        %7852 = vmatprep.subr.bf16.mxu0 %v7031
        %7853 = vmatpush1.bf16.msra.mxu0 %v7030
        %7854 = vmatprep.subr.bf16.mxu0 %v7043
        %7855 = vmatpush1.bf16.msra.mxu0 %v7042
        %7856 = vmatprep.subr.bf16.mxu0 %v7055
        %7857 = vmatpush1.bf16.msra.mxu0 %v7054
        %7858 = vmatprep.subr.bf16.mxu0 %v7067
        %7859 = vmatpush1.bf16.msra.mxu0 %v7066
        %7860 = vmatprep.subr.bf16.mxu0 %v7079
        %7861 = vmatpush1.bf16.msra.mxu0 %v7078
        %7862 = vmatprep.subr.bf16.mxu0 %v7091
        %7863 = vmatpush1.bf16.msra.mxu0 %v7090
        %7864 = vmatprep.subr.bf16.mxu0 %v7103
        %7865 = vmatpush1.bf16.msra.mxu0 %v7102
        %7866 = vmatprep.mubr.bf16.mxu0 %v5986
        %7867 = vmatmul.mubr.bf16.gmra.mrb[0].mxu0 %v5985
        %v7868 = vpop.f32.mrb[0].mxu0
        %v7869 = vadd.f32 %v6025, %v7868
        %v7870 = vpop.f32.mrb[0].mxu0
        %v7871 = vadd.f32 %v6029, %v7870
        %v7872 = vpop.f32.mrb[0].mxu0
        %v7873 = vadd.f32 %v6025, %v7872
        %v7874 = vpop.f32.mrb[0].mxu0
        %v7875 = vadd.f32 %v6029, %v7874
        %7876 = vdwg.mxu0
        %7877 = vmatprep.subr.bf16.mxu0 %v7115
        %7878 = vmatpush1.bf16.msra.mxu0 %v7114
        %7879 = vmatprep.subr.bf16.mxu0 %v7127
        %7880 = vmatpush1.bf16.msra.mxu0 %v7126
        %7881 = vmatprep.subr.bf16.mxu0 %v7139
        %7882 = vmatpush1.bf16.msra.mxu0 %v7138
        %7883 = vmatprep.subr.bf16.mxu0 %v7151
        %7884 = vmatpush1.bf16.msra.mxu0 %v7150
        %7885 = vmatprep.subr.bf16.mxu0 %v7163
        %7886 = vmatpush1.bf16.msra.mxu0 %v7162
        %7887 = vmatprep.subr.bf16.mxu0 %v7175
        %7888 = vmatpush1.bf16.msra.mxu0 %v7174
        %7889 = vmatprep.subr.bf16.mxu0 %v7187
        %7890 = vmatpush1.bf16.msra.mxu0 %v7186
        %7891 = vmatprep.subr.bf16.mxu0 %v7199
        %7892 = vmatpush1.bf16.msra.mxu0 %v7198
        %7893 = vmatprep.subr.bf16.mxu0 0
        %7894 = vmatpush1.bf16.msra.mxu0 0
        %7895 = vmatprep.subr.bf16.mxu0 0
        %7896 = vmatpush1.bf16.msra.mxu0 0
        %7897 = vmatprep.subr.bf16.mxu0 0
        %7898 = vmatpush1.bf16.msra.mxu0 0
        %7899 = vmatprep.subr.bf16.mxu0 0
        %7900 = vmatpush1.bf16.msra.mxu0 0
        %7901 = vmatprep.subr.bf16.mxu0 0
        %7902 = vmatpush1.bf16.msra.mxu0 0
        %7903 = vmatprep.subr.bf16.mxu0 0
        %7904 = vmatpush1.bf16.msra.mxu0 0
        %7905 = vmatprep.subr.bf16.mxu0 0
        %7906 = vmatpush1.bf16.msra.mxu0 0
        %7907 = vmatprep.subr.bf16.mxu0 0
        %7908 = vmatpush1.bf16.msra.mxu0 0
        %7909 = vmatprep.mubr.bf16.mxu0 0
        %7910 = vmatmul.mubr.bf16.gmra.mrb[0].mxu0 %v5987
        %v7911 = vpop.f32.mrb[0].mxu0
        %v7912 = vadd.f32 %v7869, %v7911
        %v7913 = vpop.f32.mrb[0].mxu0
        %v7914 = vadd.f32 %v7871, %v7913
        %v7915 = vpop.f32.mrb[0].mxu0
        %v7916 = vadd.f32 %v7873, %v7915
        %v7917 = vpop.f32.mrb[0].mxu0
        %v7918 = vadd.f32 %v7875, %v7917
        %7919 = vdwg.mxu0
        %7920 = vmatprep.subr.bf16.mxu0 %v6925
        %7921 = vmatpush1.bf16.msra.mxu0 %v6924
        %7922 = vmatprep.subr.bf16.mxu0 %v6937
        %7923 = vmatpush1.bf16.msra.mxu0 %v6936
        %7924 = vmatprep.subr.bf16.mxu0 %v6949
        %7925 = vmatpush1.bf16.msra.mxu0 %v6948
        %7926 = vmatprep.subr.bf16.mxu0 %v6961
        %7927 = vmatpush1.bf16.msra.mxu0 %v6960
        %7928 = vmatprep.subr.bf16.mxu0 %v6973
        %7929 = vmatpush1.bf16.msra.mxu0 %v6972
        %7930 = vmatprep.subr.bf16.mxu0 %v6985
        %7931 = vmatpush1.bf16.msra.mxu0 %v6984
        %7932 = vmatprep.subr.bf16.mxu0 %v6997
        %7933 = vmatpush1.bf16.msra.mxu0 %v6996
        %7934 = vmatprep.subr.bf16.mxu0 %v7009
        %7935 = vmatpush1.bf16.msra.mxu0 %v7008
        %7936 = vmatprep.subr.bf16.mxu0 %v7021
        %7937 = vmatpush1.bf16.msra.mxu0 %v7020
        %7938 = vmatprep.subr.bf16.mxu0 %v7033
        %7939 = vmatpush1.bf16.msra.mxu0 %v7032
        %7940 = vmatprep.subr.bf16.mxu0 %v7045
        %7941 = vmatpush1.bf16.msra.mxu0 %v7044
        %7942 = vmatprep.subr.bf16.mxu0 %v7057
        %7943 = vmatpush1.bf16.msra.mxu0 %v7056
        %7944 = vmatprep.subr.bf16.mxu0 %v7069
        %7945 = vmatpush1.bf16.msra.mxu0 %v7068
        %7946 = vmatprep.subr.bf16.mxu0 %v7081
        %7947 = vmatpush1.bf16.msra.mxu0 %v7080
        %7948 = vmatprep.subr.bf16.mxu0 %v7093
        %7949 = vmatpush1.bf16.msra.mxu0 %v7092
        %7950 = vmatprep.subr.bf16.mxu0 %v7105
        %7951 = vmatpush1.bf16.msra.mxu0 %v7104
        %7952 = vmatprep.mubr.bf16.mxu0 %v5986
        %7953 = vmatmul.mubr.bf16.gmra.mrb[0].mxu0 %v5985
        %v7954 = vpop.f32.mrb[0].mxu0
        %v7955 = vadd.f32 %v6033, %v7954
        %v7956 = vpop.f32.mrb[0].mxu0
        %v7957 = vadd.f32 %v6037, %v7956
        %v7958 = vpop.f32.mrb[0].mxu0
        %v7959 = vadd.f32 %v6033, %v7958
        %v7960 = vpop.f32.mrb[0].mxu0
        %v7961 = vadd.f32 %v6037, %v7960
        %7962 = vdwg.mxu0
        %7963 = vmatprep.subr.bf16.mxu0 %v7117
        %7964 = vmatpush1.bf16.msra.mxu0 %v7116
        %7965 = vmatprep.subr.bf16.mxu0 %v7129
        %7966 = vmatpush1.bf16.msra.mxu0 %v7128
        %7967 = vmatprep.subr.bf16.mxu0 %v7141
        %7968 = vmatpush1.bf16.msra.mxu0 %v7140
        %7969 = vmatprep.subr.bf16.mxu0 %v7153
        %7970 = vmatpush1.bf16.msra.mxu0 %v7152
        %7971 = vmatprep.subr.bf16.mxu0 %v7165
        %7972 = vmatpush1.bf16.msra.mxu0 %v7164
        %7973 = vmatprep.subr.bf16.mxu0 %v7177
        %7974 = vmatpush1.bf16.msra.mxu0 %v7176
        %7975 = vmatprep.subr.bf16.mxu0 %v7189
        %7976 = vmatpush1.bf16.msra.mxu0 %v7188
        %7977 = vmatprep.subr.bf16.mxu0 %v7201
        %7978 = vmatpush1.bf16.msra.mxu0 %v7200
        %7979 = vmatprep.subr.bf16.mxu0 0
        %7980 = vmatpush1.bf16.msra.mxu0 0
        %7981 = vmatprep.subr.bf16.mxu0 0
        %7982 = vmatpush1.bf16.msra.mxu0 0
        %7983 = vmatprep.subr.bf16.mxu0 0
        %7984 = vmatpush1.bf16.msra.mxu0 0
        %7985 = vmatprep.subr.bf16.mxu0 0
        %7986 = vmatpush1.bf16.msra.mxu0 0
        %7987 = vmatprep.subr.bf16.mxu0 0
        %7988 = vmatpush1.bf16.msra.mxu0 0
        %7989 = vmatprep.subr.bf16.mxu0 0
        %7990 = vmatpush1.bf16.msra.mxu0 0
        %7991 = vmatprep.subr.bf16.mxu0 0
        %7992 = vmatpush1.bf16.msra.mxu0 0
        %7993 = vmatprep.subr.bf16.mxu0 0
        %7994 = vmatpush1.bf16.msra.mxu0 0
        %7995 = vmatprep.mubr.bf16.mxu0 0
        %7996 = vmatmul.mubr.bf16.gmra.mrb[0].mxu0 %v5987
        %v7997 = vpop.f32.mrb[0].mxu0
        %v7998 = vadd.f32 %v7955, %v7997
        %v7999 = vpop.f32.mrb[0].mxu0
        %v8000 = vadd.f32 %v7957, %v7999
        %v8001 = vpop.f32.mrb[0].mxu0
        %v8002 = vadd.f32 %v7959, %v8001
        %v8003 = vpop.f32.mrb[0].mxu0
        %v8004 = vadd.f32 %v7961, %v8003
        %8005 = vdwg.mxu0
        %v8006 = vmul.f32 %v7568, 0.5
        %v8007 = vmul.f32 %v7570, 0.5
        %v8008 = vmul.f32 %v7654, 0.5
        %v8009 = vmul.f32 %v7656, 0.5
        %v8010 = vmul.f32 %v7740, 0.5
        %v8011 = vmul.f32 %v7742, 0.5
        %v8012 = vmul.f32 %v7826, 0.5
        %v8013 = vmul.f32 %v7828, 0.5
        %v8014 = vmul.f32 %v7912, 0.5
        %v8015 = vmul.f32 %v7914, 0.5
        %v8016 = vmul.f32 %v7998, 0.5
        %v8017 = vmul.f32 %v8000, 0.5
        %v8018 = vmul.f32 %v7572, 0.5
        %v8019 = vmul.f32 %v7574, 0.5
        %v8020 = vmul.f32 %v7658, 0.5
        %v8021 = vmul.f32 %v7660, 0.5
        %v8022 = vmul.f32 %v7744, 0.5
        %v8023 = vmul.f32 %v7746, 0.5
        %v8024 = vmul.f32 %v7830, 0.5
        %v8025 = vmul.f32 %v7832, 0.5
        %v8026 = vmul.f32 %v7916, 0.5
        %v8027 = vmul.f32 %v7918, 0.5
        %v8028 = vmul.f32 %v8002, 0.5
        %v8029 = vmul.f32 %v8004, 0.5
        %v8030 = vmul.f32 %v7568, 0.70710677
        %v8031 = vmul.f32 %v7570, 0.70710677
        %v8032 = vmul.f32 %v7654, 0.70710677
        %v8033 = vmul.f32 %v7656, 0.70710677
        %v8034 = vmul.f32 %v7740, 0.70710677
        %v8035 = vmul.f32 %v7742, 0.70710677
        %v8036 = vmul.f32 %v7826, 0.70710677
        %v8037 = vmul.f32 %v7828, 0.70710677
        %v8038 = vmul.f32 %v7912, 0.70710677
        %v8039 = vmul.f32 %v7914, 0.70710677
        %v8040 = vmul.f32 %v7998, 0.70710677
        %v8041 = vmul.f32 %v8000, 0.70710677
        %v8042 = vmul.f32 %v7572, 0.70710677
        %v8043 = vmul.f32 %v7574, 0.70710677
        %v8044 = vmul.f32 %v7658, 0.70710677
        %v8045 = vmul.f32 %v7660, 0.70710677
        %v8046 = vmul.f32 %v7744, 0.70710677
        %v8047 = vmul.f32 %v7746, 0.70710677
        %v8048 = vmul.f32 %v7830, 0.70710677
        %v8049 = vmul.f32 %v7832, 0.70710677
        %v8050 = vmul.f32 %v7916, 0.70710677
        %v8051 = vmul.f32 %v7918, 0.70710677
        %v8052 = vmul.f32 %v8002, 0.70710677
        %v8053 = vmul.f32 %v8004, 0.70710677
        %v8054 = vand.u32 2147483647, %v8030
        %v8055 = vand.u32 2147483647, %v8031
        %v8056 = vand.u32 2147483647, %v8032
        %v8057 = vand.u32 2147483647, %v8033
        %v8058 = vand.u32 2147483647, %v8034
        %v8059 = vand.u32 2147483647, %v8035
        %v8060 = vand.u32 2147483647, %v8036
        %v8061 = vand.u32 2147483647, %v8037
        %v8062 = vand.u32 2147483647, %v8038
        %v8063 = vand.u32 2147483647, %v8039
        %v8064 = vand.u32 2147483647, %v8040
        %v8065 = vand.u32 2147483647, %v8041
        %v8066 = vand.u32 2147483647, %v8042
        %v8067 = vand.u32 2147483647, %v8043
        %v8068 = vand.u32 2147483647, %v8044
        %v8069 = vand.u32 2147483647, %v8045
        %v8070 = vand.u32 2147483647, %v8046
        %v8071 = vand.u32 2147483647, %v8047
        %v8072 = vand.u32 2147483647, %v8048
        %v8073 = vand.u32 2147483647, %v8049
        %v8074 = vand.u32 2147483647, %v8050
        %v8075 = vand.u32 2147483647, %v8051
        %v8076 = vand.u32 2147483647, %v8052
        %v8077 = vand.u32 2147483647, %v8053
        %v8078 = vmul.f32 %v8054, 0.3275911
        %v8079 = vmul.f32 %v8055, 0.3275911
        %v8080 = vmul.f32 %v8056, 0.3275911
        %v8081 = vmul.f32 %v8057, 0.3275911
        %v8082 = vmul.f32 %v8058, 0.3275911
        %v8083 = vmul.f32 %v8059, 0.3275911
        %v8084 = vmul.f32 %v8060, 0.3275911
        %v8085 = vmul.f32 %v8061, 0.3275911
        %v8086 = vmul.f32 %v8062, 0.3275911
        %v8087 = vmul.f32 %v8063, 0.3275911
        %v8088 = vmul.f32 %v8064, 0.3275911
        %v8089 = vmul.f32 %v8065, 0.3275911
        %v8090 = vmul.f32 %v8066, 0.3275911
        %v8091 = vmul.f32 %v8067, 0.3275911
        %v8092 = vmul.f32 %v8068, 0.3275911
        %v8093 = vmul.f32 %v8069, 0.3275911
        %v8094 = vmul.f32 %v8070, 0.3275911
        %v8095 = vmul.f32 %v8071, 0.3275911
        %v8096 = vmul.f32 %v8072, 0.3275911
        %v8097 = vmul.f32 %v8073, 0.3275911
        %v8098 = vmul.f32 %v8074, 0.3275911
        %v8099 = vmul.f32 %v8075, 0.3275911
        %v8100 = vmul.f32 %v8076, 0.3275911
        %v8101 = vmul.f32 %v8077, 0.3275911
        %v8102 = vadd.f32 %v8078, 1.0
        %v8103 = vadd.f32 %v8079, 1.0
        %v8104 = vadd.f32 %v8080, 1.0
        %v8105 = vadd.f32 %v8081, 1.0
        %v8106 = vadd.f32 %v8082, 1.0
        %v8107 = vadd.f32 %v8083, 1.0
        %v8108 = vadd.f32 %v8084, 1.0
        %v8109 = vadd.f32 %v8085, 1.0
        %v8110 = vadd.f32 %v8086, 1.0
        %v8111 = vadd.f32 %v8087, 1.0
        %v8112 = vadd.f32 %v8088, 1.0
        %v8113 = vadd.f32 %v8089, 1.0
        %v8114 = vadd.f32 %v8090, 1.0
        %v8115 = vadd.f32 %v8091, 1.0
        %v8116 = vadd.f32 %v8092, 1.0
        %v8117 = vadd.f32 %v8093, 1.0
        %v8118 = vadd.f32 %v8094, 1.0
        %v8119 = vadd.f32 %v8095, 1.0
        %v8120 = vadd.f32 %v8096, 1.0
        %v8121 = vadd.f32 %v8097, 1.0
        %v8122 = vadd.f32 %v8098, 1.0
        %v8123 = vadd.f32 %v8099, 1.0
        %v8124 = vadd.f32 %v8100, 1.0
        %v8125 = vadd.f32 %v8101, 1.0
        %v8126 = vrcp.pop %v8102
        %v8127 = vmul.f32 1.0, %v8126
        %v8128 = vrcp.pop %v8103
        %v8129 = vmul.f32 1.0, %v8128
        %v8130 = vrcp.pop %v8104
        %v8131 = vmul.f32 1.0, %v8130
        %v8132 = vrcp.pop %v8105
        %v8133 = vmul.f32 1.0, %v8132
        %v8134 = vrcp.pop %v8106
        %v8135 = vmul.f32 1.0, %v8134
        %v8136 = vrcp.pop %v8107
        %v8137 = vmul.f32 1.0, %v8136
        %v8138 = vrcp.pop %v8108
        %v8139 = vmul.f32 1.0, %v8138
        %v8140 = vrcp.pop %v8109
        %v8141 = vmul.f32 1.0, %v8140
        %v8142 = vrcp.pop %v8110
        %v8143 = vmul.f32 1.0, %v8142
        %v8144 = vrcp.pop %v8111
        %v8145 = vmul.f32 1.0, %v8144
        %v8146 = vrcp.pop %v8112
        %v8147 = vmul.f32 1.0, %v8146
        %v8148 = vrcp.pop %v8113
        %v8149 = vmul.f32 1.0, %v8148
        %v8150 = vrcp.pop %v8114
        %v8151 = vmul.f32 1.0, %v8150
        %v8152 = vrcp.pop %v8115
        %v8153 = vmul.f32 1.0, %v8152
        %v8154 = vrcp.pop %v8116
        %v8155 = vmul.f32 1.0, %v8154
        %v8156 = vrcp.pop %v8117
        %v8157 = vmul.f32 1.0, %v8156
        %v8158 = vrcp.pop %v8118
        %v8159 = vmul.f32 1.0, %v8158
        %v8160 = vrcp.pop %v8119
        %v8161 = vmul.f32 1.0, %v8160
        %v8162 = vrcp.pop %v8120
        %v8163 = vmul.f32 1.0, %v8162
        %v8164 = vrcp.pop %v8121
        %v8165 = vmul.f32 1.0, %v8164
        %v8166 = vrcp.pop %v8122
        %v8167 = vmul.f32 1.0, %v8166
        %v8168 = vrcp.pop %v8123
        %v8169 = vmul.f32 1.0, %v8168
        %v8170 = vrcp.pop %v8124
        %v8171 = vmul.f32 1.0, %v8170
        %v8172 = vrcp.pop %v8125
        %v8173 = vmul.f32 1.0, %v8172
        %v8174 = vmul.f32 %v8127, 1.0614054
        %v8175 = vmul.f32 %v8129, 1.0614054
        %v8176 = vmul.f32 %v8131, 1.0614054
        %v8177 = vmul.f32 %v8133, 1.0614054
        %v8178 = vmul.f32 %v8135, 1.0614054
        %v8179 = vmul.f32 %v8137, 1.0614054
        %v8180 = vmul.f32 %v8139, 1.0614054
        %v8181 = vmul.f32 %v8141, 1.0614054
        %v8182 = vmul.f32 %v8143, 1.0614054
        %v8183 = vmul.f32 %v8145, 1.0614054
        %v8184 = vmul.f32 %v8147, 1.0614054
        %v8185 = vmul.f32 %v8149, 1.0614054
        %v8186 = vmul.f32 %v8151, 1.0614054
        %v8187 = vmul.f32 %v8153, 1.0614054
        %v8188 = vmul.f32 %v8155, 1.0614054
        %v8189 = vmul.f32 %v8157, 1.0614054
        %v8190 = vmul.f32 %v8159, 1.0614054
        %v8191 = vmul.f32 %v8161, 1.0614054
        %v8192 = vmul.f32 %v8163, 1.0614054
        %v8193 = vmul.f32 %v8165, 1.0614054
        %v8194 = vmul.f32 %v8167, 1.0614054
        %v8195 = vmul.f32 %v8169, 1.0614054
        %v8196 = vmul.f32 %v8171, 1.0614054
        %v8197 = vmul.f32 %v8173, 1.0614054
        %v8198 = vadd.f32 %v8174, -1.4531521
        %v8199 = vadd.f32 %v8175, -1.4531521
        %v8200 = vadd.f32 %v8176, -1.4531521
        %v8201 = vadd.f32 %v8177, -1.4531521
        %v8202 = vadd.f32 %v8178, -1.4531521
        %v8203 = vadd.f32 %v8179, -1.4531521
        %v8204 = vadd.f32 %v8180, -1.4531521
        %v8205 = vadd.f32 %v8181, -1.4531521
        %v8206 = vadd.f32 %v8182, -1.4531521
        %v8207 = vadd.f32 %v8183, -1.4531521
        %v8208 = vadd.f32 %v8184, -1.4531521
        %v8209 = vadd.f32 %v8185, -1.4531521
        %v8210 = vadd.f32 %v8186, -1.4531521
        %v8211 = vadd.f32 %v8187, -1.4531521
        %v8212 = vadd.f32 %v8188, -1.4531521
        %v8213 = vadd.f32 %v8189, -1.4531521
        %v8214 = vadd.f32 %v8190, -1.4531521
        %v8215 = vadd.f32 %v8191, -1.4531521
        %v8216 = vadd.f32 %v8192, -1.4531521
        %v8217 = vadd.f32 %v8193, -1.4531521
        %v8218 = vadd.f32 %v8194, -1.4531521
        %v8219 = vadd.f32 %v8195, -1.4531521
        %v8220 = vadd.f32 %v8196, -1.4531521
        %v8221 = vadd.f32 %v8197, -1.4531521
        %v8222 = vmul.f32 %v8198, %v8127
        %v8223 = vmul.f32 %v8199, %v8129
        %v8224 = vmul.f32 %v8200, %v8131
        %v8225 = vmul.f32 %v8201, %v8133
        %v8226 = vmul.f32 %v8202, %v8135
        %v8227 = vmul.f32 %v8203, %v8137
        %v8228 = vmul.f32 %v8204, %v8139
        %v8229 = vmul.f32 %v8205, %v8141
        %v8230 = vmul.f32 %v8206, %v8143
        %v8231 = vmul.f32 %v8207, %v8145
        %v8232 = vmul.f32 %v8208, %v8147
        %v8233 = vmul.f32 %v8209, %v8149
        %v8234 = vmul.f32 %v8210, %v8151
        %v8235 = vmul.f32 %v8211, %v8153
        %v8236 = vmul.f32 %v8212, %v8155
        %v8237 = vmul.f32 %v8213, %v8157
        %v8238 = vmul.f32 %v8214, %v8159
        %v8239 = vmul.f32 %v8215, %v8161
        %v8240 = vmul.f32 %v8216, %v8163
        %v8241 = vmul.f32 %v8217, %v8165
        %v8242 = vmul.f32 %v8218, %v8167
        %v8243 = vmul.f32 %v8219, %v8169
        %v8244 = vmul.f32 %v8220, %v8171
        %v8245 = vmul.f32 %v8221, %v8173
        %v8246 = vadd.f32 %v8222, 1.4214138
        %v8247 = vadd.f32 %v8223, 1.4214138
        %v8248 = vadd.f32 %v8224, 1.4214138
        %v8249 = vadd.f32 %v8225, 1.4214138
        %v8250 = vadd.f32 %v8226, 1.4214138
        %v8251 = vadd.f32 %v8227, 1.4214138
        %v8252 = vadd.f32 %v8228, 1.4214138
        %v8253 = vadd.f32 %v8229, 1.4214138
        %v8254 = vadd.f32 %v8230, 1.4214138
        %v8255 = vadd.f32 %v8231, 1.4214138
        %v8256 = vadd.f32 %v8232, 1.4214138
        %v8257 = vadd.f32 %v8233, 1.4214138
        %v8258 = vadd.f32 %v8234, 1.4214138
        %v8259 = vadd.f32 %v8235, 1.4214138
        %v8260 = vadd.f32 %v8236, 1.4214138
        %v8261 = vadd.f32 %v8237, 1.4214138
        %v8262 = vadd.f32 %v8238, 1.4214138
        %v8263 = vadd.f32 %v8239, 1.4214138
        %v8264 = vadd.f32 %v8240, 1.4214138
        %v8265 = vadd.f32 %v8241, 1.4214138
        %v8266 = vadd.f32 %v8242, 1.4214138
        %v8267 = vadd.f32 %v8243, 1.4214138
        %v8268 = vadd.f32 %v8244, 1.4214138
        %v8269 = vadd.f32 %v8245, 1.4214138
        %v8270 = vmul.f32 %v8246, %v8127
        %v8271 = vmul.f32 %v8247, %v8129
        %v8272 = vmul.f32 %v8248, %v8131
        %v8273 = vmul.f32 %v8249, %v8133
        %v8274 = vmul.f32 %v8250, %v8135
        %v8275 = vmul.f32 %v8251, %v8137
        %v8276 = vmul.f32 %v8252, %v8139
        %v8277 = vmul.f32 %v8253, %v8141
        %v8278 = vmul.f32 %v8254, %v8143
        %v8279 = vmul.f32 %v8255, %v8145
        %v8280 = vmul.f32 %v8256, %v8147
        %v8281 = vmul.f32 %v8257, %v8149
        %v8282 = vmul.f32 %v8258, %v8151
        %v8283 = vmul.f32 %v8259, %v8153
        %v8284 = vmul.f32 %v8260, %v8155
        %v8285 = vmul.f32 %v8261, %v8157
        %v8286 = vmul.f32 %v8262, %v8159
        %v8287 = vmul.f32 %v8263, %v8161
        %v8288 = vmul.f32 %v8264, %v8163
        %v8289 = vmul.f32 %v8265, %v8165
        %v8290 = vmul.f32 %v8266, %v8167
        %v8291 = vmul.f32 %v8267, %v8169
        %v8292 = vmul.f32 %v8268, %v8171
        %v8293 = vmul.f32 %v8269, %v8173
        %v8294 = vadd.f32 %v8270, -0.28449672
        %v8295 = vadd.f32 %v8271, -0.28449672
        %v8296 = vadd.f32 %v8272, -0.28449672
        %v8297 = vadd.f32 %v8273, -0.28449672
        %v8298 = vadd.f32 %v8274, -0.28449672
        %v8299 = vadd.f32 %v8275, -0.28449672
        %v8300 = vadd.f32 %v8276, -0.28449672
        %v8301 = vadd.f32 %v8277, -0.28449672
        %v8302 = vadd.f32 %v8278, -0.28449672
        %v8303 = vadd.f32 %v8279, -0.28449672
        %v8304 = vadd.f32 %v8280, -0.28449672
        %v8305 = vadd.f32 %v8281, -0.28449672
        %v8306 = vadd.f32 %v8282, -0.28449672
        %v8307 = vadd.f32 %v8283, -0.28449672
        %v8308 = vadd.f32 %v8284, -0.28449672
        %v8309 = vadd.f32 %v8285, -0.28449672
        %v8310 = vadd.f32 %v8286, -0.28449672
        %v8311 = vadd.f32 %v8287, -0.28449672
        %v8312 = vadd.f32 %v8288, -0.28449672
        %v8313 = vadd.f32 %v8289, -0.28449672
        %v8314 = vadd.f32 %v8290, -0.28449672
        %v8315 = vadd.f32 %v8291, -0.28449672
        %v8316 = vadd.f32 %v8292, -0.28449672
        %v8317 = vadd.f32 %v8293, -0.28449672
        %v8318 = vmul.f32 %v8294, %v8127
        %v8319 = vmul.f32 %v8295, %v8129
        %v8320 = vmul.f32 %v8296, %v8131
        %v8321 = vmul.f32 %v8297, %v8133
        %v8322 = vmul.f32 %v8298, %v8135
        %v8323 = vmul.f32 %v8299, %v8137
        %v8324 = vmul.f32 %v8300, %v8139
        %v8325 = vmul.f32 %v8301, %v8141
        %v8326 = vmul.f32 %v8302, %v8143
        %v8327 = vmul.f32 %v8303, %v8145
        %v8328 = vmul.f32 %v8304, %v8147
        %v8329 = vmul.f32 %v8305, %v8149
        %v8330 = vmul.f32 %v8306, %v8151
        %v8331 = vmul.f32 %v8307, %v8153
        %v8332 = vmul.f32 %v8308, %v8155
        %v8333 = vmul.f32 %v8309, %v8157
        %v8334 = vmul.f32 %v8310, %v8159
        %v8335 = vmul.f32 %v8311, %v8161
        %v8336 = vmul.f32 %v8312, %v8163
        %v8337 = vmul.f32 %v8313, %v8165
        %v8338 = vmul.f32 %v8314, %v8167
        %v8339 = vmul.f32 %v8315, %v8169
        %v8340 = vmul.f32 %v8316, %v8171
        %v8341 = vmul.f32 %v8317, %v8173
        %v8342 = vadd.f32 %v8318, 0.2548296
        %v8343 = vadd.f32 %v8319, 0.2548296
        %v8344 = vadd.f32 %v8320, 0.2548296
        %v8345 = vadd.f32 %v8321, 0.2548296
        %v8346 = vadd.f32 %v8322, 0.2548296
        %v8347 = vadd.f32 %v8323, 0.2548296
        %v8348 = vadd.f32 %v8324, 0.2548296
        %v8349 = vadd.f32 %v8325, 0.2548296
        %v8350 = vadd.f32 %v8326, 0.2548296
        %v8351 = vadd.f32 %v8327, 0.2548296
        %v8352 = vadd.f32 %v8328, 0.2548296
        %v8353 = vadd.f32 %v8329, 0.2548296
        %v8354 = vadd.f32 %v8330, 0.2548296
        %v8355 = vadd.f32 %v8331, 0.2548296
        %v8356 = vadd.f32 %v8332, 0.2548296
        %v8357 = vadd.f32 %v8333, 0.2548296
        %v8358 = vadd.f32 %v8334, 0.2548296
        %v8359 = vadd.f32 %v8335, 0.2548296
        %v8360 = vadd.f32 %v8336, 0.2548296
        %v8361 = vadd.f32 %v8337, 0.2548296
        %v8362 = vadd.f32 %v8338, 0.2548296
        %v8363 = vadd.f32 %v8339, 0.2548296
        %v8364 = vadd.f32 %v8340, 0.2548296
        %v8365 = vadd.f32 %v8341, 0.2548296
        %v8366 = vmul.f32 %v8342, %v8127
        %v8367 = vmul.f32 %v8343, %v8129
        %v8368 = vmul.f32 %v8344, %v8131
        %v8369 = vmul.f32 %v8345, %v8133
        %v8370 = vmul.f32 %v8346, %v8135
        %v8371 = vmul.f32 %v8347, %v8137
        %v8372 = vmul.f32 %v8348, %v8139
        %v8373 = vmul.f32 %v8349, %v8141
        %v8374 = vmul.f32 %v8350, %v8143
        %v8375 = vmul.f32 %v8351, %v8145
        %v8376 = vmul.f32 %v8352, %v8147
        %v8377 = vmul.f32 %v8353, %v8149
        %v8378 = vmul.f32 %v8354, %v8151
        %v8379 = vmul.f32 %v8355, %v8153
        %v8380 = vmul.f32 %v8356, %v8155
        %v8381 = vmul.f32 %v8357, %v8157
        %v8382 = vmul.f32 %v8358, %v8159
        %v8383 = vmul.f32 %v8359, %v8161
        %v8384 = vmul.f32 %v8360, %v8163
        %v8385 = vmul.f32 %v8361, %v8165
        %v8386 = vmul.f32 %v8362, %v8167
        %v8387 = vmul.f32 %v8363, %v8169
        %v8388 = vmul.f32 %v8364, %v8171
        %v8389 = vmul.f32 %v8365, %v8173
        %v8390 = vsub.f32 0.0, %v8054
        %v8391 = vsub.f32 0.0, %v8055
        %v8392 = vsub.f32 0.0, %v8056
        %v8393 = vsub.f32 0.0, %v8057
        %v8394 = vsub.f32 0.0, %v8058
        %v8395 = vsub.f32 0.0, %v8059
        %v8396 = vsub.f32 0.0, %v8060
        %v8397 = vsub.f32 0.0, %v8061
        %v8398 = vsub.f32 0.0, %v8062
        %v8399 = vsub.f32 0.0, %v8063
        %v8400 = vsub.f32 0.0, %v8064
        %v8401 = vsub.f32 0.0, %v8065
        %v8402 = vsub.f32 0.0, %v8066
        %v8403 = vsub.f32 0.0, %v8067
        %v8404 = vsub.f32 0.0, %v8068
        %v8405 = vsub.f32 0.0, %v8069
        %v8406 = vsub.f32 0.0, %v8070
        %v8407 = vsub.f32 0.0, %v8071
        %v8408 = vsub.f32 0.0, %v8072
        %v8409 = vsub.f32 0.0, %v8073
        %v8410 = vsub.f32 0.0, %v8074
        %v8411 = vsub.f32 0.0, %v8075
        %v8412 = vsub.f32 0.0, %v8076
        %v8413 = vsub.f32 0.0, %v8077
        %v8414 = vmul.f32 %v8390, %v8054
        %v8415 = vmul.f32 %v8391, %v8055
        %v8416 = vmul.f32 %v8392, %v8056
        %v8417 = vmul.f32 %v8393, %v8057
        %v8418 = vmul.f32 %v8394, %v8058
        %v8419 = vmul.f32 %v8395, %v8059
        %v8420 = vmul.f32 %v8396, %v8060
        %v8421 = vmul.f32 %v8397, %v8061
        %v8422 = vmul.f32 %v8398, %v8062
        %v8423 = vmul.f32 %v8399, %v8063
        %v8424 = vmul.f32 %v8400, %v8064
        %v8425 = vmul.f32 %v8401, %v8065
        %v8426 = vmul.f32 %v8402, %v8066
        %v8427 = vmul.f32 %v8403, %v8067
        %v8428 = vmul.f32 %v8404, %v8068
        %v8429 = vmul.f32 %v8405, %v8069
        %v8430 = vmul.f32 %v8406, %v8070
        %v8431 = vmul.f32 %v8407, %v8071
        %v8432 = vmul.f32 %v8408, %v8072
        %v8433 = vmul.f32 %v8409, %v8073
        %v8434 = vmul.f32 %v8410, %v8074
        %v8435 = vmul.f32 %v8411, %v8075
        %v8436 = vmul.f32 %v8412, %v8076
        %v8437 = vmul.f32 %v8413, %v8077
        %v8438 = vmul.f32 %v8414, 1.442695
        %v8439 = vpow.pop %v8438
        %v8440 = vmul.f32 %v8415, 1.442695
        %v8441 = vpow.pop %v8440
        %v8442 = vmul.f32 %v8416, 1.442695
        %v8443 = vpow.pop %v8442
        %v8444 = vmul.f32 %v8417, 1.442695
        %v8445 = vpow.pop %v8444
        %v8446 = vmul.f32 %v8418, 1.442695
        %v8447 = vpow.pop %v8446
        %v8448 = vmul.f32 %v8419, 1.442695
        %v8449 = vpow.pop %v8448
        %v8450 = vmul.f32 %v8420, 1.442695
        %v8451 = vpow.pop %v8450
        %v8452 = vmul.f32 %v8421, 1.442695
        %v8453 = vpow.pop %v8452
        %v8454 = vmul.f32 %v8422, 1.442695
        %v8455 = vpow.pop %v8454
        %v8456 = vmul.f32 %v8423, 1.442695
        %v8457 = vpow.pop %v8456
        %v8458 = vmul.f32 %v8424, 1.442695
        %v8459 = vpow.pop %v8458
        %v8460 = vmul.f32 %v8425, 1.442695
        %v8461 = vpow.pop %v8460
        %v8462 = vmul.f32 %v8426, 1.442695
        %v8463 = vpow.pop %v8462
        %v8464 = vmul.f32 %v8427, 1.442695
        %v8465 = vpow.pop %v8464
        %v8466 = vmul.f32 %v8428, 1.442695
        %v8467 = vpow.pop %v8466
        %v8468 = vmul.f32 %v8429, 1.442695
        %v8469 = vpow.pop %v8468
        %v8470 = vmul.f32 %v8430, 1.442695
        %v8471 = vpow.pop %v8470
        %v8472 = vmul.f32 %v8431, 1.442695
        %v8473 = vpow.pop %v8472
        %v8474 = vmul.f32 %v8432, 1.442695
        %v8475 = vpow.pop %v8474
        %v8476 = vmul.f32 %v8433, 1.442695
        %v8477 = vpow.pop %v8476
        %v8478 = vmul.f32 %v8434, 1.442695
        %v8479 = vpow.pop %v8478
        %v8480 = vmul.f32 %v8435, 1.442695
        %v8481 = vpow.pop %v8480
        %v8482 = vmul.f32 %v8436, 1.442695
        %v8483 = vpow.pop %v8482
        %v8484 = vmul.f32 %v8437, 1.442695
        %v8485 = vpow.pop %v8484
        %v8486 = vmul.f32 %v8366, %v8439
        %v8487 = vmul.f32 %v8367, %v8441
        %v8488 = vmul.f32 %v8368, %v8443
        %v8489 = vmul.f32 %v8369, %v8445
        %v8490 = vmul.f32 %v8370, %v8447
        %v8491 = vmul.f32 %v8371, %v8449
        %v8492 = vmul.f32 %v8372, %v8451
        %v8493 = vmul.f32 %v8373, %v8453
        %v8494 = vmul.f32 %v8374, %v8455
        %v8495 = vmul.f32 %v8375, %v8457
        %v8496 = vmul.f32 %v8376, %v8459
        %v8497 = vmul.f32 %v8377, %v8461
        %v8498 = vmul.f32 %v8378, %v8463
        %v8499 = vmul.f32 %v8379, %v8465
        %v8500 = vmul.f32 %v8380, %v8467
        %v8501 = vmul.f32 %v8381, %v8469
        %v8502 = vmul.f32 %v8382, %v8471
        %v8503 = vmul.f32 %v8383, %v8473
        %v8504 = vmul.f32 %v8384, %v8475
        %v8505 = vmul.f32 %v8385, %v8477
        %v8506 = vmul.f32 %v8386, %v8479
        %v8507 = vmul.f32 %v8387, %v8481
        %v8508 = vmul.f32 %v8388, %v8483
        %v8509 = vmul.f32 %v8389, %v8485
        %v8510 = vsub.f32 1.0, %v8486
        %v8511 = vsub.f32 1.0, %v8487
        %v8512 = vsub.f32 1.0, %v8488
        %v8513 = vsub.f32 1.0, %v8489
        %v8514 = vsub.f32 1.0, %v8490
        %v8515 = vsub.f32 1.0, %v8491
        %v8516 = vsub.f32 1.0, %v8492
        %v8517 = vsub.f32 1.0, %v8493
        %v8518 = vsub.f32 1.0, %v8494
        %v8519 = vsub.f32 1.0, %v8495
        %v8520 = vsub.f32 1.0, %v8496
        %v8521 = vsub.f32 1.0, %v8497
        %v8522 = vsub.f32 1.0, %v8498
        %v8523 = vsub.f32 1.0, %v8499
        %v8524 = vsub.f32 1.0, %v8500
        %v8525 = vsub.f32 1.0, %v8501
        %v8526 = vsub.f32 1.0, %v8502
        %v8527 = vsub.f32 1.0, %v8503
        %v8528 = vsub.f32 1.0, %v8504
        %v8529 = vsub.f32 1.0, %v8505
        %v8530 = vsub.f32 1.0, %v8506
        %v8531 = vsub.f32 1.0, %v8507
        %v8532 = vsub.f32 1.0, %v8508
        %v8533 = vsub.f32 1.0, %v8509
        %vm8534 = vcmp.ge.f32.partialorder %v8030, 0.0
        %vm8535 = vcmp.ge.f32.partialorder %v8031, 0.0
        %vm8536 = vcmp.ge.f32.partialorder %v8032, 0.0
        %vm8537 = vcmp.ge.f32.partialorder %v8033, 0.0
        %vm8538 = vcmp.ge.f32.partialorder %v8034, 0.0
        %vm8539 = vcmp.ge.f32.partialorder %v8035, 0.0
        %vm8540 = vcmp.ge.f32.partialorder %v8036, 0.0
        %vm8541 = vcmp.ge.f32.partialorder %v8037, 0.0
        %vm8542 = vcmp.ge.f32.partialorder %v8038, 0.0
        %vm8543 = vcmp.ge.f32.partialorder %v8039, 0.0
        %vm8544 = vcmp.ge.f32.partialorder %v8040, 0.0
        %vm8545 = vcmp.ge.f32.partialorder %v8041, 0.0
        %vm8546 = vcmp.ge.f32.partialorder %v8042, 0.0
        %vm8547 = vcmp.ge.f32.partialorder %v8043, 0.0
        %vm8548 = vcmp.ge.f32.partialorder %v8044, 0.0
        %vm8549 = vcmp.ge.f32.partialorder %v8045, 0.0
        %vm8550 = vcmp.ge.f32.partialorder %v8046, 0.0
        %vm8551 = vcmp.ge.f32.partialorder %v8047, 0.0
        %vm8552 = vcmp.ge.f32.partialorder %v8048, 0.0
        %vm8553 = vcmp.ge.f32.partialorder %v8049, 0.0
        %vm8554 = vcmp.ge.f32.partialorder %v8050, 0.0
        %vm8555 = vcmp.ge.f32.partialorder %v8051, 0.0
        %vm8556 = vcmp.ge.f32.partialorder %v8052, 0.0
        %vm8557 = vcmp.ge.f32.partialorder %v8053, 0.0
        %v8558 = vsub.f32 0.0, %v8510
        %v8559 = vsub.f32 0.0, %v8511
        %v8560 = vsub.f32 0.0, %v8512
        %v8561 = vsub.f32 0.0, %v8513
        %v8562 = vsub.f32 0.0, %v8514
        %v8563 = vsub.f32 0.0, %v8515
        %v8564 = vsub.f32 0.0, %v8516
        %v8565 = vsub.f32 0.0, %v8517
        %v8566 = vsub.f32 0.0, %v8518
        %v8567 = vsub.f32 0.0, %v8519
        %v8568 = vsub.f32 0.0, %v8520
        %v8569 = vsub.f32 0.0, %v8521
        %v8570 = vsub.f32 0.0, %v8522
        %v8571 = vsub.f32 0.0, %v8523
        %v8572 = vsub.f32 0.0, %v8524
        %v8573 = vsub.f32 0.0, %v8525
        %v8574 = vsub.f32 0.0, %v8526
        %v8575 = vsub.f32 0.0, %v8527
        %v8576 = vsub.f32 0.0, %v8528
        %v8577 = vsub.f32 0.0, %v8529
        %v8578 = vsub.f32 0.0, %v8530
        %v8579 = vsub.f32 0.0, %v8531
        %v8580 = vsub.f32 0.0, %v8532
        %v8581 = vsub.f32 0.0, %v8533
        %v8582 = vsel %vm8534, %v8510, %v8558
        %v8583 = vsel %vm8535, %v8511, %v8559
        %v8584 = vsel %vm8536, %v8512, %v8560
        %v8585 = vsel %vm8537, %v8513, %v8561
        %v8586 = vsel %vm8538, %v8514, %v8562
        %v8587 = vsel %vm8539, %v8515, %v8563
        %v8588 = vsel %vm8540, %v8516, %v8564
        %v8589 = vsel %vm8541, %v8517, %v8565
        %v8590 = vsel %vm8542, %v8518, %v8566
        %v8591 = vsel %vm8543, %v8519, %v8567
        %v8592 = vsel %vm8544, %v8520, %v8568
        %v8593 = vsel %vm8545, %v8521, %v8569
        %v8594 = vsel %vm8546, %v8522, %v8570
        %v8595 = vsel %vm8547, %v8523, %v8571
        %v8596 = vsel %vm8548, %v8524, %v8572
        %v8597 = vsel %vm8549, %v8525, %v8573
        %v8598 = vsel %vm8550, %v8526, %v8574
        %v8599 = vsel %vm8551, %v8527, %v8575
        %v8600 = vsel %vm8552, %v8528, %v8576
        %v8601 = vsel %vm8553, %v8529, %v8577
        %v8602 = vsel %vm8554, %v8530, %v8578
        %v8603 = vsel %vm8555, %v8531, %v8579
        %v8604 = vsel %vm8556, %v8532, %v8580
        %v8605 = vsel %vm8557, %v8533, %v8581
        %v8606 = vadd.f32 %v8582, 1.0
        %v8607 = vadd.f32 %v8583, 1.0
        %v8608 = vadd.f32 %v8584, 1.0
        %v8609 = vadd.f32 %v8585, 1.0
        %v8610 = vadd.f32 %v8586, 1.0
        %v8611 = vadd.f32 %v8587, 1.0
        %v8612 = vadd.f32 %v8588, 1.0
        %v8613 = vadd.f32 %v8589, 1.0
        %v8614 = vadd.f32 %v8590, 1.0
        %v8615 = vadd.f32 %v8591, 1.0
        %v8616 = vadd.f32 %v8592, 1.0
        %v8617 = vadd.f32 %v8593, 1.0
        %v8618 = vadd.f32 %v8594, 1.0
        %v8619 = vadd.f32 %v8595, 1.0
        %v8620 = vadd.f32 %v8596, 1.0
        %v8621 = vadd.f32 %v8597, 1.0
        %v8622 = vadd.f32 %v8598, 1.0
        %v8623 = vadd.f32 %v8599, 1.0
        %v8624 = vadd.f32 %v8600, 1.0
        %v8625 = vadd.f32 %v8601, 1.0
        %v8626 = vadd.f32 %v8602, 1.0
        %v8627 = vadd.f32 %v8603, 1.0
        %v8628 = vadd.f32 %v8604, 1.0
        %v8629 = vadd.f32 %v8605, 1.0
        %v8630 = vmul.f32 %v8006, %v8606
        %v8631 = vmul.f32 %v8007, %v8607
        %v8632 = vmul.f32 %v8008, %v8608
        %v8633 = vmul.f32 %v8009, %v8609
        %v8634 = vmul.f32 %v8010, %v8610
        %v8635 = vmul.f32 %v8011, %v8611
        %v8636 = vmul.f32 %v8012, %v8612
        %v8637 = vmul.f32 %v8013, %v8613
        %v8638 = vmul.f32 %v8014, %v8614
        %v8639 = vmul.f32 %v8015, %v8615
        %v8640 = vmul.f32 %v8016, %v8616
        %v8641 = vmul.f32 %v8017, %v8617
        %v8642 = vmul.f32 %v8018, %v8618
        %v8643 = vmul.f32 %v8019, %v8619
        %v8644 = vmul.f32 %v8020, %v8620
        %v8645 = vmul.f32 %v8021, %v8621
        %v8646 = vmul.f32 %v8022, %v8622
        %v8647 = vmul.f32 %v8023, %v8623
        %v8648 = vmul.f32 %v8024, %v8624
        %v8649 = vmul.f32 %v8025, %v8625
        %v8650 = vmul.f32 %v8026, %v8626
        %v8651 = vmul.f32 %v8027, %v8627
        %v8652 = vmul.f32 %v8028, %v8628
        %v8653 = vmul.f32 %v8029, %v8629
        %v8654 = vld [vmem:[%s850] sm:$0xff]
        %v8655 = vld [vmem:[%s850 + $0x8] sm:$0xf]
        %v8656 = vld [vmem:[%s850 + $0xc] sm:$0xff]
        %v8657 = vld [vmem:[%s850 + $0x14] sm:$0xf]
        %v8658 = vld [vmem:[%s850 + $0x18] sm:$0xff]
        %v8659 = vld [vmem:[%s850 + $0x20] sm:$0xf]
        %v8660 = vld [vmem:[%s850 + $0x24] sm:$0xff]
        %v8661 = vld [vmem:[%s850 + $0x2c] sm:$0xf]
        %v8662 = vld [vmem:[%s850 + $0x30] sm:$0xff]
        %v8663 = vld [vmem:[%s850 + $0x38] sm:$0xf]
        %v8664 = vld [vmem:[%s850 + $0x3c] sm:$0xff]
        %v8665 = vld [vmem:[%s850 + $0x44] sm:$0xf]
        %v8666 = vld [vmem:[%s850 + $0x48] sm:$0xff]
        %v8667 = vld [vmem:[%s850 + $0x50] sm:$0xf]
        %v8668 = vld [vmem:[%s850 + $0x54] sm:$0xff]
        %v8669 = vld [vmem:[%s850 + $0x5c] sm:$0xf]
        %v8670 = vld [vmem:[%s850 + $0x60] sm:$0xff]
        %v8671 = vld [vmem:[%s850 + $0x68] sm:$0xf]
        %v8672 = vld [vmem:[%s850 + $0x6c] sm:$0xff]
        %v8673 = vld [vmem:[%s850 + $0x74] sm:$0xf]
        %v8674 = vld [vmem:[%s850 + $0x78] sm:$0xff]
        %v8675 = vld [vmem:[%s850 + $0x80] sm:$0xf]
        %v8676 = vld [vmem:[%s850 + $0x84] sm:$0xff]
        %v8677 = vld [vmem:[%s850 + $0x8c] sm:$0xf]
        %v8678 = vld [vmem:[%s850 + $0x90] sm:$0xff]
        %v8679 = vld [vmem:[%s850 + $0x98] sm:$0xf]
        %v8680 = vld [vmem:[%s850 + $0x9c] sm:$0xff]
        %v8681 = vld [vmem:[%s850 + $0xa4] sm:$0xf]
        %v8682 = vld [vmem:[%s850 + $0xa8] sm:$0xff]
        %v8683 = vld [vmem:[%s850 + $0xb0] sm:$0xf]
        %v8684 = vld [vmem:[%s850 + $0xb4] sm:$0xff]
        %v8685 = vld [vmem:[%s850 + $0xbc] sm:$0xf]
        %v8686 = vld [vmem:[%s850 + $0xc0] sm:$0xff]
        %v8687 = vld [vmem:[%s850 + $0xc8] sm:$0xf]
        %v8688 = vld [vmem:[%s850 + $0xcc] sm:$0xff]
        %v8689 = vld [vmem:[%s850 + $0xd4] sm:$0xf]
        %v8690 = vld [vmem:[%s850 + $0xd8] sm:$0xff]
        %v8691 = vld [vmem:[%s850 + $0xe0] sm:$0xf]
        %v8692 = vld [vmem:[%s850 + $0xe4] sm:$0xff]
        %v8693 = vld [vmem:[%s850 + $0xec] sm:$0xf]
        %v8694 = vld [vmem:[%s850 + $0xf0] sm:$0xff]
        %v8695 = vld [vmem:[%s850 + $0xf8] sm:$0xf]
        %v8696 = vld [vmem:[%s850 + $0xfc] sm:$0xff]
        %v8697 = vld [vmem:[%s850 + $0x104] sm:$0xf]
        %v8698 = vld [vmem:[%s850 + $0x108] sm:$0xff]
        %v8699 = vld [vmem:[%s850 + $0x110] sm:$0xf]
        %v8700 = vld [vmem:[%s850 + $0x114] sm:$0xff]
        %v8701 = vld [vmem:[%s850 + $0x11c] sm:$0xf]
        %v8702 = vld [vmem:[%s850 + $0x120] sm:$0xff]
        %v8703 = vld [vmem:[%s850 + $0x128] sm:$0xf]
        %v8704 = vld [vmem:[%s850 + $0x12c] sm:$0xff]
        %v8705 = vld [vmem:[%s850 + $0x134] sm:$0xf]
        %v8706 = vld [vmem:[%s850 + $0x138] sm:$0xff]
        %v8707 = vld [vmem:[%s850 + $0x140] sm:$0xf]
        %v8708 = vld [vmem:[%s850 + $0x144] sm:$0xff]
        %v8709 = vld [vmem:[%s850 + $0x14c] sm:$0xf]
        %v8710 = vld [vmem:[%s850 + $0x150] sm:$0xff]
        %v8711 = vld [vmem:[%s850 + $0x158] sm:$0xf]
        %v8712 = vld [vmem:[%s850 + $0x15c] sm:$0xff]
        %v8713 = vld [vmem:[%s850 + $0x164] sm:$0xf]
        %v8714 = vld [vmem:[%s850 + $0x168] sm:$0xff]
        %v8715 = vld [vmem:[%s850 + $0x170] sm:$0xf]
        %v8716 = vld [vmem:[%s850 + $0x174] sm:$0xff]
        %v8717 = vld [vmem:[%s850 + $0x17c] sm:$0xf]
        %v8718 = vld [vmem:[%s850 + $0x180] sm:$0xff]
        %v8719 = vld [vmem:[%s850 + $0x188] sm:$0xf]
        %v8720 = vld [vmem:[%s850 + $0x18c] sm:$0xff]
        %v8721 = vld [vmem:[%s850 + $0x194] sm:$0xf]
        %v8722 = vld [vmem:[%s850 + $0x198] sm:$0xff]
        %v8723 = vld [vmem:[%s850 + $0x1a0] sm:$0xf]
        %v8724 = vld [vmem:[%s850 + $0x1a4] sm:$0xff]
        %v8725 = vld [vmem:[%s850 + $0x1ac] sm:$0xf]
        %v8726 = vld [vmem:[%s850 + $0x1b0] sm:$0xff]
        %v8727 = vld [vmem:[%s850 + $0x1b8] sm:$0xf]
        %v8728 = vld [vmem:[%s850 + $0x1bc] sm:$0xff]
        %v8729 = vld [vmem:[%s850 + $0x1c4] sm:$0xf]
        %v8730 = vld [vmem:[%s850 + $0x1c8] sm:$0xff]
        %v8731 = vld [vmem:[%s850 + $0x1d0] sm:$0xf]
        %v8732 = vld [vmem:[%s850 + $0x1d4] sm:$0xff]
        %v8733 = vld [vmem:[%s850 + $0x1dc] sm:$0xf]
        %v8734 = vld [vmem:[%s850 + $0x1e0] sm:$0xff]
        %v8735 = vld [vmem:[%s850 + $0x1e8] sm:$0xf]
        %v8736 = vld [vmem:[%s850 + $0x1ec] sm:$0xff]
        %v8737 = vld [vmem:[%s850 + $0x1f4] sm:$0xf]
        %v8738 = vld [vmem:[%s850 + $0x1f8] sm:$0xff]
        %v8739 = vld [vmem:[%s850 + $0x200] sm:$0xf]
        %v8740 = vld [vmem:[%s850 + $0x204] sm:$0xff]
        %v8741 = vld [vmem:[%s850 + $0x20c] sm:$0xf]
        %v8742 = vld [vmem:[%s850 + $0x210] sm:$0xff]
        %v8743 = vld [vmem:[%s850 + $0x218] sm:$0xf]
        %v8744 = vld [vmem:[%s850 + $0x21c] sm:$0xff]
        %v8745 = vld [vmem:[%s850 + $0x224] sm:$0xf]
        %v8746 = vld [vmem:[%s850 + $0x228] sm:$0xff]
        %v8747 = vld [vmem:[%s850 + $0x230] sm:$0xf]
        %v8748 = vld [vmem:[%s850 + $0x234] sm:$0xff]
        %v8749 = vld [vmem:[%s850 + $0x23c] sm:$0xf]
        %v8750 = vld [vmem:[%s850 + $0x240] sm:$0xff]
        %v8751 = vld [vmem:[%s850 + $0x248] sm:$0xf]
        %v8752 = vld [vmem:[%s850 + $0x24c] sm:$0xff]
        %v8753 = vld [vmem:[%s850 + $0x254] sm:$0xf]
        %v8754 = vld [vmem:[%s850 + $0x258] sm:$0xff]
        %v8755 = vld [vmem:[%s850 + $0x260] sm:$0xf]
        %v8756 = vld [vmem:[%s850 + $0x264] sm:$0xff]
        %v8757 = vld [vmem:[%s850 + $0x26c] sm:$0xf]
        %v8758 = vld [vmem:[%s850 + $0x270] sm:$0xff]
        %v8759 = vld [vmem:[%s850 + $0x278] sm:$0xf]
        %v8760 = vld [vmem:[%s850 + $0x27c] sm:$0xff]
        %v8761 = vld [vmem:[%s850 + $0x284] sm:$0xf]
        %v8762 = vld [vmem:[%s850 + $0x288] sm:$0xff]
        %v8763 = vld [vmem:[%s850 + $0x290] sm:$0xf]
        %v8764 = vld [vmem:[%s850 + $0x294] sm:$0xff]
        %v8765 = vld [vmem:[%s850 + $0x29c] sm:$0xf]
        %v8766 = vld [vmem:[%s850 + $0x2a0] sm:$0xff]
        %v8767 = vld [vmem:[%s850 + $0x2a8] sm:$0xf]
        %v8768 = vld [vmem:[%s850 + $0x2ac] sm:$0xff]
        %v8769 = vld [vmem:[%s850 + $0x2b4] sm:$0xf]
        %v8770 = vld [vmem:[%s850 + $0x2b8] sm:$0xff]
        %v8771 = vld [vmem:[%s850 + $0x2c0] sm:$0xf]
        %v8772 = vld [vmem:[%s850 + $0x2c4] sm:$0xff]
        %v8773 = vld [vmem:[%s850 + $0x2cc] sm:$0xf]
        %v8774 = vld [vmem:[%s850 + $0x2d0] sm:$0xff]
        %v8775 = vld [vmem:[%s850 + $0x2d8] sm:$0xf]
        %v8776 = vld [vmem:[%s850 + $0x2dc] sm:$0xff]
        %v8777 = vld [vmem:[%s850 + $0x2e4] sm:$0xf]
        %v8778 = vld [vmem:[%s850 + $0x2e8] sm:$0xff]
        %v8779 = vld [vmem:[%s850 + $0x2f0] sm:$0xf]
        %v8780 = vld [vmem:[%s850 + $0x2f4] sm:$0xff]
        %v8781 = vld [vmem:[%s850 + $0x2fc] sm:$0xf]
        %v8782 = vld [vmem:[%s850 + $0x300] sm:$0xff]
        %v8783 = vld [vmem:[%s850 + $0x308] sm:$0xf]
        %v8784 = vld [vmem:[%s850 + $0x30c] sm:$0xff]
        %v8785 = vld [vmem:[%s850 + $0x314] sm:$0xf]
        %v8786 = vld [vmem:[%s850 + $0x318] sm:$0xff]
        %v8787 = vld [vmem:[%s850 + $0x320] sm:$0xf]
        %v8788 = vld [vmem:[%s850 + $0x324] sm:$0xff]
        %v8789 = vld [vmem:[%s850 + $0x32c] sm:$0xf]
        %v8790 = vld [vmem:[%s850 + $0x330] sm:$0xff]
        %v8791 = vld [vmem:[%s850 + $0x338] sm:$0xf]
        %v8792 = vld [vmem:[%s850 + $0x33c] sm:$0xff]
        %v8793 = vld [vmem:[%s850 + $0x344] sm:$0xf]
        %v8794 = vld [vmem:[%s850 + $0x348] sm:$0xff]
        %v8795 = vld [vmem:[%s850 + $0x350] sm:$0xf]
        %v8796 = vld [vmem:[%s850 + $0x354] sm:$0xff]
        %v8797 = vld [vmem:[%s850 + $0x35c] sm:$0xf]
        %v8798 = vld [vmem:[%s850 + $0x360] sm:$0xff]
        %v8799 = vld [vmem:[%s850 + $0x368] sm:$0xf]
        %v8800 = vld [vmem:[%s850 + $0x36c] sm:$0xff]
        %v8801 = vld [vmem:[%s850 + $0x374] sm:$0xf]
        %v8802 = vld [vmem:[%s850 + $0x378] sm:$0xff]
        %v8803 = vld [vmem:[%s850 + $0x380] sm:$0xf]
        %v8804 = vld [vmem:[%s850 + $0x384] sm:$0xff]
        %v8805 = vld [vmem:[%s850 + $0x38c] sm:$0xf]
        %v8806 = vld [vmem:[%s850 + $0x390] sm:$0xff]
        %v8807 = vld [vmem:[%s850 + $0x398] sm:$0xf]
        %v8808 = vld [vmem:[%s850 + $0x39c] sm:$0xff]
        %v8809 = vld [vmem:[%s850 + $0x3a4] sm:$0xf]
        %v8810 = vld [vmem:[%s850 + $0x3a8] sm:$0xff]
        %v8811 = vld [vmem:[%s850 + $0x3b0] sm:$0xf]
        %v8812 = vld [vmem:[%s850 + $0x3b4] sm:$0xff]
        %v8813 = vld [vmem:[%s850 + $0x3bc] sm:$0xf]
        %v8814 = vld [vmem:[%s850 + $0x3c0] sm:$0xff]
        %v8815 = vld [vmem:[%s850 + $0x3c8] sm:$0xf]
        %v8816 = vld [vmem:[%s850 + $0x3cc] sm:$0xff]
        %v8817 = vld [vmem:[%s850 + $0x3d4] sm:$0xf]
        %v8818 = vld [vmem:[%s850 + $0x3d8] sm:$0xff]
        %v8819 = vld [vmem:[%s850 + $0x3e0] sm:$0xf]
        %v8820 = vld [vmem:[%s850 + $0x3e4] sm:$0xff]
        %v8821 = vld [vmem:[%s850 + $0x3ec] sm:$0xf]
        %v8822 = vld [vmem:[%s850 + $0x3f0] sm:$0xff]
        %v8823 = vld [vmem:[%s850 + $0x3f8] sm:$0xf]
        %v8824 = vld [vmem:[%s850 + $0x3fc] sm:$0xff]
        %v8825 = vld [vmem:[%s850 + $0x404] sm:$0xf]
        %v8826 = vld [vmem:[%s850 + $0x408] sm:$0xff]
        %v8827 = vld [vmem:[%s850 + $0x410] sm:$0xf]
        %v8828 = vld [vmem:[%s850 + $0x414] sm:$0xff]
        %v8829 = vld [vmem:[%s850 + $0x41c] sm:$0xf]
        %v8830 = vld [vmem:[%s850 + $0x420] sm:$0xff]
        %v8831 = vld [vmem:[%s850 + $0x428] sm:$0xf]
        %v8832 = vld [vmem:[%s850 + $0x42c] sm:$0xff]
        %v8833 = vld [vmem:[%s850 + $0x434] sm:$0xf]
        %v8834 = vld [vmem:[%s850 + $0x438] sm:$0xff]
        %v8835 = vld [vmem:[%s850 + $0x440] sm:$0xf]
        %v8836 = vld [vmem:[%s850 + $0x444] sm:$0xff]
        %v8837 = vld [vmem:[%s850 + $0x44c] sm:$0xf]
        %v8838 = vld [vmem:[%s850 + $0x450] sm:$0xff]
        %v8839 = vld [vmem:[%s850 + $0x458] sm:$0xf]
        %v8840 = vld [vmem:[%s850 + $0x45c] sm:$0xff]
        %v8841 = vld [vmem:[%s850 + $0x464] sm:$0xf]
        %v8842 = vld [vmem:[%s850 + $0x468] sm:$0xff]
        %v8843 = vld [vmem:[%s850 + $0x470] sm:$0xf]
        %v8844 = vld [vmem:[%s850 + $0x474] sm:$0xff]
        %v8845 = vld [vmem:[%s850 + $0x47c] sm:$0xf]
        %v8846 = vld [vmem:[%s850 + $0x480] sm:$0xff]
        %v8847 = vld [vmem:[%s850 + $0x488] sm:$0xf]
        %v8848 = vld [vmem:[%s850 + $0x48c] sm:$0xff]
        %v8849 = vld [vmem:[%s850 + $0x494] sm:$0xf]
        %v8850 = vld [vmem:[%s850 + $0x498] sm:$0xff]
        %v8851 = vld [vmem:[%s850 + $0x4a0] sm:$0xf]
        %v8852 = vld [vmem:[%s850 + $0x4a4] sm:$0xff]
        %v8853 = vld [vmem:[%s850 + $0x4ac] sm:$0xf]
        %v8854 = vld [vmem:[%s850 + $0x4b0] sm:$0xff]
        %v8855 = vld [vmem:[%s850 + $0x4b8] sm:$0xf]
        %v8856 = vld [vmem:[%s850 + $0x4bc] sm:$0xff]
        %v8857 = vld [vmem:[%s850 + $0x4c4] sm:$0xf]
        %v8858 = vld [vmem:[%s850 + $0x4c8] sm:$0xff]
        %v8859 = vld [vmem:[%s850 + $0x4d0] sm:$0xf]
        %v8860 = vld [vmem:[%s850 + $0x4d4] sm:$0xff]
        %v8861 = vld [vmem:[%s850 + $0x4dc] sm:$0xf]
        %v8862 = vld [vmem:[%s850 + $0x4e0] sm:$0xff]
        %v8863 = vld [vmem:[%s850 + $0x4e8] sm:$0xf]
        %v8864 = vld [vmem:[%s850 + $0x4ec] sm:$0xff]
        %v8865 = vld [vmem:[%s850 + $0x4f4] sm:$0xf]
        %v8866 = vld [vmem:[%s850 + $0x4f8] sm:$0xff]
        %v8867 = vld [vmem:[%s850 + $0x500] sm:$0xf]
        %v8868 = vld [vmem:[%s850 + $0x504] sm:$0xff]
        %v8869 = vld [vmem:[%s850 + $0x50c] sm:$0xf]
        %v8870 = vld [vmem:[%s850 + $0x510] sm:$0xff]
        %v8871 = vld [vmem:[%s850 + $0x518] sm:$0xf]
        %v8872 = vld [vmem:[%s850 + $0x51c] sm:$0xff]
        %v8873 = vld [vmem:[%s850 + $0x524] sm:$0xf]
        %v8874 = vld [vmem:[%s850 + $0x528] sm:$0xff]
        %v8875 = vld [vmem:[%s850 + $0x530] sm:$0xf]
        %v8876 = vld [vmem:[%s850 + $0x534] sm:$0xff]
        %v8877 = vld [vmem:[%s850 + $0x53c] sm:$0xf]
        %v8878 = vld [vmem:[%s850 + $0x540] sm:$0xff]
        %v8879 = vld [vmem:[%s850 + $0x548] sm:$0xf]
        %v8880 = vld [vmem:[%s850 + $0x54c] sm:$0xff]
        %v8881 = vld [vmem:[%s850 + $0x554] sm:$0xf]
        %v8882 = vld [vmem:[%s850 + $0x558] sm:$0xff]
        %v8883 = vld [vmem:[%s850 + $0x560] sm:$0xf]
        %v8884 = vld [vmem:[%s850 + $0x564] sm:$0xff]
        %v8885 = vld [vmem:[%s850 + $0x56c] sm:$0xf]
        %v8886 = vld [vmem:[%s850 + $0x570] sm:$0xff]
        %v8887 = vld [vmem:[%s850 + $0x578] sm:$0xf]
        %v8888 = vld [vmem:[%s850 + $0x57c] sm:$0xff]
        %v8889 = vld [vmem:[%s850 + $0x584] sm:$0xf]
        %v8890 = vld [vmem:[%s850 + $0x588] sm:$0xff]
        %v8891 = vld [vmem:[%s850 + $0x590] sm:$0xf]
        %v8892 = vld [vmem:[%s850 + $0x594] sm:$0xff]
        %v8893 = vld [vmem:[%s850 + $0x59c] sm:$0xf]
        %v8894 = vld [vmem:[%s850 + $0x5a0] sm:$0xff]
        %v8895 = vld [vmem:[%s850 + $0x5a8] sm:$0xf]
        %v8896 = vld [vmem:[%s850 + $0x5ac] sm:$0xff]
        %v8897 = vld [vmem:[%s850 + $0x5b4] sm:$0xf]
        %v8898 = vld [vmem:[%s850 + $0x5b8] sm:$0xff]
        %v8899 = vld [vmem:[%s850 + $0x5c0] sm:$0xf]
        %v8900 = vld [vmem:[%s850 + $0x5c4] sm:$0xff]
        %v8901 = vld [vmem:[%s850 + $0x5cc] sm:$0xf]
        %v8902 = vld [vmem:[%s850 + $0x5d0] sm:$0xff]
        %v8903 = vld [vmem:[%s850 + $0x5d8] sm:$0xf]
        %v8904 = vld [vmem:[%s850 + $0x5dc] sm:$0xff]
        %v8905 = vld [vmem:[%s850 + $0x5e4] sm:$0xf]
        %v8906 = vld [vmem:[%s850 + $0x5e8] sm:$0xff]
        %v8907 = vld [vmem:[%s850 + $0x5f0] sm:$0xf]
        %v8908 = vld [vmem:[%s850 + $0x5f4] sm:$0xff]
        %v8909 = vld [vmem:[%s850 + $0x5fc] sm:$0xf]
        %v8910 = vld [vmem:[%s850 + $0x600] sm:$0xff]
        %v8911 = vld [vmem:[%s850 + $0x608] sm:$0xf]
        %v8912 = vld [vmem:[%s850 + $0x60c] sm:$0xff]
        %v8913 = vld [vmem:[%s850 + $0x614] sm:$0xf]
        %v8914 = vld [vmem:[%s850 + $0x618] sm:$0xff]
        %v8915 = vld [vmem:[%s850 + $0x620] sm:$0xf]
        %v8916 = vld [vmem:[%s850 + $0x624] sm:$0xff]
        %v8917 = vld [vmem:[%s850 + $0x62c] sm:$0xf]
        %v8918 = vld [vmem:[%s850 + $0x630] sm:$0xff]
        %v8919 = vld [vmem:[%s850 + $0x638] sm:$0xf]
        %v8920 = vld [vmem:[%s850 + $0x63c] sm:$0xff]
        %v8921 = vld [vmem:[%s850 + $0x644] sm:$0xf]
        %v8922 = vld [vmem:[%s850 + $0x648] sm:$0xff]
        %v8923 = vld [vmem:[%s850 + $0x650] sm:$0xf]
        %v8924 = vld [vmem:[%s850 + $0x654] sm:$0xff]
        %v8925 = vld [vmem:[%s850 + $0x65c] sm:$0xf]
        %v8926 = vld [vmem:[%s850 + $0x660] sm:$0xff]
        %v8927 = vld [vmem:[%s850 + $0x668] sm:$0xf]
        %v8928 = vld [vmem:[%s850 + $0x66c] sm:$0xff]
        %v8929 = vld [vmem:[%s850 + $0x674] sm:$0xf]
        %v8930 = vld [vmem:[%s850 + $0x678] sm:$0xff]
        %v8931 = vld [vmem:[%s850 + $0x680] sm:$0xf]
        %v8932 = vld [vmem:[%s850 + $0x684] sm:$0xff]
        %v8933 = vld [vmem:[%s850 + $0x68c] sm:$0xf]
        %v8934 = vld [vmem:[%s850 + $0x690] sm:$0xff]
        %v8935 = vld [vmem:[%s850 + $0x698] sm:$0xf]
        %v8936 = vld [vmem:[%s850 + $0x69c] sm:$0xff]
        %v8937 = vld [vmem:[%s850 + $0x6a4] sm:$0xf]
        %v8938 = vld [vmem:[%s850 + $0x6a8] sm:$0xff]
        %v8939 = vld [vmem:[%s850 + $0x6b0] sm:$0xf]
        %v8940 = vld [vmem:[%s850 + $0x6b4] sm:$0xff]
        %v8941 = vld [vmem:[%s850 + $0x6bc] sm:$0xf]
        %v8942 = vld [vmem:[%s850 + $0x6c0] sm:$0xff]
        %v8943 = vld [vmem:[%s850 + $0x6c8] sm:$0xf]
        %v8944 = vld [vmem:[%s850 + $0x6cc] sm:$0xff]
        %v8945 = vld [vmem:[%s850 + $0x6d4] sm:$0xf]
        %v8946 = vld [vmem:[%s850 + $0x6d8] sm:$0xff]
        %v8947 = vld [vmem:[%s850 + $0x6e0] sm:$0xf]
        %v8948 = vld [vmem:[%s850 + $0x6e4] sm:$0xff]
        %v8949 = vld [vmem:[%s850 + $0x6ec] sm:$0xf]
        %v8950 = vld [vmem:[%s850 + $0x6f0] sm:$0xff]
        %v8951 = vld [vmem:[%s850 + $0x6f8] sm:$0xf]
        %v8952 = vld [vmem:[%s850 + $0x6fc] sm:$0xff]
        %v8953 = vld [vmem:[%s850 + $0x704] sm:$0xf]
        %v8954 = vld [vmem:[%s850 + $0x708] sm:$0xff]
        %v8955 = vld [vmem:[%s850 + $0x710] sm:$0xf]
        %v8956 = vld [vmem:[%s850 + $0x714] sm:$0xff]
        %v8957 = vld [vmem:[%s850 + $0x71c] sm:$0xf]
        %v8958 = vld [vmem:[%s850 + $0x720] sm:$0xff]
        %v8959 = vld [vmem:[%s850 + $0x728] sm:$0xf]
        %v8960 = vld [vmem:[%s850 + $0x72c] sm:$0xff]
        %v8961 = vld [vmem:[%s850 + $0x734] sm:$0xf]
        %v8962 = vld [vmem:[%s850 + $0x738] sm:$0xff]
        %v8963 = vld [vmem:[%s850 + $0x740] sm:$0xf]
        %v8964 = vld [vmem:[%s850 + $0x744] sm:$0xff]
        %v8965 = vld [vmem:[%s850 + $0x74c] sm:$0xf]
        %v8966 = vld [vmem:[%s850 + $0x750] sm:$0xff]
        %v8967 = vld [vmem:[%s850 + $0x758] sm:$0xf]
        %v8968 = vld [vmem:[%s850 + $0x75c] sm:$0xff]
        %v8969 = vld [vmem:[%s850 + $0x764] sm:$0xf]
        %v8970 = vld [vmem:[%s850 + $0x768] sm:$0xff]
        %v8971 = vld [vmem:[%s850 + $0x770] sm:$0xf]
        %v8972 = vld [vmem:[%s850 + $0x774] sm:$0xff]
        %v8973 = vld [vmem:[%s850 + $0x77c] sm:$0xf]
        %v8974 = vld [vmem:[%s850 + $0x780] sm:$0xff]
        %v8975 = vld [vmem:[%s850 + $0x788] sm:$0xf]
        %v8976 = vld [vmem:[%s850 + $0x78c] sm:$0xff]
        %v8977 = vld [vmem:[%s850 + $0x794] sm:$0xf]
        %v8978 = vld [vmem:[%s850 + $0x798] sm:$0xff]
        %v8979 = vld [vmem:[%s850 + $0x7a0] sm:$0xf]
        %v8980 = vld [vmem:[%s850 + $0x7a4] sm:$0xff]
        %v8981 = vld [vmem:[%s850 + $0x7ac] sm:$0xf]
        %v8982 = vld [vmem:[%s850 + $0x7b0] sm:$0xff]
        %v8983 = vld [vmem:[%s850 + $0x7b8] sm:$0xf]
        %v8984 = vld [vmem:[%s850 + $0x7bc] sm:$0xff]
        %v8985 = vld [vmem:[%s850 + $0x7c4] sm:$0xf]
        %v8986 = vld [vmem:[%s850 + $0x7c8] sm:$0xff]
        %v8987 = vld [vmem:[%s850 + $0x7d0] sm:$0xf]
        %v8988 = vld [vmem:[%s850 + $0x7d4] sm:$0xff]
        %v8989 = vld [vmem:[%s850 + $0x7dc] sm:$0xf]
        %v8990 = vld [vmem:[%s850 + $0x7e0] sm:$0xff]
        %v8991 = vld [vmem:[%s850 + $0x7e8] sm:$0xf]
        %v8992 = vld [vmem:[%s850 + $0x7ec] sm:$0xff]
        %v8993 = vld [vmem:[%s850 + $0x7f4] sm:$0xf]
        %v8994 = vld [vmem:[%s850 + $0x7f8] sm:$0xff]
        %v8995 = vld [vmem:[%s850 + $0x800] sm:$0xf]
        %v8996 = vld [vmem:[%s850 + $0x804] sm:$0xff]
        %v8997 = vld [vmem:[%s850 + $0x80c] sm:$0xf]
        %v8998 = vld [vmem:[%s850 + $0x810] sm:$0xff]
        %v8999 = vld [vmem:[%s850 + $0x818] sm:$0xf]
        %v9000 = vld [vmem:[%s850 + $0x81c] sm:$0xff]
        %v9001 = vld [vmem:[%s850 + $0x824] sm:$0xf]
        %v9002 = vld [vmem:[%s850 + $0x828] sm:$0xff]
        %v9003 = vld [vmem:[%s850 + $0x830] sm:$0xf]
        %v9004 = vld [vmem:[%s850 + $0x834] sm:$0xff]
        %v9005 = vld [vmem:[%s850 + $0x83c] sm:$0xf]
        %v9006 = vld [vmem:[%s850 + $0x840] sm:$0xff]
        %v9007 = vld [vmem:[%s850 + $0x848] sm:$0xf]
        %v9008 = vld [vmem:[%s850 + $0x84c] sm:$0xff]
        %v9009 = vld [vmem:[%s850 + $0x854] sm:$0xf]
        %v9010 = vld [vmem:[%s850 + $0x858] sm:$0xff]
        %v9011 = vld [vmem:[%s850 + $0x860] sm:$0xf]
        %v9012 = vld [vmem:[%s850 + $0x864] sm:$0xff]
        %v9013 = vld [vmem:[%s850 + $0x86c] sm:$0xf]
        %v9014 = vld [vmem:[%s850 + $0x870] sm:$0xff]
        %v9015 = vld [vmem:[%s850 + $0x878] sm:$0xf]
        %v9016 = vld [vmem:[%s850 + $0x87c] sm:$0xff]
        %v9017 = vld [vmem:[%s850 + $0x884] sm:$0xf]
        %v9018 = vld [vmem:[%s850 + $0x888] sm:$0xff]
        %v9019 = vld [vmem:[%s850 + $0x890] sm:$0xf]
        %v9020 = vld [vmem:[%s850 + $0x894] sm:$0xff]
        %v9021 = vld [vmem:[%s850 + $0x89c] sm:$0xf]
        %v9022 = vld [vmem:[%s850 + $0x8a0] sm:$0xff]
        %v9023 = vld [vmem:[%s850 + $0x8a8] sm:$0xf]
        %v9024 = vld [vmem:[%s850 + $0x8ac] sm:$0xff]
        %v9025 = vld [vmem:[%s850 + $0x8b4] sm:$0xf]
        %v9026 = vld [vmem:[%s850 + $0x8b8] sm:$0xff]
        %v9027 = vld [vmem:[%s850 + $0x8c0] sm:$0xf]
        %v9028 = vld [vmem:[%s850 + $0x8c4] sm:$0xff]
        %v9029 = vld [vmem:[%s850 + $0x8cc] sm:$0xf]
        %v9030 = vld [vmem:[%s850 + $0x8d0] sm:$0xff]
        %v9031 = vld [vmem:[%s850 + $0x8d8] sm:$0xf]
        %v9032 = vld [vmem:[%s850 + $0x8dc] sm:$0xff]
        %v9033 = vld [vmem:[%s850 + $0x8e4] sm:$0xf]
        %v9034 = vld [vmem:[%s850 + $0x8e8] sm:$0xff]
        %v9035 = vld [vmem:[%s850 + $0x8f0] sm:$0xf]
        %v9036 = vld [vmem:[%s850 + $0x8f4] sm:$0xff]
        %v9037 = vld [vmem:[%s850 + $0x8fc] sm:$0xf]
        %v9038 = vld [vmem:[%s859] sm:$0x7]
        %v9039 = vpack.c.bf16 %v8642, %v8630
        %v9040 = vpack.c.bf16 %v8643, %v8631
        %v9041 = vpack.c.bf16 %v8644, %v8632
        %v9042 = vpack.c.bf16 %v8645, %v8633
        %v9043 = vpack.c.bf16 %v8646, %v8634
        %v9044 = vpack.c.bf16 %v8647, %v8635
        %v9045 = vpack.c.bf16 %v8648, %v8636
        %v9046 = vpack.c.bf16 %v8649, %v8637
        %v9047 = vpack.c.bf16 %v8650, %v8638
        %v9048 = vpack.c.bf16 %v8651, %v8639
        %v9049 = vpack.c.bf16 %v8652, %v8640
        %v9050 = vpack.c.bf16 %v8653, %v8641
        %v9052 = vlaneseq
        %v9053 = vshrl.u32 %v9052, 7
        %v9054 = vsub.s32 0, %v9053
        %v9055 = vrot.slane %v9038, %v9054
        %v9056 = vlaneseq
        %v9057 = vshrl.u32 %v9056, 7
        %v9058 = vsub.s32 1, %v9057
        %v9059 = vrot.slane %v9038, %v9058
        %v9060 = vlaneseq
        %v9061 = vshrl.u32 %v9060, 7
        %v9062 = vsub.s32 2, %v9061
        %v9063 = vrot.slane %v9038, %v9062
        %v9451 = vunpack.c.l.b16 %v8654
        %v9452 = vunpack.c.h.b16 %v8654
        %v9453 = vunpack.c.l.b16 %v8655
        %v9454 = vunpack.c.l.b16 %v8656
        %v9455 = vunpack.c.h.b16 %v8656
        %v9456 = vunpack.c.l.b16 %v8657
        %v9457 = vunpack.c.l.b16 %v8658
        %v9458 = vunpack.c.h.b16 %v8658
        %v9459 = vunpack.c.l.b16 %v8659
        %v9460 = vunpack.c.l.b16 %v8660
        %v9461 = vunpack.c.h.b16 %v8660
        %v9462 = vunpack.c.l.b16 %v8661
        %v9463 = vunpack.c.l.b16 %v8662
        %v9464 = vunpack.c.h.b16 %v8662
        %v9465 = vunpack.c.l.b16 %v8663
        %v9466 = vunpack.c.l.b16 %v8664
        %v9467 = vunpack.c.h.b16 %v8664
        %v9468 = vunpack.c.l.b16 %v8665
        %v9469 = vunpack.c.l.b16 %v8666
        %v9470 = vunpack.c.h.b16 %v8666
        %v9471 = vunpack.c.l.b16 %v8667
        %v9472 = vunpack.c.l.b16 %v8668
        %v9473 = vunpack.c.h.b16 %v8668
        %v9474 = vunpack.c.l.b16 %v8669
        %v9475 = vunpack.c.l.b16 %v8670
        %v9476 = vunpack.c.h.b16 %v8670
        %v9477 = vunpack.c.l.b16 %v8671
        %v9478 = vunpack.c.l.b16 %v8672
        %v9479 = vunpack.c.h.b16 %v8672
        %v9480 = vunpack.c.l.b16 %v8673
        %v9481 = vunpack.c.l.b16 %v8674
        %v9482 = vunpack.c.h.b16 %v8674
        %v9483 = vunpack.c.l.b16 %v8675
        %v9484 = vunpack.c.l.b16 %v8676
        %v9485 = vunpack.c.h.b16 %v8676
        %v9486 = vunpack.c.l.b16 %v8677
        %v9487 = vunpack.c.l.b16 %v8678
        %v9488 = vunpack.c.h.b16 %v8678
        %v9489 = vunpack.c.l.b16 %v8679
        %v9490 = vunpack.c.l.b16 %v8680
        %v9491 = vunpack.c.h.b16 %v8680
        %v9492 = vunpack.c.l.b16 %v8681
        %v9493 = vunpack.c.l.b16 %v8682
        %v9494 = vunpack.c.h.b16 %v8682
        %v9495 = vunpack.c.l.b16 %v8683
        %v9496 = vunpack.c.l.b16 %v8684
        %v9497 = vunpack.c.h.b16 %v8684
        %v9498 = vunpack.c.l.b16 %v8685
        %v9499 = vunpack.c.l.b16 %v8686
        %v9500 = vunpack.c.h.b16 %v8686
        %v9501 = vunpack.c.l.b16 %v8687
        %v9502 = vunpack.c.l.b16 %v8688
        %v9503 = vunpack.c.h.b16 %v8688
        %v9504 = vunpack.c.l.b16 %v8689
        %v9505 = vunpack.c.l.b16 %v8690
        %v9506 = vunpack.c.h.b16 %v8690
        %v9507 = vunpack.c.l.b16 %v8691
        %v9508 = vunpack.c.l.b16 %v8692
        %v9509 = vunpack.c.h.b16 %v8692
        %v9510 = vunpack.c.l.b16 %v8693
        %v9511 = vunpack.c.l.b16 %v8694
        %v9512 = vunpack.c.h.b16 %v8694
        %v9513 = vunpack.c.l.b16 %v8695
        %v9514 = vunpack.c.l.b16 %v8696
        %v9515 = vunpack.c.h.b16 %v8696
        %v9516 = vunpack.c.l.b16 %v8697
        %v9517 = vunpack.c.l.b16 %v8698
        %v9518 = vunpack.c.h.b16 %v8698
        %v9519 = vunpack.c.l.b16 %v8699
        %v9520 = vunpack.c.l.b16 %v8700
        %v9521 = vunpack.c.h.b16 %v8700
        %v9522 = vunpack.c.l.b16 %v8701
        %v9523 = vunpack.c.l.b16 %v8702
        %v9524 = vunpack.c.h.b16 %v8702
        %v9525 = vunpack.c.l.b16 %v8703
        %v9526 = vunpack.c.l.b16 %v8704
        %v9527 = vunpack.c.h.b16 %v8704
        %v9528 = vunpack.c.l.b16 %v8705
        %v9529 = vunpack.c.l.b16 %v8706
        %v9530 = vunpack.c.h.b16 %v8706
        %v9531 = vunpack.c.l.b16 %v8707
        %v9532 = vunpack.c.l.b16 %v8708
        %v9533 = vunpack.c.h.b16 %v8708
        %v9534 = vunpack.c.l.b16 %v8709
        %v9535 = vunpack.c.l.b16 %v8710
        %v9536 = vunpack.c.h.b16 %v8710
        %v9537 = vunpack.c.l.b16 %v8711
        %v9538 = vunpack.c.l.b16 %v8712
        %v9539 = vunpack.c.h.b16 %v8712
        %v9540 = vunpack.c.l.b16 %v8713
        %v9541 = vunpack.c.l.b16 %v8714
        %v9542 = vunpack.c.h.b16 %v8714
        %v9543 = vunpack.c.l.b16 %v8715
        %v9544 = vunpack.c.l.b16 %v8716
        %v9545 = vunpack.c.h.b16 %v8716
        %v9546 = vunpack.c.l.b16 %v8717
        %v9547 = vunpack.c.l.b16 %v8718
        %v9548 = vunpack.c.h.b16 %v8718
        %v9549 = vunpack.c.l.b16 %v8719
        %v9550 = vunpack.c.l.b16 %v8720
        %v9551 = vunpack.c.h.b16 %v8720
        %v9552 = vunpack.c.l.b16 %v8721
        %v9553 = vunpack.c.l.b16 %v8722
        %v9554 = vunpack.c.h.b16 %v8722
        %v9555 = vunpack.c.l.b16 %v8723
        %v9556 = vunpack.c.l.b16 %v8724
        %v9557 = vunpack.c.h.b16 %v8724
        %v9558 = vunpack.c.l.b16 %v8725
        %v9559 = vunpack.c.l.b16 %v8726
        %v9560 = vunpack.c.h.b16 %v8726
        %v9561 = vunpack.c.l.b16 %v8727
        %v9562 = vunpack.c.l.b16 %v8728
        %v9563 = vunpack.c.h.b16 %v8728
        %v9564 = vunpack.c.l.b16 %v8729
        %v9565 = vunpack.c.l.b16 %v8730
        %v9566 = vunpack.c.h.b16 %v8730
        %v9567 = vunpack.c.l.b16 %v8731
        %v9568 = vunpack.c.l.b16 %v8732
        %v9569 = vunpack.c.h.b16 %v8732
        %v9570 = vunpack.c.l.b16 %v8733
        %v9571 = vunpack.c.l.b16 %v8734
        %v9572 = vunpack.c.h.b16 %v8734
        %v9573 = vunpack.c.l.b16 %v8735
        %v9574 = vunpack.c.l.b16 %v8736
        %v9575 = vunpack.c.h.b16 %v8736
        %v9576 = vunpack.c.l.b16 %v8737
        %v9577 = vunpack.c.l.b16 %v8738
        %v9578 = vunpack.c.h.b16 %v8738
        %v9579 = vunpack.c.l.b16 %v8739
        %v9580 = vunpack.c.l.b16 %v8740
        %v9581 = vunpack.c.h.b16 %v8740
        %v9582 = vunpack.c.l.b16 %v8741
        %v9583 = vunpack.c.l.b16 %v8742
        %v9584 = vunpack.c.h.b16 %v8742
        %v9585 = vunpack.c.l.b16 %v8743
        %v9586 = vunpack.c.l.b16 %v8744
        %v9587 = vunpack.c.h.b16 %v8744
        %v9588 = vunpack.c.l.b16 %v8745
        %v9589 = vunpack.c.l.b16 %v8746
        %v9590 = vunpack.c.h.b16 %v8746
        %v9591 = vunpack.c.l.b16 %v8747
        %v9592 = vunpack.c.l.b16 %v8748
        %v9593 = vunpack.c.h.b16 %v8748
        %v9594 = vunpack.c.l.b16 %v8749
        %v9595 = vunpack.c.l.b16 %v8750
        %v9596 = vunpack.c.h.b16 %v8750
        %v9597 = vunpack.c.l.b16 %v8751
        %v9598 = vunpack.c.l.b16 %v8752
        %v9599 = vunpack.c.h.b16 %v8752
        %v9600 = vunpack.c.l.b16 %v8753
        %v9601 = vunpack.c.l.b16 %v8754
        %v9602 = vunpack.c.h.b16 %v8754
        %v9603 = vunpack.c.l.b16 %v8755
        %v9604 = vunpack.c.l.b16 %v8756
        %v9605 = vunpack.c.h.b16 %v8756
        %v9606 = vunpack.c.l.b16 %v8757
        %v9607 = vunpack.c.l.b16 %v8758
        %v9608 = vunpack.c.h.b16 %v8758
        %v9609 = vunpack.c.l.b16 %v8759
        %v9610 = vunpack.c.l.b16 %v8760
        %v9611 = vunpack.c.h.b16 %v8760
        %v9612 = vunpack.c.l.b16 %v8761
        %v9613 = vunpack.c.l.b16 %v8762
        %v9614 = vunpack.c.h.b16 %v8762
        %v9615 = vunpack.c.l.b16 %v8763
        %v9616 = vunpack.c.l.b16 %v8764
        %v9617 = vunpack.c.h.b16 %v8764
        %v9618 = vunpack.c.l.b16 %v8765
        %v9619 = vunpack.c.l.b16 %v8766
        %v9620 = vunpack.c.h.b16 %v8766
        %v9621 = vunpack.c.l.b16 %v8767
        %v9622 = vunpack.c.l.b16 %v8768
        %v9623 = vunpack.c.h.b16 %v8768
        %v9624 = vunpack.c.l.b16 %v8769
        %v9625 = vunpack.c.l.b16 %v8770
        %v9626 = vunpack.c.h.b16 %v8770
        %v9627 = vunpack.c.l.b16 %v8771
        %v9628 = vunpack.c.l.b16 %v8772
        %v9629 = vunpack.c.h.b16 %v8772
        %v9630 = vunpack.c.l.b16 %v8773
        %v9631 = vunpack.c.l.b16 %v8774
        %v9632 = vunpack.c.h.b16 %v8774
        %v9633 = vunpack.c.l.b16 %v8775
        %v9634 = vunpack.c.l.b16 %v8776
        %v9635 = vunpack.c.h.b16 %v8776
        %v9636 = vunpack.c.l.b16 %v8777
        %v9637 = vunpack.c.l.b16 %v8778
        %v9638 = vunpack.c.h.b16 %v8778
        %v9639 = vunpack.c.l.b16 %v8779
        %v9640 = vunpack.c.l.b16 %v8780
        %v9641 = vunpack.c.h.b16 %v8780
        %v9642 = vunpack.c.l.b16 %v8781
        %v9643 = vunpack.c.l.b16 %v8782
        %v9644 = vunpack.c.h.b16 %v8782
        %v9645 = vunpack.c.l.b16 %v8783
        %v9646 = vunpack.c.l.b16 %v8784
        %v9647 = vunpack.c.h.b16 %v8784
        %v9648 = vunpack.c.l.b16 %v8785
        %v9649 = vunpack.c.l.b16 %v8786
        %v9650 = vunpack.c.h.b16 %v8786
        %v9651 = vunpack.c.l.b16 %v8787
        %v9652 = vunpack.c.l.b16 %v8788
        %v9653 = vunpack.c.h.b16 %v8788
        %v9654 = vunpack.c.l.b16 %v8789
        %v9655 = vunpack.c.l.b16 %v8790
        %v9656 = vunpack.c.h.b16 %v8790
        %v9657 = vunpack.c.l.b16 %v8791
        %v9658 = vunpack.c.l.b16 %v8792
        %v9659 = vunpack.c.h.b16 %v8792
        %v9660 = vunpack.c.l.b16 %v8793
        %v9661 = vunpack.c.l.b16 %v8794
        %v9662 = vunpack.c.h.b16 %v8794
        %v9663 = vunpack.c.l.b16 %v8795
        %v9664 = vunpack.c.l.b16 %v8796
        %v9665 = vunpack.c.h.b16 %v8796
        %v9666 = vunpack.c.l.b16 %v8797
        %v9667 = vunpack.c.l.b16 %v8798
        %v9668 = vunpack.c.h.b16 %v8798
        %v9669 = vunpack.c.l.b16 %v8799
        %v9670 = vunpack.c.l.b16 %v8800
        %v9671 = vunpack.c.h.b16 %v8800
        %v9672 = vunpack.c.l.b16 %v8801
        %v9673 = vunpack.c.l.b16 %v8802
        %v9674 = vunpack.c.h.b16 %v8802
        %v9675 = vunpack.c.l.b16 %v8803
        %v9676 = vunpack.c.l.b16 %v8804
        %v9677 = vunpack.c.h.b16 %v8804
        %v9678 = vunpack.c.l.b16 %v8805
        %v9679 = vunpack.c.l.b16 %v8806
        %v9680 = vunpack.c.h.b16 %v8806
        %v9681 = vunpack.c.l.b16 %v8807
        %v9682 = vunpack.c.l.b16 %v8808
        %v9683 = vunpack.c.h.b16 %v8808
        %v9684 = vunpack.c.l.b16 %v8809
        %v9685 = vunpack.c.l.b16 %v8810
        %v9686 = vunpack.c.h.b16 %v8810
        %v9687 = vunpack.c.l.b16 %v8811
        %v9688 = vunpack.c.l.b16 %v8812
        %v9689 = vunpack.c.h.b16 %v8812
        %v9690 = vunpack.c.l.b16 %v8813
        %v9691 = vunpack.c.l.b16 %v8814
        %v9692 = vunpack.c.h.b16 %v8814
        %v9693 = vunpack.c.l.b16 %v8815
        %v9694 = vunpack.c.l.b16 %v8816
        %v9695 = vunpack.c.h.b16 %v8816
        %v9696 = vunpack.c.l.b16 %v8817
        %v9697 = vunpack.c.l.b16 %v8818
        %v9698 = vunpack.c.h.b16 %v8818
        %v9699 = vunpack.c.l.b16 %v8819
        %v9700 = vunpack.c.l.b16 %v8820
        %v9701 = vunpack.c.h.b16 %v8820
        %v9702 = vunpack.c.l.b16 %v8821
        %v9703 = vunpack.c.l.b16 %v8822
        %v9704 = vunpack.c.h.b16 %v8822
        %v9705 = vunpack.c.l.b16 %v8823
        %v9706 = vunpack.c.l.b16 %v8824
        %v9707 = vunpack.c.h.b16 %v8824
        %v9708 = vunpack.c.l.b16 %v8825
        %v9709 = vunpack.c.l.b16 %v8826
        %v9710 = vunpack.c.h.b16 %v8826
        %v9711 = vunpack.c.l.b16 %v8827
        %v9712 = vunpack.c.l.b16 %v8828
        %v9713 = vunpack.c.h.b16 %v8828
        %v9714 = vunpack.c.l.b16 %v8829
        %v9715 = vunpack.c.l.b16 %v8830
        %v9716 = vunpack.c.h.b16 %v8830
        %v9717 = vunpack.c.l.b16 %v8831
        %v9718 = vunpack.c.l.b16 %v8832
        %v9719 = vunpack.c.h.b16 %v8832
        %v9720 = vunpack.c.l.b16 %v8833
        %v9721 = vunpack.c.l.b16 %v8834
        %v9722 = vunpack.c.h.b16 %v8834
        %v9723 = vunpack.c.l.b16 %v8835
        %v9724 = vunpack.c.l.b16 %v8836
        %v9725 = vunpack.c.h.b16 %v8836
        %v9726 = vunpack.c.l.b16 %v8837
        %v9727 = vunpack.c.l.b16 %v8838
        %v9728 = vunpack.c.h.b16 %v8838
        %v9729 = vunpack.c.l.b16 %v8839
        %v9730 = vunpack.c.l.b16 %v8840
        %v9731 = vunpack.c.h.b16 %v8840
        %v9732 = vunpack.c.l.b16 %v8841
        %v9733 = vunpack.c.l.b16 %v8842
        %v9734 = vunpack.c.h.b16 %v8842
        %v9735 = vunpack.c.l.b16 %v8843
        %v9736 = vunpack.c.l.b16 %v8844
        %v9737 = vunpack.c.h.b16 %v8844
        %v9738 = vunpack.c.l.b16 %v8845
        %v9739 = vunpack.c.l.b16 %v8846
        %v9740 = vunpack.c.h.b16 %v8846
        %v9741 = vunpack.c.l.b16 %v8847
        %v9742 = vunpack.c.l.b16 %v8848
        %v9743 = vunpack.c.h.b16 %v8848
        %v9744 = vunpack.c.l.b16 %v8849
        %v9745 = vunpack.c.l.b16 %v8850
        %v9746 = vunpack.c.h.b16 %v8850
        %v9747 = vunpack.c.l.b16 %v8851
        %v9748 = vunpack.c.l.b16 %v8852
        %v9749 = vunpack.c.h.b16 %v8852
        %v9750 = vunpack.c.l.b16 %v8853
        %v9751 = vunpack.c.l.b16 %v8854
        %v9752 = vunpack.c.h.b16 %v8854
        %v9753 = vunpack.c.l.b16 %v8855
        %v9754 = vunpack.c.l.b16 %v8856
        %v9755 = vunpack.c.h.b16 %v8856
        %v9756 = vunpack.c.l.b16 %v8857
        %v9757 = vunpack.c.l.b16 %v8858
        %v9758 = vunpack.c.h.b16 %v8858
        %v9759 = vunpack.c.l.b16 %v8859
        %v9760 = vunpack.c.l.b16 %v8860
        %v9761 = vunpack.c.h.b16 %v8860
        %v9762 = vunpack.c.l.b16 %v8861
        %v9763 = vunpack.c.l.b16 %v8862
        %v9764 = vunpack.c.h.b16 %v8862
        %v9765 = vunpack.c.l.b16 %v8863
        %v9766 = vunpack.c.l.b16 %v8864
        %v9767 = vunpack.c.h.b16 %v8864
        %v9768 = vunpack.c.l.b16 %v8865
        %v9769 = vunpack.c.l.b16 %v8866
        %v9770 = vunpack.c.h.b16 %v8866
        %v9771 = vunpack.c.l.b16 %v8867
        %v9772 = vunpack.c.l.b16 %v8868
        %v9773 = vunpack.c.h.b16 %v8868
        %v9774 = vunpack.c.l.b16 %v8869
        %v9775 = vunpack.c.l.b16 %v8870
        %v9776 = vunpack.c.h.b16 %v8870
        %v9777 = vunpack.c.l.b16 %v8871
        %v9778 = vunpack.c.l.b16 %v8872
        %v9779 = vunpack.c.h.b16 %v8872
        %v9780 = vunpack.c.l.b16 %v8873
        %v9781 = vunpack.c.l.b16 %v8874
        %v9782 = vunpack.c.h.b16 %v8874
        %v9783 = vunpack.c.l.b16 %v8875
        %v9784 = vunpack.c.l.b16 %v8876
        %v9785 = vunpack.c.h.b16 %v8876
        %v9786 = vunpack.c.l.b16 %v8877
        %v9787 = vunpack.c.l.b16 %v8878
        %v9788 = vunpack.c.h.b16 %v8878
        %v9789 = vunpack.c.l.b16 %v8879
        %v9790 = vunpack.c.l.b16 %v8880
        %v9791 = vunpack.c.h.b16 %v8880
        %v9792 = vunpack.c.l.b16 %v8881
        %v9793 = vunpack.c.l.b16 %v8882
        %v9794 = vunpack.c.h.b16 %v8882
        %v9795 = vunpack.c.l.b16 %v8883
        %v9796 = vunpack.c.l.b16 %v8884
        %v9797 = vunpack.c.h.b16 %v8884
        %v9798 = vunpack.c.l.b16 %v8885
        %v9799 = vunpack.c.l.b16 %v8886
        %v9800 = vunpack.c.h.b16 %v8886
        %v9801 = vunpack.c.l.b16 %v8887
        %v9802 = vunpack.c.l.b16 %v8888
        %v9803 = vunpack.c.h.b16 %v8888
        %v9804 = vunpack.c.l.b16 %v8889
        %v9805 = vunpack.c.l.b16 %v8890
        %v9806 = vunpack.c.h.b16 %v8890
        %v9807 = vunpack.c.l.b16 %v8891
        %v9808 = vunpack.c.l.b16 %v8892
        %v9809 = vunpack.c.h.b16 %v8892
        %v9810 = vunpack.c.l.b16 %v8893
        %v9811 = vunpack.c.l.b16 %v8894
        %v9812 = vunpack.c.h.b16 %v8894
        %v9813 = vunpack.c.l.b16 %v8895
        %v9814 = vunpack.c.l.b16 %v8896
        %v9815 = vunpack.c.h.b16 %v8896
        %v9816 = vunpack.c.l.b16 %v8897
        %v9817 = vunpack.c.l.b16 %v8898
        %v9818 = vunpack.c.h.b16 %v8898
        %v9819 = vunpack.c.l.b16 %v8899
        %v9820 = vunpack.c.l.b16 %v8900
        %v9821 = vunpack.c.h.b16 %v8900
        %v9822 = vunpack.c.l.b16 %v8901
        %v9823 = vunpack.c.l.b16 %v8902
        %v9824 = vunpack.c.h.b16 %v8902
        %v9825 = vunpack.c.l.b16 %v8903
        %v9826 = vunpack.c.l.b16 %v8904
        %v9827 = vunpack.c.h.b16 %v8904
        %v9828 = vunpack.c.l.b16 %v8905
        %v9829 = vunpack.c.l.b16 %v8906
        %v9830 = vunpack.c.h.b16 %v8906
        %v9831 = vunpack.c.l.b16 %v8907
        %v9832 = vunpack.c.l.b16 %v8908
        %v9833 = vunpack.c.h.b16 %v8908
        %v9834 = vunpack.c.l.b16 %v8909
        %v9835 = vunpack.c.l.b16 %v8910
        %v9836 = vunpack.c.h.b16 %v8910
        %v9837 = vunpack.c.l.b16 %v8911
        %v9838 = vunpack.c.l.b16 %v8912
        %v9839 = vunpack.c.h.b16 %v8912
        %v9840 = vunpack.c.l.b16 %v8913
        %v9841 = vunpack.c.l.b16 %v8914
        %v9842 = vunpack.c.h.b16 %v8914
        %v9843 = vunpack.c.l.b16 %v8915
        %v9844 = vunpack.c.l.b16 %v8916
        %v9845 = vunpack.c.h.b16 %v8916
        %v9846 = vunpack.c.l.b16 %v8917
        %v9847 = vunpack.c.l.b16 %v8918
        %v9848 = vunpack.c.h.b16 %v8918
        %v9849 = vunpack.c.l.b16 %v8919
        %v9850 = vunpack.c.l.b16 %v8920
        %v9851 = vunpack.c.h.b16 %v8920
        %v9852 = vunpack.c.l.b16 %v8921
        %v9853 = vunpack.c.l.b16 %v8922
        %v9854 = vunpack.c.h.b16 %v8922
        %v9855 = vunpack.c.l.b16 %v8923
        %v9856 = vunpack.c.l.b16 %v8924
        %v9857 = vunpack.c.h.b16 %v8924
        %v9858 = vunpack.c.l.b16 %v8925
        %v9859 = vunpack.c.l.b16 %v8926
        %v9860 = vunpack.c.h.b16 %v8926
        %v9861 = vunpack.c.l.b16 %v8927
        %v9862 = vunpack.c.l.b16 %v8928
        %v9863 = vunpack.c.h.b16 %v8928
        %v9864 = vunpack.c.l.b16 %v8929
        %v9865 = vunpack.c.l.b16 %v8930
        %v9866 = vunpack.c.h.b16 %v8930
        %v9867 = vunpack.c.l.b16 %v8931
        %v9868 = vunpack.c.l.b16 %v8932
        %v9869 = vunpack.c.h.b16 %v8932
        %v9870 = vunpack.c.l.b16 %v8933
        %v9871 = vunpack.c.l.b16 %v8934
        %v9872 = vunpack.c.h.b16 %v8934
        %v9873 = vunpack.c.l.b16 %v8935
        %v9874 = vunpack.c.l.b16 %v8936
        %v9875 = vunpack.c.h.b16 %v8936
        %v9876 = vunpack.c.l.b16 %v8937
        %v9877 = vunpack.c.l.b16 %v8938
        %v9878 = vunpack.c.h.b16 %v8938
        %v9879 = vunpack.c.l.b16 %v8939
        %v9880 = vunpack.c.l.b16 %v8940
        %v9881 = vunpack.c.h.b16 %v8940
        %v9882 = vunpack.c.l.b16 %v8941
        %v9883 = vunpack.c.l.b16 %v8942
        %v9884 = vunpack.c.h.b16 %v8942
        %v9885 = vunpack.c.l.b16 %v8943
        %v9886 = vunpack.c.l.b16 %v8944
        %v9887 = vunpack.c.h.b16 %v8944
        %v9888 = vunpack.c.l.b16 %v8945
        %v9889 = vunpack.c.l.b16 %v8946
        %v9890 = vunpack.c.h.b16 %v8946
        %v9891 = vunpack.c.l.b16 %v8947
        %v9892 = vunpack.c.l.b16 %v8948
        %v9893 = vunpack.c.h.b16 %v8948
        %v9894 = vunpack.c.l.b16 %v8949
        %v9895 = vunpack.c.l.b16 %v8950
        %v9896 = vunpack.c.h.b16 %v8950
        %v9897 = vunpack.c.l.b16 %v8951
        %v9898 = vunpack.c.l.b16 %v8952
        %v9899 = vunpack.c.h.b16 %v8952
        %v9900 = vunpack.c.l.b16 %v8953
        %v9901 = vunpack.c.l.b16 %v8954
        %v9902 = vunpack.c.h.b16 %v8954
        %v9903 = vunpack.c.l.b16 %v8955
        %v9904 = vunpack.c.l.b16 %v8956
        %v9905 = vunpack.c.h.b16 %v8956
        %v9906 = vunpack.c.l.b16 %v8957
        %v9907 = vunpack.c.l.b16 %v8958
        %v9908 = vunpack.c.h.b16 %v8958
        %v9909 = vunpack.c.l.b16 %v8959
        %v9910 = vunpack.c.l.b16 %v8960
        %v9911 = vunpack.c.h.b16 %v8960
        %v9912 = vunpack.c.l.b16 %v8961
        %v9913 = vunpack.c.l.b16 %v8962
        %v9914 = vunpack.c.h.b16 %v8962
        %v9915 = vunpack.c.l.b16 %v8963
        %v9916 = vunpack.c.l.b16 %v8964
        %v9917 = vunpack.c.h.b16 %v8964
        %v9918 = vunpack.c.l.b16 %v8965
        %v9919 = vunpack.c.l.b16 %v8966
        %v9920 = vunpack.c.h.b16 %v8966
        %v9921 = vunpack.c.l.b16 %v8967
        %v9922 = vunpack.c.l.b16 %v8968
        %v9923 = vunpack.c.h.b16 %v8968
        %v9924 = vunpack.c.l.b16 %v8969
        %v9925 = vunpack.c.l.b16 %v8970
        %v9926 = vunpack.c.h.b16 %v8970
        %v9927 = vunpack.c.l.b16 %v8971
        %v9928 = vunpack.c.l.b16 %v8972
        %v9929 = vunpack.c.h.b16 %v8972
        %v9930 = vunpack.c.l.b16 %v8973
        %v9931 = vunpack.c.l.b16 %v8974
        %v9932 = vunpack.c.h.b16 %v8974
        %v9933 = vunpack.c.l.b16 %v8975
        %v9934 = vunpack.c.l.b16 %v8976
        %v9935 = vunpack.c.h.b16 %v8976
        %v9936 = vunpack.c.l.b16 %v8977
        %v9937 = vunpack.c.l.b16 %v8978
        %v9938 = vunpack.c.h.b16 %v8978
        %v9939 = vunpack.c.l.b16 %v8979
        %v9940 = vunpack.c.l.b16 %v8980
        %v9941 = vunpack.c.h.b16 %v8980
        %v9942 = vunpack.c.l.b16 %v8981
        %v9943 = vunpack.c.l.b16 %v8982
        %v9944 = vunpack.c.h.b16 %v8982
        %v9945 = vunpack.c.l.b16 %v8983
        %v9946 = vunpack.c.l.b16 %v8984
        %v9947 = vunpack.c.h.b16 %v8984
        %v9948 = vunpack.c.l.b16 %v8985
        %v9949 = vunpack.c.l.b16 %v8986
        %v9950 = vunpack.c.h.b16 %v8986
        %v9951 = vunpack.c.l.b16 %v8987
        %v9952 = vunpack.c.l.b16 %v8988
        %v9953 = vunpack.c.h.b16 %v8988
        %v9954 = vunpack.c.l.b16 %v8989
        %v9955 = vunpack.c.l.b16 %v8990
        %v9956 = vunpack.c.h.b16 %v8990
        %v9957 = vunpack.c.l.b16 %v8991
        %v9958 = vunpack.c.l.b16 %v8992
        %v9959 = vunpack.c.h.b16 %v8992
        %v9960 = vunpack.c.l.b16 %v8993
        %v9961 = vunpack.c.l.b16 %v8994
        %v9962 = vunpack.c.h.b16 %v8994
        %v9963 = vunpack.c.l.b16 %v8995
        %v9964 = vunpack.c.l.b16 %v8996
        %v9965 = vunpack.c.h.b16 %v8996
        %v9966 = vunpack.c.l.b16 %v8997
        %v9967 = vunpack.c.l.b16 %v8998
        %v9968 = vunpack.c.h.b16 %v8998
        %v9969 = vunpack.c.l.b16 %v8999
        %v9970 = vunpack.c.l.b16 %v9000
        %v9971 = vunpack.c.h.b16 %v9000
        %v9972 = vunpack.c.l.b16 %v9001
        %v9973 = vunpack.c.l.b16 %v9002
        %v9974 = vunpack.c.h.b16 %v9002
        %v9975 = vunpack.c.l.b16 %v9003
        %v9976 = vunpack.c.l.b16 %v9004
        %v9977 = vunpack.c.h.b16 %v9004
        %v9978 = vunpack.c.l.b16 %v9005
        %v9979 = vunpack.c.l.b16 %v9006
        %v9980 = vunpack.c.h.b16 %v9006
        %v9981 = vunpack.c.l.b16 %v9007
        %v9982 = vunpack.c.l.b16 %v9008
        %v9983 = vunpack.c.h.b16 %v9008
        %v9984 = vunpack.c.l.b16 %v9009
        %v9985 = vunpack.c.l.b16 %v9010
        %v9986 = vunpack.c.h.b16 %v9010
        %v9987 = vunpack.c.l.b16 %v9011
        %v9988 = vunpack.c.l.b16 %v9012
        %v9989 = vunpack.c.h.b16 %v9012
        %v9990 = vunpack.c.l.b16 %v9013
        %v9991 = vunpack.c.l.b16 %v9014
        %v9992 = vunpack.c.h.b16 %v9014
        %v9993 = vunpack.c.l.b16 %v9015
        %v9994 = vunpack.c.l.b16 %v9016
        %v9995 = vunpack.c.h.b16 %v9016
        %v9996 = vunpack.c.l.b16 %v9017
        %v9997 = vunpack.c.l.b16 %v9018
        %v9998 = vunpack.c.h.b16 %v9018
        %v9999 = vunpack.c.l.b16 %v9019
        %v10000 = vunpack.c.l.b16 %v9020
        %v10001 = vunpack.c.h.b16 %v9020
        %v10002 = vunpack.c.l.b16 %v9021
        %v10003 = vunpack.c.l.b16 %v9022
        %v10004 = vunpack.c.h.b16 %v9022
        %v10005 = vunpack.c.l.b16 %v9023
        %v10006 = vunpack.c.l.b16 %v9024
        %v10007 = vunpack.c.h.b16 %v9024
        %v10008 = vunpack.c.l.b16 %v9025
        %v10009 = vunpack.c.l.b16 %v9026
        %v10010 = vunpack.c.h.b16 %v9026
        %v10011 = vunpack.c.l.b16 %v9027
        %v10012 = vunpack.c.l.b16 %v9028
        %v10013 = vunpack.c.h.b16 %v9028
        %v10014 = vunpack.c.l.b16 %v9029
        %v10015 = vunpack.c.l.b16 %v9030
        %v10016 = vunpack.c.h.b16 %v9030
        %v10017 = vunpack.c.l.b16 %v9031
        %v10018 = vunpack.c.l.b16 %v9032
        %v10019 = vunpack.c.h.b16 %v9032
        %v10020 = vunpack.c.l.b16 %v9033
        %v10021 = vunpack.c.l.b16 %v9034
        %v10022 = vunpack.c.h.b16 %v9034
        %v10023 = vunpack.c.l.b16 %v9035
        %v10024 = vunpack.c.l.b16 %v9036
        %v10025 = vunpack.c.h.b16 %v9036
        %v10026 = vunpack.c.l.b16 %v9037
        %v10027 = vpack.c.b16 %v9454, %v9451
        %v10028 = vpack.c.b16 %v9455, %v9452
        %v10029 = vpack.c.b16 %v9456, %v9453
        %v10030 = vpack.c.b16 %v9460, %v9457
        %v10031 = vpack.c.b16 %v9461, %v9458
        %v10032 = vpack.c.b16 %v9462, %v9459
        %v10033 = vpack.c.b16 %v9466, %v9463
        %v10034 = vpack.c.b16 %v9467, %v9464
        %v10035 = vpack.c.b16 %v9468, %v9465
        %v10036 = vpack.c.b16 %v9472, %v9469
        %v10037 = vpack.c.b16 %v9473, %v9470
        %v10038 = vpack.c.b16 %v9474, %v9471
        %v10039 = vpack.c.b16 %v9478, %v9475
        %v10040 = vpack.c.b16 %v9479, %v9476
        %v10041 = vpack.c.b16 %v9480, %v9477
        %v10042 = vpack.c.b16 %v9484, %v9481
        %v10043 = vpack.c.b16 %v9485, %v9482
        %v10044 = vpack.c.b16 %v9486, %v9483
        %v10045 = vpack.c.b16 %v9490, %v9487
        %v10046 = vpack.c.b16 %v9491, %v9488
        %v10047 = vpack.c.b16 %v9492, %v9489
        %v10048 = vpack.c.b16 %v9496, %v9493
        %v10049 = vpack.c.b16 %v9497, %v9494
        %v10050 = vpack.c.b16 %v9498, %v9495
        %v10051 = vpack.c.b16 %v9502, %v9499
        %v10052 = vpack.c.b16 %v9503, %v9500
        %v10053 = vpack.c.b16 %v9504, %v9501
        %v10054 = vpack.c.b16 %v9508, %v9505
        %v10055 = vpack.c.b16 %v9509, %v9506
        %v10056 = vpack.c.b16 %v9510, %v9507
        %v10057 = vpack.c.b16 %v9514, %v9511
        %v10058 = vpack.c.b16 %v9515, %v9512
        %v10059 = vpack.c.b16 %v9516, %v9513
        %v10060 = vpack.c.b16 %v9520, %v9517
        %v10061 = vpack.c.b16 %v9521, %v9518
        %v10062 = vpack.c.b16 %v9522, %v9519
        %v10063 = vpack.c.b16 %v9526, %v9523
        %v10064 = vpack.c.b16 %v9527, %v9524
        %v10065 = vpack.c.b16 %v9528, %v9525
        %v10066 = vpack.c.b16 %v9532, %v9529
        %v10067 = vpack.c.b16 %v9533, %v9530
        %v10068 = vpack.c.b16 %v9534, %v9531
        %v10069 = vpack.c.b16 %v9538, %v9535
        %v10070 = vpack.c.b16 %v9539, %v9536
        %v10071 = vpack.c.b16 %v9540, %v9537
        %v10072 = vpack.c.b16 %v9544, %v9541
        %v10073 = vpack.c.b16 %v9545, %v9542
        %v10074 = vpack.c.b16 %v9546, %v9543
        %v10075 = vpack.c.b16 %v9550, %v9547
        %v10076 = vpack.c.b16 %v9551, %v9548
        %v10077 = vpack.c.b16 %v9552, %v9549
        %v10078 = vpack.c.b16 %v9556, %v9553
        %v10079 = vpack.c.b16 %v9557, %v9554
        %v10080 = vpack.c.b16 %v9558, %v9555
        %v10081 = vpack.c.b16 %v9562, %v9559
        %v10082 = vpack.c.b16 %v9563, %v9560
        %v10083 = vpack.c.b16 %v9564, %v9561
        %v10084 = vpack.c.b16 %v9568, %v9565
        %v10085 = vpack.c.b16 %v9569, %v9566
        %v10086 = vpack.c.b16 %v9570, %v9567
        %v10087 = vpack.c.b16 %v9574, %v9571
        %v10088 = vpack.c.b16 %v9575, %v9572
        %v10089 = vpack.c.b16 %v9576, %v9573
        %v10090 = vpack.c.b16 %v9580, %v9577
        %v10091 = vpack.c.b16 %v9581, %v9578
        %v10092 = vpack.c.b16 %v9582, %v9579
        %v10093 = vpack.c.b16 %v9586, %v9583
        %v10094 = vpack.c.b16 %v9587, %v9584
        %v10095 = vpack.c.b16 %v9588, %v9585
        %v10096 = vpack.c.b16 %v9592, %v9589
        %v10097 = vpack.c.b16 %v9593, %v9590
        %v10098 = vpack.c.b16 %v9594, %v9591
        %v10099 = vpack.c.b16 %v9598, %v9595
        %v10100 = vpack.c.b16 %v9599, %v9596
        %v10101 = vpack.c.b16 %v9600, %v9597
        %v10102 = vpack.c.b16 %v9604, %v9601
        %v10103 = vpack.c.b16 %v9605, %v9602
        %v10104 = vpack.c.b16 %v9606, %v9603
        %v10105 = vpack.c.b16 %v9610, %v9607
        %v10106 = vpack.c.b16 %v9611, %v9608
        %v10107 = vpack.c.b16 %v9612, %v9609
        %v10108 = vpack.c.b16 %v9616, %v9613
        %v10109 = vpack.c.b16 %v9617, %v9614
        %v10110 = vpack.c.b16 %v9618, %v9615
        %v10111 = vpack.c.b16 %v9622, %v9619
        %v10112 = vpack.c.b16 %v9623, %v9620
        %v10113 = vpack.c.b16 %v9624, %v9621
        %v10114 = vpack.c.b16 %v9628, %v9625
        %v10115 = vpack.c.b16 %v9629, %v9626
        %v10116 = vpack.c.b16 %v9630, %v9627
        %v10117 = vpack.c.b16 %v9634, %v9631
        %v10118 = vpack.c.b16 %v9635, %v9632
        %v10119 = vpack.c.b16 %v9636, %v9633
        %v10120 = vpack.c.b16 %v9640, %v9637
        %v10121 = vpack.c.b16 %v9641, %v9638
        %v10122 = vpack.c.b16 %v9642, %v9639
        %v10123 = vpack.c.b16 %v9646, %v9643
        %v10124 = vpack.c.b16 %v9647, %v9644
        %v10125 = vpack.c.b16 %v9648, %v9645
        %v10126 = vpack.c.b16 %v9652, %v9649
        %v10127 = vpack.c.b16 %v9653, %v9650
        %v10128 = vpack.c.b16 %v9654, %v9651
        %v10129 = vpack.c.b16 %v9658, %v9655
        %v10130 = vpack.c.b16 %v9659, %v9656
        %v10131 = vpack.c.b16 %v9660, %v9657
        %v10132 = vpack.c.b16 %v9664, %v9661
        %v10133 = vpack.c.b16 %v9665, %v9662
        %v10134 = vpack.c.b16 %v9666, %v9663
        %v10135 = vpack.c.b16 %v9670, %v9667
        %v10136 = vpack.c.b16 %v9671, %v9668
        %v10137 = vpack.c.b16 %v9672, %v9669
        %v10138 = vpack.c.b16 %v9676, %v9673
        %v10139 = vpack.c.b16 %v9677, %v9674
        %v10140 = vpack.c.b16 %v9678, %v9675
        %v10141 = vpack.c.b16 %v9682, %v9679
        %v10142 = vpack.c.b16 %v9683, %v9680
        %v10143 = vpack.c.b16 %v9684, %v9681
        %v10144 = vpack.c.b16 %v9688, %v9685
        %v10145 = vpack.c.b16 %v9689, %v9686
        %v10146 = vpack.c.b16 %v9690, %v9687
        %v10147 = vpack.c.b16 %v9694, %v9691
        %v10148 = vpack.c.b16 %v9695, %v9692
        %v10149 = vpack.c.b16 %v9696, %v9693
        %v10150 = vpack.c.b16 %v9700, %v9697
        %v10151 = vpack.c.b16 %v9701, %v9698
        %v10152 = vpack.c.b16 %v9702, %v9699
        %v10153 = vpack.c.b16 %v9706, %v9703
        %v10154 = vpack.c.b16 %v9707, %v9704
        %v10155 = vpack.c.b16 %v9708, %v9705
        %v10156 = vpack.c.b16 %v9712, %v9709
        %v10157 = vpack.c.b16 %v9713, %v9710
        %v10158 = vpack.c.b16 %v9714, %v9711
        %v10159 = vpack.c.b16 %v9718, %v9715
        %v10160 = vpack.c.b16 %v9719, %v9716
        %v10161 = vpack.c.b16 %v9720, %v9717
        %v10162 = vpack.c.b16 %v9724, %v9721
        %v10163 = vpack.c.b16 %v9725, %v9722
        %v10164 = vpack.c.b16 %v9726, %v9723
        %v10165 = vpack.c.b16 %v9730, %v9727
        %v10166 = vpack.c.b16 %v9731, %v9728
        %v10167 = vpack.c.b16 %v9732, %v9729
        %v10168 = vpack.c.b16 %v9736, %v9733
        %v10169 = vpack.c.b16 %v9737, %v9734
        %v10170 = vpack.c.b16 %v9738, %v9735
        %v10171 = vpack.c.b16 %v9742, %v9739
        %v10172 = vpack.c.b16 %v9743, %v9740
        %v10173 = vpack.c.b16 %v9744, %v9741
        %v10174 = vpack.c.b16 %v9748, %v9745
        %v10175 = vpack.c.b16 %v9749, %v9746
        %v10176 = vpack.c.b16 %v9750, %v9747
        %v10177 = vpack.c.b16 %v9754, %v9751
        %v10178 = vpack.c.b16 %v9755, %v9752
        %v10179 = vpack.c.b16 %v9756, %v9753
        %v10180 = vpack.c.b16 %v9760, %v9757
        %v10181 = vpack.c.b16 %v9761, %v9758
        %v10182 = vpack.c.b16 %v9762, %v9759
        %v10183 = vpack.c.b16 %v9766, %v9763
        %v10184 = vpack.c.b16 %v9767, %v9764
        %v10185 = vpack.c.b16 %v9768, %v9765
        %v10186 = vpack.c.b16 %v9772, %v9769
        %v10187 = vpack.c.b16 %v9773, %v9770
        %v10188 = vpack.c.b16 %v9774, %v9771
        %v10189 = vpack.c.b16 %v9778, %v9775
        %v10190 = vpack.c.b16 %v9779, %v9776
        %v10191 = vpack.c.b16 %v9780, %v9777
        %v10192 = vpack.c.b16 %v9784, %v9781
        %v10193 = vpack.c.b16 %v9785, %v9782
        %v10194 = vpack.c.b16 %v9786, %v9783
        %v10195 = vpack.c.b16 %v9790, %v9787
        %v10196 = vpack.c.b16 %v9791, %v9788
        %v10197 = vpack.c.b16 %v9792, %v9789
        %v10198 = vpack.c.b16 %v9796, %v9793
        %v10199 = vpack.c.b16 %v9797, %v9794
        %v10200 = vpack.c.b16 %v9798, %v9795
        %v10201 = vpack.c.b16 %v9802, %v9799
        %v10202 = vpack.c.b16 %v9803, %v9800
        %v10203 = vpack.c.b16 %v9804, %v9801
        %v10204 = vpack.c.b16 %v9808, %v9805
        %v10205 = vpack.c.b16 %v9809, %v9806
        %v10206 = vpack.c.b16 %v9810, %v9807
        %v10207 = vpack.c.b16 %v9814, %v9811
        %v10208 = vpack.c.b16 %v9815, %v9812
        %v10209 = vpack.c.b16 %v9816, %v9813
        %v10210 = vpack.c.b16 %v9820, %v9817
        %v10211 = vpack.c.b16 %v9821, %v9818
        %v10212 = vpack.c.b16 %v9822, %v9819
        %v10213 = vpack.c.b16 %v9826, %v9823
        %v10214 = vpack.c.b16 %v9827, %v9824
        %v10215 = vpack.c.b16 %v9828, %v9825
        %v10216 = vpack.c.b16 %v9832, %v9829
        %v10217 = vpack.c.b16 %v9833, %v9830
        %v10218 = vpack.c.b16 %v9834, %v9831
        %v10219 = vpack.c.b16 %v9838, %v9835
        %v10220 = vpack.c.b16 %v9839, %v9836
        %v10221 = vpack.c.b16 %v9840, %v9837
        %v10222 = vpack.c.b16 %v9844, %v9841
        %v10223 = vpack.c.b16 %v9845, %v9842
        %v10224 = vpack.c.b16 %v9846, %v9843
        %v10225 = vpack.c.b16 %v9850, %v9847
        %v10226 = vpack.c.b16 %v9851, %v9848
        %v10227 = vpack.c.b16 %v9852, %v9849
        %v10228 = vpack.c.b16 %v9856, %v9853
        %v10229 = vpack.c.b16 %v9857, %v9854
        %v10230 = vpack.c.b16 %v9858, %v9855
        %v10231 = vpack.c.b16 %v9862, %v9859
        %v10232 = vpack.c.b16 %v9863, %v9860
        %v10233 = vpack.c.b16 %v9864, %v9861
        %v10234 = vpack.c.b16 %v9868, %v9865
        %v10235 = vpack.c.b16 %v9869, %v9866
        %v10236 = vpack.c.b16 %v9870, %v9867
        %v10237 = vpack.c.b16 %v9874, %v9871
        %v10238 = vpack.c.b16 %v9875, %v9872
        %v10239 = vpack.c.b16 %v9876, %v9873
        %v10240 = vpack.c.b16 %v9880, %v9877
        %v10241 = vpack.c.b16 %v9881, %v9878
        %v10242 = vpack.c.b16 %v9882, %v9879
        %v10243 = vpack.c.b16 %v9886, %v9883
        %v10244 = vpack.c.b16 %v9887, %v9884
        %v10245 = vpack.c.b16 %v9888, %v9885
        %v10246 = vpack.c.b16 %v9892, %v9889
        %v10247 = vpack.c.b16 %v9893, %v9890
        %v10248 = vpack.c.b16 %v9894, %v9891
        %v10249 = vpack.c.b16 %v9898, %v9895
        %v10250 = vpack.c.b16 %v9899, %v9896
        %v10251 = vpack.c.b16 %v9900, %v9897
        %v10252 = vpack.c.b16 %v9904, %v9901
        %v10253 = vpack.c.b16 %v9905, %v9902
        %v10254 = vpack.c.b16 %v9906, %v9903
        %v10255 = vpack.c.b16 %v9910, %v9907
        %v10256 = vpack.c.b16 %v9911, %v9908
        %v10257 = vpack.c.b16 %v9912, %v9909
        %v10258 = vpack.c.b16 %v9916, %v9913
        %v10259 = vpack.c.b16 %v9917, %v9914
        %v10260 = vpack.c.b16 %v9918, %v9915
        %v10261 = vpack.c.b16 %v9922, %v9919
        %v10262 = vpack.c.b16 %v9923, %v9920
        %v10263 = vpack.c.b16 %v9924, %v9921
        %v10264 = vpack.c.b16 %v9928, %v9925
        %v10265 = vpack.c.b16 %v9929, %v9926
        %v10266 = vpack.c.b16 %v9930, %v9927
        %v10267 = vpack.c.b16 %v9934, %v9931
        %v10268 = vpack.c.b16 %v9935, %v9932
        %v10269 = vpack.c.b16 %v9936, %v9933
        %v10270 = vpack.c.b16 %v9940, %v9937
        %v10271 = vpack.c.b16 %v9941, %v9938
        %v10272 = vpack.c.b16 %v9942, %v9939
        %v10273 = vpack.c.b16 %v9946, %v9943
        %v10274 = vpack.c.b16 %v9947, %v9944
        %v10275 = vpack.c.b16 %v9948, %v9945
        %v10276 = vpack.c.b16 %v9952, %v9949
        %v10277 = vpack.c.b16 %v9953, %v9950
        %v10278 = vpack.c.b16 %v9954, %v9951
        %v10279 = vpack.c.b16 %v9958, %v9955
        %v10280 = vpack.c.b16 %v9959, %v9956
        %v10281 = vpack.c.b16 %v9960, %v9957
        %v10282 = vpack.c.b16 %v9964, %v9961
        %v10283 = vpack.c.b16 %v9965, %v9962
        %v10284 = vpack.c.b16 %v9966, %v9963
        %v10285 = vpack.c.b16 %v9970, %v9967
        %v10286 = vpack.c.b16 %v9971, %v9968
        %v10287 = vpack.c.b16 %v9972, %v9969
        %v10288 = vpack.c.b16 %v9976, %v9973
        %v10289 = vpack.c.b16 %v9977, %v9974
        %v10290 = vpack.c.b16 %v9978, %v9975
        %v10291 = vpack.c.b16 %v9982, %v9979
        %v10292 = vpack.c.b16 %v9983, %v9980
        %v10293 = vpack.c.b16 %v9984, %v9981
        %v10294 = vpack.c.b16 %v9988, %v9985
        %v10295 = vpack.c.b16 %v9989, %v9986
        %v10296 = vpack.c.b16 %v9990, %v9987
        %v10297 = vpack.c.b16 %v9994, %v9991
        %v10298 = vpack.c.b16 %v9995, %v9992
        %v10299 = vpack.c.b16 %v9996, %v9993
        %v10300 = vpack.c.b16 %v10000, %v9997
        %v10301 = vpack.c.b16 %v10001, %v9998
        %v10302 = vpack.c.b16 %v10002, %v9999
        %v10303 = vpack.c.b16 %v10006, %v10003
        %v10304 = vpack.c.b16 %v10007, %v10004
        %v10305 = vpack.c.b16 %v10008, %v10005
        %v10306 = vpack.c.b16 %v10012, %v10009
        %v10307 = vpack.c.b16 %v10013, %v10010
        %v10308 = vpack.c.b16 %v10014, %v10011
        %v10309 = vpack.c.b16 %v10018, %v10015
        %v10310 = vpack.c.b16 %v10019, %v10016
        %v10311 = vpack.c.b16 %v10020, %v10017
        %v10312 = vpack.c.b16 %v10024, %v10021
        %v10313 = vpack.c.b16 %v10025, %v10022
        %v10314 = vpack.c.b16 %v10026, %v10023
        %10603 = vmatprep.subr.bf16.mxu0 %v10028
        %10604 = vmatpush1.bf16.msra.mxu0 %v10027
        %10605 = vmatprep.subr.bf16.mxu0 %v10031
        %10606 = vmatpush1.bf16.msra.mxu0 %v10030
        %10607 = vmatprep.subr.bf16.mxu0 %v10034
        %10608 = vmatpush1.bf16.msra.mxu0 %v10033
        %10609 = vmatprep.subr.bf16.mxu0 %v10037
        %10610 = vmatpush1.bf16.msra.mxu0 %v10036
        %10611 = vmatprep.subr.bf16.mxu0 %v10040
        %10612 = vmatpush1.bf16.msra.mxu0 %v10039
        %10613 = vmatprep.subr.bf16.mxu0 %v10043
        %10614 = vmatpush1.bf16.msra.mxu0 %v10042
        %10615 = vmatprep.subr.bf16.mxu0 %v10046
        %10616 = vmatpush1.bf16.msra.mxu0 %v10045
        %10617 = vmatprep.subr.bf16.mxu0 %v10049
        %10618 = vmatpush1.bf16.msra.mxu0 %v10048
        %10619 = vmatprep.subr.bf16.mxu0 %v10052
        %10620 = vmatpush1.bf16.msra.mxu0 %v10051
        %10621 = vmatprep.subr.bf16.mxu0 %v10055
        %10622 = vmatpush1.bf16.msra.mxu0 %v10054
        %10623 = vmatprep.subr.bf16.mxu0 %v10058
        %10624 = vmatpush1.bf16.msra.mxu0 %v10057
        %10625 = vmatprep.subr.bf16.mxu0 %v10061
        %10626 = vmatpush1.bf16.msra.mxu0 %v10060
        %10627 = vmatprep.subr.bf16.mxu0 %v10064
        %10628 = vmatpush1.bf16.msra.mxu0 %v10063
        %10629 = vmatprep.subr.bf16.mxu0 %v10067
        %10630 = vmatpush1.bf16.msra.mxu0 %v10066
        %10631 = vmatprep.subr.bf16.mxu0 %v10070
        %10632 = vmatpush1.bf16.msra.mxu0 %v10069
        %10633 = vmatprep.subr.bf16.mxu0 %v10073
        %10634 = vmatpush1.bf16.msra.mxu0 %v10072
        %10635 = vmatprep.mubr.bf16.mxu0 %v9040
        %10636 = vmatmul.mubr.bf16.gmra.mrb[0].mxu0 %v9039
        %v10637 = vpop.f32.mrb[0].mxu0
        %v10638 = vadd.f32 %v9055, %v10637
        %v10639 = vpop.f32.mrb[0].mxu0
        %v10640 = vadd.f32 %v9059, %v10639
        %v10641 = vpop.f32.mrb[0].mxu0
        %v10642 = vadd.f32 %v9055, %v10641
        %v10643 = vpop.f32.mrb[0].mxu0
        %v10644 = vadd.f32 %v9059, %v10643
        %10645 = vdwg.mxu0
        %10646 = vmatprep.subr.bf16.mxu0 %v10076
        %10647 = vmatpush1.bf16.msra.mxu0 %v10075
        %10648 = vmatprep.subr.bf16.mxu0 %v10079
        %10649 = vmatpush1.bf16.msra.mxu0 %v10078
        %10650 = vmatprep.subr.bf16.mxu0 %v10082
        %10651 = vmatpush1.bf16.msra.mxu0 %v10081
        %10652 = vmatprep.subr.bf16.mxu0 %v10085
        %10653 = vmatpush1.bf16.msra.mxu0 %v10084
        %10654 = vmatprep.subr.bf16.mxu0 %v10088
        %10655 = vmatpush1.bf16.msra.mxu0 %v10087
        %10656 = vmatprep.subr.bf16.mxu0 %v10091
        %10657 = vmatpush1.bf16.msra.mxu0 %v10090
        %10658 = vmatprep.subr.bf16.mxu0 %v10094
        %10659 = vmatpush1.bf16.msra.mxu0 %v10093
        %10660 = vmatprep.subr.bf16.mxu0 %v10097
        %10661 = vmatpush1.bf16.msra.mxu0 %v10096
        %10662 = vmatprep.subr.bf16.mxu0 %v10100
        %10663 = vmatpush1.bf16.msra.mxu0 %v10099
        %10664 = vmatprep.subr.bf16.mxu0 %v10103
        %10665 = vmatpush1.bf16.msra.mxu0 %v10102
        %10666 = vmatprep.subr.bf16.mxu0 %v10106
        %10667 = vmatpush1.bf16.msra.mxu0 %v10105
        %10668 = vmatprep.subr.bf16.mxu0 %v10109
        %10669 = vmatpush1.bf16.msra.mxu0 %v10108
        %10670 = vmatprep.subr.bf16.mxu0 %v10112
        %10671 = vmatpush1.bf16.msra.mxu0 %v10111
        %10672 = vmatprep.subr.bf16.mxu0 %v10115
        %10673 = vmatpush1.bf16.msra.mxu0 %v10114
        %10674 = vmatprep.subr.bf16.mxu0 %v10118
        %10675 = vmatpush1.bf16.msra.mxu0 %v10117
        %10676 = vmatprep.subr.bf16.mxu0 %v10121
        %10677 = vmatpush1.bf16.msra.mxu0 %v10120
        %10678 = vmatprep.mubr.bf16.mxu0 %v9042
        %10679 = vmatmul.mubr.bf16.gmra.mrb[0].mxu0 %v9041
        %v10680 = vpop.f32.mrb[0].mxu0
        %v10681 = vadd.f32 %v10638, %v10680
        %v10682 = vpop.f32.mrb[0].mxu0
        %v10683 = vadd.f32 %v10640, %v10682
        %v10684 = vpop.f32.mrb[0].mxu0
        %v10685 = vadd.f32 %v10642, %v10684
        %v10686 = vpop.f32.mrb[0].mxu0
        %v10687 = vadd.f32 %v10644, %v10686
        %10688 = vdwg.mxu0
        %10689 = vmatprep.subr.bf16.mxu0 %v10124
        %10690 = vmatpush1.bf16.msra.mxu0 %v10123
        %10691 = vmatprep.subr.bf16.mxu0 %v10127
        %10692 = vmatpush1.bf16.msra.mxu0 %v10126
        %10693 = vmatprep.subr.bf16.mxu0 %v10130
        %10694 = vmatpush1.bf16.msra.mxu0 %v10129
        %10695 = vmatprep.subr.bf16.mxu0 %v10133
        %10696 = vmatpush1.bf16.msra.mxu0 %v10132
        %10697 = vmatprep.subr.bf16.mxu0 %v10136
        %10698 = vmatpush1.bf16.msra.mxu0 %v10135
        %10699 = vmatprep.subr.bf16.mxu0 %v10139
        %10700 = vmatpush1.bf16.msra.mxu0 %v10138
        %10701 = vmatprep.subr.bf16.mxu0 %v10142
        %10702 = vmatpush1.bf16.msra.mxu0 %v10141
        %10703 = vmatprep.subr.bf16.mxu0 %v10145
        %10704 = vmatpush1.bf16.msra.mxu0 %v10144
        %10705 = vmatprep.subr.bf16.mxu0 %v10148
        %10706 = vmatpush1.bf16.msra.mxu0 %v10147
        %10707 = vmatprep.subr.bf16.mxu0 %v10151
        %10708 = vmatpush1.bf16.msra.mxu0 %v10150
        %10709 = vmatprep.subr.bf16.mxu0 %v10154
        %10710 = vmatpush1.bf16.msra.mxu0 %v10153
        %10711 = vmatprep.subr.bf16.mxu0 %v10157
        %10712 = vmatpush1.bf16.msra.mxu0 %v10156
        %10713 = vmatprep.subr.bf16.mxu0 %v10160
        %10714 = vmatpush1.bf16.msra.mxu0 %v10159
        %10715 = vmatprep.subr.bf16.mxu0 %v10163
        %10716 = vmatpush1.bf16.msra.mxu0 %v10162
        %10717 = vmatprep.subr.bf16.mxu0 %v10166
        %10718 = vmatpush1.bf16.msra.mxu0 %v10165
        %10719 = vmatprep.subr.bf16.mxu0 %v10169
        %10720 = vmatpush1.bf16.msra.mxu0 %v10168
        %10721 = vmatprep.mubr.bf16.mxu0 %v9044
        %10722 = vmatmul.mubr.bf16.gmra.mrb[0].mxu0 %v9043
        %v10723 = vpop.f32.mrb[0].mxu0
        %v10724 = vadd.f32 %v10681, %v10723
        %v10725 = vpop.f32.mrb[0].mxu0
        %v10726 = vadd.f32 %v10683, %v10725
        %v10727 = vpop.f32.mrb[0].mxu0
        %v10728 = vadd.f32 %v10685, %v10727
        %v10729 = vpop.f32.mrb[0].mxu0
        %v10730 = vadd.f32 %v10687, %v10729
        %10731 = vdwg.mxu0
        %10732 = vmatprep.subr.bf16.mxu0 %v10172
        %10733 = vmatpush1.bf16.msra.mxu0 %v10171
        %10734 = vmatprep.subr.bf16.mxu0 %v10175
        %10735 = vmatpush1.bf16.msra.mxu0 %v10174
        %10736 = vmatprep.subr.bf16.mxu0 %v10178
        %10737 = vmatpush1.bf16.msra.mxu0 %v10177
        %10738 = vmatprep.subr.bf16.mxu0 %v10181
        %10739 = vmatpush1.bf16.msra.mxu0 %v10180
        %10740 = vmatprep.subr.bf16.mxu0 %v10184
        %10741 = vmatpush1.bf16.msra.mxu0 %v10183
        %10742 = vmatprep.subr.bf16.mxu0 %v10187
        %10743 = vmatpush1.bf16.msra.mxu0 %v10186
        %10744 = vmatprep.subr.bf16.mxu0 %v10190
        %10745 = vmatpush1.bf16.msra.mxu0 %v10189
        %10746 = vmatprep.subr.bf16.mxu0 %v10193
        %10747 = vmatpush1.bf16.msra.mxu0 %v10192
        %10748 = vmatprep.subr.bf16.mxu0 %v10196
        %10749 = vmatpush1.bf16.msra.mxu0 %v10195
        %10750 = vmatprep.subr.bf16.mxu0 %v10199
        %10751 = vmatpush1.bf16.msra.mxu0 %v10198
        %10752 = vmatprep.subr.bf16.mxu0 %v10202
        %10753 = vmatpush1.bf16.msra.mxu0 %v10201
        %10754 = vmatprep.subr.bf16.mxu0 %v10205
        %10755 = vmatpush1.bf16.msra.mxu0 %v10204
        %10756 = vmatprep.subr.bf16.mxu0 %v10208
        %10757 = vmatpush1.bf16.msra.mxu0 %v10207
        %10758 = vmatprep.subr.bf16.mxu0 %v10211
        %10759 = vmatpush1.bf16.msra.mxu0 %v10210
        %10760 = vmatprep.subr.bf16.mxu0 %v10214
        %10761 = vmatpush1.bf16.msra.mxu0 %v10213
        %10762 = vmatprep.subr.bf16.mxu0 %v10217
        %10763 = vmatpush1.bf16.msra.mxu0 %v10216
        %10764 = vmatprep.mubr.bf16.mxu0 %v9046
        %10765 = vmatmul.mubr.bf16.gmra.mrb[0].mxu0 %v9045
        %v10766 = vpop.f32.mrb[0].mxu0
        %v10767 = vadd.f32 %v10724, %v10766
        %v10768 = vpop.f32.mrb[0].mxu0
        %v10769 = vadd.f32 %v10726, %v10768
        %v10770 = vpop.f32.mrb[0].mxu0
        %v10771 = vadd.f32 %v10728, %v10770
        %v10772 = vpop.f32.mrb[0].mxu0
        %v10773 = vadd.f32 %v10730, %v10772
        %10774 = vdwg.mxu0
        %10775 = vmatprep.subr.bf16.mxu0 %v10220
        %10776 = vmatpush1.bf16.msra.mxu0 %v10219
        %10777 = vmatprep.subr.bf16.mxu0 %v10223
        %10778 = vmatpush1.bf16.msra.mxu0 %v10222
        %10779 = vmatprep.subr.bf16.mxu0 %v10226
        %10780 = vmatpush1.bf16.msra.mxu0 %v10225
        %10781 = vmatprep.subr.bf16.mxu0 %v10229
        %10782 = vmatpush1.bf16.msra.mxu0 %v10228
        %10783 = vmatprep.subr.bf16.mxu0 %v10232
        %10784 = vmatpush1.bf16.msra.mxu0 %v10231
        %10785 = vmatprep.subr.bf16.mxu0 %v10235
        %10786 = vmatpush1.bf16.msra.mxu0 %v10234
        %10787 = vmatprep.subr.bf16.mxu0 %v10238
        %10788 = vmatpush1.bf16.msra.mxu0 %v10237
        %10789 = vmatprep.subr.bf16.mxu0 %v10241
        %10790 = vmatpush1.bf16.msra.mxu0 %v10240
        %10791 = vmatprep.subr.bf16.mxu0 %v10244
        %10792 = vmatpush1.bf16.msra.mxu0 %v10243
        %10793 = vmatprep.subr.bf16.mxu0 %v10247
        %10794 = vmatpush1.bf16.msra.mxu0 %v10246
        %10795 = vmatprep.subr.bf16.mxu0 %v10250
        %10796 = vmatpush1.bf16.msra.mxu0 %v10249
        %10797 = vmatprep.subr.bf16.mxu0 %v10253
        %10798 = vmatpush1.bf16.msra.mxu0 %v10252
        %10799 = vmatprep.subr.bf16.mxu0 %v10256
        %10800 = vmatpush1.bf16.msra.mxu0 %v10255
        %10801 = vmatprep.subr.bf16.mxu0 %v10259
        %10802 = vmatpush1.bf16.msra.mxu0 %v10258
        %10803 = vmatprep.subr.bf16.mxu0 %v10262
        %10804 = vmatpush1.bf16.msra.mxu0 %v10261
        %10805 = vmatprep.subr.bf16.mxu0 %v10265
        %10806 = vmatpush1.bf16.msra.mxu0 %v10264
        %10807 = vmatprep.mubr.bf16.mxu0 %v9048
        %10808 = vmatmul.mubr.bf16.gmra.mrb[0].mxu0 %v9047
        %v10809 = vpop.f32.mrb[0].mxu0
        %v10810 = vadd.f32 %v10767, %v10809
        %v10811 = vpop.f32.mrb[0].mxu0
        %v10812 = vadd.f32 %v10769, %v10811
        %v10813 = vpop.f32.mrb[0].mxu0
        %v10814 = vadd.f32 %v10771, %v10813
        %v10815 = vpop.f32.mrb[0].mxu0
        %v10816 = vadd.f32 %v10773, %v10815
        %10817 = vdwg.mxu0
        %10818 = vmatprep.subr.bf16.mxu0 %v10268
        %10819 = vmatpush1.bf16.msra.mxu0 %v10267
        %10820 = vmatprep.subr.bf16.mxu0 %v10271
        %10821 = vmatpush1.bf16.msra.mxu0 %v10270
        %10822 = vmatprep.subr.bf16.mxu0 %v10274
        %10823 = vmatpush1.bf16.msra.mxu0 %v10273
        %10824 = vmatprep.subr.bf16.mxu0 %v10277
        %10825 = vmatpush1.bf16.msra.mxu0 %v10276
        %10826 = vmatprep.subr.bf16.mxu0 %v10280
        %10827 = vmatpush1.bf16.msra.mxu0 %v10279
        %10828 = vmatprep.subr.bf16.mxu0 %v10283
        %10829 = vmatpush1.bf16.msra.mxu0 %v10282
        %10830 = vmatprep.subr.bf16.mxu0 %v10286
        %10831 = vmatpush1.bf16.msra.mxu0 %v10285
        %10832 = vmatprep.subr.bf16.mxu0 %v10289
        %10833 = vmatpush1.bf16.msra.mxu0 %v10288
        %10834 = vmatprep.subr.bf16.mxu0 %v10292
        %10835 = vmatpush1.bf16.msra.mxu0 %v10291
        %10836 = vmatprep.subr.bf16.mxu0 %v10295
        %10837 = vmatpush1.bf16.msra.mxu0 %v10294
        %10838 = vmatprep.subr.bf16.mxu0 %v10298
        %10839 = vmatpush1.bf16.msra.mxu0 %v10297
        %10840 = vmatprep.subr.bf16.mxu0 %v10301
        %10841 = vmatpush1.bf16.msra.mxu0 %v10300
        %10842 = vmatprep.subr.bf16.mxu0 %v10304
        %10843 = vmatpush1.bf16.msra.mxu0 %v10303
        %10844 = vmatprep.subr.bf16.mxu0 %v10307
        %10845 = vmatpush1.bf16.msra.mxu0 %v10306
        %10846 = vmatprep.subr.bf16.mxu0 %v10310
        %10847 = vmatpush1.bf16.msra.mxu0 %v10309
        %10848 = vmatprep.subr.bf16.mxu0 %v10313
        %10849 = vmatpush1.bf16.msra.mxu0 %v10312
        %10850 = vmatprep.mubr.bf16.mxu0 %v9050
        %10851 = vmatmul.mubr.bf16.gmra.mrb[0].mxu0 %v9049
        %v10852 = vpop.f32.mrb[0].mxu0
        %v10853 = vadd.f32 %v10810, %v10852
        %v10854 = vpop.f32.mrb[0].mxu0
        %v10855 = vadd.f32 %v10812, %v10854
        %v10856 = vpop.f32.mrb[0].mxu0
        %v10857 = vadd.f32 %v10814, %v10856
        %v10858 = vpop.f32.mrb[0].mxu0
        %v10859 = vadd.f32 %v10816, %v10858
        %10860 = vdwg.mxu0
        %10861 = vmatprep.subr.bf16.mxu0 0
        %10862 = vmatpush1.bf16.msra.mxu0 %v10029
        %10863 = vmatprep.subr.bf16.mxu0 0
        %10864 = vmatpush1.bf16.msra.mxu0 %v10032
        %10865 = vmatprep.subr.bf16.mxu0 0
        %10866 = vmatpush1.bf16.msra.mxu0 %v10035
        %10867 = vmatprep.subr.bf16.mxu0 0
        %10868 = vmatpush1.bf16.msra.mxu0 %v10038
        %10869 = vmatprep.subr.bf16.mxu0 0
        %10870 = vmatpush1.bf16.msra.mxu0 %v10041
        %10871 = vmatprep.subr.bf16.mxu0 0
        %10872 = vmatpush1.bf16.msra.mxu0 %v10044
        %10873 = vmatprep.subr.bf16.mxu0 0
        %10874 = vmatpush1.bf16.msra.mxu0 %v10047
        %10875 = vmatprep.subr.bf16.mxu0 0
        %10876 = vmatpush1.bf16.msra.mxu0 %v10050
        %10877 = vmatprep.subr.bf16.mxu0 0
        %10878 = vmatpush1.bf16.msra.mxu0 %v10053
        %10879 = vmatprep.subr.bf16.mxu0 0
        %10880 = vmatpush1.bf16.msra.mxu0 %v10056
        %10881 = vmatprep.subr.bf16.mxu0 0
        %10882 = vmatpush1.bf16.msra.mxu0 %v10059
        %10883 = vmatprep.subr.bf16.mxu0 0
        %10884 = vmatpush1.bf16.msra.mxu0 %v10062
        %10885 = vmatprep.subr.bf16.mxu0 0
        %10886 = vmatpush1.bf16.msra.mxu0 %v10065
        %10887 = vmatprep.subr.bf16.mxu0 0
        %10888 = vmatpush1.bf16.msra.mxu0 %v10068
        %10889 = vmatprep.subr.bf16.mxu0 0
        %10890 = vmatpush1.bf16.msra.mxu0 %v10071
        %10891 = vmatprep.subr.bf16.mxu0 0
        %10892 = vmatpush1.bf16.msra.mxu0 %v10074
        %10893 = vmatprep.mubr.bf16.mxu0 %v9040
        %10894 = vmatmul.mubr.bf16.gmra.mrb[0].mxu0 %v9039
        %v10895 = vpop.f32.mrb[0].mxu0
        %v10896 = vadd.f32 %v9063, %v10895
        %v10897 = vpop.f32.mrb[0].mxu0
        %v10898 = vpop.f32.mrb[0].mxu0
        %v10899 = vadd.f32 %v9063, %v10898
        %v10900 = vpop.f32.mrb[0].mxu0
        %10901 = vdwg.mxu0
        %10902 = vmatprep.subr.bf16.mxu0 0
        %10903 = vmatpush1.bf16.msra.mxu0 %v10077
        %10904 = vmatprep.subr.bf16.mxu0 0
        %10905 = vmatpush1.bf16.msra.mxu0 %v10080
        %10906 = vmatprep.subr.bf16.mxu0 0
        %10907 = vmatpush1.bf16.msra.mxu0 %v10083
        %10908 = vmatprep.subr.bf16.mxu0 0
        %10909 = vmatpush1.bf16.msra.mxu0 %v10086
        %10910 = vmatprep.subr.bf16.mxu0 0
        %10911 = vmatpush1.bf16.msra.mxu0 %v10089
        %10912 = vmatprep.subr.bf16.mxu0 0
        %10913 = vmatpush1.bf16.msra.mxu0 %v10092
        %10914 = vmatprep.subr.bf16.mxu0 0
        %10915 = vmatpush1.bf16.msra.mxu0 %v10095
        %10916 = vmatprep.subr.bf16.mxu0 0
        %10917 = vmatpush1.bf16.msra.mxu0 %v10098
        %10918 = vmatprep.subr.bf16.mxu0 0
        %10919 = vmatpush1.bf16.msra.mxu0 %v10101
        %10920 = vmatprep.subr.bf16.mxu0 0
        %10921 = vmatpush1.bf16.msra.mxu0 %v10104
        %10922 = vmatprep.subr.bf16.mxu0 0
        %10923 = vmatpush1.bf16.msra.mxu0 %v10107
        %10924 = vmatprep.subr.bf16.mxu0 0
        %10925 = vmatpush1.bf16.msra.mxu0 %v10110
        %10926 = vmatprep.subr.bf16.mxu0 0
        %10927 = vmatpush1.bf16.msra.mxu0 %v10113
        %10928 = vmatprep.subr.bf16.mxu0 0
        %10929 = vmatpush1.bf16.msra.mxu0 %v10116
        %10930 = vmatprep.subr.bf16.mxu0 0
        %10931 = vmatpush1.bf16.msra.mxu0 %v10119
        %10932 = vmatprep.subr.bf16.mxu0 0
        %10933 = vmatpush1.bf16.msra.mxu0 %v10122
        %10934 = vmatprep.mubr.bf16.mxu0 %v9042
        %10935 = vmatmul.mubr.bf16.gmra.mrb[0].mxu0 %v9041
        %v10936 = vpop.f32.mrb[0].mxu0
        %v10937 = vadd.f32 %v10896, %v10936
        %v10938 = vpop.f32.mrb[0].mxu0
        %v10939 = vpop.f32.mrb[0].mxu0
        %v10940 = vadd.f32 %v10899, %v10939
        %v10941 = vpop.f32.mrb[0].mxu0
        %10942 = vdwg.mxu0
        %10943 = vmatprep.subr.bf16.mxu0 0
        %10944 = vmatpush1.bf16.msra.mxu0 %v10125
        %10945 = vmatprep.subr.bf16.mxu0 0
        %10946 = vmatpush1.bf16.msra.mxu0 %v10128
        %10947 = vmatprep.subr.bf16.mxu0 0
        %10948 = vmatpush1.bf16.msra.mxu0 %v10131
        %10949 = vmatprep.subr.bf16.mxu0 0
        %10950 = vmatpush1.bf16.msra.mxu0 %v10134
        %10951 = vmatprep.subr.bf16.mxu0 0
        %10952 = vmatpush1.bf16.msra.mxu0 %v10137
        %10953 = vmatprep.subr.bf16.mxu0 0
        %10954 = vmatpush1.bf16.msra.mxu0 %v10140
        %10955 = vmatprep.subr.bf16.mxu0 0
        %10956 = vmatpush1.bf16.msra.mxu0 %v10143
        %10957 = vmatprep.subr.bf16.mxu0 0
        %10958 = vmatpush1.bf16.msra.mxu0 %v10146
        %10959 = vmatprep.subr.bf16.mxu0 0
        %10960 = vmatpush1.bf16.msra.mxu0 %v10149
        %10961 = vmatprep.subr.bf16.mxu0 0
        %10962 = vmatpush1.bf16.msra.mxu0 %v10152
        %10963 = vmatprep.subr.bf16.mxu0 0
        %10964 = vmatpush1.bf16.msra.mxu0 %v10155
        %10965 = vmatprep.subr.bf16.mxu0 0
        %10966 = vmatpush1.bf16.msra.mxu0 %v10158
        %10967 = vmatprep.subr.bf16.mxu0 0
        %10968 = vmatpush1.bf16.msra.mxu0 %v10161
        %10969 = vmatprep.subr.bf16.mxu0 0
        %10970 = vmatpush1.bf16.msra.mxu0 %v10164
        %10971 = vmatprep.subr.bf16.mxu0 0
        %10972 = vmatpush1.bf16.msra.mxu0 %v10167
        %10973 = vmatprep.subr.bf16.mxu0 0
        %10974 = vmatpush1.bf16.msra.mxu0 %v10170
        %10975 = vmatprep.mubr.bf16.mxu0 %v9044
        %10976 = vmatmul.mubr.bf16.gmra.mrb[0].mxu0 %v9043
        %v10977 = vpop.f32.mrb[0].mxu0
        %v10978 = vadd.f32 %v10937, %v10977
        %v10979 = vpop.f32.mrb[0].mxu0
        %v10980 = vpop.f32.mrb[0].mxu0
        %v10981 = vadd.f32 %v10940, %v10980
        %v10982 = vpop.f32.mrb[0].mxu0
        %10983 = vdwg.mxu0
        %10984 = vmatprep.subr.bf16.mxu0 0
        %10985 = vmatpush1.bf16.msra.mxu0 %v10173
        %10986 = vmatprep.subr.bf16.mxu0 0
        %10987 = vmatpush1.bf16.msra.mxu0 %v10176
        %10988 = vmatprep.subr.bf16.mxu0 0
        %10989 = vmatpush1.bf16.msra.mxu0 %v10179
        %10990 = vmatprep.subr.bf16.mxu0 0
        %10991 = vmatpush1.bf16.msra.mxu0 %v10182
        %10992 = vmatprep.subr.bf16.mxu0 0
        %10993 = vmatpush1.bf16.msra.mxu0 %v10185
        %10994 = vmatprep.subr.bf16.mxu0 0
        %10995 = vmatpush1.bf16.msra.mxu0 %v10188
        %10996 = vmatprep.subr.bf16.mxu0 0
        %10997 = vmatpush1.bf16.msra.mxu0 %v10191
        %10998 = vmatprep.subr.bf16.mxu0 0
        %10999 = vmatpush1.bf16.msra.mxu0 %v10194
        %11000 = vmatprep.subr.bf16.mxu0 0
        %11001 = vmatpush1.bf16.msra.mxu0 %v10197
        %11002 = vmatprep.subr.bf16.mxu0 0
        %11003 = vmatpush1.bf16.msra.mxu0 %v10200
        %11004 = vmatprep.subr.bf16.mxu0 0
        %11005 = vmatpush1.bf16.msra.mxu0 %v10203
        %11006 = vmatprep.subr.bf16.mxu0 0
        %11007 = vmatpush1.bf16.msra.mxu0 %v10206
        %11008 = vmatprep.subr.bf16.mxu0 0
        %11009 = vmatpush1.bf16.msra.mxu0 %v10209
        %11010 = vmatprep.subr.bf16.mxu0 0
        %11011 = vmatpush1.bf16.msra.mxu0 %v10212
        %11012 = vmatprep.subr.bf16.mxu0 0
        %11013 = vmatpush1.bf16.msra.mxu0 %v10215
        %11014 = vmatprep.subr.bf16.mxu0 0
        %11015 = vmatpush1.bf16.msra.mxu0 %v10218
        %11016 = vmatprep.mubr.bf16.mxu0 %v9046
        %11017 = vmatmul.mubr.bf16.gmra.mrb[0].mxu0 %v9045
        %v11018 = vpop.f32.mrb[0].mxu0
        %v11019 = vadd.f32 %v10978, %v11018
        %v11020 = vpop.f32.mrb[0].mxu0
        %v11021 = vpop.f32.mrb[0].mxu0
        %v11022 = vadd.f32 %v10981, %v11021
        %v11023 = vpop.f32.mrb[0].mxu0
        %11024 = vdwg.mxu0
        %11025 = vmatprep.subr.bf16.mxu0 0
        %11026 = vmatpush1.bf16.msra.mxu0 %v10221
        %11027 = vmatprep.subr.bf16.mxu0 0
        %11028 = vmatpush1.bf16.msra.mxu0 %v10224
        %11029 = vmatprep.subr.bf16.mxu0 0
        %11030 = vmatpush1.bf16.msra.mxu0 %v10227
        %11031 = vmatprep.subr.bf16.mxu0 0
        %11032 = vmatpush1.bf16.msra.mxu0 %v10230
        %11033 = vmatprep.subr.bf16.mxu0 0
        %11034 = vmatpush1.bf16.msra.mxu0 %v10233
        %11035 = vmatprep.subr.bf16.mxu0 0
        %11036 = vmatpush1.bf16.msra.mxu0 %v10236
        %11037 = vmatprep.subr.bf16.mxu0 0
        %11038 = vmatpush1.bf16.msra.mxu0 %v10239
        %11039 = vmatprep.subr.bf16.mxu0 0
        %11040 = vmatpush1.bf16.msra.mxu0 %v10242
        %11041 = vmatprep.subr.bf16.mxu0 0
        %11042 = vmatpush1.bf16.msra.mxu0 %v10245
        %11043 = vmatprep.subr.bf16.mxu0 0
        %11044 = vmatpush1.bf16.msra.mxu0 %v10248
        %11045 = vmatprep.subr.bf16.mxu0 0
        %11046 = vmatpush1.bf16.msra.mxu0 %v10251
        %11047 = vmatprep.subr.bf16.mxu0 0
        %11048 = vmatpush1.bf16.msra.mxu0 %v10254
        %11049 = vmatprep.subr.bf16.mxu0 0
        %11050 = vmatpush1.bf16.msra.mxu0 %v10257
        %11051 = vmatprep.subr.bf16.mxu0 0
        %11052 = vmatpush1.bf16.msra.mxu0 %v10260
        %11053 = vmatprep.subr.bf16.mxu0 0
        %11054 = vmatpush1.bf16.msra.mxu0 %v10263
        %11055 = vmatprep.subr.bf16.mxu0 0
        %11056 = vmatpush1.bf16.msra.mxu0 %v10266
        %11057 = vmatprep.mubr.bf16.mxu0 %v9048
        %11058 = vmatmul.mubr.bf16.gmra.mrb[0].mxu0 %v9047
        %v11059 = vpop.f32.mrb[0].mxu0
        %v11060 = vadd.f32 %v11019, %v11059
        %v11061 = vpop.f32.mrb[0].mxu0
        %v11062 = vpop.f32.mrb[0].mxu0
        %v11063 = vadd.f32 %v11022, %v11062
        %v11064 = vpop.f32.mrb[0].mxu0
        %11065 = vdwg.mxu0
        %11066 = vmatprep.subr.bf16.mxu0 0
        %11067 = vmatpush1.bf16.msra.mxu0 %v10269
        %11068 = vmatprep.subr.bf16.mxu0 0
        %11069 = vmatpush1.bf16.msra.mxu0 %v10272
        %11070 = vmatprep.subr.bf16.mxu0 0
        %11071 = vmatpush1.bf16.msra.mxu0 %v10275
        %11072 = vmatprep.subr.bf16.mxu0 0
        %11073 = vmatpush1.bf16.msra.mxu0 %v10278
        %11074 = vmatprep.subr.bf16.mxu0 0
        %11075 = vmatpush1.bf16.msra.mxu0 %v10281
        %11076 = vmatprep.subr.bf16.mxu0 0
        %11077 = vmatpush1.bf16.msra.mxu0 %v10284
        %11078 = vmatprep.subr.bf16.mxu0 0
        %11079 = vmatpush1.bf16.msra.mxu0 %v10287
        %11080 = vmatprep.subr.bf16.mxu0 0
        %11081 = vmatpush1.bf16.msra.mxu0 %v10290
        %11082 = vmatprep.subr.bf16.mxu0 0
        %11083 = vmatpush1.bf16.msra.mxu0 %v10293
        %11084 = vmatprep.subr.bf16.mxu0 0
        %11085 = vmatpush1.bf16.msra.mxu0 %v10296
        %11086 = vmatprep.subr.bf16.mxu0 0
        %11087 = vmatpush1.bf16.msra.mxu0 %v10299
        %11088 = vmatprep.subr.bf16.mxu0 0
        %11089 = vmatpush1.bf16.msra.mxu0 %v10302
        %11090 = vmatprep.subr.bf16.mxu0 0
        %11091 = vmatpush1.bf16.msra.mxu0 %v10305
        %11092 = vmatprep.subr.bf16.mxu0 0
        %11093 = vmatpush1.bf16.msra.mxu0 %v10308
        %11094 = vmatprep.subr.bf16.mxu0 0
        %11095 = vmatpush1.bf16.msra.mxu0 %v10311
        %11096 = vmatprep.subr.bf16.mxu0 0
        %11097 = vmatpush1.bf16.msra.mxu0 %v10314
        %11098 = vmatprep.mubr.bf16.mxu0 %v9050
        %11099 = vmatmul.mubr.bf16.gmra.mrb[0].mxu0 %v9049
        %v11100 = vpop.f32.mrb[0].mxu0
        %v11101 = vadd.f32 %v11060, %v11100
        %v11102 = vpop.f32.mrb[0].mxu0
        %v11103 = vpop.f32.mrb[0].mxu0
        %v11104 = vadd.f32 %v11063, %v11103
        %v11105 = vpop.f32.mrb[0].mxu0
        %11106 = vdwg.mxu0
        %v11107 = vadd.f32 %v5689, %v10853
        %v11108 = vadd.f32 %v5690, %v10855
        %v11109 = vadd.f32 %v5691, %v11101
        %v11110 = vadd.f32 %v5692, %v10857
        %v11111 = vadd.f32 %v5693, %v10859
        %v11112 = vadd.f32 %v5694, %v11104
        %v11113 = vld [vmem:[%s868] sm:$0x7]
        %v11114 = vld [vmem:[%s877] sm:$0x7]
        %v11115 = vadd.f32 %v11107, %v11108
        %v11116 = vadd.f32 %v11115, %v11109
        %11117 = vadd.xlane.f32.xlu0 %v11116
        %v11118 = vpop.xlane.xlu0 %11117
        %v11119 = vadd.f32 %v11110, %v11111
        %v11120 = vadd.f32 %v11119, %v11112
        %11121 = vadd.xlane.f32.xlu0 %v11120
        %v11122 = vpop.xlane.xlu0 %11121
        %v11123 = vmul.f32 %v11118, %v5616
        %v11124 = vmul.f32 %v11122, %v5616
        %v11125 = vsub.f32 %v11107, %v11123
        %v11126 = vsub.f32 %v11108, %v11123
        %v11127 = vsub.f32 %v11109, %v11123
        %v11128 = vsub.f32 %v11110, %v11124
        %v11129 = vsub.f32 %v11111, %v11124
        %v11130 = vsub.f32 %v11112, %v11124
        %v11131 = vmul.f32 %v11125, %v11125
        %v11132 = vmul.f32 %v11126, %v11126
        %v11133 = vmul.f32 %v11127, %v11127
        %v11134 = vmul.f32 %v11128, %v11128
        %v11135 = vmul.f32 %v11129, %v11129
        %v11136 = vmul.f32 %v11130, %v11130
        %v11137 = vadd.f32 %v11131, %v11132
        %v11138 = vadd.f32 %v11137, %v11133
        %11139 = vadd.xlane.f32.xlu0 %v11138
        %v11140 = vpop.xlane.xlu0 %11139
        %v11141 = vadd.f32 %v11134, %v11135
        %v11142 = vadd.f32 %v11141, %v11136
        %11143 = vadd.xlane.f32.xlu0 %v11142
        %v11144 = vpop.xlane.xlu0 %11143
        %v11145 = vmul.f32 %v11140, %v5616
        %v11146 = vmul.f32 %v11144, %v5616
        %v11147 = vadd.f32 %v11145, 1e-12
        %v11148 = vadd.f32 %v11146, 1e-12
        %v11149 = vrsqrt.pop %v11147
        %v11150 = vrsqrt.pop %v11148
        %v11151 = vmul.f32 %v11125, %v11149
        %v11152 = vmul.f32 %v11126, %v11149
        %v11153 = vmul.f32 %v11127, %v11149
        %v11154 = vmul.f32 %v11128, %v11150
        %v11155 = vmul.f32 %v11129, %v11150
        %v11156 = vmul.f32 %v11130, %v11150
        %v11158 = vlaneseq
        %v11159 = vshrl.u32 %v11158, 7
        %v11160 = vsub.s32 0, %v11159
        %v11161 = vrot.slane %v11113, %v11160
        %v11162 = vlaneseq
        %v11163 = vshrl.u32 %v11162, 7
        %v11164 = vsub.s32 1, %v11163
        %v11165 = vrot.slane %v11113, %v11164
        %v11166 = vlaneseq
        %v11167 = vshrl.u32 %v11166, 7
        %v11168 = vsub.s32 2, %v11167
        %v11169 = vrot.slane %v11113, %v11168
        %v11173 = vmul.f32 %v11151, %v11161
        %v11174 = vmul.f32 %v11152, %v11165
        %v11175 = vmul.f32 %v11153, %v11169
        %v11176 = vmul.f32 %v11154, %v11161
        %v11177 = vmul.f32 %v11155, %v11165
        %v11178 = vmul.f32 %v11156, %v11169
        %v11180 = vlaneseq
        %v11181 = vshrl.u32 %v11180, 7
        %v11182 = vsub.s32 0, %v11181
        %v11183 = vrot.slane %v11114, %v11182
        %v11184 = vlaneseq
        %v11185 = vshrl.u32 %v11184, 7
        %v11186 = vsub.s32 1, %v11185
        %v11187 = vrot.slane %v11114, %v11186
        %v11188 = vlaneseq
        %v11189 = vshrl.u32 %v11188, 7
        %v11190 = vsub.s32 2, %v11189
        %v11191 = vrot.slane %v11114, %v11190
        %v11195 = vadd.f32 %v11173, %v11183
        %v11196 = vadd.f32 %v11174, %v11187
        %v11197 = vadd.f32 %v11175, %v11191
        %v11198 = vadd.f32 %v11176, %v11183
        %v11199 = vadd.f32 %v11177, %v11187
        %v11200 = vadd.f32 %v11178, %v11191
        %11201 = vst [vmem:[#allocation2] sm:$0xff] %v11195
        %11202 = vst [vmem:[#allocation2 + $0x8] sm:$0xff] %v11196
        %11203 = vst [vmem:[#allocation2 + $0x10] sm:$0xff] %v11197
        %11204 = vst [vmem:[#allocation2 + $0x18] sm:$0xff] %v11198
        %11205 = vst [vmem:[#allocation2 + $0x20] sm:$0xff] %v11199
        %11206 = vst [vmem:[#allocation2 + $0x28] sm:$0xff] %v11200
        %p11207 = scmp.eq.s32.totalorder %s32, 1
        // Predicated region
        $region153: #{metadata_regressor_forward.1} parent=87 // pred_check
          %p11208 = pneg %p11207
        $region154: #{metadata_regressor_forward.1} parent=87 // pred_check_branch
          %11210 = sbr.rel (%p11208) target = $region156
        $region155: #{metadata_regressor_forward.1} parent=87 // pred_region
          %v11211 = vld [vmem:[#allocation20] sm:$0x7]
          %v11213 = vlaneseq
          %v11214 = vshrl.u32 %v11213, 7
          %v11215 = vsub.s32 0, %v11214
          %v11216 = vrot.slane %v11211, %v11215
          %v11217 = vlaneseq
          %v11218 = vshrl.u32 %v11217, 7
          %v11219 = vsub.s32 1, %v11218
          %v11220 = vrot.slane %v11211, %v11219
          %v11221 = vlaneseq
          %v11222 = vshrl.u32 %v11221, 7
          %v11223 = vsub.s32 2, %v11222
          %v11224 = vrot.slane %v11211, %v11223
          %v11228 = vmul.f32 %v11195, %v11216
          %v11229 = vmul.f32 %v11196, %v11220
          %v11230 = vmul.f32 %v11197, %v11224
          %v11231 = vmul.f32 %v11198, %v11216
          %v11232 = vmul.f32 %v11199, %v11220
          %v11233 = vmul.f32 %v11200, %v11224
          %v11240 = vrot.slane %v11231, 7
          %vm11241 = vcmask 1041409
          %v11242 = vsel %vm11241, %v11240, %v11228
          %v11243 = vrot.slane %v11232, 7
          %v11244 = vsel %vm11241, %v11243, %v11229
          %v11245 = vrot.slane %v11233, 7
          %v11246 = vsel %vm11241, %v11245, %v11230
          %vm11250 = vcmask 1041408
          %v11251 = vsel %vm11250, %v11242, 0.0
          %v11252 = vsel %vm11250, %v11244, 0.0
          %v11253 = vadd.f32 %v11251, %v11252
          %v11254 = vsel %vm11250, %v11246, 0.0
          %v11255 = vadd.f32 %v11253, %v11254
          %11256 = vadd.xlane.f32.xlu0 %v11255
          %v11257 = vpop.xlane.xlu0 %11256
          %v11258 = vld [vmem:[#allocation3] sm:$0x1]
          %v11260 = vlaneseq
          %v11261 = vshrl.u32 %v11260, 7
          %v11262 = vsub.s32 0, %v11261
          %v11263 = vrot.slane %v11258, %v11262
          %v11265 = vadd.f32 %v11257, %v11263
          %vm11266 = vcmask 1024
          %11267 = vst.msk [vmem:[%s17] sm:$0x3] %vm11266, %v11265
        $region156: #{metadata_regressor_forward.1} parent=87 // pred_fallthru
          _
        // Predicated region
        $region157: #{metadata_regressor_forward.1} parent=87 // pred_check
          %p11268 = pneg %p462
        $region158: #{metadata_regressor_forward.1} parent=87 // pred_check_branch
          %11270 = sbr.rel (%p11268) target = $region160
        $region159: #{metadata_regressor_forward.1} parent=87 // pred_region
          _
        $region160: #{metadata_regressor_forward.1} parent=87 // pred_fallthru
          _
        // Predicated region
        $region161: #{metadata_regressor_forward.1} parent=87 // pred_check
          %p11271 = pneg %p462
        $region162: #{metadata_regressor_forward.1} parent=87 // pred_check_branch
          %11273 = sbr.rel (%p11271) target = $region164
        $region163: #{metadata_regressor_forward.1} parent=87 // pred_region
          _
        $region164: #{metadata_regressor_forward.1} parent=87 // pred_fallthru
          _
      $region88: #{metadata_regressor_forward.1} parent=5 // pred_fallthru
        _
      %p11274 = scmp.le.s32.totalorder 2, %s27
      // Predicated region
      $region165: #{metadata_regressor_forward.1} parent=5 // pred_check
        %p11275 = pneg %p11274
      $region166: #{metadata_regressor_forward.1} parent=5 // pred_check_branch
        %11277 = sbr.rel (%p11275) target = $region168
      $region167: #{metadata_regressor_forward.1} parent=5 // pred_region
        %s11278 = ssub.s32 %s27, 2
      $region168: #{metadata_regressor_forward.1} parent=5 // pred_fallthru
        _
    $region6: #{metadata_regressor_forward.1} parent=1 // loop_footer
      %s31 = sadd.s32 1, %s27
    $region7: #{metadata_regressor_forward.1} parent=1 // loop_footer_branch
      %26 = sbr.rel target = $region3
    $region8: #{metadata_regressor_forward.1} parent=1 // loop_exit
      _
    %11279 = vsyncpa [#allocation5], 1
    %s11280 = scalar_lea.sflag [#allocation5], 1
    %11281 = vsyncpa %s11280, 1
    %11282 = vsyncpa [#allocation7], 1

</llo_original>
